<compile_context>
chip_gen: v6e
topology: v6e:2x2x1
jax: 0.10.0
libtpu: 0.0.40
codegen_flags: <defaults>
</compile_context>

<pallas_src>
import jax
import jax.numpy as jnp
from jax.experimental import pallas as pl
from jax.experimental.pallas import tpu as pltpu

COMPUTE_DTYPE = jnp.bfloat16   # MXU operand dtype (accumulation stays f32)
_APRON = 128                   # zero halo (lanes) each side; must be >= H*W+W+1


def _make_fused_kernel(C_pad, D, H, W, NB):
    DHW = D * H * W
    HW = H * W
    PAD = _APRON

    def kernel(x_ref, w1_ref, b1_ref, w2_ref, b2_ref, alpha_ref, mask_ref,
               o_ref, *scratch):
        pad_refs = scratch[:NB]        # NB x (C_pad, DHW + 2*PAD)  bf16
        patch_refs = scratch[NB:]      # 2  x (9*C_pad, NB*DHW)     bf16
        cdt = pad_refs[0].dtype

        # Zero the halo regions every step.  Scratch persists across grid
        # iterations, but under a "parallel" megacore split a core may never
        # run program_id==0, so a pl.when(pid==0) hoist would be unsafe; this
        # is ~2% of the patch-build store traffic, so keep it unconditional.
        zeros_apron = jnp.zeros((C_pad, PAD), cdt)
        for b in range(NB):
            pad_refs[b][:, 0:PAD] = zeros_apron
            pad_refs[b][:, PAD + DHW:PAD + DHW + PAD] = zeros_apron

        def conv3d(w_ref):
            """3x3x3 conv of the volume currently in pad_refs.

            Returns (C_pad, NB*DHW) f32 (no bias).  Three accumulating
            K = 9*C_pad matmuls (grouped by kd); the two patch slabs
            alternate so matmul(g) can overlap the build of group g+1.
            """
            out = None
            for g in range(3):                          # kd group
                pr = patch_refs[g % 2]
                for t in range(9):                      # (kh, kw) taps
                    kh, kw = t // 3, t % 3
                    off = (g - 1) * HW + (kh - 1) * W + (kw - 1)
                    m = mask_ref[g * 9 + t:g * 9 + t + 1, :]   # (1, DHW) f32 {0,1}
                    for b in range(NB):
                        shifted = pad_refs[b][:, PAD + off:PAD + off + DHW]
                        pr[t * C_pad:(t + 1) * C_pad,
                           b * DHW:(b + 1) * DHW] = (shifted * m).astype(cdt)
                part = jnp.dot(w_ref[g], pr[...],
                               preferred_element_type=jnp.float32)
                out = part if out is None else out + part
            return out

        alpha = alpha_ref[0]

        # conv1: source = x (cast to bf16 only for the MXU operands)
        for b in range(NB):
            pad_refs[b][:, PAD:PAD + DHW] = x_ref[b].astype(cdt)
        y = conv3d(w1_ref) + b1_ref[...]                 # bias in f32
        y = jnp.where(y > 0, y, alpha * y)               # single-param PReLU, f32

        # conv2: source = y
        for b in range(NB):
            pad_refs[b][:, PAD:PAD + DHW] = y[:, b * DHW:(b + 1) * DHW].astype(cdt)
        z = conv3d(w2_ref) + b2_ref[...]

        # *0.1 + residual; re-read x from the VMEM-resident block (cheap)
        # instead of carrying it live through both conv phases.
        for b in range(NB):
            o_ref[b] = (z[:, b * DHW:(b + 1) * DHW] * jnp.float32(0.1)
                        + x_ref[b]).astype(o_ref.dtype)

    return kernel


@jax.jit
def residual_block_3d(x_ncdhw, w1, b1, w2, b2, alpha):
    """x: (N,C,D,H,W);  w1,w2: (C,C,3,3,3) OIDHW;  b1,b2: (C,);  alpha scalar."""
    N, C, D, H, W = x_ncdhw.shape
    DHW = D * H * W
    PAD = _APRON
    assert PAD >= H * W + W + 1, "increase _APRON for these spatial dims"
    # TODO(synk): for large D*H*W, tile the D axis with a 1-plane halo (manual
    # DMA / pl.Element index_map) and mark it "parallel" so both v7x
    # TensorCores stay busy while patch scratch stays bounded per tile.

    cdt = COMPUTE_DTYPE
    sub = 16 if cdt == jnp.bfloat16 else 8
    C_pad = -(-C // sub) * sub                 # pad channels to sublane tile
    NB = 2 if (N % 2 == 0) else 1              # batch elems per grid step
    grid = (N // NB,)

    x_flat = x_ncdhw.reshape(N, C, DHW).astype(jnp.float32)
    x_flat = jnp.pad(x_flat, ((0, 0), (0, C_pad - C), (0, 0)))

    def prep_w(w):
        # OIDHW -> (kd, O, kh, kw, I); zero-pad O/I to C_pad; flatten cols as
        # (kh, kw, I) per kd group to match the patch row order.
        wt = jnp.transpose(w, (2, 0, 3, 4, 1))
        wt = jnp.pad(wt, ((0, 0), (0, C_pad - C), (0, 0), (0, 0), (0, C_pad - C)))
        return wt.reshape(3, C_pad, 9 * C_pad).astype(cdt)

    w1_m, w2_m = prep_w(w1), prep_w(w2)
    b1_v = jnp.pad(b1, (0, C_pad - C)).reshape(C_pad, 1).astype(jnp.float32)
    b2_v = jnp.pad(b2, (0, C_pad - C)).reshape(C_pad, 1).astype(jnp.float32)
    alpha_v = jnp.asarray(alpha, jnp.float32).reshape(1)

    # Grid-invariant boundary masks (27, DHW), computed once in the wrapper.
    p = jnp.arange(DHW, dtype=jnp.int32)
    d_i, h_i, w_i = p // (H * W), (p // W) % H, p % W
    rows = []
    for kd in range(3):
        for kh in range(3):
            for kw in range(3):
                ok = jnp.ones((DHW,), jnp.bool_)
                if kd == 0: ok &= d_i >= 1
                if kd == 2: ok &= d_i <= D - 2
                if kh == 0: ok &= h_i >= 1
                if kh == 2: ok &= h_i <= H - 2
                if kw == 0: ok &= w_i >= 1
                if kw == 2: ok &= w_i <= W - 2
                rows.append(ok)
    mask_arr = jnp.stack(rows).astype(jnp.float32)          # (27, DHW)

    # Explicit scoped-VMEM budget (I/O blocks double-buffered by the pipeline).
    io_blk = NB * C_pad * DHW * 4
    w_bytes = 2 * 3 * C_pad * 9 * C_pad * 2
    m_bytes = 27 * DHW * 4
    pad_bytes = NB * C_pad * (DHW + 2 * PAD) * 2
    patch_bytes = 2 * 9 * C_pad * NB * DHW * 2
    est = 2 * (2 * io_blk) + w_bytes + m_bytes + pad_bytes + patch_bytes
    vmem_limit = int(min(64 << 20, max(32 << 20, 2 * est)))

    out_flat = pl.pallas_call(
        _make_fused_kernel(C_pad, D, H, W, NB),
        out_shape=jax.ShapeDtypeStruct((N, C_pad, DHW), jnp.float32),
        grid_spec=pltpu.PrefetchScalarGridSpec(
            num_scalar_prefetch=0,
            grid=grid,
            in_specs=[
                pl.BlockSpec((NB, C_pad, DHW), lambda n: (n, 0, 0)),       # x
                pl.BlockSpec((3, C_pad, 9 * C_pad), lambda n: (0, 0, 0)),  # w1
                pl.BlockSpec((C_pad, 1), lambda n: (0, 0)),                # b1
                pl.BlockSpec((3, C_pad, 9 * C_pad), lambda n: (0, 0, 0)),  # w2
                pl.BlockSpec((C_pad, 1), lambda n: (0, 0)),                # b2
                pl.BlockSpec(memory_space=pltpu.MemorySpace.SMEM),         # alpha
                pl.BlockSpec((27, DHW), lambda n: (0, 0)),                 # masks
            ],
            out_specs=pl.BlockSpec((NB, C_pad, DHW), lambda n: (n, 0, 0)),
            scratch_shapes=(
                [pltpu.VMEM((C_pad, DHW + 2 * PAD), cdt) for _ in range(NB)]
                + [pltpu.VMEM((9 * C_pad, NB * DHW), cdt) for _ in range(2)]),
        ),
        compiler_params=pltpu.CompilerParams(
            dimension_semantics=("parallel",),
            vmem_limit_bytes=vmem_limit),
    )(x_flat, w1_m, b1_v, w2_m, b2_v, alpha_v, mask_arr)

    return out_flat.reshape(N, C_pad, D, H, W)[:, :C]


# ---------------------------------------------------------------------------
# Pure-JAX reference (mirrors the PyTorch module semantics, f32 HIGHEST)
# ---------------------------------------------------------------------------
def _conv3d_ref(x_ncdhw, w_oidhw, b):
    out = jax.lax.conv_general_dilated(
        x_ncdhw, w_oidhw,
        window_strides=(1, 1, 1),
        padding=((1, 1), (1, 1), (1, 1)),
        dimension_numbers=("NCDHW", "OIDHW", "NCDHW"),
        precision=jax.lax.Precision.HIGHEST)
    return out + b[None, :, None, None, None]


def residual_block_3d_ref(x, w1, b1, w2, b2, alpha):
    o = _conv3d_ref(x, w1, b1)
    o = jnp.where(o > 0, o, alpha * o)          # single-parameter PReLU
    o = _conv3d_ref(o, w2, b2) * 0.1
    return o + x


# ---------------------------------------------------------------------------
# Main
# ---------------------------------------------------------------------------
if __name__ == "__main__":
    key = jax.random.PRNGKey(0)
    k_x, k_w1, k_b1, k_w2, k_b2 = jax.random.split(key, 5)

    N, C, D, H, W = 2, 8, 4, 8, 8                 # small NCDHW shapes
    x = jax.random.normal(k_x, (N, C, D, H, W), jnp.float32)

    # Deterministic parameter init (shapes from nn.Conv3d(C, C, (3,3,3)))
    fan_in = C * 27
    w_scale = 1.0 / jnp.sqrt(fan_in)
    w1 = jax.random.uniform(k_w1, (C, C, 3, 3, 3), jnp.float32, -w_scale, w_scale)
    b1 = jax.random.uniform(k_b1, (C,), jnp.float32, -w_scale, w_scale)
    w2 = jax.random.uniform(k_w2, (C, C, 3, 3, 3), jnp.float32, -w_scale, w_scale)
    b2 = jax.random.uniform(k_b2, (C,), jnp.float32, -w_scale, w_scale)
    alpha = jnp.float32(0.25)                     # nn.PReLU() default init

    out = jax.block_until_ready(residual_block_3d(x, w1, b1, w2, b2, alpha))

    ref = residual_block_3d_ref(x, w1, b1, w2, b2, alpha)
    assert out.shape == (N, C, D, H, W)
    max_err = jnp.max(jnp.abs(out - ref))
    # bf16 MXU operands with f32 accumulation (per perf review): residual /
    # bias / PReLU stay exact f32, only the conv matmul operands are rounded,
    # and the second conv is scaled by 0.1 -> a few-e-3 worst-case deviation.
    assert jnp.allclose(out, ref, atol=2e-2, rtol=2e-2), (
        f"max abs diff {max_err}")

    print("KERNEL_OK")
</pallas_src>

<mosaic_0001>
module attributes {stable_mosaic.version = 11 : i64} {
  func.func @kernel(%arg0: i32, %arg1: memref<2x16x256xf32, #tpu.memory_space<vmem>>, %arg2: memref<3x16x144xbf16, #tpu.memory_space<vmem>>, %arg3: memref<16x1xf32, #tpu.memory_space<vmem>>, %arg4: memref<3x16x144xbf16, #tpu.memory_space<vmem>>, %arg5: memref<16x1xf32, #tpu.memory_space<vmem>>, %arg6: memref<1xf32, #tpu.memory_space<smem>>, %arg7: memref<27x256xf32, #tpu.memory_space<vmem>>, %arg8: memref<2x16x256xf32, #tpu.memory_space<vmem>>, %arg9: memref<16x512xbf16, #tpu.memory_space<vmem>>, %arg10: memref<16x512xbf16, #tpu.memory_space<vmem>>, %arg11: memref<144x512xbf16, #tpu.memory_space<vmem>>, %arg12: memref<144x512xbf16, #tpu.memory_space<vmem>>) attributes {dimension_semantics = [#tpu.dimension_semantics<parallel>], iteration_bounds = array<i64: 1>, scalar_prefetch = 0 : i64, scratch_operands = 4 : i64, tpu.core_type = #tpu.core_type<tc>, window_params = [{transform_indices = @transform_0, window_bounds = array<i64: 2, 16, 256>}, {pipeline_mode = #tpu.pipeline_mode<synchronous>, transform_indices = @transform_1, window_bounds = array<i64: 3, 16, 144>}, {pipeline_mode = #tpu.pipeline_mode<synchronous>, transform_indices = @transform_2, window_bounds = array<i64: 16, 1>}, {pipeline_mode = #tpu.pipeline_mode<synchronous>, transform_indices = @transform_3, window_bounds = array<i64: 3, 16, 144>}, {pipeline_mode = #tpu.pipeline_mode<synchronous>, transform_indices = @transform_4, window_bounds = array<i64: 16, 1>}, {transform_indices = @transform_5, window_bounds = array<i64: 1>}, {pipeline_mode = #tpu.pipeline_mode<synchronous>, transform_indices = @transform_6, window_bounds = array<i64: 27, 256>}, {transform_indices = @transform_7, window_bounds = array<i64: 2, 16, 256>}]} {
    %cst = arith.constant 0.000000e+00 : bf16
    %0 = vector.broadcast %cst : bf16 to vector<16x128xbf16>
    %c0 = arith.constant 0 : index
    %c0_0 = arith.constant 0 : index
    %1 = vector.load %arg9[%c0, %c0_0] : memref<16x512xbf16, #tpu.memory_space<vmem>>, vector<16x128xbf16>
    tpu.vector_store %arg9[%c0, %c0_0], %0 {strides = array<i32>} : memref<16x512xbf16, #tpu.memory_space<vmem>>, vector<16x128xbf16>,
    %c0_1 = arith.constant 0 : index
    %c384 = arith.constant 384 : index
    %2 = vector.load %arg9[%c0_1, %c384] : memref<16x512xbf16, #tpu.memory_space<vmem>>, vector<16x128xbf16>
    tpu.vector_store %arg9[%c0_1, %c384], %0 {strides = array<i32>} : memref<16x512xbf16, #tpu.memory_space<vmem>>, vector<16x128xbf16>,
    %c0_2 = arith.constant 0 : index
    %c0_3 = arith.constant 0 : index
    %3 = vector.load %arg10[%c0_2, %c0_3] : memref<16x512xbf16, #tpu.memory_space<vmem>>, vector<16x128xbf16>
    tpu.vector_store %arg10[%c0_2, %c0_3], %0 {strides = array<i32>} : memref<16x512xbf16, #tpu.memory_space<vmem>>, vector<16x128xbf16>,
    %c0_4 = arith.constant 0 : index
    %c384_5 = arith.constant 384 : index
    %4 = vector.load %arg10[%c0_4, %c384_5] : memref<16x512xbf16, #tpu.memory_space<vmem>>, vector<16x128xbf16>
    tpu.vector_store %arg10[%c0_4, %c384_5], %0 {strides = array<i32>} : memref<16x512xbf16, #tpu.memory_space<vmem>>, vector<16x128xbf16>,
    %c0_6 = arith.constant 0 : index
    %5 = memref.load %arg6[%c0_6] : memref<1xf32, #tpu.memory_space<smem>>
    %c0_7 = arith.constant 0 : index
    %c0_8 = arith.constant 0 : index
    %c0_9 = arith.constant 0 : index
    %6 = vector.load %arg1[%c0_7, %c0_8, %c0_9] : memref<2x16x256xf32, #tpu.memory_space<vmem>>, vector<1x16x256xf32>
    %7 = vector.shape_cast %6 : vector<1x16x256xf32> to vector<16x256xf32>
    %8 = arith.truncf %7 : vector<16x256xf32> to vector<16x256xbf16>
    %c0_10 = arith.constant 0 : index
    %c128 = arith.constant 128 : index
    %9 = vector.load %arg9[%c0_10, %c128] : memref<16x512xbf16, #tpu.memory_space<vmem>>, vector<16x256xbf16>
    tpu.vector_store %arg9[%c0_10, %c128], %8 {strides = array<i32>} : memref<16x512xbf16, #tpu.memory_space<vmem>>, vector<16x256xbf16>,
    %c1 = arith.constant 1 : index
    %c0_11 = arith.constant 0 : index
    %c0_12 = arith.constant 0 : index
    %10 = vector.load %arg1[%c1, %c0_11, %c0_12] : memref<2x16x256xf32, #tpu.memory_space<vmem>>, vector<1x16x256xf32>
    %11 = vector.shape_cast %10 : vector<1x16x256xf32> to vector<16x256xf32>
    %12 = arith.truncf %11 : vector<16x256xf32> to vector<16x256xbf16>
    %c0_13 = arith.constant 0 : index
    %c128_14 = arith.constant 128 : index
    %13 = vector.load %arg10[%c0_13, %c128_14] : memref<16x512xbf16, #tpu.memory_space<vmem>>, vector<16x256xbf16>
    tpu.vector_store %arg10[%c0_13, %c128_14], %12 {strides = array<i32>} : memref<16x512xbf16, #tpu.memory_space<vmem>>, vector<16x256xbf16>,
    %c0_15 = arith.constant 0 : index
    %c0_16 = arith.constant 0 : index
    %14 = vector.load %arg7[%c0_15, %c0_16] : memref<27x256xf32, #tpu.memory_space<vmem>>, vector<1x256xf32>
    %c0_17 = arith.constant 0 : index
    %c55 = arith.constant 55 : index
    %15 = vector.load %arg9[%c0_17, %c55] : memref<16x512xbf16, #tpu.memory_space<vmem>>, vector<16x256xbf16>
    %16 = arith.extf %15 : vector<16x256xbf16> to vector<16x256xf32>
    %17 = vector.broadcast %14 : vector<1x256xf32> to vector<16x256xf32>
    %18 = arith.mulf %16, %17 : vector<16x256xf32>
    %19 = arith.truncf %18 : vector<16x256xf32> to vector<16x256xbf16>
    %c0_18 = arith.constant 0 : index
    %c0_19 = arith.constant 0 : index
    %20 = vector.load %arg11[%c0_18, %c0_19] : memref<144x512xbf16, #tpu.memory_space<vmem>>, vector<16x256xbf16>
    tpu.vector_store %arg11[%c0_18, %c0_19], %19 {strides = array<i32>} : memref<144x512xbf16, #tpu.memory_space<vmem>>, vector<16x256xbf16>,
    %c0_20 = arith.constant 0 : index
    %c55_21 = arith.constant 55 : index
    %21 = vector.load %arg10[%c0_20, %c55_21] : memref<16x512xbf16, #tpu.memory_space<vmem>>, vector<16x256xbf16>
    %22 = arith.extf %21 : vector<16x256xbf16> to vector<16x256xf32>
    %23 = vector.broadcast %14 : vector<1x256xf32> to vector<16x256xf32>
    %24 = arith.mulf %22, %23 : vector<16x256xf32>
    %25 = arith.truncf %24 : vector<16x256xf32> to vector<16x256xbf16>
    %c0_22 = arith.constant 0 : index
    %c256 = arith.constant 256 : index
    %26 = vector.load %arg11[%c0_22, %c256] : memref<144x512xbf16, #tpu.memory_space<vmem>>, vector<16x256xbf16>
    tpu.vector_store %arg11[%c0_22, %c256], %25 {strides = array<i32>} : memref<144x512xbf16, #tpu.memory_space<vmem>>, vector<16x256xbf16>,
    %c1_23 = arith.constant 1 : index
    %c0_24 = arith.constant 0 : index
    %27 = vector.load %arg7[%c1_23, %c0_24] : memref<27x256xf32, #tpu.memory_space<vmem>>, vector<1x256xf32>
    %c0_25 = arith.constant 0 : index
    %c56 = arith.constant 56 : index
    %28 = vector.load %arg9[%c0_25, %c56] : memref<16x512xbf16, #tpu.memory_space<vmem>>, vector<16x256xbf16>
    %29 = arith.extf %28 : vector<16x256xbf16> to vector<16x256xf32>
    %30 = vector.broadcast %27 : vector<1x256xf32> to vector<16x256xf32>
    %31 = arith.mulf %29, %30 : vector<16x256xf32>
    %32 = arith.truncf %31 : vector<16x256xf32> to vector<16x256xbf16>
    %c16 = arith.constant 16 : index
    %c0_26 = arith.constant 0 : index
    %33 = vector.load %arg11[%c16, %c0_26] : memref<144x512xbf16, #tpu.memory_space<vmem>>, vector<16x256xbf16>
    tpu.vector_store %arg11[%c16, %c0_26], %32 {strides = array<i32>} : memref<144x512xbf16, #tpu.memory_space<vmem>>, vector<16x256xbf16>,
    %c0_27 = arith.constant 0 : index
    %c56_28 = arith.constant 56 : index
    %34 = vector.load %arg10[%c0_27, %c56_28] : memref<16x512xbf16, #tpu.memory_space<vmem>>, vector<16x256xbf16>
    %35 = arith.extf %34 : vector<16x256xbf16> to vector<16x256xf32>
    %36 = vector.broadcast %27 : vector<1x256xf32> to vector<16x256xf32>
    %37 = arith.mulf %35, %36 : vector<16x256xf32>
    %38 = arith.truncf %37 : vector<16x256xf32> to vector<16x256xbf16>
    %c16_29 = arith.constant 16 : index
    %c256_30 = arith.constant 256 : index
    %39 = vector.load %arg11[%c16_29, %c256_30] : memref<144x512xbf16, #tpu.memory_space<vmem>>, vector<16x256xbf16>
    tpu.vector_store %arg11[%c16_29, %c256_30], %38 {strides = array<i32>} : memref<144x512xbf16, #tpu.memory_space<vmem>>, vector<16x256xbf16>,
    %c2 = arith.constant 2 : index
    %c0_31 = arith.constant 0 : index
    %40 = vector.load %arg7[%c2, %c0_31] : memref<27x256xf32, #tpu.memory_space<vmem>>, vector<1x256xf32>
    %c0_32 = arith.constant 0 : index
    %c57 = arith.constant 57 : index
    %41 = vector.load %arg9[%c0_32, %c57] : memref<16x512xbf16, #tpu.memory_space<vmem>>, vector<16x256xbf16>
    %42 = arith.extf %41 : vector<16x256xbf16> to vector<16x256xf32>
    %43 = vector.broadcast %40 : vector<1x256xf32> to vector<16x256xf32>
    %44 = arith.mulf %42, %43 : vector<16x256xf32>
    %45 = arith.truncf %44 : vector<16x256xf32> to vector<16x256xbf16>
    %c32 = arith.constant 32 : index
    %c0_33 = arith.constant 0 : index
    %46 = vector.load %arg11[%c32, %c0_33] : memref<144x512xbf16, #tpu.memory_space<vmem>>, vector<16x256xbf16>
    tpu.vector_store %arg11[%c32, %c0_33], %45 {strides = array<i32>} : memref<144x512xbf16, #tpu.memory_space<vmem>>, vector<16x256xbf16>,
    %c0_34 = arith.constant 0 : index
    %c57_35 = arith.constant 57 : index
    %47 = vector.load %arg10[%c0_34, %c57_35] : memref<16x512xbf16, #tpu.memory_space<vmem>>, vector<16x256xbf16>
    %48 = arith.extf %47 : vector<16x256xbf16> to vector<16x256xf32>
    %49 = vector.broadcast %40 : vector<1x256xf32> to vector<16x256xf32>
    %50 = arith.mulf %48, %49 : vector<16x256xf32>
    %51 = arith.truncf %50 : vector<16x256xf32> to vector<16x256xbf16>
    %c32_36 = arith.constant 32 : index
    %c256_37 = arith.constant 256 : index
    %52 = vector.load %arg11[%c32_36, %c256_37] : memref<144x512xbf16, #tpu.memory_space<vmem>>, vector<16x256xbf16>
    tpu.vector_store %arg11[%c32_36, %c256_37], %51 {strides = array<i32>} : memref<144x512xbf16, #tpu.memory_space<vmem>>, vector<16x256xbf16>,
    %c3 = arith.constant 3 : index
    %c0_38 = arith.constant 0 : index
    %53 = vector.load %arg7[%c3, %c0_38] : memref<27x256xf32, #tpu.memory_space<vmem>>, vector<1x256xf32>
    %c0_39 = arith.constant 0 : index
    %c63 = arith.constant 63 : index
    %54 = vector.load %arg9[%c0_39, %c63] : memref<16x512xbf16, #tpu.memory_space<vmem>>, vector<16x256xbf16>
    %55 = arith.extf %54 : vector<16x256xbf16> to vector<16x256xf32>
    %56 = vector.broadcast %53 : vector<1x256xf32> to vector<16x256xf32>
    %57 = arith.mulf %55, %56 : vector<16x256xf32>
    %58 = arith.truncf %57 : vector<16x256xf32> to vector<16x256xbf16>
    %c48 = arith.constant 48 : index
    %c0_40 = arith.constant 0 : index
    %59 = vector.load %arg11[%c48, %c0_40] : memref<144x512xbf16, #tpu.memory_space<vmem>>, vector<16x256xbf16>
    tpu.vector_store %arg11[%c48, %c0_40], %58 {strides = array<i32>} : memref<144x512xbf16, #tpu.memory_space<vmem>>, vector<16x256xbf16>,
    %c0_41 = arith.constant 0 : index
    %c63_42 = arith.constant 63 : index
    %60 = vector.load %arg10[%c0_41, %c63_42] : memref<16x512xbf16, #tpu.memory_space<vmem>>, vector<16x256xbf16>
    %61 = arith.extf %60 : vector<16x256xbf16> to vector<16x256xf32>
    %62 = vector.broadcast %53 : vector<1x256xf32> to vector<16x256xf32>
    %63 = arith.mulf %61, %62 : vector<16x256xf32>
    %64 = arith.truncf %63 : vector<16x256xf32> to vector<16x256xbf16>
    %c48_43 = arith.constant 48 : index
    %c256_44 = arith.constant 256 : index
    %65 = vector.load %arg11[%c48_43, %c256_44] : memref<144x512xbf16, #tpu.memory_space<vmem>>, vector<16x256xbf16>
    tpu.vector_store %arg11[%c48_43, %c256_44], %64 {strides = array<i32>} : memref<144x512xbf16, #tpu.memory_space<vmem>>, vector<16x256xbf16>,
    %c4 = arith.constant 4 : index
    %c0_45 = arith.constant 0 : index
    %66 = vector.load %arg7[%c4, %c0_45] : memref<27x256xf32, #tpu.memory_space<vmem>>, vector<1x256xf32>
    %c0_46 = arith.constant 0 : index
    %c64 = arith.constant 64 : index
    %67 = vector.load %arg9[%c0_46, %c64] : memref<16x512xbf16, #tpu.memory_space<vmem>>, vector<16x256xbf16>
    %68 = arith.extf %67 : vector<16x256xbf16> to vector<16x256xf32>
    %69 = vector.broadcast %66 : vector<1x256xf32> to vector<16x256xf32>
    %70 = arith.mulf %68, %69 : vector<16x256xf32>
    %71 = arith.truncf %70 : vector<16x256xf32> to vector<16x256xbf16>
    %c64_47 = arith.constant 64 : index
    %c0_48 = arith.constant 0 : index
    %72 = vector.load %arg11[%c64_47, %c0_48] : memref<144x512xbf16, #tpu.memory_space<vmem>>, vector<16x256xbf16>
    tpu.vector_store %arg11[%c64_47, %c0_48], %71 {strides = array<i32>} : memref<144x512xbf16, #tpu.memory_space<vmem>>, vector<16x256xbf16>,
    %c0_49 = arith.constant 0 : index
    %c64_50 = arith.constant 64 : index
    %73 = vector.load %arg10[%c0_49, %c64_50] : memref<16x512xbf16, #tpu.memory_space<vmem>>, vector<16x256xbf16>
    %74 = arith.extf %73 : vector<16x256xbf16> to vector<16x256xf32>
    %75 = vector.broadcast %66 : vector<1x256xf32> to vector<16x256xf32>
    %76 = arith.mulf %74, %75 : vector<16x256xf32>
    %77 = arith.truncf %76 : vector<16x256xf32> to vector<16x256xbf16>
    %c64_51 = arith.constant 64 : index
    %c256_52 = arith.constant 256 : index
    %78 = vector.load %arg11[%c64_51, %c256_52] : memref<144x512xbf16, #tpu.memory_space<vmem>>, vector<16x256xbf16>
    tpu.vector_store %arg11[%c64_51, %c256_52], %77 {strides = array<i32>} : memref<144x512xbf16, #tpu.memory_space<vmem>>, vector<16x256xbf16>,
    %c5 = arith.constant 5 : index
    %c0_53 = arith.constant 0 : index
    %79 = vector.load %arg7[%c5, %c0_53] : memref<27x256xf32, #tpu.memory_space<vmem>>, vector<1x256xf32>
    %c0_54 = arith.constant 0 : index
    %c65 = arith.constant 65 : index
    %80 = vector.load %arg9[%c0_54, %c65] : memref<16x512xbf16, #tpu.memory_space<vmem>>, vector<16x256xbf16>
    %81 = arith.extf %80 : vector<16x256xbf16> to vector<16x256xf32>
    %82 = vector.broadcast %79 : vector<1x256xf32> to vector<16x256xf32>
    %83 = arith.mulf %81, %82 : vector<16x256xf32>
    %84 = arith.truncf %83 : vector<16x256xf32> to vector<16x256xbf16>
    %c80 = arith.constant 80 : index
    %c0_55 = arith.constant 0 : index
    %85 = vector.load %arg11[%c80, %c0_55] : memref<144x512xbf16, #tpu.memory_space<vmem>>, vector<16x256xbf16>
    tpu.vector_store %arg11[%c80, %c0_55], %84 {strides = array<i32>} : memref<144x512xbf16, #tpu.memory_space<vmem>>, vector<16x256xbf16>,
    %c0_56 = arith.constant 0 : index
    %c65_57 = arith.constant 65 : index
    %86 = vector.load %arg10[%c0_56, %c65_57] : memref<16x512xbf16, #tpu.memory_space<vmem>>, vector<16x256xbf16>
    %87 = arith.extf %86 : vector<16x256xbf16> to vector<16x256xf32>
    %88 = vector.broadcast %79 : vector<1x256xf32> to vector<16x256xf32>
    %89 = arith.mulf %87, %88 : vector<16x256xf32>
    %90 = arith.truncf %89 : vector<16x256xf32> to vector<16x256xbf16>
    %c80_58 = arith.constant 80 : index
    %c256_59 = arith.constant 256 : index
    %91 = vector.load %arg11[%c80_58, %c256_59] : memref<144x512xbf16, #tpu.memory_space<vmem>>, vector<16x256xbf16>
    tpu.vector_store %arg11[%c80_58, %c256_59], %90 {strides = array<i32>} : memref<144x512xbf16, #tpu.memory_space<vmem>>, vector<16x256xbf16>,
    %c6 = arith.constant 6 : index
    %c0_60 = arith.constant 0 : index
    %92 = vector.load %arg7[%c6, %c0_60] : memref<27x256xf32, #tpu.memory_space<vmem>>, vector<1x256xf32>
    %c0_61 = arith.constant 0 : index
    %c71 = arith.constant 71 : index
    %93 = vector.load %arg9[%c0_61, %c71] : memref<16x512xbf16, #tpu.memory_space<vmem>>, vector<16x256xbf16>
    %94 = arith.extf %93 : vector<16x256xbf16> to vector<16x256xf32>
    %95 = vector.broadcast %92 : vector<1x256xf32> to vector<16x256xf32>
    %96 = arith.mulf %94, %95 : vector<16x256xf32>
    %97 = arith.truncf %96 : vector<16x256xf32> to vector<16x256xbf16>
    %c96 = arith.constant 96 : index
    %c0_62 = arith.constant 0 : index
    %98 = vector.load %arg11[%c96, %c0_62] : memref<144x512xbf16, #tpu.memory_space<vmem>>, vector<16x256xbf16>
    tpu.vector_store %arg11[%c96, %c0_62], %97 {strides = array<i32>} : memref<144x512xbf16, #tpu.memory_space<vmem>>, vector<16x256xbf16>,
    %c0_63 = arith.constant 0 : index
    %c71_64 = arith.constant 71 : index
    %99 = vector.load %arg10[%c0_63, %c71_64] : memref<16x512xbf16, #tpu.memory_space<vmem>>, vector<16x256xbf16>
    %100 = arith.extf %99 : vector<16x256xbf16> to vector<16x256xf32>
    %101 = vector.broadcast %92 : vector<1x256xf32> to vector<16x256xf32>
    %102 = arith.mulf %100, %101 : vector<16x256xf32>
    %103 = arith.truncf %102 : vector<16x256xf32> to vector<16x256xbf16>
    %c96_65 = arith.constant 96 : index
    %c256_66 = arith.constant 256 : index
    %104 = vector.load %arg11[%c96_65, %c256_66] : memref<144x512xbf16, #tpu.memory_space<vmem>>, vector<16x256xbf16>
    tpu.vector_store %arg11[%c96_65, %c256_66], %103 {strides = array<i32>} : memref<144x512xbf16, #tpu.memory_space<vmem>>, vector<16x256xbf16>,
    %c7 = arith.constant 7 : index
    %c0_67 = arith.constant 0 : index
    %105 = vector.load %arg7[%c7, %c0_67] : memref<27x256xf32, #tpu.memory_space<vmem>>, vector<1x256xf32>
    %c0_68 = arith.constant 0 : index
    %c72 = arith.constant 72 : index
    %106 = vector.load %arg9[%c0_68, %c72] : memref<16x512xbf16, #tpu.memory_space<vmem>>, vector<16x256xbf16>
    %107 = arith.extf %106 : vector<16x256xbf16> to vector<16x256xf32>
    %108 = vector.broadcast %105 : vector<1x256xf32> to vector<16x256xf32>
    %109 = arith.mulf %107, %108 : vector<16x256xf32>
    %110 = arith.truncf %109 : vector<16x256xf32> to vector<16x256xbf16>
    %c112 = arith.constant 112 : index
    %c0_69 = arith.constant 0 : index
    %111 = vector.load %arg11[%c112, %c0_69] : memref<144x512xbf16, #tpu.memory_space<vmem>>, vector<16x256xbf16>
    tpu.vector_store %arg11[%c112, %c0_69], %110 {strides = array<i32>} : memref<144x512xbf16, #tpu.memory_space<vmem>>, vector<16x256xbf16>,
    %c0_70 = arith.constant 0 : index
    %c72_71 = arith.constant 72 : index
    %112 = vector.load %arg10[%c0_70, %c72_71] : memref<16x512xbf16, #tpu.memory_space<vmem>>, vector<16x256xbf16>
    %113 = arith.extf %112 : vector<16x256xbf16> to vector<16x256xf32>
    %114 = vector.broadcast %105 : vector<1x256xf32> to vector<16x256xf32>
    %115 = arith.mulf %113, %114 : vector<16x256xf32>
    %116 = arith.truncf %115 : vector<16x256xf32> to vector<16x256xbf16>
    %c112_72 = arith.constant 112 : index
    %c256_73 = arith.constant 256 : index
    %117 = vector.load %arg11[%c112_72, %c256_73] : memref<144x512xbf16, #tpu.memory_space<vmem>>, vector<16x256xbf16>
    tpu.vector_store %arg11[%c112_72, %c256_73], %116 {strides = array<i32>} : memref<144x512xbf16, #tpu.memory_space<vmem>>, vector<16x256xbf16>,
    %c8 = arith.constant 8 : index
    %c0_74 = arith.constant 0 : index
    %118 = vector.load %arg7[%c8, %c0_74] : memref<27x256xf32, #tpu.memory_space<vmem>>, vector<1x256xf32>
    %c0_75 = arith.constant 0 : index
    %c73 = arith.constant 73 : index
    %119 = vector.load %arg9[%c0_75, %c73] : memref<16x512xbf16, #tpu.memory_space<vmem>>, vector<16x256xbf16>
    %120 = arith.extf %119 : vector<16x256xbf16> to vector<16x256xf32>
    %121 = vector.broadcast %118 : vector<1x256xf32> to vector<16x256xf32>
    %122 = arith.mulf %120, %121 : vector<16x256xf32>
    %123 = arith.truncf %122 : vector<16x256xf32> to vector<16x256xbf16>
    %c128_76 = arith.constant 128 : index
    %c0_77 = arith.constant 0 : index
    %124 = vector.load %arg11[%c128_76, %c0_77] : memref<144x512xbf16, #tpu.memory_space<vmem>>, vector<16x256xbf16>
    tpu.vector_store %arg11[%c128_76, %c0_77], %123 {strides = array<i32>} : memref<144x512xbf16, #tpu.memory_space<vmem>>, vector<16x256xbf16>,
    %c0_78 = arith.constant 0 : index
    %c73_79 = arith.constant 73 : index
    %125 = vector.load %arg10[%c0_78, %c73_79] : memref<16x512xbf16, #tpu.memory_space<vmem>>, vector<16x256xbf16>
    %126 = arith.extf %125 : vector<16x256xbf16> to vector<16x256xf32>
    %127 = vector.broadcast %118 : vector<1x256xf32> to vector<16x256xf32>
    %128 = arith.mulf %126, %127 : vector<16x256xf32>
    %129 = arith.truncf %128 : vector<16x256xf32> to vector<16x256xbf16>
    %c128_80 = arith.constant 128 : index
    %c256_81 = arith.constant 256 : index
    %130 = vector.load %arg11[%c128_80, %c256_81] : memref<144x512xbf16, #tpu.memory_space<vmem>>, vector<16x256xbf16>
    tpu.vector_store %arg11[%c128_80, %c256_81], %129 {strides = array<i32>} : memref<144x512xbf16, #tpu.memory_space<vmem>>, vector<16x256xbf16>,
    %c0_82 = arith.constant 0 : index
    %c0_83 = arith.constant 0 : index
    %c0_84 = arith.constant 0 : index
    %131 = vector.load %arg2[%c0_82, %c0_83, %c0_84] : memref<3x16x144xbf16, #tpu.memory_space<vmem>>, vector<1x16x144xbf16>
    %132 = vector.shape_cast %131 : vector<1x16x144xbf16> to vector<16x144xbf16>
    %c0_85 = arith.constant 0 : index
    %c0_86 = arith.constant 0 : index
    %133 = vector.load %arg11[%c0_85, %c0_86] : memref<144x512xbf16, #tpu.memory_space<vmem>>, vector<144x512xbf16>
    %cst_87 = arith.constant dense<0.000000e+00> : vector<16x512xf32>
    %134 = tpu.matmul %132, %133, %cst_87 {dimension_numbers = #tpu.dot_dimension_numbers<[1], [0], [0], [1], [0, 0, 1, 1], [], []>} : vector<16x144xbf16>, vector<144x512xbf16>, vector<16x512xf32> -> vector<16x512xf32>
    %c9 = arith.constant 9 : index
    %c0_88 = arith.constant 0 : index
    %135 = vector.load %arg7[%c9, %c0_88] : memref<27x256xf32, #tpu.memory_space<vmem>>, vector<1x256xf32>
    %c0_89 = arith.constant 0 : index
    %c119 = arith.constant 119 : index
    %136 = vector.load %arg9[%c0_89, %c119] : memref<16x512xbf16, #tpu.memory_space<vmem>>, vector<16x256xbf16>
    %137 = arith.extf %136 : vector<16x256xbf16> to vector<16x256xf32>
    %138 = vector.broadcast %135 : vector<1x256xf32> to vector<16x256xf32>
    %139 = arith.mulf %137, %138 : vector<16x256xf32>
    %140 = arith.truncf %139 : vector<16x256xf32> to vector<16x256xbf16>
    %c0_90 = arith.constant 0 : index
    %c0_91 = arith.constant 0 : index
    %141 = vector.load %arg12[%c0_90, %c0_91] : memref<144x512xbf16, #tpu.memory_space<vmem>>, vector<16x256xbf16>
    tpu.vector_store %arg12[%c0_90, %c0_91], %140 {strides = array<i32>} : memref<144x512xbf16, #tpu.memory_space<vmem>>, vector<16x256xbf16>,
    %c0_92 = arith.constant 0 : index
    %c119_93 = arith.constant 119 : index
    %142 = vector.load %arg10[%c0_92, %c119_93] : memref<16x512xbf16, #tpu.memory_space<vmem>>, vector<16x256xbf16>
    %143 = arith.extf %142 : vector<16x256xbf16> to vector<16x256xf32>
    %144 = vector.broadcast %135 : vector<1x256xf32> to vector<16x256xf32>
    %145 = arith.mulf %143, %144 : vector<16x256xf32>
    %146 = arith.truncf %145 : vector<16x256xf32> to vector<16x256xbf16>
    %c0_94 = arith.constant 0 : index
    %c256_95 = arith.constant 256 : index
    %147 = vector.load %arg12[%c0_94, %c256_95] : memref<144x512xbf16, #tpu.memory_space<vmem>>, vector<16x256xbf16>
    tpu.vector_store %arg12[%c0_94, %c256_95], %146 {strides = array<i32>} : memref<144x512xbf16, #tpu.memory_space<vmem>>, vector<16x256xbf16>,
    %c10 = arith.constant 10 : index
    %c0_96 = arith.constant 0 : index
    %148 = vector.load %arg7[%c10, %c0_96] : memref<27x256xf32, #tpu.memory_space<vmem>>, vector<1x256xf32>
    %c0_97 = arith.constant 0 : index
    %c120 = arith.constant 120 : index
    %149 = vector.load %arg9[%c0_97, %c120] : memref<16x512xbf16, #tpu.memory_space<vmem>>, vector<16x256xbf16>
    %150 = arith.extf %149 : vector<16x256xbf16> to vector<16x256xf32>
    %151 = vector.broadcast %148 : vector<1x256xf32> to vector<16x256xf32>
    %152 = arith.mulf %150, %151 : vector<16x256xf32>
    %153 = arith.truncf %152 : vector<16x256xf32> to vector<16x256xbf16>
    %c16_98 = arith.constant 16 : index
    %c0_99 = arith.constant 0 : index
    %154 = vector.load %arg12[%c16_98, %c0_99] : memref<144x512xbf16, #tpu.memory_space<vmem>>, vector<16x256xbf16>
    tpu.vector_store %arg12[%c16_98, %c0_99], %153 {strides = array<i32>} : memref<144x512xbf16, #tpu.memory_space<vmem>>, vector<16x256xbf16>,
    %c0_100 = arith.constant 0 : index
    %c120_101 = arith.constant 120 : index
    %155 = vector.load %arg10[%c0_100, %c120_101] : memref<16x512xbf16, #tpu.memory_space<vmem>>, vector<16x256xbf16>
    %156 = arith.extf %155 : vector<16x256xbf16> to vector<16x256xf32>
    %157 = vector.broadcast %148 : vector<1x256xf32> to vector<16x256xf32>
    %158 = arith.mulf %156, %157 : vector<16x256xf32>
    %159 = arith.truncf %158 : vector<16x256xf32> to vector<16x256xbf16>
    %c16_102 = arith.constant 16 : index
    %c256_103 = arith.constant 256 : index
    %160 = vector.load %arg12[%c16_102, %c256_103] : memref<144x512xbf16, #tpu.memory_space<vmem>>, vector<16x256xbf16>
    tpu.vector_store %arg12[%c16_102, %c256_103], %159 {strides = array<i32>} : memref<144x512xbf16, #tpu.memory_space<vmem>>, vector<16x256xbf16>,
    %c11 = arith.constant 11 : index
    %c0_104 = arith.constant 0 : index
    %161 = vector.load %arg7[%c11, %c0_104] : memref<27x256xf32, #tpu.memory_space<vmem>>, vector<1x256xf32>
    %c0_105 = arith.constant 0 : index
    %c121 = arith.constant 121 : index
    %162 = vector.load %arg9[%c0_105, %c121] : memref<16x512xbf16, #tpu.memory_space<vmem>>, vector<16x256xbf16>
    %163 = arith.extf %162 : vector<16x256xbf16> to vector<16x256xf32>
    %164 = vector.broadcast %161 : vector<1x256xf32> to vector<16x256xf32>
    %165 = arith.mulf %163, %164 : vector<16x256xf32>
    %166 = arith.truncf %165 : vector<16x256xf32> to vector<16x256xbf16>
    %c32_106 = arith.constant 32 : index
    %c0_107 = arith.constant 0 : index
    %167 = vector.load %arg12[%c32_106, %c0_107] : memref<144x512xbf16, #tpu.memory_space<vmem>>, vector<16x256xbf16>
    tpu.vector_store %arg12[%c32_106, %c0_107], %166 {strides = array<i32>} : memref<144x512xbf16, #tpu.memory_space<vmem>>, vector<16x256xbf16>,
    %c0_108 = arith.constant 0 : index
    %c121_109 = arith.constant 121 : index
    %168 = vector.load %arg10[%c0_108, %c121_109] : memref<16x512xbf16, #tpu.memory_space<vmem>>, vector<16x256xbf16>
    %169 = arith.extf %168 : vector<16x256xbf16> to vector<16x256xf32>
    %170 = vector.broadcast %161 : vector<1x256xf32> to vector<16x256xf32>
    %171 = arith.mulf %169, %170 : vector<16x256xf32>
    %172 = arith.truncf %171 : vector<16x256xf32> to vector<16x256xbf16>
    %c32_110 = arith.constant 32 : index
    %c256_111 = arith.constant 256 : index
    %173 = vector.load %arg12[%c32_110, %c256_111] : memref<144x512xbf16, #tpu.memory_space<vmem>>, vector<16x256xbf16>
    tpu.vector_store %arg12[%c32_110, %c256_111], %172 {strides = array<i32>} : memref<144x512xbf16, #tpu.memory_space<vmem>>, vector<16x256xbf16>,
    %c12 = arith.constant 12 : index
    %c0_112 = arith.constant 0 : index
    %174 = vector.load %arg7[%c12, %c0_112] : memref<27x256xf32, #tpu.memory_space<vmem>>, vector<1x256xf32>
    %c0_113 = arith.constant 0 : index
    %c127 = arith.constant 127 : index
    %175 = vector.load %arg9[%c0_113, %c127] : memref<16x512xbf16, #tpu.memory_space<vmem>>, vector<16x256xbf16>
    %176 = arith.extf %175 : vector<16x256xbf16> to vector<16x256xf32>
    %177 = vector.broadcast %174 : vector<1x256xf32> to vector<16x256xf32>
    %178 = arith.mulf %176, %177 : vector<16x256xf32>
    %179 = arith.truncf %178 : vector<16x256xf32> to vector<16x256xbf16>
    %c48_114 = arith.constant 48 : index
    %c0_115 = arith.constant 0 : index
    %180 = vector.load %arg12[%c48_114, %c0_115] : memref<144x512xbf16, #tpu.memory_space<vmem>>, vector<16x256xbf16>
    tpu.vector_store %arg12[%c48_114, %c0_115], %179 {strides = array<i32>} : memref<144x512xbf16, #tpu.memory_space<vmem>>, vector<16x256xbf16>,
    %c0_116 = arith.constant 0 : index
    %c127_117 = arith.constant 127 : index
    %181 = vector.load %arg10[%c0_116, %c127_117] : memref<16x512xbf16, #tpu.memory_space<vmem>>, vector<16x256xbf16>
    %182 = arith.extf %181 : vector<16x256xbf16> to vector<16x256xf32>
    %183 = vector.broadcast %174 : vector<1x256xf32> to vector<16x256xf32>
    %184 = arith.mulf %182, %183 : vector<16x256xf32>
    %185 = arith.truncf %184 : vector<16x256xf32> to vector<16x256xbf16>
    %c48_118 = arith.constant 48 : index
    %c256_119 = arith.constant 256 : index
    %186 = vector.load %arg12[%c48_118, %c256_119] : memref<144x512xbf16, #tpu.memory_space<vmem>>, vector<16x256xbf16>
    tpu.vector_store %arg12[%c48_118, %c256_119], %185 {strides = array<i32>} : memref<144x512xbf16, #tpu.memory_space<vmem>>, vector<16x256xbf16>,
    %c13 = arith.constant 13 : index
    %c0_120 = arith.constant 0 : index
    %187 = vector.load %arg7[%c13, %c0_120] : memref<27x256xf32, #tpu.memory_space<vmem>>, vector<1x256xf32>
    %c0_121 = arith.constant 0 : index
    %c128_122 = arith.constant 128 : index
    %188 = vector.load %arg9[%c0_121, %c128_122] : memref<16x512xbf16, #tpu.memory_space<vmem>>, vector<16x256xbf16>
    %189 = arith.extf %188 : vector<16x256xbf16> to vector<16x256xf32>
    %190 = vector.broadcast %187 : vector<1x256xf32> to vector<16x256xf32>
    %191 = arith.mulf %189, %190 : vector<16x256xf32>
    %192 = arith.truncf %191 : vector<16x256xf32> to vector<16x256xbf16>
    %c64_123 = arith.constant 64 : index
    %c0_124 = arith.constant 0 : index
    %193 = vector.load %arg12[%c64_123, %c0_124] : memref<144x512xbf16, #tpu.memory_space<vmem>>, vector<16x256xbf16>
    tpu.vector_store %arg12[%c64_123, %c0_124], %192 {strides = array<i32>} : memref<144x512xbf16, #tpu.memory_space<vmem>>, vector<16x256xbf16>,
    %c0_125 = arith.constant 0 : index
    %c128_126 = arith.constant 128 : index
    %194 = vector.load %arg10[%c0_125, %c128_126] : memref<16x512xbf16, #tpu.memory_space<vmem>>, vector<16x256xbf16>
    %195 = arith.extf %194 : vector<16x256xbf16> to vector<16x256xf32>
    %196 = vector.broadcast %187 : vector<1x256xf32> to vector<16x256xf32>
    %197 = arith.mulf %195, %196 : vector<16x256xf32>
    %198 = arith.truncf %197 : vector<16x256xf32> to vector<16x256xbf16>
    %c64_127 = arith.constant 64 : index
    %c256_128 = arith.constant 256 : index
    %199 = vector.load %arg12[%c64_127, %c256_128] : memref<144x512xbf16, #tpu.memory_space<vmem>>, vector<16x256xbf16>
    tpu.vector_store %arg12[%c64_127, %c256_128], %198 {strides = array<i32>} : memref<144x512xbf16, #tpu.memory_space<vmem>>, vector<16x256xbf16>,
    %c14 = arith.constant 14 : index
    %c0_129 = arith.constant 0 : index
    %200 = vector.load %arg7[%c14, %c0_129] : memref<27x256xf32, #tpu.memory_space<vmem>>, vector<1x256xf32>
    %c0_130 = arith.constant 0 : index
    %c129 = arith.constant 129 : index
    %201 = vector.load %arg9[%c0_130, %c129] : memref<16x512xbf16, #tpu.memory_space<vmem>>, vector<16x256xbf16>
    %202 = arith.extf %201 : vector<16x256xbf16> to vector<16x256xf32>
    %203 = vector.broadcast %200 : vector<1x256xf32> to vector<16x256xf32>
    %204 = arith.mulf %202, %203 : vector<16x256xf32>
    %205 = arith.truncf %204 : vector<16x256xf32> to vector<16x256xbf16>
    %c80_131 = arith.constant 80 : index
    %c0_132 = arith.constant 0 : index
    %206 = vector.load %arg12[%c80_131, %c0_132] : memref<144x512xbf16, #tpu.memory_space<vmem>>, vector<16x256xbf16>
    tpu.vector_store %arg12[%c80_131, %c0_132], %205 {strides = array<i32>} : memref<144x512xbf16, #tpu.memory_space<vmem>>, vector<16x256xbf16>,
    %c0_133 = arith.constant 0 : index
    %c129_134 = arith.constant 129 : index
    %207 = vector.load %arg10[%c0_133, %c129_134] : memref<16x512xbf16, #tpu.memory_space<vmem>>, vector<16x256xbf16>
    %208 = arith.extf %207 : vector<16x256xbf16> to vector<16x256xf32>
    %209 = vector.broadcast %200 : vector<1x256xf32> to vector<16x256xf32>
    %210 = arith.mulf %208, %209 : vector<16x256xf32>
    %211 = arith.truncf %210 : vector<16x256xf32> to vector<16x256xbf16>
    %c80_135 = arith.constant 80 : index
    %c256_136 = arith.constant 256 : index
    %212 = vector.load %arg12[%c80_135, %c256_136] : memref<144x512xbf16, #tpu.memory_space<vmem>>, vector<16x256xbf16>
    tpu.vector_store %arg12[%c80_135, %c256_136], %211 {strides = array<i32>} : memref<144x512xbf16, #tpu.memory_space<vmem>>, vector<16x256xbf16>,
    %c15 = arith.constant 15 : index
    %c0_137 = arith.constant 0 : index
    %213 = vector.load %arg7[%c15, %c0_137] : memref<27x256xf32, #tpu.memory_space<vmem>>, vector<1x256xf32>
    %c0_138 = arith.constant 0 : index
    %c135 = arith.constant 135 : index
    %214 = vector.load %arg9[%c0_138, %c135] : memref<16x512xbf16, #tpu.memory_space<vmem>>, vector<16x256xbf16>
    %215 = arith.extf %214 : vector<16x256xbf16> to vector<16x256xf32>
    %216 = vector.broadcast %213 : vector<1x256xf32> to vector<16x256xf32>
    %217 = arith.mulf %215, %216 : vector<16x256xf32>
    %218 = arith.truncf %217 : vector<16x256xf32> to vector<16x256xbf16>
    %c96_139 = arith.constant 96 : index
    %c0_140 = arith.constant 0 : index
    %219 = vector.load %arg12[%c96_139, %c0_140] : memref<144x512xbf16, #tpu.memory_space<vmem>>, vector<16x256xbf16>
    tpu.vector_store %arg12[%c96_139, %c0_140], %218 {strides = array<i32>} : memref<144x512xbf16, #tpu.memory_space<vmem>>, vector<16x256xbf16>,
    %c0_141 = arith.constant 0 : index
    %c135_142 = arith.constant 135 : index
    %220 = vector.load %arg10[%c0_141, %c135_142] : memref<16x512xbf16, #tpu.memory_space<vmem>>, vector<16x256xbf16>
    %221 = arith.extf %220 : vector<16x256xbf16> to vector<16x256xf32>
    %222 = vector.broadcast %213 : vector<1x256xf32> to vector<16x256xf32>
    %223 = arith.mulf %221, %222 : vector<16x256xf32>
    %224 = arith.truncf %223 : vector<16x256xf32> to vector<16x256xbf16>
    %c96_143 = arith.constant 96 : index
    %c256_144 = arith.constant 256 : index
    %225 = vector.load %arg12[%c96_143, %c256_144] : memref<144x512xbf16, #tpu.memory_space<vmem>>, vector<16x256xbf16>
    tpu.vector_store %arg12[%c96_143, %c256_144], %224 {strides = array<i32>} : memref<144x512xbf16, #tpu.memory_space<vmem>>, vector<16x256xbf16>,
    %c16_145 = arith.constant 16 : index
    %c0_146 = arith.constant 0 : index
    %226 = vector.load %arg7[%c16_145, %c0_146] : memref<27x256xf32, #tpu.memory_space<vmem>>, vector<1x256xf32>
    %c0_147 = arith.constant 0 : index
    %c136 = arith.constant 136 : index
    %227 = vector.load %arg9[%c0_147, %c136] : memref<16x512xbf16, #tpu.memory_space<vmem>>, vector<16x256xbf16>
    %228 = arith.extf %227 : vector<16x256xbf16> to vector<16x256xf32>
    %229 = vector.broadcast %226 : vector<1x256xf32> to vector<16x256xf32>
    %230 = arith.mulf %228, %229 : vector<16x256xf32>
    %231 = arith.truncf %230 : vector<16x256xf32> to vector<16x256xbf16>
    %c112_148 = arith.constant 112 : index
    %c0_149 = arith.constant 0 : index
    %232 = vector.load %arg12[%c112_148, %c0_149] : memref<144x512xbf16, #tpu.memory_space<vmem>>, vector<16x256xbf16>
    tpu.vector_store %arg12[%c112_148, %c0_149], %231 {strides = array<i32>} : memref<144x512xbf16, #tpu.memory_space<vmem>>, vector<16x256xbf16>,
    %c0_150 = arith.constant 0 : index
    %c136_151 = arith.constant 136 : index
    %233 = vector.load %arg10[%c0_150, %c136_151] : memref<16x512xbf16, #tpu.memory_space<vmem>>, vector<16x256xbf16>
    %234 = arith.extf %233 : vector<16x256xbf16> to vector<16x256xf32>
    %235 = vector.broadcast %226 : vector<1x256xf32> to vector<16x256xf32>
    %236 = arith.mulf %234, %235 : vector<16x256xf32>
    %237 = arith.truncf %236 : vector<16x256xf32> to vector<16x256xbf16>
    %c112_152 = arith.constant 112 : index
    %c256_153 = arith.constant 256 : index
    %238 = vector.load %arg12[%c112_152, %c256_153] : memref<144x512xbf16, #tpu.memory_space<vmem>>, vector<16x256xbf16>
    tpu.vector_store %arg12[%c112_152, %c256_153], %237 {strides = array<i32>} : memref<144x512xbf16, #tpu.memory_space<vmem>>, vector<16x256xbf16>,
    %c17 = arith.constant 17 : index
    %c0_154 = arith.constant 0 : index
    %239 = vector.load %arg7[%c17, %c0_154] : memref<27x256xf32, #tpu.memory_space<vmem>>, vector<1x256xf32>
    %c0_155 = arith.constant 0 : index
    %c137 = arith.constant 137 : index
    %240 = vector.load %arg9[%c0_155, %c137] : memref<16x512xbf16, #tpu.memory_space<vmem>>, vector<16x256xbf16>
    %241 = arith.extf %240 : vector<16x256xbf16> to vector<16x256xf32>
    %242 = vector.broadcast %239 : vector<1x256xf32> to vector<16x256xf32>
    %243 = arith.mulf %241, %242 : vector<16x256xf32>
    %244 = arith.truncf %243 : vector<16x256xf32> to vector<16x256xbf16>
    %c128_156 = arith.constant 128 : index
    %c0_157 = arith.constant 0 : index
    %245 = vector.load %arg12[%c128_156, %c0_157] : memref<144x512xbf16, #tpu.memory_space<vmem>>, vector<16x256xbf16>
    tpu.vector_store %arg12[%c128_156, %c0_157], %244 {strides = array<i32>} : memref<144x512xbf16, #tpu.memory_space<vmem>>, vector<16x256xbf16>,
    %c0_158 = arith.constant 0 : index
    %c137_159 = arith.constant 137 : index
    %246 = vector.load %arg10[%c0_158, %c137_159] : memref<16x512xbf16, #tpu.memory_space<vmem>>, vector<16x256xbf16>
    %247 = arith.extf %246 : vector<16x256xbf16> to vector<16x256xf32>
    %248 = vector.broadcast %239 : vector<1x256xf32> to vector<16x256xf32>
    %249 = arith.mulf %247, %248 : vector<16x256xf32>
    %250 = arith.truncf %249 : vector<16x256xf32> to vector<16x256xbf16>
    %c128_160 = arith.constant 128 : index
    %c256_161 = arith.constant 256 : index
    %251 = vector.load %arg12[%c128_160, %c256_161] : memref<144x512xbf16, #tpu.memory_space<vmem>>, vector<16x256xbf16>
    tpu.vector_store %arg12[%c128_160, %c256_161], %250 {strides = array<i32>} : memref<144x512xbf16, #tpu.memory_space<vmem>>, vector<16x256xbf16>,
    %c1_162 = arith.constant 1 : index
    %c0_163 = arith.constant 0 : index
    %c0_164 = arith.constant 0 : index
    %252 = vector.load %arg2[%c1_162, %c0_163, %c0_164] : memref<3x16x144xbf16, #tpu.memory_space<vmem>>, vector<1x16x144xbf16>
    %253 = vector.shape_cast %252 : vector<1x16x144xbf16> to vector<16x144xbf16>
    %c0_165 = arith.constant 0 : index
    %c0_166 = arith.constant 0 : index
    %254 = vector.load %arg12[%c0_165, %c0_166] : memref<144x512xbf16, #tpu.memory_space<vmem>>, vector<144x512xbf16>
    %cst_167 = arith.constant dense<0.000000e+00> : vector<16x512xf32>
    %255 = tpu.matmul %253, %254, %cst_167 {dimension_numbers = #tpu.dot_dimension_numbers<[1], [0], [0], [1], [0, 0, 1, 1], [], []>} : vector<16x144xbf16>, vector<144x512xbf16>, vector<16x512xf32> -> vector<16x512xf32>
    %256 = arith.addf %134, %255 : vector<16x512xf32>
    %c18 = arith.constant 18 : index
    %c0_168 = arith.constant 0 : index
    %257 = vector.load %arg7[%c18, %c0_168] : memref<27x256xf32, #tpu.memory_space<vmem>>, vector<1x256xf32>
    %c0_169 = arith.constant 0 : index
    %c183 = arith.constant 183 : index
    %258 = vector.load %arg9[%c0_169, %c183] : memref<16x512xbf16, #tpu.memory_space<vmem>>, vector<16x256xbf16>
    %259 = arith.extf %258 : vector<16x256xbf16> to vector<16x256xf32>
    %260 = vector.broadcast %257 : vector<1x256xf32> to vector<16x256xf32>
    %261 = arith.mulf %259, %260 : vector<16x256xf32>
    %262 = arith.truncf %261 : vector<16x256xf32> to vector<16x256xbf16>
    %c0_170 = arith.constant 0 : index
    %c0_171 = arith.constant 0 : index
    %263 = vector.load %arg11[%c0_170, %c0_171] : memref<144x512xbf16, #tpu.memory_space<vmem>>, vector<16x256xbf16>
    tpu.vector_store %arg11[%c0_170, %c0_171], %262 {strides = array<i32>} : memref<144x512xbf16, #tpu.memory_space<vmem>>, vector<16x256xbf16>,
    %c0_172 = arith.constant 0 : index
    %c183_173 = arith.constant 183 : index
    %264 = vector.load %arg10[%c0_172, %c183_173] : memref<16x512xbf16, #tpu.memory_space<vmem>>, vector<16x256xbf16>
    %265 = arith.extf %264 : vector<16x256xbf16> to vector<16x256xf32>
    %266 = vector.broadcast %257 : vector<1x256xf32> to vector<16x256xf32>
    %267 = arith.mulf %265, %266 : vector<16x256xf32>
    %268 = arith.truncf %267 : vector<16x256xf32> to vector<16x256xbf16>
    %c0_174 = arith.constant 0 : index
    %c256_175 = arith.constant 256 : index
    %269 = vector.load %arg11[%c0_174, %c256_175] : memref<144x512xbf16, #tpu.memory_space<vmem>>, vector<16x256xbf16>
    tpu.vector_store %arg11[%c0_174, %c256_175], %268 {strides = array<i32>} : memref<144x512xbf16, #tpu.memory_space<vmem>>, vector<16x256xbf16>,
    %c19 = arith.constant 19 : index
    %c0_176 = arith.constant 0 : index
    %270 = vector.load %arg7[%c19, %c0_176] : memref<27x256xf32, #tpu.memory_space<vmem>>, vector<1x256xf32>
    %c0_177 = arith.constant 0 : index
    %c184 = arith.constant 184 : index
    %271 = vector.load %arg9[%c0_177, %c184] : memref<16x512xbf16, #tpu.memory_space<vmem>>, vector<16x256xbf16>
    %272 = arith.extf %271 : vector<16x256xbf16> to vector<16x256xf32>
    %273 = vector.broadcast %270 : vector<1x256xf32> to vector<16x256xf32>
    %274 = arith.mulf %272, %273 : vector<16x256xf32>
    %275 = arith.truncf %274 : vector<16x256xf32> to vector<16x256xbf16>
    %c16_178 = arith.constant 16 : index
    %c0_179 = arith.constant 0 : index
    %276 = vector.load %arg11[%c16_178, %c0_179] : memref<144x512xbf16, #tpu.memory_space<vmem>>, vector<16x256xbf16>
    tpu.vector_store %arg11[%c16_178, %c0_179], %275 {strides = array<i32>} : memref<144x512xbf16, #tpu.memory_space<vmem>>, vector<16x256xbf16>,
    %c0_180 = arith.constant 0 : index
    %c184_181 = arith.constant 184 : index
    %277 = vector.load %arg10[%c0_180, %c184_181] : memref<16x512xbf16, #tpu.memory_space<vmem>>, vector<16x256xbf16>
    %278 = arith.extf %277 : vector<16x256xbf16> to vector<16x256xf32>
    %279 = vector.broadcast %270 : vector<1x256xf32> to vector<16x256xf32>
    %280 = arith.mulf %278, %279 : vector<16x256xf32>
    %281 = arith.truncf %280 : vector<16x256xf32> to vector<16x256xbf16>
    %c16_182 = arith.constant 16 : index
    %c256_183 = arith.constant 256 : index
    %282 = vector.load %arg11[%c16_182, %c256_183] : memref<144x512xbf16, #tpu.memory_space<vmem>>, vector<16x256xbf16>
    tpu.vector_store %arg11[%c16_182, %c256_183], %281 {strides = array<i32>} : memref<144x512xbf16, #tpu.memory_space<vmem>>, vector<16x256xbf16>,
    %c20 = arith.constant 20 : index
    %c0_184 = arith.constant 0 : index
    %283 = vector.load %arg7[%c20, %c0_184] : memref<27x256xf32, #tpu.memory_space<vmem>>, vector<1x256xf32>
    %c0_185 = arith.constant 0 : index
    %c185 = arith.constant 185 : index
    %284 = vector.load %arg9[%c0_185, %c185] : memref<16x512xbf16, #tpu.memory_space<vmem>>, vector<16x256xbf16>
    %285 = arith.extf %284 : vector<16x256xbf16> to vector<16x256xf32>
    %286 = vector.broadcast %283 : vector<1x256xf32> to vector<16x256xf32>
    %287 = arith.mulf %285, %286 : vector<16x256xf32>
    %288 = arith.truncf %287 : vector<16x256xf32> to vector<16x256xbf16>
    %c32_186 = arith.constant 32 : index
    %c0_187 = arith.constant 0 : index
    %289 = vector.load %arg11[%c32_186, %c0_187] : memref<144x512xbf16, #tpu.memory_space<vmem>>, vector<16x256xbf16>
    tpu.vector_store %arg11[%c32_186, %c0_187], %288 {strides = array<i32>} : memref<144x512xbf16, #tpu.memory_space<vmem>>, vector<16x256xbf16>,
    %c0_188 = arith.constant 0 : index
    %c185_189 = arith.constant 185 : index
    %290 = vector.load %arg10[%c0_188, %c185_189] : memref<16x512xbf16, #tpu.memory_space<vmem>>, vector<16x256xbf16>
    %291 = arith.extf %290 : vector<16x256xbf16> to vector<16x256xf32>
    %292 = vector.broadcast %283 : vector<1x256xf32> to vector<16x256xf32>
    %293 = arith.mulf %291, %292 : vector<16x256xf32>
    %294 = arith.truncf %293 : vector<16x256xf32> to vector<16x256xbf16>
    %c32_190 = arith.constant 32 : index
    %c256_191 = arith.constant 256 : index
    %295 = vector.load %arg11[%c32_190, %c256_191] : memref<144x512xbf16, #tpu.memory_space<vmem>>, vector<16x256xbf16>
    tpu.vector_store %arg11[%c32_190, %c256_191], %294 {strides = array<i32>} : memref<144x512xbf16, #tpu.memory_space<vmem>>, vector<16x256xbf16>,
    %c21 = arith.constant 21 : index
    %c0_192 = arith.constant 0 : index
    %296 = vector.load %arg7[%c21, %c0_192] : memref<27x256xf32, #tpu.memory_space<vmem>>, vector<1x256xf32>
    %c0_193 = arith.constant 0 : index
    %c191 = arith.constant 191 : index
    %297 = vector.load %arg9[%c0_193, %c191] : memref<16x512xbf16, #tpu.memory_space<vmem>>, vector<16x256xbf16>
    %298 = arith.extf %297 : vector<16x256xbf16> to vector<16x256xf32>
    %299 = vector.broadcast %296 : vector<1x256xf32> to vector<16x256xf32>
    %300 = arith.mulf %298, %299 : vector<16x256xf32>
    %301 = arith.truncf %300 : vector<16x256xf32> to vector<16x256xbf16>
    %c48_194 = arith.constant 48 : index
    %c0_195 = arith.constant 0 : index
    %302 = vector.load %arg11[%c48_194, %c0_195] : memref<144x512xbf16, #tpu.memory_space<vmem>>, vector<16x256xbf16>
    tpu.vector_store %arg11[%c48_194, %c0_195], %301 {strides = array<i32>} : memref<144x512xbf16, #tpu.memory_space<vmem>>, vector<16x256xbf16>,
    %c0_196 = arith.constant 0 : index
    %c191_197 = arith.constant 191 : index
    %303 = vector.load %arg10[%c0_196, %c191_197] : memref<16x512xbf16, #tpu.memory_space<vmem>>, vector<16x256xbf16>
    %304 = arith.extf %303 : vector<16x256xbf16> to vector<16x256xf32>
    %305 = vector.broadcast %296 : vector<1x256xf32> to vector<16x256xf32>
    %306 = arith.mulf %304, %305 : vector<16x256xf32>
    %307 = arith.truncf %306 : vector<16x256xf32> to vector<16x256xbf16>
    %c48_198 = arith.constant 48 : index
    %c256_199 = arith.constant 256 : index
    %308 = vector.load %arg11[%c48_198, %c256_199] : memref<144x512xbf16, #tpu.memory_space<vmem>>, vector<16x256xbf16>
    tpu.vector_store %arg11[%c48_198, %c256_199], %307 {strides = array<i32>} : memref<144x512xbf16, #tpu.memory_space<vmem>>, vector<16x256xbf16>,
    %c22 = arith.constant 22 : index
    %c0_200 = arith.constant 0 : index
    %309 = vector.load %arg7[%c22, %c0_200] : memref<27x256xf32, #tpu.memory_space<vmem>>, vector<1x256xf32>
    %c0_201 = arith.constant 0 : index
    %c192 = arith.constant 192 : index
    %310 = vector.load %arg9[%c0_201, %c192] : memref<16x512xbf16, #tpu.memory_space<vmem>>, vector<16x256xbf16>
    %311 = arith.extf %310 : vector<16x256xbf16> to vector<16x256xf32>
    %312 = vector.broadcast %309 : vector<1x256xf32> to vector<16x256xf32>
    %313 = arith.mulf %311, %312 : vector<16x256xf32>
    %314 = arith.truncf %313 : vector<16x256xf32> to vector<16x256xbf16>
    %c64_202 = arith.constant 64 : index
    %c0_203 = arith.constant 0 : index
    %315 = vector.load %arg11[%c64_202, %c0_203] : memref<144x512xbf16, #tpu.memory_space<vmem>>, vector<16x256xbf16>
    tpu.vector_store %arg11[%c64_202, %c0_203], %314 {strides = array<i32>} : memref<144x512xbf16, #tpu.memory_space<vmem>>, vector<16x256xbf16>,
    %c0_204 = arith.constant 0 : index
    %c192_205 = arith.constant 192 : index
    %316 = vector.load %arg10[%c0_204, %c192_205] : memref<16x512xbf16, #tpu.memory_space<vmem>>, vector<16x256xbf16>
    %317 = arith.extf %316 : vector<16x256xbf16> to vector<16x256xf32>
    %318 = vector.broadcast %309 : vector<1x256xf32> to vector<16x256xf32>
    %319 = arith.mulf %317, %318 : vector<16x256xf32>
    %320 = arith.truncf %319 : vector<16x256xf32> to vector<16x256xbf16>
    %c64_206 = arith.constant 64 : index
    %c256_207 = arith.constant 256 : index
    %321 = vector.load %arg11[%c64_206, %c256_207] : memref<144x512xbf16, #tpu.memory_space<vmem>>, vector<16x256xbf16>
    tpu.vector_store %arg11[%c64_206, %c256_207], %320 {strides = array<i32>} : memref<144x512xbf16, #tpu.memory_space<vmem>>, vector<16x256xbf16>,
    %c23 = arith.constant 23 : index
    %c0_208 = arith.constant 0 : index
    %322 = vector.load %arg7[%c23, %c0_208] : memref<27x256xf32, #tpu.memory_space<vmem>>, vector<1x256xf32>
    %c0_209 = arith.constant 0 : index
    %c193 = arith.constant 193 : index
    %323 = vector.load %arg9[%c0_209, %c193] : memref<16x512xbf16, #tpu.memory_space<vmem>>, vector<16x256xbf16>
    %324 = arith.extf %323 : vector<16x256xbf16> to vector<16x256xf32>
    %325 = vector.broadcast %322 : vector<1x256xf32> to vector<16x256xf32>
    %326 = arith.mulf %324, %325 : vector<16x256xf32>
    %327 = arith.truncf %326 : vector<16x256xf32> to vector<16x256xbf16>
    %c80_210 = arith.constant 80 : index
    %c0_211 = arith.constant 0 : index
    %328 = vector.load %arg11[%c80_210, %c0_211] : memref<144x512xbf16, #tpu.memory_space<vmem>>, vector<16x256xbf16>
    tpu.vector_store %arg11[%c80_210, %c0_211], %327 {strides = array<i32>} : memref<144x512xbf16, #tpu.memory_space<vmem>>, vector<16x256xbf16>,
    %c0_212 = arith.constant 0 : index
    %c193_213 = arith.constant 193 : index
    %329 = vector.load %arg10[%c0_212, %c193_213] : memref<16x512xbf16, #tpu.memory_space<vmem>>, vector<16x256xbf16>
    %330 = arith.extf %329 : vector<16x256xbf16> to vector<16x256xf32>
    %331 = vector.broadcast %322 : vector<1x256xf32> to vector<16x256xf32>
    %332 = arith.mulf %330, %331 : vector<16x256xf32>
    %333 = arith.truncf %332 : vector<16x256xf32> to vector<16x256xbf16>
    %c80_214 = arith.constant 80 : index
    %c256_215 = arith.constant 256 : index
    %334 = vector.load %arg11[%c80_214, %c256_215] : memref<144x512xbf16, #tpu.memory_space<vmem>>, vector<16x256xbf16>
    tpu.vector_store %arg11[%c80_214, %c256_215], %333 {strides = array<i32>} : memref<144x512xbf16, #tpu.memory_space<vmem>>, vector<16x256xbf16>,
    %c24 = arith.constant 24 : index
    %c0_216 = arith.constant 0 : index
    %335 = vector.load %arg7[%c24, %c0_216] : memref<27x256xf32, #tpu.memory_space<vmem>>, vector<1x256xf32>
    %c0_217 = arith.constant 0 : index
    %c199 = arith.constant 199 : index
    %336 = vector.load %arg9[%c0_217, %c199] : memref<16x512xbf16, #tpu.memory_space<vmem>>, vector<16x256xbf16>
    %337 = arith.extf %336 : vector<16x256xbf16> to vector<16x256xf32>
    %338 = vector.broadcast %335 : vector<1x256xf32> to vector<16x256xf32>
    %339 = arith.mulf %337, %338 : vector<16x256xf32>
    %340 = arith.truncf %339 : vector<16x256xf32> to vector<16x256xbf16>
    %c96_218 = arith.constant 96 : index
    %c0_219 = arith.constant 0 : index
    %341 = vector.load %arg11[%c96_218, %c0_219] : memref<144x512xbf16, #tpu.memory_space<vmem>>, vector<16x256xbf16>
    tpu.vector_store %arg11[%c96_218, %c0_219], %340 {strides = array<i32>} : memref<144x512xbf16, #tpu.memory_space<vmem>>, vector<16x256xbf16>,
    %c0_220 = arith.constant 0 : index
    %c199_221 = arith.constant 199 : index
    %342 = vector.load %arg10[%c0_220, %c199_221] : memref<16x512xbf16, #tpu.memory_space<vmem>>, vector<16x256xbf16>
    %343 = arith.extf %342 : vector<16x256xbf16> to vector<16x256xf32>
    %344 = vector.broadcast %335 : vector<1x256xf32> to vector<16x256xf32>
    %345 = arith.mulf %343, %344 : vector<16x256xf32>
    %346 = arith.truncf %345 : vector<16x256xf32> to vector<16x256xbf16>
    %c96_222 = arith.constant 96 : index
    %c256_223 = arith.constant 256 : index
    %347 = vector.load %arg11[%c96_222, %c256_223] : memref<144x512xbf16, #tpu.memory_space<vmem>>, vector<16x256xbf16>
    tpu.vector_store %arg11[%c96_222, %c256_223], %346 {strides = array<i32>} : memref<144x512xbf16, #tpu.memory_space<vmem>>, vector<16x256xbf16>,
    %c25 = arith.constant 25 : index
    %c0_224 = arith.constant 0 : index
    %348 = vector.load %arg7[%c25, %c0_224] : memref<27x256xf32, #tpu.memory_space<vmem>>, vector<1x256xf32>
    %c0_225 = arith.constant 0 : index
    %c200 = arith.constant 200 : index
    %349 = vector.load %arg9[%c0_225, %c200] : memref<16x512xbf16, #tpu.memory_space<vmem>>, vector<16x256xbf16>
    %350 = arith.extf %349 : vector<16x256xbf16> to vector<16x256xf32>
    %351 = vector.broadcast %348 : vector<1x256xf32> to vector<16x256xf32>
    %352 = arith.mulf %350, %351 : vector<16x256xf32>
    %353 = arith.truncf %352 : vector<16x256xf32> to vector<16x256xbf16>
    %c112_226 = arith.constant 112 : index
    %c0_227 = arith.constant 0 : index
    %354 = vector.load %arg11[%c112_226, %c0_227] : memref<144x512xbf16, #tpu.memory_space<vmem>>, vector<16x256xbf16>
    tpu.vector_store %arg11[%c112_226, %c0_227], %353 {strides = array<i32>} : memref<144x512xbf16, #tpu.memory_space<vmem>>, vector<16x256xbf16>,
    %c0_228 = arith.constant 0 : index
    %c200_229 = arith.constant 200 : index
    %355 = vector.load %arg10[%c0_228, %c200_229] : memref<16x512xbf16, #tpu.memory_space<vmem>>, vector<16x256xbf16>
    %356 = arith.extf %355 : vector<16x256xbf16> to vector<16x256xf32>
    %357 = vector.broadcast %348 : vector<1x256xf32> to vector<16x256xf32>
    %358 = arith.mulf %356, %357 : vector<16x256xf32>
    %359 = arith.truncf %358 : vector<16x256xf32> to vector<16x256xbf16>
    %c112_230 = arith.constant 112 : index
    %c256_231 = arith.constant 256 : index
    %360 = vector.load %arg11[%c112_230, %c256_231] : memref<144x512xbf16, #tpu.memory_space<vmem>>, vector<16x256xbf16>
    tpu.vector_store %arg11[%c112_230, %c256_231], %359 {strides = array<i32>} : memref<144x512xbf16, #tpu.memory_space<vmem>>, vector<16x256xbf16>,
    %c26 = arith.constant 26 : index
    %c0_232 = arith.constant 0 : index
    %361 = vector.load %arg7[%c26, %c0_232] : memref<27x256xf32, #tpu.memory_space<vmem>>, vector<1x256xf32>
    %c0_233 = arith.constant 0 : index
    %c201 = arith.constant 201 : index
    %362 = vector.load %arg9[%c0_233, %c201] : memref<16x512xbf16, #tpu.memory_space<vmem>>, vector<16x256xbf16>
    %363 = arith.extf %362 : vector<16x256xbf16> to vector<16x256xf32>
    %364 = vector.broadcast %361 : vector<1x256xf32> to vector<16x256xf32>
    %365 = arith.mulf %363, %364 : vector<16x256xf32>
    %366 = arith.truncf %365 : vector<16x256xf32> to vector<16x256xbf16>
    %c128_234 = arith.constant 128 : index
    %c0_235 = arith.constant 0 : index
    %367 = vector.load %arg11[%c128_234, %c0_235] : memref<144x512xbf16, #tpu.memory_space<vmem>>, vector<16x256xbf16>
    tpu.vector_store %arg11[%c128_234, %c0_235], %366 {strides = array<i32>} : memref<144x512xbf16, #tpu.memory_space<vmem>>, vector<16x256xbf16>,
    %c0_236 = arith.constant 0 : index
    %c201_237 = arith.constant 201 : index
    %368 = vector.load %arg10[%c0_236, %c201_237] : memref<16x512xbf16, #tpu.memory_space<vmem>>, vector<16x256xbf16>
    %369 = arith.extf %368 : vector<16x256xbf16> to vector<16x256xf32>
    %370 = vector.broadcast %361 : vector<1x256xf32> to vector<16x256xf32>
    %371 = arith.mulf %369, %370 : vector<16x256xf32>
    %372 = arith.truncf %371 : vector<16x256xf32> to vector<16x256xbf16>
    %c128_238 = arith.constant 128 : index
    %c256_239 = arith.constant 256 : index
    %373 = vector.load %arg11[%c128_238, %c256_239] : memref<144x512xbf16, #tpu.memory_space<vmem>>, vector<16x256xbf16>
    tpu.vector_store %arg11[%c128_238, %c256_239], %372 {strides = array<i32>} : memref<144x512xbf16, #tpu.memory_space<vmem>>, vector<16x256xbf16>,
    %c2_240 = arith.constant 2 : index
    %c0_241 = arith.constant 0 : index
    %c0_242 = arith.constant 0 : index
    %374 = vector.load %arg2[%c2_240, %c0_241, %c0_242] : memref<3x16x144xbf16, #tpu.memory_space<vmem>>, vector<1x16x144xbf16>
    %375 = vector.shape_cast %374 : vector<1x16x144xbf16> to vector<16x144xbf16>
    %c0_243 = arith.constant 0 : index
    %c0_244 = arith.constant 0 : index
    %376 = vector.load %arg11[%c0_243, %c0_244] : memref<144x512xbf16, #tpu.memory_space<vmem>>, vector<144x512xbf16>
    %cst_245 = arith.constant dense<0.000000e+00> : vector<16x512xf32>
    %377 = tpu.matmul %375, %376, %cst_245 {dimension_numbers = #tpu.dot_dimension_numbers<[1], [0], [0], [1], [0, 0, 1, 1], [], []>} : vector<16x144xbf16>, vector<144x512xbf16>, vector<16x512xf32> -> vector<16x512xf32>
    %378 = arith.addf %256, %377 : vector<16x512xf32>
    %c0_246 = arith.constant 0 : index
    %c0_247 = arith.constant 0 : index
    %379 = vector.load %arg3[%c0_246, %c0_247] : memref<16x1xf32, #tpu.memory_space<vmem>>, vector<16x1xf32>
    %380 = vector.broadcast %379 : vector<16x1xf32> to vector<16x512xf32>
    %381 = arith.addf %378, %380 : vector<16x512xf32>
    %cst_248 = arith.constant 0.000000e+00 : f32
    %382 = vector.broadcast %cst_248 : f32 to vector<16x512xf32>
    %383 = arith.cmpf ogt, %381, %382 : vector<16x512xf32>
    %384 = vector.broadcast %5 : f32 to vector<16x512xf32>
    %385 = arith.mulf %384, %381 : vector<16x512xf32>
    %386 = arith.select %383, %381, %385 : vector<16x512xi1>, vector<16x512xf32>
    %387 = vector.extract_strided_slice %386 {offsets = [0, 0], sizes = [16, 256], strides = [1, 1]} : vector<16x512xf32> to vector<16x256xf32>
    %388 = arith.truncf %387 : vector<16x256xf32> to vector<16x256xbf16>
    %c0_249 = arith.constant 0 : index
    %c128_250 = arith.constant 128 : index
    %389 = vector.load %arg9[%c0_249, %c128_250] : memref<16x512xbf16, #tpu.memory_space<vmem>>, vector<16x256xbf16>
    tpu.vector_store %arg9[%c0_249, %c128_250], %388 {strides = array<i32>} : memref<16x512xbf16, #tpu.memory_space<vmem>>, vector<16x256xbf16>,
    %390 = vector.extract_strided_slice %386 {offsets = [0, 256], sizes = [16, 256], strides = [1, 1]} : vector<16x512xf32> to vector<16x256xf32>
    %391 = arith.truncf %390 : vector<16x256xf32> to vector<16x256xbf16>
    %c0_251 = arith.constant 0 : index
    %c128_252 = arith.constant 128 : index
    %392 = vector.load %arg10[%c0_251, %c128_252] : memref<16x512xbf16, #tpu.memory_space<vmem>>, vector<16x256xbf16>
    tpu.vector_store %arg10[%c0_251, %c128_252], %391 {strides = array<i32>} : memref<16x512xbf16, #tpu.memory_space<vmem>>, vector<16x256xbf16>,
    %c0_253 = arith.constant 0 : index
    %c0_254 = arith.constant 0 : index
    %393 = vector.load %arg7[%c0_253, %c0_254] : memref<27x256xf32, #tpu.memory_space<vmem>>, vector<1x256xf32>
    %c0_255 = arith.constant 0 : index
    %c55_256 = arith.constant 55 : index
    %394 = vector.load %arg9[%c0_255, %c55_256] : memref<16x512xbf16, #tpu.memory_space<vmem>>, vector<16x256xbf16>
    %395 = arith.extf %394 : vector<16x256xbf16> to vector<16x256xf32>
    %396 = vector.broadcast %393 : vector<1x256xf32> to vector<16x256xf32>
    %397 = arith.mulf %395, %396 : vector<16x256xf32>
    %398 = arith.truncf %397 : vector<16x256xf32> to vector<16x256xbf16>
    %c0_257 = arith.constant 0 : index
    %c0_258 = arith.constant 0 : index
    %399 = vector.load %arg11[%c0_257, %c0_258] : memref<144x512xbf16, #tpu.memory_space<vmem>>, vector<16x256xbf16>
    tpu.vector_store %arg11[%c0_257, %c0_258], %398 {strides = array<i32>} : memref<144x512xbf16, #tpu.memory_space<vmem>>, vector<16x256xbf16>,
    %c0_259 = arith.constant 0 : index
    %c55_260 = arith.constant 55 : index
    %400 = vector.load %arg10[%c0_259, %c55_260] : memref<16x512xbf16, #tpu.memory_space<vmem>>, vector<16x256xbf16>
    %401 = arith.extf %400 : vector<16x256xbf16> to vector<16x256xf32>
    %402 = vector.broadcast %393 : vector<1x256xf32> to vector<16x256xf32>
    %403 = arith.mulf %401, %402 : vector<16x256xf32>
    %404 = arith.truncf %403 : vector<16x256xf32> to vector<16x256xbf16>
    %c0_261 = arith.constant 0 : index
    %c256_262 = arith.constant 256 : index
    %405 = vector.load %arg11[%c0_261, %c256_262] : memref<144x512xbf16, #tpu.memory_space<vmem>>, vector<16x256xbf16>
    tpu.vector_store %arg11[%c0_261, %c256_262], %404 {strides = array<i32>} : memref<144x512xbf16, #tpu.memory_space<vmem>>, vector<16x256xbf16>,
    %c1_263 = arith.constant 1 : index
    %c0_264 = arith.constant 0 : index
    %406 = vector.load %arg7[%c1_263, %c0_264] : memref<27x256xf32, #tpu.memory_space<vmem>>, vector<1x256xf32>
    %c0_265 = arith.constant 0 : index
    %c56_266 = arith.constant 56 : index
    %407 = vector.load %arg9[%c0_265, %c56_266] : memref<16x512xbf16, #tpu.memory_space<vmem>>, vector<16x256xbf16>
    %408 = arith.extf %407 : vector<16x256xbf16> to vector<16x256xf32>
    %409 = vector.broadcast %406 : vector<1x256xf32> to vector<16x256xf32>
    %410 = arith.mulf %408, %409 : vector<16x256xf32>
    %411 = arith.truncf %410 : vector<16x256xf32> to vector<16x256xbf16>
    %c16_267 = arith.constant 16 : index
    %c0_268 = arith.constant 0 : index
    %412 = vector.load %arg11[%c16_267, %c0_268] : memref<144x512xbf16, #tpu.memory_space<vmem>>, vector<16x256xbf16>
    tpu.vector_store %arg11[%c16_267, %c0_268], %411 {strides = array<i32>} : memref<144x512xbf16, #tpu.memory_space<vmem>>, vector<16x256xbf16>,
    %c0_269 = arith.constant 0 : index
    %c56_270 = arith.constant 56 : index
    %413 = vector.load %arg10[%c0_269, %c56_270] : memref<16x512xbf16, #tpu.memory_space<vmem>>, vector<16x256xbf16>
    %414 = arith.extf %413 : vector<16x256xbf16> to vector<16x256xf32>
    %415 = vector.broadcast %406 : vector<1x256xf32> to vector<16x256xf32>
    %416 = arith.mulf %414, %415 : vector<16x256xf32>
    %417 = arith.truncf %416 : vector<16x256xf32> to vector<16x256xbf16>
    %c16_271 = arith.constant 16 : index
    %c256_272 = arith.constant 256 : index
    %418 = vector.load %arg11[%c16_271, %c256_272] : memref<144x512xbf16, #tpu.memory_space<vmem>>, vector<16x256xbf16>
    tpu.vector_store %arg11[%c16_271, %c256_272], %417 {strides = array<i32>} : memref<144x512xbf16, #tpu.memory_space<vmem>>, vector<16x256xbf16>,
    %c2_273 = arith.constant 2 : index
    %c0_274 = arith.constant 0 : index
    %419 = vector.load %arg7[%c2_273, %c0_274] : memref<27x256xf32, #tpu.memory_space<vmem>>, vector<1x256xf32>
    %c0_275 = arith.constant 0 : index
    %c57_276 = arith.constant 57 : index
    %420 = vector.load %arg9[%c0_275, %c57_276] : memref<16x512xbf16, #tpu.memory_space<vmem>>, vector<16x256xbf16>
    %421 = arith.extf %420 : vector<16x256xbf16> to vector<16x256xf32>
    %422 = vector.broadcast %419 : vector<1x256xf32> to vector<16x256xf32>
    %423 = arith.mulf %421, %422 : vector<16x256xf32>
    %424 = arith.truncf %423 : vector<16x256xf32> to vector<16x256xbf16>
    %c32_277 = arith.constant 32 : index
    %c0_278 = arith.constant 0 : index
    %425 = vector.load %arg11[%c32_277, %c0_278] : memref<144x512xbf16, #tpu.memory_space<vmem>>, vector<16x256xbf16>
    tpu.vector_store %arg11[%c32_277, %c0_278], %424 {strides = array<i32>} : memref<144x512xbf16, #tpu.memory_space<vmem>>, vector<16x256xbf16>,
    %c0_279 = arith.constant 0 : index
    %c57_280 = arith.constant 57 : index
    %426 = vector.load %arg10[%c0_279, %c57_280] : memref<16x512xbf16, #tpu.memory_space<vmem>>, vector<16x256xbf16>
    %427 = arith.extf %426 : vector<16x256xbf16> to vector<16x256xf32>
    %428 = vector.broadcast %419 : vector<1x256xf32> to vector<16x256xf32>
    %429 = arith.mulf %427, %428 : vector<16x256xf32>
    %430 = arith.truncf %429 : vector<16x256xf32> to vector<16x256xbf16>
    %c32_281 = arith.constant 32 : index
    %c256_282 = arith.constant 256 : index
    %431 = vector.load %arg11[%c32_281, %c256_282] : memref<144x512xbf16, #tpu.memory_space<vmem>>, vector<16x256xbf16>
    tpu.vector_store %arg11[%c32_281, %c256_282], %430 {strides = array<i32>} : memref<144x512xbf16, #tpu.memory_space<vmem>>, vector<16x256xbf16>,
    %c3_283 = arith.constant 3 : index
    %c0_284 = arith.constant 0 : index
    %432 = vector.load %arg7[%c3_283, %c0_284] : memref<27x256xf32, #tpu.memory_space<vmem>>, vector<1x256xf32>
    %c0_285 = arith.constant 0 : index
    %c63_286 = arith.constant 63 : index
    %433 = vector.load %arg9[%c0_285, %c63_286] : memref<16x512xbf16, #tpu.memory_space<vmem>>, vector<16x256xbf16>
    %434 = arith.extf %433 : vector<16x256xbf16> to vector<16x256xf32>
    %435 = vector.broadcast %432 : vector<1x256xf32> to vector<16x256xf32>
    %436 = arith.mulf %434, %435 : vector<16x256xf32>
    %437 = arith.truncf %436 : vector<16x256xf32> to vector<16x256xbf16>
    %c48_287 = arith.constant 48 : index
    %c0_288 = arith.constant 0 : index
    %438 = vector.load %arg11[%c48_287, %c0_288] : memref<144x512xbf16, #tpu.memory_space<vmem>>, vector<16x256xbf16>
    tpu.vector_store %arg11[%c48_287, %c0_288], %437 {strides = array<i32>} : memref<144x512xbf16, #tpu.memory_space<vmem>>, vector<16x256xbf16>,
    %c0_289 = arith.constant 0 : index
    %c63_290 = arith.constant 63 : index
    %439 = vector.load %arg10[%c0_289, %c63_290] : memref<16x512xbf16, #tpu.memory_space<vmem>>, vector<16x256xbf16>
    %440 = arith.extf %439 : vector<16x256xbf16> to vector<16x256xf32>
    %441 = vector.broadcast %432 : vector<1x256xf32> to vector<16x256xf32>
    %442 = arith.mulf %440, %441 : vector<16x256xf32>
    %443 = arith.truncf %442 : vector<16x256xf32> to vector<16x256xbf16>
    %c48_291 = arith.constant 48 : index
    %c256_292 = arith.constant 256 : index
    %444 = vector.load %arg11[%c48_291, %c256_292] : memref<144x512xbf16, #tpu.memory_space<vmem>>, vector<16x256xbf16>
    tpu.vector_store %arg11[%c48_291, %c256_292], %443 {strides = array<i32>} : memref<144x512xbf16, #tpu.memory_space<vmem>>, vector<16x256xbf16>,
    %c4_293 = arith.constant 4 : index
    %c0_294 = arith.constant 0 : index
    %445 = vector.load %arg7[%c4_293, %c0_294] : memref<27x256xf32, #tpu.memory_space<vmem>>, vector<1x256xf32>
    %c0_295 = arith.constant 0 : index
    %c64_296 = arith.constant 64 : index
    %446 = vector.load %arg9[%c0_295, %c64_296] : memref<16x512xbf16, #tpu.memory_space<vmem>>, vector<16x256xbf16>
    %447 = arith.extf %446 : vector<16x256xbf16> to vector<16x256xf32>
    %448 = vector.broadcast %445 : vector<1x256xf32> to vector<16x256xf32>
    %449 = arith.mulf %447, %448 : vector<16x256xf32>
    %450 = arith.truncf %449 : vector<16x256xf32> to vector<16x256xbf16>
    %c64_297 = arith.constant 64 : index
    %c0_298 = arith.constant 0 : index
    %451 = vector.load %arg11[%c64_297, %c0_298] : memref<144x512xbf16, #tpu.memory_space<vmem>>, vector<16x256xbf16>
    tpu.vector_store %arg11[%c64_297, %c0_298], %450 {strides = array<i32>} : memref<144x512xbf16, #tpu.memory_space<vmem>>, vector<16x256xbf16>,
    %c0_299 = arith.constant 0 : index
    %c64_300 = arith.constant 64 : index
    %452 = vector.load %arg10[%c0_299, %c64_300] : memref<16x512xbf16, #tpu.memory_space<vmem>>, vector<16x256xbf16>
    %453 = arith.extf %452 : vector<16x256xbf16> to vector<16x256xf32>
    %454 = vector.broadcast %445 : vector<1x256xf32> to vector<16x256xf32>
    %455 = arith.mulf %453, %454 : vector<16x256xf32>
    %456 = arith.truncf %455 : vector<16x256xf32> to vector<16x256xbf16>
    %c64_301 = arith.constant 64 : index
    %c256_302 = arith.constant 256 : index
    %457 = vector.load %arg11[%c64_301, %c256_302] : memref<144x512xbf16, #tpu.memory_space<vmem>>, vector<16x256xbf16>
    tpu.vector_store %arg11[%c64_301, %c256_302], %456 {strides = array<i32>} : memref<144x512xbf16, #tpu.memory_space<vmem>>, vector<16x256xbf16>,
    %c5_303 = arith.constant 5 : index
    %c0_304 = arith.constant 0 : index
    %458 = vector.load %arg7[%c5_303, %c0_304] : memref<27x256xf32, #tpu.memory_space<vmem>>, vector<1x256xf32>
    %c0_305 = arith.constant 0 : index
    %c65_306 = arith.constant 65 : index
    %459 = vector.load %arg9[%c0_305, %c65_306] : memref<16x512xbf16, #tpu.memory_space<vmem>>, vector<16x256xbf16>
    %460 = arith.extf %459 : vector<16x256xbf16> to vector<16x256xf32>
    %461 = vector.broadcast %458 : vector<1x256xf32> to vector<16x256xf32>
    %462 = arith.mulf %460, %461 : vector<16x256xf32>
    %463 = arith.truncf %462 : vector<16x256xf32> to vector<16x256xbf16>
    %c80_307 = arith.constant 80 : index
    %c0_308 = arith.constant 0 : index
    %464 = vector.load %arg11[%c80_307, %c0_308] : memref<144x512xbf16, #tpu.memory_space<vmem>>, vector<16x256xbf16>
    tpu.vector_store %arg11[%c80_307, %c0_308], %463 {strides = array<i32>} : memref<144x512xbf16, #tpu.memory_space<vmem>>, vector<16x256xbf16>,
    %c0_309 = arith.constant 0 : index
    %c65_310 = arith.constant 65 : index
    %465 = vector.load %arg10[%c0_309, %c65_310] : memref<16x512xbf16, #tpu.memory_space<vmem>>, vector<16x256xbf16>
    %466 = arith.extf %465 : vector<16x256xbf16> to vector<16x256xf32>
    %467 = vector.broadcast %458 : vector<1x256xf32> to vector<16x256xf32>
    %468 = arith.mulf %466, %467 : vector<16x256xf32>
    %469 = arith.truncf %468 : vector<16x256xf32> to vector<16x256xbf16>
    %c80_311 = arith.constant 80 : index
    %c256_312 = arith.constant 256 : index
    %470 = vector.load %arg11[%c80_311, %c256_312] : memref<144x512xbf16, #tpu.memory_space<vmem>>, vector<16x256xbf16>
    tpu.vector_store %arg11[%c80_311, %c256_312], %469 {strides = array<i32>} : memref<144x512xbf16, #tpu.memory_space<vmem>>, vector<16x256xbf16>,
    %c6_313 = arith.constant 6 : index
    %c0_314 = arith.constant 0 : index
    %471 = vector.load %arg7[%c6_313, %c0_314] : memref<27x256xf32, #tpu.memory_space<vmem>>, vector<1x256xf32>
    %c0_315 = arith.constant 0 : index
    %c71_316 = arith.constant 71 : index
    %472 = vector.load %arg9[%c0_315, %c71_316] : memref<16x512xbf16, #tpu.memory_space<vmem>>, vector<16x256xbf16>
    %473 = arith.extf %472 : vector<16x256xbf16> to vector<16x256xf32>
    %474 = vector.broadcast %471 : vector<1x256xf32> to vector<16x256xf32>
    %475 = arith.mulf %473, %474 : vector<16x256xf32>
    %476 = arith.truncf %475 : vector<16x256xf32> to vector<16x256xbf16>
    %c96_317 = arith.constant 96 : index
    %c0_318 = arith.constant 0 : index
    %477 = vector.load %arg11[%c96_317, %c0_318] : memref<144x512xbf16, #tpu.memory_space<vmem>>, vector<16x256xbf16>
    tpu.vector_store %arg11[%c96_317, %c0_318], %476 {strides = array<i32>} : memref<144x512xbf16, #tpu.memory_space<vmem>>, vector<16x256xbf16>,
    %c0_319 = arith.constant 0 : index
    %c71_320 = arith.constant 71 : index
    %478 = vector.load %arg10[%c0_319, %c71_320] : memref<16x512xbf16, #tpu.memory_space<vmem>>, vector<16x256xbf16>
    %479 = arith.extf %478 : vector<16x256xbf16> to vector<16x256xf32>
    %480 = vector.broadcast %471 : vector<1x256xf32> to vector<16x256xf32>
    %481 = arith.mulf %479, %480 : vector<16x256xf32>
    %482 = arith.truncf %481 : vector<16x256xf32> to vector<16x256xbf16>
    %c96_321 = arith.constant 96 : index
    %c256_322 = arith.constant 256 : index
    %483 = vector.load %arg11[%c96_321, %c256_322] : memref<144x512xbf16, #tpu.memory_space<vmem>>, vector<16x256xbf16>
    tpu.vector_store %arg11[%c96_321, %c256_322], %482 {strides = array<i32>} : memref<144x512xbf16, #tpu.memory_space<vmem>>, vector<16x256xbf16>,
    %c7_323 = arith.constant 7 : index
    %c0_324 = arith.constant 0 : index
    %484 = vector.load %arg7[%c7_323, %c0_324] : memref<27x256xf32, #tpu.memory_space<vmem>>, vector<1x256xf32>
    %c0_325 = arith.constant 0 : index
    %c72_326 = arith.constant 72 : index
    %485 = vector.load %arg9[%c0_325, %c72_326] : memref<16x512xbf16, #tpu.memory_space<vmem>>, vector<16x256xbf16>
    %486 = arith.extf %485 : vector<16x256xbf16> to vector<16x256xf32>
    %487 = vector.broadcast %484 : vector<1x256xf32> to vector<16x256xf32>
    %488 = arith.mulf %486, %487 : vector<16x256xf32>
    %489 = arith.truncf %488 : vector<16x256xf32> to vector<16x256xbf16>
    %c112_327 = arith.constant 112 : index
    %c0_328 = arith.constant 0 : index
    %490 = vector.load %arg11[%c112_327, %c0_328] : memref<144x512xbf16, #tpu.memory_space<vmem>>, vector<16x256xbf16>
    tpu.vector_store %arg11[%c112_327, %c0_328], %489 {strides = array<i32>} : memref<144x512xbf16, #tpu.memory_space<vmem>>, vector<16x256xbf16>,
    %c0_329 = arith.constant 0 : index
    %c72_330 = arith.constant 72 : index
    %491 = vector.load %arg10[%c0_329, %c72_330] : memref<16x512xbf16, #tpu.memory_space<vmem>>, vector<16x256xbf16>
    %492 = arith.extf %491 : vector<16x256xbf16> to vector<16x256xf32>
    %493 = vector.broadcast %484 : vector<1x256xf32> to vector<16x256xf32>
    %494 = arith.mulf %492, %493 : vector<16x256xf32>
    %495 = arith.truncf %494 : vector<16x256xf32> to vector<16x256xbf16>
    %c112_331 = arith.constant 112 : index
    %c256_332 = arith.constant 256 : index
    %496 = vector.load %arg11[%c112_331, %c256_332] : memref<144x512xbf16, #tpu.memory_space<vmem>>, vector<16x256xbf16>
    tpu.vector_store %arg11[%c112_331, %c256_332], %495 {strides = array<i32>} : memref<144x512xbf16, #tpu.memory_space<vmem>>, vector<16x256xbf16>,
    %c8_333 = arith.constant 8 : index
    %c0_334 = arith.constant 0 : index
    %497 = vector.load %arg7[%c8_333, %c0_334] : memref<27x256xf32, #tpu.memory_space<vmem>>, vector<1x256xf32>
    %c0_335 = arith.constant 0 : index
    %c73_336 = arith.constant 73 : index
    %498 = vector.load %arg9[%c0_335, %c73_336] : memref<16x512xbf16, #tpu.memory_space<vmem>>, vector<16x256xbf16>
    %499 = arith.extf %498 : vector<16x256xbf16> to vector<16x256xf32>
    %500 = vector.broadcast %497 : vector<1x256xf32> to vector<16x256xf32>
    %501 = arith.mulf %499, %500 : vector<16x256xf32>
    %502 = arith.truncf %501 : vector<16x256xf32> to vector<16x256xbf16>
    %c128_337 = arith.constant 128 : index
    %c0_338 = arith.constant 0 : index
    %503 = vector.load %arg11[%c128_337, %c0_338] : memref<144x512xbf16, #tpu.memory_space<vmem>>, vector<16x256xbf16>
    tpu.vector_store %arg11[%c128_337, %c0_338], %502 {strides = array<i32>} : memref<144x512xbf16, #tpu.memory_space<vmem>>, vector<16x256xbf16>,
    %c0_339 = arith.constant 0 : index
    %c73_340 = arith.constant 73 : index
    %504 = vector.load %arg10[%c0_339, %c73_340] : memref<16x512xbf16, #tpu.memory_space<vmem>>, vector<16x256xbf16>
    %505 = arith.extf %504 : vector<16x256xbf16> to vector<16x256xf32>
    %506 = vector.broadcast %497 : vector<1x256xf32> to vector<16x256xf32>
    %507 = arith.mulf %505, %506 : vector<16x256xf32>
    %508 = arith.truncf %507 : vector<16x256xf32> to vector<16x256xbf16>
    %c128_341 = arith.constant 128 : index
    %c256_342 = arith.constant 256 : index
    %509 = vector.load %arg11[%c128_341, %c256_342] : memref<144x512xbf16, #tpu.memory_space<vmem>>, vector<16x256xbf16>
    tpu.vector_store %arg11[%c128_341, %c256_342], %508 {strides = array<i32>} : memref<144x512xbf16, #tpu.memory_space<vmem>>, vector<16x256xbf16>,
    %c0_343 = arith.constant 0 : index
    %c0_344 = arith.constant 0 : index
    %c0_345 = arith.constant 0 : index
    %510 = vector.load %arg4[%c0_343, %c0_344, %c0_345] : memref<3x16x144xbf16, #tpu.memory_space<vmem>>, vector<1x16x144xbf16>
    %511 = vector.shape_cast %510 : vector<1x16x144xbf16> to vector<16x144xbf16>
    %c0_346 = arith.constant 0 : index
    %c0_347 = arith.constant 0 : index
    %512 = vector.load %arg11[%c0_346, %c0_347] : memref<144x512xbf16, #tpu.memory_space<vmem>>, vector<144x512xbf16>
    %cst_348 = arith.constant dense<0.000000e+00> : vector<16x512xf32>
    %513 = tpu.matmul %511, %512, %cst_348 {dimension_numbers = #tpu.dot_dimension_numbers<[1], [0], [0], [1], [0, 0, 1, 1], [], []>} : vector<16x144xbf16>, vector<144x512xbf16>, vector<16x512xf32> -> vector<16x512xf32>
    %c9_349 = arith.constant 9 : index
    %c0_350 = arith.constant 0 : index
    %514 = vector.load %arg7[%c9_349, %c0_350] : memref<27x256xf32, #tpu.memory_space<vmem>>, vector<1x256xf32>
    %c0_351 = arith.constant 0 : index
    %c119_352 = arith.constant 119 : index
    %515 = vector.load %arg9[%c0_351, %c119_352] : memref<16x512xbf16, #tpu.memory_space<vmem>>, vector<16x256xbf16>
    %516 = arith.extf %515 : vector<16x256xbf16> to vector<16x256xf32>
    %517 = vector.broadcast %514 : vector<1x256xf32> to vector<16x256xf32>
    %518 = arith.mulf %516, %517 : vector<16x256xf32>
    %519 = arith.truncf %518 : vector<16x256xf32> to vector<16x256xbf16>
    %c0_353 = arith.constant 0 : index
    %c0_354 = arith.constant 0 : index
    %520 = vector.load %arg12[%c0_353, %c0_354] : memref<144x512xbf16, #tpu.memory_space<vmem>>, vector<16x256xbf16>
    tpu.vector_store %arg12[%c0_353, %c0_354], %519 {strides = array<i32>} : memref<144x512xbf16, #tpu.memory_space<vmem>>, vector<16x256xbf16>,
    %c0_355 = arith.constant 0 : index
    %c119_356 = arith.constant 119 : index
    %521 = vector.load %arg10[%c0_355, %c119_356] : memref<16x512xbf16, #tpu.memory_space<vmem>>, vector<16x256xbf16>
    %522 = arith.extf %521 : vector<16x256xbf16> to vector<16x256xf32>
    %523 = vector.broadcast %514 : vector<1x256xf32> to vector<16x256xf32>
    %524 = arith.mulf %522, %523 : vector<16x256xf32>
    %525 = arith.truncf %524 : vector<16x256xf32> to vector<16x256xbf16>
    %c0_357 = arith.constant 0 : index
    %c256_358 = arith.constant 256 : index
    %526 = vector.load %arg12[%c0_357, %c256_358] : memref<144x512xbf16, #tpu.memory_space<vmem>>, vector<16x256xbf16>
    tpu.vector_store %arg12[%c0_357, %c256_358], %525 {strides = array<i32>} : memref<144x512xbf16, #tpu.memory_space<vmem>>, vector<16x256xbf16>,
    %c10_359 = arith.constant 10 : index
    %c0_360 = arith.constant 0 : index
    %527 = vector.load %arg7[%c10_359, %c0_360] : memref<27x256xf32, #tpu.memory_space<vmem>>, vector<1x256xf32>
    %c0_361 = arith.constant 0 : index
    %c120_362 = arith.constant 120 : index
    %528 = vector.load %arg9[%c0_361, %c120_362] : memref<16x512xbf16, #tpu.memory_space<vmem>>, vector<16x256xbf16>
    %529 = arith.extf %528 : vector<16x256xbf16> to vector<16x256xf32>
    %530 = vector.broadcast %527 : vector<1x256xf32> to vector<16x256xf32>
    %531 = arith.mulf %529, %530 : vector<16x256xf32>
    %532 = arith.truncf %531 : vector<16x256xf32> to vector<16x256xbf16>
    %c16_363 = arith.constant 16 : index
    %c0_364 = arith.constant 0 : index
    %533 = vector.load %arg12[%c16_363, %c0_364] : memref<144x512xbf16, #tpu.memory_space<vmem>>, vector<16x256xbf16>
    tpu.vector_store %arg12[%c16_363, %c0_364], %532 {strides = array<i32>} : memref<144x512xbf16, #tpu.memory_space<vmem>>, vector<16x256xbf16>,
    %c0_365 = arith.constant 0 : index
    %c120_366 = arith.constant 120 : index
    %534 = vector.load %arg10[%c0_365, %c120_366] : memref<16x512xbf16, #tpu.memory_space<vmem>>, vector<16x256xbf16>
    %535 = arith.extf %534 : vector<16x256xbf16> to vector<16x256xf32>
    %536 = vector.broadcast %527 : vector<1x256xf32> to vector<16x256xf32>
    %537 = arith.mulf %535, %536 : vector<16x256xf32>
    %538 = arith.truncf %537 : vector<16x256xf32> to vector<16x256xbf16>
    %c16_367 = arith.constant 16 : index
    %c256_368 = arith.constant 256 : index
    %539 = vector.load %arg12[%c16_367, %c256_368] : memref<144x512xbf16, #tpu.memory_space<vmem>>, vector<16x256xbf16>
    tpu.vector_store %arg12[%c16_367, %c256_368], %538 {strides = array<i32>} : memref<144x512xbf16, #tpu.memory_space<vmem>>, vector<16x256xbf16>,
    %c11_369 = arith.constant 11 : index
    %c0_370 = arith.constant 0 : index
    %540 = vector.load %arg7[%c11_369, %c0_370] : memref<27x256xf32, #tpu.memory_space<vmem>>, vector<1x256xf32>
    %c0_371 = arith.constant 0 : index
    %c121_372 = arith.constant 121 : index
    %541 = vector.load %arg9[%c0_371, %c121_372] : memref<16x512xbf16, #tpu.memory_space<vmem>>, vector<16x256xbf16>
    %542 = arith.extf %541 : vector<16x256xbf16> to vector<16x256xf32>
    %543 = vector.broadcast %540 : vector<1x256xf32> to vector<16x256xf32>
    %544 = arith.mulf %542, %543 : vector<16x256xf32>
    %545 = arith.truncf %544 : vector<16x256xf32> to vector<16x256xbf16>
    %c32_373 = arith.constant 32 : index
    %c0_374 = arith.constant 0 : index
    %546 = vector.load %arg12[%c32_373, %c0_374] : memref<144x512xbf16, #tpu.memory_space<vmem>>, vector<16x256xbf16>
    tpu.vector_store %arg12[%c32_373, %c0_374], %545 {strides = array<i32>} : memref<144x512xbf16, #tpu.memory_space<vmem>>, vector<16x256xbf16>,
    %c0_375 = arith.constant 0 : index
    %c121_376 = arith.constant 121 : index
    %547 = vector.load %arg10[%c0_375, %c121_376] : memref<16x512xbf16, #tpu.memory_space<vmem>>, vector<16x256xbf16>
    %548 = arith.extf %547 : vector<16x256xbf16> to vector<16x256xf32>
    %549 = vector.broadcast %540 : vector<1x256xf32> to vector<16x256xf32>
    %550 = arith.mulf %548, %549 : vector<16x256xf32>
    %551 = arith.truncf %550 : vector<16x256xf32> to vector<16x256xbf16>
    %c32_377 = arith.constant 32 : index
    %c256_378 = arith.constant 256 : index
    %552 = vector.load %arg12[%c32_377, %c256_378] : memref<144x512xbf16, #tpu.memory_space<vmem>>, vector<16x256xbf16>
    tpu.vector_store %arg12[%c32_377, %c256_378], %551 {strides = array<i32>} : memref<144x512xbf16, #tpu.memory_space<vmem>>, vector<16x256xbf16>,
    %c12_379 = arith.constant 12 : index
    %c0_380 = arith.constant 0 : index
    %553 = vector.load %arg7[%c12_379, %c0_380] : memref<27x256xf32, #tpu.memory_space<vmem>>, vector<1x256xf32>
    %c0_381 = arith.constant 0 : index
    %c127_382 = arith.constant 127 : index
    %554 = vector.load %arg9[%c0_381, %c127_382] : memref<16x512xbf16, #tpu.memory_space<vmem>>, vector<16x256xbf16>
    %555 = arith.extf %554 : vector<16x256xbf16> to vector<16x256xf32>
    %556 = vector.broadcast %553 : vector<1x256xf32> to vector<16x256xf32>
    %557 = arith.mulf %555, %556 : vector<16x256xf32>
    %558 = arith.truncf %557 : vector<16x256xf32> to vector<16x256xbf16>
    %c48_383 = arith.constant 48 : index
    %c0_384 = arith.constant 0 : index
    %559 = vector.load %arg12[%c48_383, %c0_384] : memref<144x512xbf16, #tpu.memory_space<vmem>>, vector<16x256xbf16>
    tpu.vector_store %arg12[%c48_383, %c0_384], %558 {strides = array<i32>} : memref<144x512xbf16, #tpu.memory_space<vmem>>, vector<16x256xbf16>,
    %c0_385 = arith.constant 0 : index
    %c127_386 = arith.constant 127 : index
    %560 = vector.load %arg10[%c0_385, %c127_386] : memref<16x512xbf16, #tpu.memory_space<vmem>>, vector<16x256xbf16>
    %561 = arith.extf %560 : vector<16x256xbf16> to vector<16x256xf32>
    %562 = vector.broadcast %553 : vector<1x256xf32> to vector<16x256xf32>
    %563 = arith.mulf %561, %562 : vector<16x256xf32>
    %564 = arith.truncf %563 : vector<16x256xf32> to vector<16x256xbf16>
    %c48_387 = arith.constant 48 : index
    %c256_388 = arith.constant 256 : index
    %565 = vector.load %arg12[%c48_387, %c256_388] : memref<144x512xbf16, #tpu.memory_space<vmem>>, vector<16x256xbf16>
    tpu.vector_store %arg12[%c48_387, %c256_388], %564 {strides = array<i32>} : memref<144x512xbf16, #tpu.memory_space<vmem>>, vector<16x256xbf16>,
    %c13_389 = arith.constant 13 : index
    %c0_390 = arith.constant 0 : index
    %566 = vector.load %arg7[%c13_389, %c0_390] : memref<27x256xf32, #tpu.memory_space<vmem>>, vector<1x256xf32>
    %c0_391 = arith.constant 0 : index
    %c128_392 = arith.constant 128 : index
    %567 = vector.load %arg9[%c0_391, %c128_392] : memref<16x512xbf16, #tpu.memory_space<vmem>>, vector<16x256xbf16>
    %568 = arith.extf %567 : vector<16x256xbf16> to vector<16x256xf32>
    %569 = vector.broadcast %566 : vector<1x256xf32> to vector<16x256xf32>
    %570 = arith.mulf %568, %569 : vector<16x256xf32>
    %571 = arith.truncf %570 : vector<16x256xf32> to vector<16x256xbf16>
    %c64_393 = arith.constant 64 : index
    %c0_394 = arith.constant 0 : index
    %572 = vector.load %arg12[%c64_393, %c0_394] : memref<144x512xbf16, #tpu.memory_space<vmem>>, vector<16x256xbf16>
    tpu.vector_store %arg12[%c64_393, %c0_394], %571 {strides = array<i32>} : memref<144x512xbf16, #tpu.memory_space<vmem>>, vector<16x256xbf16>,
    %c0_395 = arith.constant 0 : index
    %c128_396 = arith.constant 128 : index
    %573 = vector.load %arg10[%c0_395, %c128_396] : memref<16x512xbf16, #tpu.memory_space<vmem>>, vector<16x256xbf16>
    %574 = arith.extf %573 : vector<16x256xbf16> to vector<16x256xf32>
    %575 = vector.broadcast %566 : vector<1x256xf32> to vector<16x256xf32>
    %576 = arith.mulf %574, %575 : vector<16x256xf32>
    %577 = arith.truncf %576 : vector<16x256xf32> to vector<16x256xbf16>
    %c64_397 = arith.constant 64 : index
    %c256_398 = arith.constant 256 : index
    %578 = vector.load %arg12[%c64_397, %c256_398] : memref<144x512xbf16, #tpu.memory_space<vmem>>, vector<16x256xbf16>
    tpu.vector_store %arg12[%c64_397, %c256_398], %577 {strides = array<i32>} : memref<144x512xbf16, #tpu.memory_space<vmem>>, vector<16x256xbf16>,
    %c14_399 = arith.constant 14 : index
    %c0_400 = arith.constant 0 : index
    %579 = vector.load %arg7[%c14_399, %c0_400] : memref<27x256xf32, #tpu.memory_space<vmem>>, vector<1x256xf32>
    %c0_401 = arith.constant 0 : index
    %c129_402 = arith.constant 129 : index
    %580 = vector.load %arg9[%c0_401, %c129_402] : memref<16x512xbf16, #tpu.memory_space<vmem>>, vector<16x256xbf16>
    %581 = arith.extf %580 : vector<16x256xbf16> to vector<16x256xf32>
    %582 = vector.broadcast %579 : vector<1x256xf32> to vector<16x256xf32>
    %583 = arith.mulf %581, %582 : vector<16x256xf32>
    %584 = arith.truncf %583 : vector<16x256xf32> to vector<16x256xbf16>
    %c80_403 = arith.constant 80 : index
    %c0_404 = arith.constant 0 : index
    %585 = vector.load %arg12[%c80_403, %c0_404] : memref<144x512xbf16, #tpu.memory_space<vmem>>, vector<16x256xbf16>
    tpu.vector_store %arg12[%c80_403, %c0_404], %584 {strides = array<i32>} : memref<144x512xbf16, #tpu.memory_space<vmem>>, vector<16x256xbf16>,
    %c0_405 = arith.constant 0 : index
    %c129_406 = arith.constant 129 : index
    %586 = vector.load %arg10[%c0_405, %c129_406] : memref<16x512xbf16, #tpu.memory_space<vmem>>, vector<16x256xbf16>
    %587 = arith.extf %586 : vector<16x256xbf16> to vector<16x256xf32>
    %588 = vector.broadcast %579 : vector<1x256xf32> to vector<16x256xf32>
    %589 = arith.mulf %587, %588 : vector<16x256xf32>
    %590 = arith.truncf %589 : vector<16x256xf32> to vector<16x256xbf16>
    %c80_407 = arith.constant 80 : index
    %c256_408 = arith.constant 256 : index
    %591 = vector.load %arg12[%c80_407, %c256_408] : memref<144x512xbf16, #tpu.memory_space<vmem>>, vector<16x256xbf16>
    tpu.vector_store %arg12[%c80_407, %c256_408], %590 {strides = array<i32>} : memref<144x512xbf16, #tpu.memory_space<vmem>>, vector<16x256xbf16>,
    %c15_409 = arith.constant 15 : index
    %c0_410 = arith.constant 0 : index
    %592 = vector.load %arg7[%c15_409, %c0_410] : memref<27x256xf32, #tpu.memory_space<vmem>>, vector<1x256xf32>
    %c0_411 = arith.constant 0 : index
    %c135_412 = arith.constant 135 : index
    %593 = vector.load %arg9[%c0_411, %c135_412] : memref<16x512xbf16, #tpu.memory_space<vmem>>, vector<16x256xbf16>
    %594 = arith.extf %593 : vector<16x256xbf16> to vector<16x256xf32>
    %595 = vector.broadcast %592 : vector<1x256xf32> to vector<16x256xf32>
    %596 = arith.mulf %594, %595 : vector<16x256xf32>
    %597 = arith.truncf %596 : vector<16x256xf32> to vector<16x256xbf16>
    %c96_413 = arith.constant 96 : index
    %c0_414 = arith.constant 0 : index
    %598 = vector.load %arg12[%c96_413, %c0_414] : memref<144x512xbf16, #tpu.memory_space<vmem>>, vector<16x256xbf16>
    tpu.vector_store %arg12[%c96_413, %c0_414], %597 {strides = array<i32>} : memref<144x512xbf16, #tpu.memory_space<vmem>>, vector<16x256xbf16>,
    %c0_415 = arith.constant 0 : index
    %c135_416 = arith.constant 135 : index
    %599 = vector.load %arg10[%c0_415, %c135_416] : memref<16x512xbf16, #tpu.memory_space<vmem>>, vector<16x256xbf16>
    %600 = arith.extf %599 : vector<16x256xbf16> to vector<16x256xf32>
    %601 = vector.broadcast %592 : vector<1x256xf32> to vector<16x256xf32>
    %602 = arith.mulf %600, %601 : vector<16x256xf32>
    %603 = arith.truncf %602 : vector<16x256xf32> to vector<16x256xbf16>
    %c96_417 = arith.constant 96 : index
    %c256_418 = arith.constant 256 : index
    %604 = vector.load %arg12[%c96_417, %c256_418] : memref<144x512xbf16, #tpu.memory_space<vmem>>, vector<16x256xbf16>
    tpu.vector_store %arg12[%c96_417, %c256_418], %603 {strides = array<i32>} : memref<144x512xbf16, #tpu.memory_space<vmem>>, vector<16x256xbf16>,
    %c16_419 = arith.constant 16 : index
    %c0_420 = arith.constant 0 : index
    %605 = vector.load %arg7[%c16_419, %c0_420] : memref<27x256xf32, #tpu.memory_space<vmem>>, vector<1x256xf32>
    %c0_421 = arith.constant 0 : index
    %c136_422 = arith.constant 136 : index
    %606 = vector.load %arg9[%c0_421, %c136_422] : memref<16x512xbf16, #tpu.memory_space<vmem>>, vector<16x256xbf16>
    %607 = arith.extf %606 : vector<16x256xbf16> to vector<16x256xf32>
    %608 = vector.broadcast %605 : vector<1x256xf32> to vector<16x256xf32>
    %609 = arith.mulf %607, %608 : vector<16x256xf32>
    %610 = arith.truncf %609 : vector<16x256xf32> to vector<16x256xbf16>
    %c112_423 = arith.constant 112 : index
    %c0_424 = arith.constant 0 : index
    %611 = vector.load %arg12[%c112_423, %c0_424] : memref<144x512xbf16, #tpu.memory_space<vmem>>, vector<16x256xbf16>
    tpu.vector_store %arg12[%c112_423, %c0_424], %610 {strides = array<i32>} : memref<144x512xbf16, #tpu.memory_space<vmem>>, vector<16x256xbf16>,
    %c0_425 = arith.constant 0 : index
    %c136_426 = arith.constant 136 : index
    %612 = vector.load %arg10[%c0_425, %c136_426] : memref<16x512xbf16, #tpu.memory_space<vmem>>, vector<16x256xbf16>
    %613 = arith.extf %612 : vector<16x256xbf16> to vector<16x256xf32>
    %614 = vector.broadcast %605 : vector<1x256xf32> to vector<16x256xf32>
    %615 = arith.mulf %613, %614 : vector<16x256xf32>
    %616 = arith.truncf %615 : vector<16x256xf32> to vector<16x256xbf16>
    %c112_427 = arith.constant 112 : index
    %c256_428 = arith.constant 256 : index
    %617 = vector.load %arg12[%c112_427, %c256_428] : memref<144x512xbf16, #tpu.memory_space<vmem>>, vector<16x256xbf16>
    tpu.vector_store %arg12[%c112_427, %c256_428], %616 {strides = array<i32>} : memref<144x512xbf16, #tpu.memory_space<vmem>>, vector<16x256xbf16>,
    %c17_429 = arith.constant 17 : index
    %c0_430 = arith.constant 0 : index
    %618 = vector.load %arg7[%c17_429, %c0_430] : memref<27x256xf32, #tpu.memory_space<vmem>>, vector<1x256xf32>
    %c0_431 = arith.constant 0 : index
    %c137_432 = arith.constant 137 : index
    %619 = vector.load %arg9[%c0_431, %c137_432] : memref<16x512xbf16, #tpu.memory_space<vmem>>, vector<16x256xbf16>
    %620 = arith.extf %619 : vector<16x256xbf16> to vector<16x256xf32>
    %621 = vector.broadcast %618 : vector<1x256xf32> to vector<16x256xf32>
    %622 = arith.mulf %620, %621 : vector<16x256xf32>
    %623 = arith.truncf %622 : vector<16x256xf32> to vector<16x256xbf16>
    %c128_433 = arith.constant 128 : index
    %c0_434 = arith.constant 0 : index
    %624 = vector.load %arg12[%c128_433, %c0_434] : memref<144x512xbf16, #tpu.memory_space<vmem>>, vector<16x256xbf16>
    tpu.vector_store %arg12[%c128_433, %c0_434], %623 {strides = array<i32>} : memref<144x512xbf16, #tpu.memory_space<vmem>>, vector<16x256xbf16>,
    %c0_435 = arith.constant 0 : index
    %c137_436 = arith.constant 137 : index
    %625 = vector.load %arg10[%c0_435, %c137_436] : memref<16x512xbf16, #tpu.memory_space<vmem>>, vector<16x256xbf16>
    %626 = arith.extf %625 : vector<16x256xbf16> to vector<16x256xf32>
    %627 = vector.broadcast %618 : vector<1x256xf32> to vector<16x256xf32>
    %628 = arith.mulf %626, %627 : vector<16x256xf32>
    %629 = arith.truncf %628 : vector<16x256xf32> to vector<16x256xbf16>
    %c128_437 = arith.constant 128 : index
    %c256_438 = arith.constant 256 : index
    %630 = vector.load %arg12[%c128_437, %c256_438] : memref<144x512xbf16, #tpu.memory_space<vmem>>, vector<16x256xbf16>
    tpu.vector_store %arg12[%c128_437, %c256_438], %629 {strides = array<i32>} : memref<144x512xbf16, #tpu.memory_space<vmem>>, vector<16x256xbf16>,
    %c1_439 = arith.constant 1 : index
    %c0_440 = arith.constant 0 : index
    %c0_441 = arith.constant 0 : index
    %631 = vector.load %arg4[%c1_439, %c0_440, %c0_441] : memref<3x16x144xbf16, #tpu.memory_space<vmem>>, vector<1x16x144xbf16>
    %632 = vector.shape_cast %631 : vector<1x16x144xbf16> to vector<16x144xbf16>
    %c0_442 = arith.constant 0 : index
    %c0_443 = arith.constant 0 : index
    %633 = vector.load %arg12[%c0_442, %c0_443] : memref<144x512xbf16, #tpu.memory_space<vmem>>, vector<144x512xbf16>
    %cst_444 = arith.constant dense<0.000000e+00> : vector<16x512xf32>
    %634 = tpu.matmul %632, %633, %cst_444 {dimension_numbers = #tpu.dot_dimension_numbers<[1], [0], [0], [1], [0, 0, 1, 1], [], []>} : vector<16x144xbf16>, vector<144x512xbf16>, vector<16x512xf32> -> vector<16x512xf32>
    %635 = arith.addf %513, %634 : vector<16x512xf32>
    %c18_445 = arith.constant 18 : index
    %c0_446 = arith.constant 0 : index
    %636 = vector.load %arg7[%c18_445, %c0_446] : memref<27x256xf32, #tpu.memory_space<vmem>>, vector<1x256xf32>
    %c0_447 = arith.constant 0 : index
    %c183_448 = arith.constant 183 : index
    %637 = vector.load %arg9[%c0_447, %c183_448] : memref<16x512xbf16, #tpu.memory_space<vmem>>, vector<16x256xbf16>
    %638 = arith.extf %637 : vector<16x256xbf16> to vector<16x256xf32>
    %639 = vector.broadcast %636 : vector<1x256xf32> to vector<16x256xf32>
    %640 = arith.mulf %638, %639 : vector<16x256xf32>
    %641 = arith.truncf %640 : vector<16x256xf32> to vector<16x256xbf16>
    %c0_449 = arith.constant 0 : index
    %c0_450 = arith.constant 0 : index
    %642 = vector.load %arg11[%c0_449, %c0_450] : memref<144x512xbf16, #tpu.memory_space<vmem>>, vector<16x256xbf16>
    tpu.vector_store %arg11[%c0_449, %c0_450], %641 {strides = array<i32>} : memref<144x512xbf16, #tpu.memory_space<vmem>>, vector<16x256xbf16>,
    %c0_451 = arith.constant 0 : index
    %c183_452 = arith.constant 183 : index
    %643 = vector.load %arg10[%c0_451, %c183_452] : memref<16x512xbf16, #tpu.memory_space<vmem>>, vector<16x256xbf16>
    %644 = arith.extf %643 : vector<16x256xbf16> to vector<16x256xf32>
    %645 = vector.broadcast %636 : vector<1x256xf32> to vector<16x256xf32>
    %646 = arith.mulf %644, %645 : vector<16x256xf32>
    %647 = arith.truncf %646 : vector<16x256xf32> to vector<16x256xbf16>
    %c0_453 = arith.constant 0 : index
    %c256_454 = arith.constant 256 : index
    %648 = vector.load %arg11[%c0_453, %c256_454] : memref<144x512xbf16, #tpu.memory_space<vmem>>, vector<16x256xbf16>
    tpu.vector_store %arg11[%c0_453, %c256_454], %647 {strides = array<i32>} : memref<144x512xbf16, #tpu.memory_space<vmem>>, vector<16x256xbf16>,
    %c19_455 = arith.constant 19 : index
    %c0_456 = arith.constant 0 : index
    %649 = vector.load %arg7[%c19_455, %c0_456] : memref<27x256xf32, #tpu.memory_space<vmem>>, vector<1x256xf32>
    %c0_457 = arith.constant 0 : index
    %c184_458 = arith.constant 184 : index
    %650 = vector.load %arg9[%c0_457, %c184_458] : memref<16x512xbf16, #tpu.memory_space<vmem>>, vector<16x256xbf16>
    %651 = arith.extf %650 : vector<16x256xbf16> to vector<16x256xf32>
    %652 = vector.broadcast %649 : vector<1x256xf32> to vector<16x256xf32>
    %653 = arith.mulf %651, %652 : vector<16x256xf32>
    %654 = arith.truncf %653 : vector<16x256xf32> to vector<16x256xbf16>
    %c16_459 = arith.constant 16 : index
    %c0_460 = arith.constant 0 : index
    %655 = vector.load %arg11[%c16_459, %c0_460] : memref<144x512xbf16, #tpu.memory_space<vmem>>, vector<16x256xbf16>
    tpu.vector_store %arg11[%c16_459, %c0_460], %654 {strides = array<i32>} : memref<144x512xbf16, #tpu.memory_space<vmem>>, vector<16x256xbf16>,
    %c0_461 = arith.constant 0 : index
    %c184_462 = arith.constant 184 : index
    %656 = vector.load %arg10[%c0_461, %c184_462] : memref<16x512xbf16, #tpu.memory_space<vmem>>, vector<16x256xbf16>
    %657 = arith.extf %656 : vector<16x256xbf16> to vector<16x256xf32>
    %658 = vector.broadcast %649 : vector<1x256xf32> to vector<16x256xf32>
    %659 = arith.mulf %657, %658 : vector<16x256xf32>
    %660 = arith.truncf %659 : vector<16x256xf32> to vector<16x256xbf16>
    %c16_463 = arith.constant 16 : index
    %c256_464 = arith.constant 256 : index
    %661 = vector.load %arg11[%c16_463, %c256_464] : memref<144x512xbf16, #tpu.memory_space<vmem>>, vector<16x256xbf16>
    tpu.vector_store %arg11[%c16_463, %c256_464], %660 {strides = array<i32>} : memref<144x512xbf16, #tpu.memory_space<vmem>>, vector<16x256xbf16>,
    %c20_465 = arith.constant 20 : index
    %c0_466 = arith.constant 0 : index
    %662 = vector.load %arg7[%c20_465, %c0_466] : memref<27x256xf32, #tpu.memory_space<vmem>>, vector<1x256xf32>
    %c0_467 = arith.constant 0 : index
    %c185_468 = arith.constant 185 : index
    %663 = vector.load %arg9[%c0_467, %c185_468] : memref<16x512xbf16, #tpu.memory_space<vmem>>, vector<16x256xbf16>
    %664 = arith.extf %663 : vector<16x256xbf16> to vector<16x256xf32>
    %665 = vector.broadcast %662 : vector<1x256xf32> to vector<16x256xf32>
    %666 = arith.mulf %664, %665 : vector<16x256xf32>
    %667 = arith.truncf %666 : vector<16x256xf32> to vector<16x256xbf16>
    %c32_469 = arith.constant 32 : index
    %c0_470 = arith.constant 0 : index
    %668 = vector.load %arg11[%c32_469, %c0_470] : memref<144x512xbf16, #tpu.memory_space<vmem>>, vector<16x256xbf16>
    tpu.vector_store %arg11[%c32_469, %c0_470], %667 {strides = array<i32>} : memref<144x512xbf16, #tpu.memory_space<vmem>>, vector<16x256xbf16>,
    %c0_471 = arith.constant 0 : index
    %c185_472 = arith.constant 185 : index
    %669 = vector.load %arg10[%c0_471, %c185_472] : memref<16x512xbf16, #tpu.memory_space<vmem>>, vector<16x256xbf16>
    %670 = arith.extf %669 : vector<16x256xbf16> to vector<16x256xf32>
    %671 = vector.broadcast %662 : vector<1x256xf32> to vector<16x256xf32>
    %672 = arith.mulf %670, %671 : vector<16x256xf32>
    %673 = arith.truncf %672 : vector<16x256xf32> to vector<16x256xbf16>
    %c32_473 = arith.constant 32 : index
    %c256_474 = arith.constant 256 : index
    %674 = vector.load %arg11[%c32_473, %c256_474] : memref<144x512xbf16, #tpu.memory_space<vmem>>, vector<16x256xbf16>
    tpu.vector_store %arg11[%c32_473, %c256_474], %673 {strides = array<i32>} : memref<144x512xbf16, #tpu.memory_space<vmem>>, vector<16x256xbf16>,
    %c21_475 = arith.constant 21 : index
    %c0_476 = arith.constant 0 : index
    %675 = vector.load %arg7[%c21_475, %c0_476] : memref<27x256xf32, #tpu.memory_space<vmem>>, vector<1x256xf32>
    %c0_477 = arith.constant 0 : index
    %c191_478 = arith.constant 191 : index
    %676 = vector.load %arg9[%c0_477, %c191_478] : memref<16x512xbf16, #tpu.memory_space<vmem>>, vector<16x256xbf16>
    %677 = arith.extf %676 : vector<16x256xbf16> to vector<16x256xf32>
    %678 = vector.broadcast %675 : vector<1x256xf32> to vector<16x256xf32>
    %679 = arith.mulf %677, %678 : vector<16x256xf32>
    %680 = arith.truncf %679 : vector<16x256xf32> to vector<16x256xbf16>
    %c48_479 = arith.constant 48 : index
    %c0_480 = arith.constant 0 : index
    %681 = vector.load %arg11[%c48_479, %c0_480] : memref<144x512xbf16, #tpu.memory_space<vmem>>, vector<16x256xbf16>
    tpu.vector_store %arg11[%c48_479, %c0_480], %680 {strides = array<i32>} : memref<144x512xbf16, #tpu.memory_space<vmem>>, vector<16x256xbf16>,
    %c0_481 = arith.constant 0 : index
    %c191_482 = arith.constant 191 : index
    %682 = vector.load %arg10[%c0_481, %c191_482] : memref<16x512xbf16, #tpu.memory_space<vmem>>, vector<16x256xbf16>
    %683 = arith.extf %682 : vector<16x256xbf16> to vector<16x256xf32>
    %684 = vector.broadcast %675 : vector<1x256xf32> to vector<16x256xf32>
    %685 = arith.mulf %683, %684 : vector<16x256xf32>
    %686 = arith.truncf %685 : vector<16x256xf32> to vector<16x256xbf16>
    %c48_483 = arith.constant 48 : index
    %c256_484 = arith.constant 256 : index
    %687 = vector.load %arg11[%c48_483, %c256_484] : memref<144x512xbf16, #tpu.memory_space<vmem>>, vector<16x256xbf16>
    tpu.vector_store %arg11[%c48_483, %c256_484], %686 {strides = array<i32>} : memref<144x512xbf16, #tpu.memory_space<vmem>>, vector<16x256xbf16>,
    %c22_485 = arith.constant 22 : index
    %c0_486 = arith.constant 0 : index
    %688 = vector.load %arg7[%c22_485, %c0_486] : memref<27x256xf32, #tpu.memory_space<vmem>>, vector<1x256xf32>
    %c0_487 = arith.constant 0 : index
    %c192_488 = arith.constant 192 : index
    %689 = vector.load %arg9[%c0_487, %c192_488] : memref<16x512xbf16, #tpu.memory_space<vmem>>, vector<16x256xbf16>
    %690 = arith.extf %689 : vector<16x256xbf16> to vector<16x256xf32>
    %691 = vector.broadcast %688 : vector<1x256xf32> to vector<16x256xf32>
    %692 = arith.mulf %690, %691 : vector<16x256xf32>
    %693 = arith.truncf %692 : vector<16x256xf32> to vector<16x256xbf16>
    %c64_489 = arith.constant 64 : index
    %c0_490 = arith.constant 0 : index
    %694 = vector.load %arg11[%c64_489, %c0_490] : memref<144x512xbf16, #tpu.memory_space<vmem>>, vector<16x256xbf16>
    tpu.vector_store %arg11[%c64_489, %c0_490], %693 {strides = array<i32>} : memref<144x512xbf16, #tpu.memory_space<vmem>>, vector<16x256xbf16>,
    %c0_491 = arith.constant 0 : index
    %c192_492 = arith.constant 192 : index
    %695 = vector.load %arg10[%c0_491, %c192_492] : memref<16x512xbf16, #tpu.memory_space<vmem>>, vector<16x256xbf16>
    %696 = arith.extf %695 : vector<16x256xbf16> to vector<16x256xf32>
    %697 = vector.broadcast %688 : vector<1x256xf32> to vector<16x256xf32>
    %698 = arith.mulf %696, %697 : vector<16x256xf32>
    %699 = arith.truncf %698 : vector<16x256xf32> to vector<16x256xbf16>
    %c64_493 = arith.constant 64 : index
    %c256_494 = arith.constant 256 : index
    %700 = vector.load %arg11[%c64_493, %c256_494] : memref<144x512xbf16, #tpu.memory_space<vmem>>, vector<16x256xbf16>
    tpu.vector_store %arg11[%c64_493, %c256_494], %699 {strides = array<i32>} : memref<144x512xbf16, #tpu.memory_space<vmem>>, vector<16x256xbf16>,
    %c23_495 = arith.constant 23 : index
    %c0_496 = arith.constant 0 : index
    %701 = vector.load %arg7[%c23_495, %c0_496] : memref<27x256xf32, #tpu.memory_space<vmem>>, vector<1x256xf32>
    %c0_497 = arith.constant 0 : index
    %c193_498 = arith.constant 193 : index
    %702 = vector.load %arg9[%c0_497, %c193_498] : memref<16x512xbf16, #tpu.memory_space<vmem>>, vector<16x256xbf16>
    %703 = arith.extf %702 : vector<16x256xbf16> to vector<16x256xf32>
    %704 = vector.broadcast %701 : vector<1x256xf32> to vector<16x256xf32>
    %705 = arith.mulf %703, %704 : vector<16x256xf32>
    %706 = arith.truncf %705 : vector<16x256xf32> to vector<16x256xbf16>
    %c80_499 = arith.constant 80 : index
    %c0_500 = arith.constant 0 : index
    %707 = vector.load %arg11[%c80_499, %c0_500] : memref<144x512xbf16, #tpu.memory_space<vmem>>, vector<16x256xbf16>
    tpu.vector_store %arg11[%c80_499, %c0_500], %706 {strides = array<i32>} : memref<144x512xbf16, #tpu.memory_space<vmem>>, vector<16x256xbf16>,
    %c0_501 = arith.constant 0 : index
    %c193_502 = arith.constant 193 : index
    %708 = vector.load %arg10[%c0_501, %c193_502] : memref<16x512xbf16, #tpu.memory_space<vmem>>, vector<16x256xbf16>
    %709 = arith.extf %708 : vector<16x256xbf16> to vector<16x256xf32>
    %710 = vector.broadcast %701 : vector<1x256xf32> to vector<16x256xf32>
    %711 = arith.mulf %709, %710 : vector<16x256xf32>
    %712 = arith.truncf %711 : vector<16x256xf32> to vector<16x256xbf16>
    %c80_503 = arith.constant 80 : index
    %c256_504 = arith.constant 256 : index
    %713 = vector.load %arg11[%c80_503, %c256_504] : memref<144x512xbf16, #tpu.memory_space<vmem>>, vector<16x256xbf16>
    tpu.vector_store %arg11[%c80_503, %c256_504], %712 {strides = array<i32>} : memref<144x512xbf16, #tpu.memory_space<vmem>>, vector<16x256xbf16>,
    %c24_505 = arith.constant 24 : index
    %c0_506 = arith.constant 0 : index
    %714 = vector.load %arg7[%c24_505, %c0_506] : memref<27x256xf32, #tpu.memory_space<vmem>>, vector<1x256xf32>
    %c0_507 = arith.constant 0 : index
    %c199_508 = arith.constant 199 : index
    %715 = vector.load %arg9[%c0_507, %c199_508] : memref<16x512xbf16, #tpu.memory_space<vmem>>, vector<16x256xbf16>
    %716 = arith.extf %715 : vector<16x256xbf16> to vector<16x256xf32>
    %717 = vector.broadcast %714 : vector<1x256xf32> to vector<16x256xf32>
    %718 = arith.mulf %716, %717 : vector<16x256xf32>
    %719 = arith.truncf %718 : vector<16x256xf32> to vector<16x256xbf16>
    %c96_509 = arith.constant 96 : index
    %c0_510 = arith.constant 0 : index
    %720 = vector.load %arg11[%c96_509, %c0_510] : memref<144x512xbf16, #tpu.memory_space<vmem>>, vector<16x256xbf16>
    tpu.vector_store %arg11[%c96_509, %c0_510], %719 {strides = array<i32>} : memref<144x512xbf16, #tpu.memory_space<vmem>>, vector<16x256xbf16>,
    %c0_511 = arith.constant 0 : index
    %c199_512 = arith.constant 199 : index
    %721 = vector.load %arg10[%c0_511, %c199_512] : memref<16x512xbf16, #tpu.memory_space<vmem>>, vector<16x256xbf16>
    %722 = arith.extf %721 : vector<16x256xbf16> to vector<16x256xf32>
    %723 = vector.broadcast %714 : vector<1x256xf32> to vector<16x256xf32>
    %724 = arith.mulf %722, %723 : vector<16x256xf32>
    %725 = arith.truncf %724 : vector<16x256xf32> to vector<16x256xbf16>
    %c96_513 = arith.constant 96 : index
    %c256_514 = arith.constant 256 : index
    %726 = vector.load %arg11[%c96_513, %c256_514] : memref<144x512xbf16, #tpu.memory_space<vmem>>, vector<16x256xbf16>
    tpu.vector_store %arg11[%c96_513, %c256_514], %725 {strides = array<i32>} : memref<144x512xbf16, #tpu.memory_space<vmem>>, vector<16x256xbf16>,
    %c25_515 = arith.constant 25 : index
    %c0_516 = arith.constant 0 : index
    %727 = vector.load %arg7[%c25_515, %c0_516] : memref<27x256xf32, #tpu.memory_space<vmem>>, vector<1x256xf32>
    %c0_517 = arith.constant 0 : index
    %c200_518 = arith.constant 200 : index
    %728 = vector.load %arg9[%c0_517, %c200_518] : memref<16x512xbf16, #tpu.memory_space<vmem>>, vector<16x256xbf16>
    %729 = arith.extf %728 : vector<16x256xbf16> to vector<16x256xf32>
    %730 = vector.broadcast %727 : vector<1x256xf32> to vector<16x256xf32>
    %731 = arith.mulf %729, %730 : vector<16x256xf32>
    %732 = arith.truncf %731 : vector<16x256xf32> to vector<16x256xbf16>
    %c112_519 = arith.constant 112 : index
    %c0_520 = arith.constant 0 : index
    %733 = vector.load %arg11[%c112_519, %c0_520] : memref<144x512xbf16, #tpu.memory_space<vmem>>, vector<16x256xbf16>
    tpu.vector_store %arg11[%c112_519, %c0_520], %732 {strides = array<i32>} : memref<144x512xbf16, #tpu.memory_space<vmem>>, vector<16x256xbf16>,
    %c0_521 = arith.constant 0 : index
    %c200_522 = arith.constant 200 : index
    %734 = vector.load %arg10[%c0_521, %c200_522] : memref<16x512xbf16, #tpu.memory_space<vmem>>, vector<16x256xbf16>
    %735 = arith.extf %734 : vector<16x256xbf16> to vector<16x256xf32>
    %736 = vector.broadcast %727 : vector<1x256xf32> to vector<16x256xf32>
    %737 = arith.mulf %735, %736 : vector<16x256xf32>
    %738 = arith.truncf %737 : vector<16x256xf32> to vector<16x256xbf16>
    %c112_523 = arith.constant 112 : index
    %c256_524 = arith.constant 256 : index
    %739 = vector.load %arg11[%c112_523, %c256_524] : memref<144x512xbf16, #tpu.memory_space<vmem>>, vector<16x256xbf16>
    tpu.vector_store %arg11[%c112_523, %c256_524], %738 {strides = array<i32>} : memref<144x512xbf16, #tpu.memory_space<vmem>>, vector<16x256xbf16>,
    %c26_525 = arith.constant 26 : index
    %c0_526 = arith.constant 0 : index
    %740 = vector.load %arg7[%c26_525, %c0_526] : memref<27x256xf32, #tpu.memory_space<vmem>>, vector<1x256xf32>
    %c0_527 = arith.constant 0 : index
    %c201_528 = arith.constant 201 : index
    %741 = vector.load %arg9[%c0_527, %c201_528] : memref<16x512xbf16, #tpu.memory_space<vmem>>, vector<16x256xbf16>
    %742 = arith.extf %741 : vector<16x256xbf16> to vector<16x256xf32>
    %743 = vector.broadcast %740 : vector<1x256xf32> to vector<16x256xf32>
    %744 = arith.mulf %742, %743 : vector<16x256xf32>
    %745 = arith.truncf %744 : vector<16x256xf32> to vector<16x256xbf16>
    %c128_529 = arith.constant 128 : index
    %c0_530 = arith.constant 0 : index
    %746 = vector.load %arg11[%c128_529, %c0_530] : memref<144x512xbf16, #tpu.memory_space<vmem>>, vector<16x256xbf16>
    tpu.vector_store %arg11[%c128_529, %c0_530], %745 {strides = array<i32>} : memref<144x512xbf16, #tpu.memory_space<vmem>>, vector<16x256xbf16>,
    %c0_531 = arith.constant 0 : index
    %c201_532 = arith.constant 201 : index
    %747 = vector.load %arg10[%c0_531, %c201_532] : memref<16x512xbf16, #tpu.memory_space<vmem>>, vector<16x256xbf16>
    %748 = arith.extf %747 : vector<16x256xbf16> to vector<16x256xf32>
    %749 = vector.broadcast %740 : vector<1x256xf32> to vector<16x256xf32>
    %750 = arith.mulf %748, %749 : vector<16x256xf32>
    %751 = arith.truncf %750 : vector<16x256xf32> to vector<16x256xbf16>
    %c128_533 = arith.constant 128 : index
    %c256_534 = arith.constant 256 : index
    %752 = vector.load %arg11[%c128_533, %c256_534] : memref<144x512xbf16, #tpu.memory_space<vmem>>, vector<16x256xbf16>
    tpu.vector_store %arg11[%c128_533, %c256_534], %751 {strides = array<i32>} : memref<144x512xbf16, #tpu.memory_space<vmem>>, vector<16x256xbf16>,
    %c2_535 = arith.constant 2 : index
    %c0_536 = arith.constant 0 : index
    %c0_537 = arith.constant 0 : index
    %753 = vector.load %arg4[%c2_535, %c0_536, %c0_537] : memref<3x16x144xbf16, #tpu.memory_space<vmem>>, vector<1x16x144xbf16>
    %754 = vector.shape_cast %753 : vector<1x16x144xbf16> to vector<16x144xbf16>
    %c0_538 = arith.constant 0 : index
    %c0_539 = arith.constant 0 : index
    %755 = vector.load %arg11[%c0_538, %c0_539] : memref<144x512xbf16, #tpu.memory_space<vmem>>, vector<144x512xbf16>
    %cst_540 = arith.constant dense<0.000000e+00> : vector<16x512xf32>
    %756 = tpu.matmul %754, %755, %cst_540 {dimension_numbers = #tpu.dot_dimension_numbers<[1], [0], [0], [1], [0, 0, 1, 1], [], []>} : vector<16x144xbf16>, vector<144x512xbf16>, vector<16x512xf32> -> vector<16x512xf32>
    %757 = arith.addf %635, %756 : vector<16x512xf32>
    %c0_541 = arith.constant 0 : index
    %c0_542 = arith.constant 0 : index
    %758 = vector.load %arg5[%c0_541, %c0_542] : memref<16x1xf32, #tpu.memory_space<vmem>>, vector<16x1xf32>
    %759 = vector.broadcast %758 : vector<16x1xf32> to vector<16x512xf32>
    %760 = arith.addf %757, %759 : vector<16x512xf32>
    %761 = vector.extract_strided_slice %760 {offsets = [0, 0], sizes = [16, 256], strides = [1, 1]} : vector<16x512xf32> to vector<16x256xf32>
    %cst_543 = arith.constant 1.000000e-01 : f32
    %762 = vector.broadcast %cst_543 : f32 to vector<16x256xf32>
    %763 = arith.mulf %761, %762 : vector<16x256xf32>
    %c0_544 = arith.constant 0 : index
    %c0_545 = arith.constant 0 : index
    %c0_546 = arith.constant 0 : index
    %764 = vector.load %arg1[%c0_544, %c0_545, %c0_546] : memref<2x16x256xf32, #tpu.memory_space<vmem>>, vector<1x16x256xf32>
    %765 = vector.shape_cast %764 : vector<1x16x256xf32> to vector<16x256xf32>
    %766 = arith.addf %763, %765 : vector<16x256xf32>
    %c0_547 = arith.constant 0 : index
    %c0_548 = arith.constant 0 : index
    %c0_549 = arith.constant 0 : index
    %767 = vector.load %arg8[%c0_547, %c0_548, %c0_549] : memref<2x16x256xf32, #tpu.memory_space<vmem>>, vector<1x16x256xf32>
    %768 = vector.shape_cast %767 : vector<1x16x256xf32> to vector<16x256xf32>
    %769 = vector.shape_cast %766 : vector<16x256xf32> to vector<1x16x256xf32>
    tpu.vector_store %arg8[%c0_547, %c0_548, %c0_549], %769 {strides = array<i32>} : memref<2x16x256xf32, #tpu.memory_space<vmem>>, vector<1x16x256xf32>,
    %770 = vector.extract_strided_slice %760 {offsets = [0, 256], sizes = [16, 256], strides = [1, 1]} : vector<16x512xf32> to vector<16x256xf32>
    %cst_550 = arith.constant 1.000000e-01 : f32
    %771 = vector.broadcast %cst_550 : f32 to vector<16x256xf32>
    %772 = arith.mulf %770, %771 : vector<16x256xf32>
    %c1_551 = arith.constant 1 : index
    %c0_552 = arith.constant 0 : index
    %c0_553 = arith.constant 0 : index
    %773 = vector.load %arg1[%c1_551, %c0_552, %c0_553] : memref<2x16x256xf32, #tpu.memory_space<vmem>>, vector<1x16x256xf32>
    %774 = vector.shape_cast %773 : vector<1x16x256xf32> to vector<16x256xf32>
    %775 = arith.addf %772, %774 : vector<16x256xf32>
    %c1_554 = arith.constant 1 : index
    %c0_555 = arith.constant 0 : index
    %c0_556 = arith.constant 0 : index
    %776 = vector.load %arg8[%c1_554, %c0_555, %c0_556] : memref<2x16x256xf32, #tpu.memory_space<vmem>>, vector<1x16x256xf32>
    %777 = vector.shape_cast %776 : vector<1x16x256xf32> to vector<16x256xf32>
    %778 = vector.shape_cast %775 : vector<16x256xf32> to vector<1x16x256xf32>
    tpu.vector_store %arg8[%c1_554, %c0_555, %c0_556], %778 {strides = array<i32>} : memref<2x16x256xf32, #tpu.memory_space<vmem>>, vector<1x16x256xf32>,
    return
  }
  func.func @transform_0(%arg0: i32) -> (i32, i32, i32) {
    %c0_i32 = arith.constant 0 : i32
    %c0_i32_0 = arith.constant 0 : i32
    %c0_i32_1 = arith.constant 0 : i32
    return %arg0, %c0_i32, %c0_i32_0 : i32, i32, i32
  }
  func.func @transform_1(%arg0: i32) -> (i32, i32, i32) {
    %c0_i32 = arith.constant 0 : i32
    %c0_i32_0 = arith.constant 0 : i32
    %c0_i32_1 = arith.constant 0 : i32
    %c0_i32_2 = arith.constant 0 : i32
    return %c0_i32, %c0_i32_0, %c0_i32_1 : i32, i32, i32
  }
  func.func @transform_2(%arg0: i32) -> (i32, i32) {
    %c0_i32 = arith.constant 0 : i32
    %c0_i32_0 = arith.constant 0 : i32
    %c0_i32_1 = arith.constant 0 : i32
    return %c0_i32, %c0_i32_0 : i32, i32
  }
  func.func @transform_3(%arg0: i32) -> (i32, i32, i32) {
    %c0_i32 = arith.constant 0 : i32
    %c0_i32_0 = arith.constant 0 : i32
    %c0_i32_1 = arith.constant 0 : i32
    %c0_i32_2 = arith.constant 0 : i32
    return %c0_i32, %c0_i32_0, %c0_i32_1 : i32, i32, i32
  }
  func.func @transform_4(%arg0: i32) -> (i32, i32) {
    %c0_i32 = arith.constant 0 : i32
    %c0_i32_0 = arith.constant 0 : i32
    %c0_i32_1 = arith.constant 0 : i32
    return %c0_i32, %c0_i32_0 : i32, i32
  }
  func.func @transform_5(%arg0: i32) -> i32 {
    %c0_i32 = arith.constant 0 : i32
    %c0_i32_0 = arith.constant 0 : i32
    return %c0_i32 : i32
  }
  func.func @transform_6(%arg0: i32) -> (i32, i32) {
    %c0_i32 = arith.constant 0 : i32
    %c0_i32_0 = arith.constant 0 : i32
    %c0_i32_1 = arith.constant 0 : i32
    return %c0_i32, %c0_i32_0 : i32, i32
  }
  func.func @transform_7(%arg0: i32) -> (i32, i32, i32) {
    %c0_i32 = arith.constant 0 : i32
    %c0_i32_0 = arith.constant 0 : i32
    %c0_i32_1 = arith.constant 0 : i32
    return %arg0, %c0_i32, %c0_i32_0 : i32, i32, i32
  }
}

</mosaic_0001>

<llo_original>
// kernel: residual_block_3d.1
$region0: #{residual_block_3d.1}
  #allocation0 [shape = 'u32[]', space=smem, size = 0x4, offset = 0x4, fixed_abs, tag = 'smem constant byte address 0x4 - core index']
  #allocation1 [shape = 'u32[144,128]{1,0:T(1,128)}', space=vmem, size = 0x12000, scoped, tag = 'internal scratch']
  #allocation2 [shape = 'bf16[16,512]{1,0:T(8,128)(2,1)}', space=vmem, size = 0x4000, scoped, tag = 'scratch operand']
  #allocation3 [shape = 'bf16[16,512]{1,0:T(8,128)(2,1)}', space=vmem, size = 0x4000, scoped, tag = 'scratch operand']
  #allocation4 [shape = 'bf16[144,512]{1,0:T(8,128)(2,1)}', space=vmem, size = 0x24000, scoped, tag = 'scratch operand']
  #allocation5 [shape = 'bf16[144,512]{1,0:T(8,128)(2,1)}', space=vmem, size = 0x24000, scoped, tag = 'scratch operand']
  #allocation6 [shape = 'f32[1]{0:T(128)S(6)}', space=smem, size = 0x200, scoped, tag = 'scoped memory for residual_block_3d.1']
  %s0 = inlined_call_operand.vmem [shape: f32[2,16,256], index: 0, kind: input, shape index: {}]
  %s1 = inlined_call_operand.vmem [shape: bf16[3,16,144], index: 1, kind: input, shape index: {}]
  %s2 = inlined_call_operand.vmem [shape: f32[16,1], index: 2, kind: input, shape index: {}]
  %s3 = inlined_call_operand.vmem [shape: bf16[3,16,144], index: 3, kind: input, shape index: {}]
  %s4 = inlined_call_operand.vmem [shape: f32[16,1], index: 4, kind: input, shape index: {}]
  %s5 = inlined_call_operand.<no memory space> [shape: f32[1], index: 5, kind: input, shape index: {}]
  %s6 = inlined_call_operand.vmem [shape: f32[27,256], index: 6, kind: input, shape index: {}]
  %s7 = inlined_call_operand.vmem [shape: f32[2,16,256], index: 7, kind: output, shape index: {}]
  %s8 = sld [smem:[#allocation0]]
  $region38: #{residual_block_3d.1} parent=0
    _
  %s10 = ssub.s32 1, %s8
  %s11 = scalar_select 0, %s10, %s8
  %12 = sst [smem:[#allocation6]] %s5
  // Predicated region
  $region2: #{residual_block_3d.1} parent=0 // pred_check
    _
  $region3: #{residual_block_3d.1} parent=0 // pred_check_branch
    %14 = sbr.rel (0) target = $region5
  $region4: #{residual_block_3d.1} parent=0 // pred_region
    _
  $region5: #{residual_block_3d.1} parent=0 // pred_fallthru
    _
  // Predicated region
  $region6: #{residual_block_3d.1} parent=0 // pred_check
    _
  $region7: #{residual_block_3d.1} parent=0 // pred_check_branch
    %16 = sbr.rel (0) target = $region9
  $region8: #{residual_block_3d.1} parent=0 // pred_region
    _
  $region9: #{residual_block_3d.1} parent=0 // pred_fallthru
    _
  // Predicated region
  $region10: #{residual_block_3d.1} parent=0 // pred_check
    _
  $region11: #{residual_block_3d.1} parent=0 // pred_check_branch
    %18 = sbr.rel (0) target = $region13
  $region12: #{residual_block_3d.1} parent=0 // pred_region
    _
  $region13: #{residual_block_3d.1} parent=0 // pred_fallthru
    _
  // Predicated region
  $region14: #{residual_block_3d.1} parent=0 // pred_check
    _
  $region15: #{residual_block_3d.1} parent=0 // pred_check_branch
    %20 = sbr.rel (0) target = $region17
  $region16: #{residual_block_3d.1} parent=0 // pred_region
    _
  $region17: #{residual_block_3d.1} parent=0 // pred_fallthru
    _
  // Predicated region
  $region18: #{residual_block_3d.1} parent=0 // pred_check
    _
  $region19: #{residual_block_3d.1} parent=0 // pred_check_branch
    %22 = sbr.rel (0) target = $region21
  $region20: #{residual_block_3d.1} parent=0 // pred_region
    _
  $region21: #{residual_block_3d.1} parent=0 // pred_fallthru
    _
  // Predicated region
  $region22: #{residual_block_3d.1} parent=0 // pred_check
    _
  $region23: #{residual_block_3d.1} parent=0 // pred_check_branch
    %24 = sbr.rel (0) target = $region25
  $region24: #{residual_block_3d.1} parent=0 // pred_region
    _
  $region25: #{residual_block_3d.1} parent=0 // pred_fallthru
    _
  // Predicated region
  $region26: #{residual_block_3d.1} parent=0 // pred_check
    _
  $region27: #{residual_block_3d.1} parent=0 // pred_check_branch
    %26 = sbr.rel (0) target = $region29
  $region28: #{residual_block_3d.1} parent=0 // pred_region
    _
  $region29: #{residual_block_3d.1} parent=0 // pred_fallthru
    _
  %28 = vst [vmem:[#allocation2] sm:$0xf] 0
  %29 = vst [vmem:[#allocation2 + $0x10] sm:$0xf] 0
  %30 = vst [vmem:[#allocation2 + $0xc] sm:$0xf] 0
  %31 = vst [vmem:[#allocation2 + $0x1c] sm:$0xf] 0
  %32 = vst [vmem:[#allocation3] sm:$0xf] 0
  %33 = vst [vmem:[#allocation3 + $0x10] sm:$0xf] 0
  %34 = vst [vmem:[#allocation3 + $0xc] sm:$0xf] 0
  %35 = vst [vmem:[#allocation3 + $0x1c] sm:$0xf] 0
  %s36 = sld [smem:[#allocation6]]
  %v37 = vld [vmem:[%s0] sm:$0xff]
  %v38 = vld [vmem:[%s0 + $0x8] sm:$0xff]
  %v39 = vld [vmem:[%s0 + $0x10] sm:$0xff]
  %v40 = vld [vmem:[%s0 + $0x18] sm:$0xff]
  %v41 = vpack.c.bf16 %v39, %v37
  %v42 = vpack.c.bf16 %v40, %v38
  %v45 = vunpack.c.l.b16 %v41
  %v46 = vunpack.c.l.b16 %v42
  %v47 = vunpack.c.h.b16 %v41
  %v48 = vunpack.c.h.b16 %v42
  %v49 = vpack.c.b16 %v46, %v45
  %v50 = vpack.c.b16 %v48, %v47
  %53 = vst [vmem:[#allocation2 + $0x4] sm:$0xff] %v49
  %54 = vst [vmem:[#allocation2 + $0x14] sm:$0xff] %v50
  %s55 = scalar_lea.vmem %s0, 32
  %v56 = vld [vmem:[%s55] sm:$0xff]
  %v57 = vld [vmem:[%s55 + $0x8] sm:$0xff]
  %v58 = vld [vmem:[%s55 + $0x10] sm:$0xff]
  %v59 = vld [vmem:[%s55 + $0x18] sm:$0xff]
  %v60 = vpack.c.bf16 %v58, %v56
  %v61 = vpack.c.bf16 %v59, %v57
  %v64 = vunpack.c.l.b16 %v60
  %v65 = vunpack.c.l.b16 %v61
  %v66 = vunpack.c.h.b16 %v60
  %v67 = vunpack.c.h.b16 %v61
  %v68 = vpack.c.b16 %v65, %v64
  %v69 = vpack.c.b16 %v67, %v66
  %72 = vst [vmem:[#allocation3 + $0x4] sm:$0xff] %v68
  %73 = vst [vmem:[#allocation3 + $0x14] sm:$0xff] %v69
  %v74 = vld [vmem:[%s6] ss:$8 sm:$0x3]
  %v75 = vld [vmem:[#allocation2] sm:$0xff]
  %v76 = vld [vmem:[#allocation2 + $0x8] sm:$0xf]
  %v77 = vld [vmem:[#allocation2 + $0x10] sm:$0xff]
  %v78 = vld [vmem:[#allocation2 + $0x18] sm:$0xf]
  %v79 = vunpack.c.l.bf16 %v75
  %v80 = vunpack.c.h.bf16 %v75
  %v81 = vunpack.c.l.bf16 %v76
  %v82 = vunpack.c.l.bf16 %v77
  %v83 = vunpack.c.h.bf16 %v77
  %v84 = vunpack.c.l.bf16 %v78
  %v86 = vlaneseq
  %v87 = vshrl.u32 %v86, 7
  %v88 = vsub.s32 0, %v87
  %v89 = vrot.slane %v74, %v88
  %v90 = vlaneseq
  %v91 = vshrl.u32 %v90, 7
  %v92 = vsub.s32 1, %v91
  %v93 = vrot.slane %v74, %v92
  %94 = vrot.lane.b32.xlu0 %v89, 55
  %v95 = vpop.permute.xlu0 %94
  %96 = vrot.lane.b32.xlu0 %v93, 55
  %v97 = vpop.permute.xlu0 %96
  %vm98 = vcmask 449536
  %v99 = vsel %vm98, %v95, %v97
  %v103 = vmul.f32 %v79, %v95
  %v104 = vmul.f32 %v80, %v99
  %v105 = vmul.f32 %v81, %v97
  %v106 = vmul.f32 %v82, %v95
  %v107 = vmul.f32 %v83, %v99
  %v108 = vmul.f32 %v84, %v97
  %v109 = vpack.c.bf16 %v106, %v103
  %v110 = vpack.c.bf16 %v107, %v104
  %v111 = vpack.c.bf16 %v108, %v105
  %v115 = vunpack.c.l.b16 %v109
  %v116 = vunpack.c.l.b16 %v110
  %v117 = vunpack.c.l.b16 %v111
  %v118 = vunpack.c.h.b16 %v109
  %v119 = vunpack.c.h.b16 %v110
  %v120 = vunpack.c.h.b16 %v111
  %v121 = vpack.c.b16 %v116, %v115
  %v122 = vpack.c.b16 %v117, %v117
  %v123 = vpack.c.b16 %v119, %v118
  %v124 = vpack.c.b16 %v120, %v120
  %125 = vrot.lane.b32.xlu0 %v121, 73
  %v126 = vpop.permute.xlu0 %125
  %127 = vrot.lane.b32.xlu0 %v122, 73
  %v128 = vpop.permute.xlu0 %127
  %129 = vrot.lane.b32.xlu0 %v123, 73
  %v130 = vpop.permute.xlu0 %129
  %131 = vrot.lane.b32.xlu0 %v124, 73
  %v132 = vpop.permute.xlu0 %131
  %v133 = vrot.slane %v126, 4
  %v134 = vrot.slane %v128, 4
  %v135 = vrot.slane %v130, 4
  %v136 = vrot.slane %v132, 4
  %vm137 = vcmask 1043456
  %v138 = vsel %vm137, %v133, %v134
  %vm139 = vcmask 596992
  %v140 = vsel %vm139, %v126, %v138
  %v141 = vsel %vm137, %v135, %v136
  %v142 = vsel %vm139, %v130, %v141
  %145 = vst [vmem:[#allocation4] sm:$0xff] %v140
  %146 = vst [vmem:[#allocation4 + $0x10] sm:$0xff] %v142
  %v147 = vld [vmem:[#allocation3] sm:$0xff]
  %v148 = vld [vmem:[#allocation3 + $0x8] sm:$0xf]
  %v149 = vld [vmem:[#allocation3 + $0x10] sm:$0xff]
  %v150 = vld [vmem:[#allocation3 + $0x18] sm:$0xf]
  %v151 = vunpack.c.l.bf16 %v147
  %v152 = vunpack.c.h.bf16 %v147
  %v153 = vunpack.c.l.bf16 %v148
  %v154 = vunpack.c.l.bf16 %v149
  %v155 = vunpack.c.h.bf16 %v149
  %v156 = vunpack.c.l.bf16 %v150
  %v157 = vmul.f32 %v151, %v95
  %v158 = vmul.f32 %v152, %v99
  %v159 = vmul.f32 %v153, %v97
  %v160 = vmul.f32 %v154, %v95
  %v161 = vmul.f32 %v155, %v99
  %v162 = vmul.f32 %v156, %v97
  %v163 = vpack.c.bf16 %v160, %v157
  %v164 = vpack.c.bf16 %v161, %v158
  %v165 = vpack.c.bf16 %v162, %v159
  %v169 = vunpack.c.l.b16 %v163
  %v170 = vunpack.c.l.b16 %v164
  %v171 = vunpack.c.l.b16 %v165
  %v172 = vunpack.c.h.b16 %v163
  %v173 = vunpack.c.h.b16 %v164
  %v174 = vunpack.c.h.b16 %v165
  %v175 = vpack.c.b16 %v170, %v169
  %v176 = vpack.c.b16 %v171, %v171
  %v177 = vpack.c.b16 %v173, %v172
  %v178 = vpack.c.b16 %v174, %v174
  %179 = vrot.lane.b32.xlu0 %v175, 73
  %v180 = vpop.permute.xlu0 %179
  %181 = vrot.lane.b32.xlu0 %v176, 73
  %v182 = vpop.permute.xlu0 %181
  %183 = vrot.lane.b32.xlu0 %v177, 73
  %v184 = vpop.permute.xlu0 %183
  %185 = vrot.lane.b32.xlu0 %v178, 73
  %v186 = vpop.permute.xlu0 %185
  %v187 = vrot.slane %v180, 4
  %v188 = vrot.slane %v182, 4
  %v189 = vrot.slane %v184, 4
  %v190 = vrot.slane %v186, 4
  %v191 = vsel %vm137, %v187, %v188
  %v192 = vsel %vm139, %v180, %v191
  %v193 = vsel %vm137, %v189, %v190
  %v194 = vsel %vm139, %v184, %v193
  %197 = vst [vmem:[#allocation4 + $0x8] sm:$0xff] %v192
  %198 = vst [vmem:[#allocation4 + $0x18] sm:$0xff] %v194
  %s199 = scalar_lea.vmem %s6, 1
  %v200 = vld [vmem:[%s199] ss:$8 sm:$0x3]
  %v201 = vld [vmem:[#allocation2] sm:$0xff]
  %v202 = vld [vmem:[#allocation2 + $0x8] sm:$0xf]
  %v203 = vld [vmem:[#allocation2 + $0x10] sm:$0xff]
  %v204 = vld [vmem:[#allocation2 + $0x18] sm:$0xf]
  %v205 = vunpack.c.l.bf16 %v201
  %v206 = vunpack.c.h.bf16 %v201
  %v207 = vunpack.c.l.bf16 %v202
  %v208 = vunpack.c.l.bf16 %v203
  %v209 = vunpack.c.h.bf16 %v203
  %v210 = vunpack.c.l.bf16 %v204
  %v212 = vlaneseq
  %v213 = vshrl.u32 %v212, 7
  %v214 = vsub.s32 0, %v213
  %v215 = vrot.slane %v200, %v214
  %v216 = vlaneseq
  %v217 = vshrl.u32 %v216, 7
  %v218 = vsub.s32 1, %v217
  %v219 = vrot.slane %v200, %v218
  %220 = vrot.lane.b32.xlu0 %v215, 56
  %v221 = vpop.permute.xlu0 %220
  %222 = vrot.lane.b32.xlu0 %v219, 56
  %v223 = vpop.permute.xlu0 %222
  %vm224 = vcmask 457728
  %v225 = vsel %vm224, %v221, %v223
  %v229 = vmul.f32 %v205, %v221
  %v230 = vmul.f32 %v206, %v225
  %v231 = vmul.f32 %v207, %v223
  %v232 = vmul.f32 %v208, %v221
  %v233 = vmul.f32 %v209, %v225
  %v234 = vmul.f32 %v210, %v223
  %v235 = vpack.c.bf16 %v232, %v229
  %v236 = vpack.c.bf16 %v233, %v230
  %v237 = vpack.c.bf16 %v234, %v231
  %v241 = vunpack.c.l.b16 %v235
  %v242 = vunpack.c.l.b16 %v236
  %v243 = vunpack.c.l.b16 %v237
  %v244 = vunpack.c.h.b16 %v235
  %v245 = vunpack.c.h.b16 %v236
  %v246 = vunpack.c.h.b16 %v237
  %v247 = vpack.c.b16 %v242, %v241
  %v248 = vpack.c.b16 %v243, %v243
  %v249 = vpack.c.b16 %v245, %v244
  %v250 = vpack.c.b16 %v246, %v246
  %251 = vrot.lane.b32.xlu0 %v247, 72
  %v252 = vpop.permute.xlu0 %251
  %253 = vrot.lane.b32.xlu0 %v248, 72
  %v254 = vpop.permute.xlu0 %253
  %255 = vrot.lane.b32.xlu0 %v249, 72
  %v256 = vpop.permute.xlu0 %255
  %257 = vrot.lane.b32.xlu0 %v250, 72
  %v258 = vpop.permute.xlu0 %257
  %v259 = vrot.slane %v252, 4
  %v260 = vrot.slane %v254, 4
  %v261 = vrot.slane %v256, 4
  %v262 = vrot.slane %v258, 4
  %v263 = vsel %vm137, %v259, %v260
  %vm264 = vcmask 588800
  %v265 = vsel %vm264, %v252, %v263
  %v266 = vsel %vm137, %v261, %v262
  %v267 = vsel %vm264, %v256, %v266
  %270 = vst [vmem:[#allocation4 + $0x20] sm:$0xff] %v265
  %271 = vst [vmem:[#allocation4 + $0x30] sm:$0xff] %v267
  %v272 = vld [vmem:[#allocation3] sm:$0xff]
  %v273 = vld [vmem:[#allocation3 + $0x8] sm:$0xf]
  %v274 = vld [vmem:[#allocation3 + $0x10] sm:$0xff]
  %v275 = vld [vmem:[#allocation3 + $0x18] sm:$0xf]
  %v276 = vunpack.c.l.bf16 %v272
  %v277 = vunpack.c.h.bf16 %v272
  %v278 = vunpack.c.l.bf16 %v273
  %v279 = vunpack.c.l.bf16 %v274
  %v280 = vunpack.c.h.bf16 %v274
  %v281 = vunpack.c.l.bf16 %v275
  %v282 = vmul.f32 %v276, %v221
  %v283 = vmul.f32 %v277, %v225
  %v284 = vmul.f32 %v278, %v223
  %v285 = vmul.f32 %v279, %v221
  %v286 = vmul.f32 %v280, %v225
  %v287 = vmul.f32 %v281, %v223
  %v288 = vpack.c.bf16 %v285, %v282
  %v289 = vpack.c.bf16 %v286, %v283
  %v290 = vpack.c.bf16 %v287, %v284
  %v294 = vunpack.c.l.b16 %v288
  %v295 = vunpack.c.l.b16 %v289
  %v296 = vunpack.c.l.b16 %v290
  %v297 = vunpack.c.h.b16 %v288
  %v298 = vunpack.c.h.b16 %v289
  %v299 = vunpack.c.h.b16 %v290
  %v300 = vpack.c.b16 %v295, %v294
  %v301 = vpack.c.b16 %v296, %v296
  %v302 = vpack.c.b16 %v298, %v297
  %v303 = vpack.c.b16 %v299, %v299
  %304 = vrot.lane.b32.xlu0 %v300, 72
  %v305 = vpop.permute.xlu0 %304
  %306 = vrot.lane.b32.xlu0 %v301, 72
  %v307 = vpop.permute.xlu0 %306
  %308 = vrot.lane.b32.xlu0 %v302, 72
  %v309 = vpop.permute.xlu0 %308
  %310 = vrot.lane.b32.xlu0 %v303, 72
  %v311 = vpop.permute.xlu0 %310
  %v312 = vrot.slane %v305, 4
  %v313 = vrot.slane %v307, 4
  %v314 = vrot.slane %v309, 4
  %v315 = vrot.slane %v311, 4
  %v316 = vsel %vm137, %v312, %v313
  %v317 = vsel %vm264, %v305, %v316
  %v318 = vsel %vm137, %v314, %v315
  %v319 = vsel %vm264, %v309, %v318
  %322 = vst [vmem:[#allocation4 + $0x28] sm:$0xff] %v317
  %323 = vst [vmem:[#allocation4 + $0x38] sm:$0xff] %v319
  %s324 = scalar_lea.vmem %s6, 2
  %v325 = vld [vmem:[%s324] ss:$8 sm:$0x3]
  %v326 = vld [vmem:[#allocation2] sm:$0xff]
  %v327 = vld [vmem:[#allocation2 + $0x8] sm:$0xf]
  %v328 = vld [vmem:[#allocation2 + $0x10] sm:$0xff]
  %v329 = vld [vmem:[#allocation2 + $0x18] sm:$0xf]
  %v330 = vunpack.c.l.bf16 %v326
  %v331 = vunpack.c.h.bf16 %v326
  %v332 = vunpack.c.l.bf16 %v327
  %v333 = vunpack.c.l.bf16 %v328
  %v334 = vunpack.c.h.bf16 %v328
  %v335 = vunpack.c.l.bf16 %v329
  %v337 = vlaneseq
  %v338 = vshrl.u32 %v337, 7
  %v339 = vsub.s32 0, %v338
  %v340 = vrot.slane %v325, %v339
  %v341 = vlaneseq
  %v342 = vshrl.u32 %v341, 7
  %v343 = vsub.s32 1, %v342
  %v344 = vrot.slane %v325, %v343
  %345 = vrot.lane.b32.xlu0 %v340, 57
  %v346 = vpop.permute.xlu0 %345
  %347 = vrot.lane.b32.xlu0 %v344, 57
  %v348 = vpop.permute.xlu0 %347
  %vm349 = vcmask 465920
  %v350 = vsel %vm349, %v346, %v348
  %v354 = vmul.f32 %v330, %v346
  %v355 = vmul.f32 %v331, %v350
  %v356 = vmul.f32 %v332, %v348
  %v357 = vmul.f32 %v333, %v346
  %v358 = vmul.f32 %v334, %v350
  %v359 = vmul.f32 %v335, %v348
  %v360 = vpack.c.bf16 %v357, %v354
  %v361 = vpack.c.bf16 %v358, %v355
  %v362 = vpack.c.bf16 %v359, %v356
  %v366 = vunpack.c.l.b16 %v360
  %v367 = vunpack.c.l.b16 %v361
  %v368 = vunpack.c.l.b16 %v362
  %v369 = vunpack.c.h.b16 %v360
  %v370 = vunpack.c.h.b16 %v361
  %v371 = vunpack.c.h.b16 %v362
  %v372 = vpack.c.b16 %v367, %v366
  %v373 = vpack.c.b16 %v368, %v368
  %v374 = vpack.c.b16 %v370, %v369
  %v375 = vpack.c.b16 %v371, %v371
  %376 = vrot.lane.b32.xlu0 %v372, 71
  %v377 = vpop.permute.xlu0 %376
  %378 = vrot.lane.b32.xlu0 %v373, 71
  %v379 = vpop.permute.xlu0 %378
  %380 = vrot.lane.b32.xlu0 %v374, 71
  %v381 = vpop.permute.xlu0 %380
  %382 = vrot.lane.b32.xlu0 %v375, 71
  %v383 = vpop.permute.xlu0 %382
  %v384 = vrot.slane %v377, 4
  %v385 = vrot.slane %v379, 4
  %v386 = vrot.slane %v381, 4
  %v387 = vrot.slane %v383, 4
  %v388 = vsel %vm137, %v384, %v385
  %vm389 = vcmask 580608
  %v390 = vsel %vm389, %v377, %v388
  %v391 = vsel %vm137, %v386, %v387
  %v392 = vsel %vm389, %v381, %v391
  %395 = vst [vmem:[#allocation4 + $0x40] sm:$0xff] %v390
  %396 = vst [vmem:[#allocation4 + $0x50] sm:$0xff] %v392
  %v397 = vld [vmem:[#allocation3] sm:$0xff]
  %v398 = vld [vmem:[#allocation3 + $0x8] sm:$0xf]
  %v399 = vld [vmem:[#allocation3 + $0x10] sm:$0xff]
  %v400 = vld [vmem:[#allocation3 + $0x18] sm:$0xf]
  %v401 = vunpack.c.l.bf16 %v397
  %v402 = vunpack.c.h.bf16 %v397
  %v403 = vunpack.c.l.bf16 %v398
  %v404 = vunpack.c.l.bf16 %v399
  %v405 = vunpack.c.h.bf16 %v399
  %v406 = vunpack.c.l.bf16 %v400
  %v407 = vmul.f32 %v401, %v346
  %v408 = vmul.f32 %v402, %v350
  %v409 = vmul.f32 %v403, %v348
  %v410 = vmul.f32 %v404, %v346
  %v411 = vmul.f32 %v405, %v350
  %v412 = vmul.f32 %v406, %v348
  %v413 = vpack.c.bf16 %v410, %v407
  %v414 = vpack.c.bf16 %v411, %v408
  %v415 = vpack.c.bf16 %v412, %v409
  %v419 = vunpack.c.l.b16 %v413
  %v420 = vunpack.c.l.b16 %v414
  %v421 = vunpack.c.l.b16 %v415
  %v422 = vunpack.c.h.b16 %v413
  %v423 = vunpack.c.h.b16 %v414
  %v424 = vunpack.c.h.b16 %v415
  %v425 = vpack.c.b16 %v420, %v419
  %v426 = vpack.c.b16 %v421, %v421
  %v427 = vpack.c.b16 %v423, %v422
  %v428 = vpack.c.b16 %v424, %v424
  %429 = vrot.lane.b32.xlu0 %v425, 71
  %v430 = vpop.permute.xlu0 %429
  %431 = vrot.lane.b32.xlu0 %v426, 71
  %v432 = vpop.permute.xlu0 %431
  %433 = vrot.lane.b32.xlu0 %v427, 71
  %v434 = vpop.permute.xlu0 %433
  %435 = vrot.lane.b32.xlu0 %v428, 71
  %v436 = vpop.permute.xlu0 %435
  %v437 = vrot.slane %v430, 4
  %v438 = vrot.slane %v432, 4
  %v439 = vrot.slane %v434, 4
  %v440 = vrot.slane %v436, 4
  %v441 = vsel %vm137, %v437, %v438
  %v442 = vsel %vm389, %v430, %v441
  %v443 = vsel %vm137, %v439, %v440
  %v444 = vsel %vm389, %v434, %v443
  %447 = vst [vmem:[#allocation4 + $0x48] sm:$0xff] %v442
  %448 = vst [vmem:[#allocation4 + $0x58] sm:$0xff] %v444
  %s449 = scalar_lea.vmem %s6, 3
  %v450 = vld [vmem:[%s449] ss:$8 sm:$0x3]
  %v451 = vld [vmem:[#allocation2] sm:$0xff]
  %v452 = vld [vmem:[#allocation2 + $0x8] sm:$0xf]
  %v453 = vld [vmem:[#allocation2 + $0x10] sm:$0xff]
  %v454 = vld [vmem:[#allocation2 + $0x18] sm:$0xf]
  %v455 = vunpack.c.l.bf16 %v451
  %v456 = vunpack.c.h.bf16 %v451
  %v457 = vunpack.c.l.bf16 %v452
  %v458 = vunpack.c.l.bf16 %v453
  %v459 = vunpack.c.h.bf16 %v453
  %v460 = vunpack.c.l.bf16 %v454
  %v462 = vlaneseq
  %v463 = vshrl.u32 %v462, 7
  %v464 = vsub.s32 0, %v463
  %v465 = vrot.slane %v450, %v464
  %v466 = vlaneseq
  %v467 = vshrl.u32 %v466, 7
  %v468 = vsub.s32 1, %v467
  %v469 = vrot.slane %v450, %v468
  %470 = vrot.lane.b32.xlu0 %v465, 63
  %v471 = vpop.permute.xlu0 %470
  %472 = vrot.lane.b32.xlu0 %v469, 63
  %v473 = vpop.permute.xlu0 %472
  %vm474 = vcmask 515072
  %v475 = vsel %vm474, %v471, %v473
  %v479 = vmul.f32 %v455, %v471
  %v480 = vmul.f32 %v456, %v475
  %v481 = vmul.f32 %v457, %v473
  %v482 = vmul.f32 %v458, %v471
  %v483 = vmul.f32 %v459, %v475
  %v484 = vmul.f32 %v460, %v473
  %v485 = vpack.c.bf16 %v482, %v479
  %v486 = vpack.c.bf16 %v483, %v480
  %v487 = vpack.c.bf16 %v484, %v481
  %v491 = vunpack.c.l.b16 %v485
  %v492 = vunpack.c.l.b16 %v486
  %v493 = vunpack.c.l.b16 %v487
  %v494 = vunpack.c.h.b16 %v485
  %v495 = vunpack.c.h.b16 %v486
  %v496 = vunpack.c.h.b16 %v487
  %v497 = vpack.c.b16 %v492, %v491
  %v498 = vpack.c.b16 %v493, %v493
  %v499 = vpack.c.b16 %v495, %v494
  %v500 = vpack.c.b16 %v496, %v496
  %501 = vrot.lane.b32.xlu0 %v497, 65
  %v502 = vpop.permute.xlu0 %501
  %503 = vrot.lane.b32.xlu0 %v498, 65
  %v504 = vpop.permute.xlu0 %503
  %505 = vrot.lane.b32.xlu0 %v499, 65
  %v506 = vpop.permute.xlu0 %505
  %507 = vrot.lane.b32.xlu0 %v500, 65
  %v508 = vpop.permute.xlu0 %507
  %v509 = vrot.slane %v502, 4
  %v510 = vrot.slane %v504, 4
  %v511 = vrot.slane %v506, 4
  %v512 = vrot.slane %v508, 4
  %v513 = vsel %vm137, %v509, %v510
  %vm514 = vcmask 531456
  %v515 = vsel %vm514, %v502, %v513
  %v516 = vsel %vm137, %v511, %v512
  %v517 = vsel %vm514, %v506, %v516
  %520 = vst [vmem:[#allocation4 + $0x60] sm:$0xff] %v515
  %521 = vst [vmem:[#allocation4 + $0x70] sm:$0xff] %v517
  %v522 = vld [vmem:[#allocation3] sm:$0xff]
  %v523 = vld [vmem:[#allocation3 + $0x8] sm:$0xf]
  %v524 = vld [vmem:[#allocation3 + $0x10] sm:$0xff]
  %v525 = vld [vmem:[#allocation3 + $0x18] sm:$0xf]
  %v526 = vunpack.c.l.bf16 %v522
  %v527 = vunpack.c.h.bf16 %v522
  %v528 = vunpack.c.l.bf16 %v523
  %v529 = vunpack.c.l.bf16 %v524
  %v530 = vunpack.c.h.bf16 %v524
  %v531 = vunpack.c.l.bf16 %v525
  %v532 = vmul.f32 %v526, %v471
  %v533 = vmul.f32 %v527, %v475
  %v534 = vmul.f32 %v528, %v473
  %v535 = vmul.f32 %v529, %v471
  %v536 = vmul.f32 %v530, %v475
  %v537 = vmul.f32 %v531, %v473
  %v538 = vpack.c.bf16 %v535, %v532
  %v539 = vpack.c.bf16 %v536, %v533
  %v540 = vpack.c.bf16 %v537, %v534
  %v544 = vunpack.c.l.b16 %v538
  %v545 = vunpack.c.l.b16 %v539
  %v546 = vunpack.c.l.b16 %v540
  %v547 = vunpack.c.h.b16 %v538
  %v548 = vunpack.c.h.b16 %v539
  %v549 = vunpack.c.h.b16 %v540
  %v550 = vpack.c.b16 %v545, %v544
  %v551 = vpack.c.b16 %v546, %v546
  %v552 = vpack.c.b16 %v548, %v547
  %v553 = vpack.c.b16 %v549, %v549
  %554 = vrot.lane.b32.xlu0 %v550, 65
  %v555 = vpop.permute.xlu0 %554
  %556 = vrot.lane.b32.xlu0 %v551, 65
  %v557 = vpop.permute.xlu0 %556
  %558 = vrot.lane.b32.xlu0 %v552, 65
  %v559 = vpop.permute.xlu0 %558
  %560 = vrot.lane.b32.xlu0 %v553, 65
  %v561 = vpop.permute.xlu0 %560
  %v562 = vrot.slane %v555, 4
  %v563 = vrot.slane %v557, 4
  %v564 = vrot.slane %v559, 4
  %v565 = vrot.slane %v561, 4
  %v566 = vsel %vm137, %v562, %v563
  %v567 = vsel %vm514, %v555, %v566
  %v568 = vsel %vm137, %v564, %v565
  %v569 = vsel %vm514, %v559, %v568
  %572 = vst [vmem:[#allocation4 + $0x68] sm:$0xff] %v567
  %573 = vst [vmem:[#allocation4 + $0x78] sm:$0xff] %v569
  %s574 = scalar_lea.vmem %s6, 4
  %v575 = vld [vmem:[%s574] ss:$8 sm:$0x3]
  %v576 = vld [vmem:[#allocation2] sm:$0xff]
  %v577 = vld [vmem:[#allocation2 + $0x8] sm:$0xf]
  %v578 = vld [vmem:[#allocation2 + $0x10] sm:$0xff]
  %v579 = vld [vmem:[#allocation2 + $0x18] sm:$0xf]
  %v580 = vunpack.c.l.bf16 %v576
  %v581 = vunpack.c.h.bf16 %v576
  %v582 = vunpack.c.l.bf16 %v577
  %v583 = vunpack.c.l.bf16 %v578
  %v584 = vunpack.c.h.bf16 %v578
  %v585 = vunpack.c.l.bf16 %v579
  %v587 = vlaneseq
  %v588 = vshrl.u32 %v587, 7
  %v589 = vsub.s32 0, %v588
  %v590 = vrot.slane %v575, %v589
  %v591 = vlaneseq
  %v592 = vshrl.u32 %v591, 7
  %v593 = vsub.s32 1, %v592
  %v594 = vrot.slane %v575, %v593
  %595 = vrot.lane.b32.xlu0 %v590, 64
  %v596 = vpop.permute.xlu0 %595
  %597 = vrot.lane.b32.xlu0 %v594, 64
  %v598 = vpop.permute.xlu0 %597
  %vm599 = vcmask 523264
  %v600 = vsel %vm599, %v596, %v598
  %v604 = vmul.f32 %v580, %v596
  %v605 = vmul.f32 %v581, %v600
  %v606 = vmul.f32 %v582, %v598
  %v607 = vmul.f32 %v583, %v596
  %v608 = vmul.f32 %v584, %v600
  %v609 = vmul.f32 %v585, %v598
  %v610 = vpack.c.bf16 %v607, %v604
  %v611 = vpack.c.bf16 %v608, %v605
  %v612 = vpack.c.bf16 %v609, %v606
  %v616 = vunpack.c.l.b16 %v610
  %v617 = vunpack.c.l.b16 %v611
  %v618 = vunpack.c.l.b16 %v612
  %v619 = vunpack.c.h.b16 %v610
  %v620 = vunpack.c.h.b16 %v611
  %v621 = vunpack.c.h.b16 %v612
  %v622 = vpack.c.b16 %v617, %v616
  %v623 = vpack.c.b16 %v618, %v618
  %v624 = vpack.c.b16 %v620, %v619
  %v625 = vpack.c.b16 %v621, %v621
  %626 = vrot.lane.b32.xlu0 %v622, 64
  %v627 = vpop.permute.xlu0 %626
  %628 = vrot.lane.b32.xlu0 %v623, 64
  %v629 = vpop.permute.xlu0 %628
  %630 = vrot.lane.b32.xlu0 %v624, 64
  %v631 = vpop.permute.xlu0 %630
  %632 = vrot.lane.b32.xlu0 %v625, 64
  %v633 = vpop.permute.xlu0 %632
  %v634 = vrot.slane %v627, 4
  %v635 = vrot.slane %v629, 4
  %v636 = vrot.slane %v631, 4
  %v637 = vrot.slane %v633, 4
  %v638 = vsel %vm137, %v634, %v635
  %vm639 = vcmask 523264
  %v640 = vsel %vm639, %v627, %v638
  %v641 = vsel %vm137, %v636, %v637
  %v642 = vsel %vm639, %v631, %v641
  %645 = vst [vmem:[#allocation4 + $0x80] sm:$0xff] %v640
  %646 = vst [vmem:[#allocation4 + $0x90] sm:$0xff] %v642
  %v647 = vld [vmem:[#allocation3] sm:$0xff]
  %v648 = vld [vmem:[#allocation3 + $0x8] sm:$0xf]
  %v649 = vld [vmem:[#allocation3 + $0x10] sm:$0xff]
  %v650 = vld [vmem:[#allocation3 + $0x18] sm:$0xf]
  %v651 = vunpack.c.l.bf16 %v647
  %v652 = vunpack.c.h.bf16 %v647
  %v653 = vunpack.c.l.bf16 %v648
  %v654 = vunpack.c.l.bf16 %v649
  %v655 = vunpack.c.h.bf16 %v649
  %v656 = vunpack.c.l.bf16 %v650
  %v657 = vmul.f32 %v651, %v596
  %v658 = vmul.f32 %v652, %v600
  %v659 = vmul.f32 %v653, %v598
  %v660 = vmul.f32 %v654, %v596
  %v661 = vmul.f32 %v655, %v600
  %v662 = vmul.f32 %v656, %v598
  %v663 = vpack.c.bf16 %v660, %v657
  %v664 = vpack.c.bf16 %v661, %v658
  %v665 = vpack.c.bf16 %v662, %v659
  %v669 = vunpack.c.l.b16 %v663
  %v670 = vunpack.c.l.b16 %v664
  %v671 = vunpack.c.l.b16 %v665
  %v672 = vunpack.c.h.b16 %v663
  %v673 = vunpack.c.h.b16 %v664
  %v674 = vunpack.c.h.b16 %v665
  %v675 = vpack.c.b16 %v670, %v669
  %v676 = vpack.c.b16 %v671, %v671
  %v677 = vpack.c.b16 %v673, %v672
  %v678 = vpack.c.b16 %v674, %v674
  %679 = vrot.lane.b32.xlu0 %v675, 64
  %v680 = vpop.permute.xlu0 %679
  %681 = vrot.lane.b32.xlu0 %v676, 64
  %v682 = vpop.permute.xlu0 %681
  %683 = vrot.lane.b32.xlu0 %v677, 64
  %v684 = vpop.permute.xlu0 %683
  %685 = vrot.lane.b32.xlu0 %v678, 64
  %v686 = vpop.permute.xlu0 %685
  %v687 = vrot.slane %v680, 4
  %v688 = vrot.slane %v682, 4
  %v689 = vrot.slane %v684, 4
  %v690 = vrot.slane %v686, 4
  %v691 = vsel %vm137, %v687, %v688
  %v692 = vsel %vm639, %v680, %v691
  %v693 = vsel %vm137, %v689, %v690
  %v694 = vsel %vm639, %v684, %v693
  %697 = vst [vmem:[#allocation4 + $0x88] sm:$0xff] %v692
  %698 = vst [vmem:[#allocation4 + $0x98] sm:$0xff] %v694
  %s699 = scalar_lea.vmem %s6, 5
  %v700 = vld [vmem:[%s699] ss:$8 sm:$0x3]
  %v701 = vld [vmem:[#allocation2] sm:$0xff]
  %v702 = vld [vmem:[#allocation2 + $0x8] sm:$0xf]
  %v703 = vld [vmem:[#allocation2 + $0x10] sm:$0xff]
  %v704 = vld [vmem:[#allocation2 + $0x18] sm:$0xf]
  %v705 = vunpack.c.l.bf16 %v701
  %v706 = vunpack.c.h.bf16 %v701
  %v707 = vunpack.c.l.bf16 %v702
  %v708 = vunpack.c.l.bf16 %v703
  %v709 = vunpack.c.h.bf16 %v703
  %v710 = vunpack.c.l.bf16 %v704
  %v712 = vlaneseq
  %v713 = vshrl.u32 %v712, 7
  %v714 = vsub.s32 0, %v713
  %v715 = vrot.slane %v700, %v714
  %v716 = vlaneseq
  %v717 = vshrl.u32 %v716, 7
  %v718 = vsub.s32 1, %v717
  %v719 = vrot.slane %v700, %v718
  %720 = vrot.lane.b32.xlu0 %v715, 65
  %v721 = vpop.permute.xlu0 %720
  %722 = vrot.lane.b32.xlu0 %v719, 65
  %v723 = vpop.permute.xlu0 %722
  %vm724 = vcmask 531456
  %v725 = vsel %vm724, %v721, %v723
  %v729 = vmul.f32 %v705, %v721
  %v730 = vmul.f32 %v706, %v725
  %v731 = vmul.f32 %v707, %v723
  %v732 = vmul.f32 %v708, %v721
  %v733 = vmul.f32 %v709, %v725
  %v734 = vmul.f32 %v710, %v723
  %v735 = vpack.c.bf16 %v732, %v729
  %v736 = vpack.c.bf16 %v733, %v730
  %v737 = vpack.c.bf16 %v734, %v731
  %v741 = vunpack.c.l.b16 %v735
  %v742 = vunpack.c.l.b16 %v736
  %v743 = vunpack.c.l.b16 %v737
  %v744 = vunpack.c.h.b16 %v735
  %v745 = vunpack.c.h.b16 %v736
  %v746 = vunpack.c.h.b16 %v737
  %v747 = vpack.c.b16 %v742, %v741
  %v748 = vpack.c.b16 %v743, %v743
  %v749 = vpack.c.b16 %v745, %v744
  %v750 = vpack.c.b16 %v746, %v746
  %751 = vrot.lane.b32.xlu0 %v747, 63
  %v752 = vpop.permute.xlu0 %751
  %753 = vrot.lane.b32.xlu0 %v748, 63
  %v754 = vpop.permute.xlu0 %753
  %755 = vrot.lane.b32.xlu0 %v749, 63
  %v756 = vpop.permute.xlu0 %755
  %757 = vrot.lane.b32.xlu0 %v750, 63
  %v758 = vpop.permute.xlu0 %757
  %v759 = vrot.slane %v752, 4
  %v760 = vrot.slane %v754, 4
  %v761 = vrot.slane %v756, 4
  %v762 = vrot.slane %v758, 4
  %v763 = vsel %vm137, %v759, %v760
  %vm764 = vcmask 515072
  %v765 = vsel %vm764, %v752, %v763
  %v766 = vsel %vm137, %v761, %v762
  %v767 = vsel %vm764, %v756, %v766
  %770 = vst [vmem:[#allocation4 + $0xa0] sm:$0xff] %v765
  %771 = vst [vmem:[#allocation4 + $0xb0] sm:$0xff] %v767
  %v772 = vld [vmem:[#allocation3] sm:$0xff]
  %v773 = vld [vmem:[#allocation3 + $0x8] sm:$0xf]
  %v774 = vld [vmem:[#allocation3 + $0x10] sm:$0xff]
  %v775 = vld [vmem:[#allocation3 + $0x18] sm:$0xf]
  %v776 = vunpack.c.l.bf16 %v772
  %v777 = vunpack.c.h.bf16 %v772
  %v778 = vunpack.c.l.bf16 %v773
  %v779 = vunpack.c.l.bf16 %v774
  %v780 = vunpack.c.h.bf16 %v774
  %v781 = vunpack.c.l.bf16 %v775
  %v782 = vmul.f32 %v776, %v721
  %v783 = vmul.f32 %v777, %v725
  %v784 = vmul.f32 %v778, %v723
  %v785 = vmul.f32 %v779, %v721
  %v786 = vmul.f32 %v780, %v725
  %v787 = vmul.f32 %v781, %v723
  %v788 = vpack.c.bf16 %v785, %v782
  %v789 = vpack.c.bf16 %v786, %v783
  %v790 = vpack.c.bf16 %v787, %v784
  %v794 = vunpack.c.l.b16 %v788
  %v795 = vunpack.c.l.b16 %v789
  %v796 = vunpack.c.l.b16 %v790
  %v797 = vunpack.c.h.b16 %v788
  %v798 = vunpack.c.h.b16 %v789
  %v799 = vunpack.c.h.b16 %v790
  %v800 = vpack.c.b16 %v795, %v794
  %v801 = vpack.c.b16 %v796, %v796
  %v802 = vpack.c.b16 %v798, %v797
  %v803 = vpack.c.b16 %v799, %v799
  %804 = vrot.lane.b32.xlu0 %v800, 63
  %v805 = vpop.permute.xlu0 %804
  %806 = vrot.lane.b32.xlu0 %v801, 63
  %v807 = vpop.permute.xlu0 %806
  %808 = vrot.lane.b32.xlu0 %v802, 63
  %v809 = vpop.permute.xlu0 %808
  %810 = vrot.lane.b32.xlu0 %v803, 63
  %v811 = vpop.permute.xlu0 %810
  %v812 = vrot.slane %v805, 4
  %v813 = vrot.slane %v807, 4
  %v814 = vrot.slane %v809, 4
  %v815 = vrot.slane %v811, 4
  %v816 = vsel %vm137, %v812, %v813
  %v817 = vsel %vm764, %v805, %v816
  %v818 = vsel %vm137, %v814, %v815
  %v819 = vsel %vm764, %v809, %v818
  %822 = vst [vmem:[#allocation4 + $0xa8] sm:$0xff] %v817
  %823 = vst [vmem:[#allocation4 + $0xb8] sm:$0xff] %v819
  %s824 = scalar_lea.vmem %s6, 6
  %v825 = vld [vmem:[%s824] ss:$8 sm:$0x3]
  %v826 = vld [vmem:[#allocation2] sm:$0xff]
  %v827 = vld [vmem:[#allocation2 + $0x8] sm:$0xf]
  %v828 = vld [vmem:[#allocation2 + $0x10] sm:$0xff]
  %v829 = vld [vmem:[#allocation2 + $0x18] sm:$0xf]
  %v830 = vunpack.c.l.bf16 %v826
  %v831 = vunpack.c.h.bf16 %v826
  %v832 = vunpack.c.l.bf16 %v827
  %v833 = vunpack.c.l.bf16 %v828
  %v834 = vunpack.c.h.bf16 %v828
  %v835 = vunpack.c.l.bf16 %v829
  %v837 = vlaneseq
  %v838 = vshrl.u32 %v837, 7
  %v839 = vsub.s32 0, %v838
  %v840 = vrot.slane %v825, %v839
  %v841 = vlaneseq
  %v842 = vshrl.u32 %v841, 7
  %v843 = vsub.s32 1, %v842
  %v844 = vrot.slane %v825, %v843
  %845 = vrot.lane.b32.xlu0 %v840, 71
  %v846 = vpop.permute.xlu0 %845
  %847 = vrot.lane.b32.xlu0 %v844, 71
  %v848 = vpop.permute.xlu0 %847
  %vm849 = vcmask 580608
  %v850 = vsel %vm849, %v846, %v848
  %v854 = vmul.f32 %v830, %v846
  %v855 = vmul.f32 %v831, %v850
  %v856 = vmul.f32 %v832, %v848
  %v857 = vmul.f32 %v833, %v846
  %v858 = vmul.f32 %v834, %v850
  %v859 = vmul.f32 %v835, %v848
  %v860 = vpack.c.bf16 %v857, %v854
  %v861 = vpack.c.bf16 %v858, %v855
  %v862 = vpack.c.bf16 %v859, %v856
  %v866 = vunpack.c.l.b16 %v860
  %v867 = vunpack.c.l.b16 %v861
  %v868 = vunpack.c.l.b16 %v862
  %v869 = vunpack.c.h.b16 %v860
  %v870 = vunpack.c.h.b16 %v861
  %v871 = vunpack.c.h.b16 %v862
  %v872 = vpack.c.b16 %v867, %v866
  %v873 = vpack.c.b16 %v868, %v868
  %v874 = vpack.c.b16 %v870, %v869
  %v875 = vpack.c.b16 %v871, %v871
  %876 = vrot.lane.b32.xlu0 %v872, 57
  %v877 = vpop.permute.xlu0 %876
  %878 = vrot.lane.b32.xlu0 %v873, 57
  %v879 = vpop.permute.xlu0 %878
  %880 = vrot.lane.b32.xlu0 %v874, 57
  %v881 = vpop.permute.xlu0 %880
  %882 = vrot.lane.b32.xlu0 %v875, 57
  %v883 = vpop.permute.xlu0 %882
  %v884 = vrot.slane %v877, 4
  %v885 = vrot.slane %v879, 4
  %v886 = vrot.slane %v881, 4
  %v887 = vrot.slane %v883, 4
  %v888 = vsel %vm137, %v884, %v885
  %vm889 = vcmask 465920
  %v890 = vsel %vm889, %v877, %v888
  %v891 = vsel %vm137, %v886, %v887
  %v892 = vsel %vm889, %v881, %v891
  %895 = vst [vmem:[#allocation4 + $0xc0] sm:$0xff] %v890
  %896 = vst [vmem:[#allocation4 + $0xd0] sm:$0xff] %v892
  %v897 = vld [vmem:[#allocation3] sm:$0xff]
  %v898 = vld [vmem:[#allocation3 + $0x8] sm:$0xf]
  %v899 = vld [vmem:[#allocation3 + $0x10] sm:$0xff]
  %v900 = vld [vmem:[#allocation3 + $0x18] sm:$0xf]
  %v901 = vunpack.c.l.bf16 %v897
  %v902 = vunpack.c.h.bf16 %v897
  %v903 = vunpack.c.l.bf16 %v898
  %v904 = vunpack.c.l.bf16 %v899
  %v905 = vunpack.c.h.bf16 %v899
  %v906 = vunpack.c.l.bf16 %v900
  %v907 = vmul.f32 %v901, %v846
  %v908 = vmul.f32 %v902, %v850
  %v909 = vmul.f32 %v903, %v848
  %v910 = vmul.f32 %v904, %v846
  %v911 = vmul.f32 %v905, %v850
  %v912 = vmul.f32 %v906, %v848
  %v913 = vpack.c.bf16 %v910, %v907
  %v914 = vpack.c.bf16 %v911, %v908
  %v915 = vpack.c.bf16 %v912, %v909
  %v919 = vunpack.c.l.b16 %v913
  %v920 = vunpack.c.l.b16 %v914
  %v921 = vunpack.c.l.b16 %v915
  %v922 = vunpack.c.h.b16 %v913
  %v923 = vunpack.c.h.b16 %v914
  %v924 = vunpack.c.h.b16 %v915
  %v925 = vpack.c.b16 %v920, %v919
  %v926 = vpack.c.b16 %v921, %v921
  %v927 = vpack.c.b16 %v923, %v922
  %v928 = vpack.c.b16 %v924, %v924
  %929 = vrot.lane.b32.xlu0 %v925, 57
  %v930 = vpop.permute.xlu0 %929
  %931 = vrot.lane.b32.xlu0 %v926, 57
  %v932 = vpop.permute.xlu0 %931
  %933 = vrot.lane.b32.xlu0 %v927, 57
  %v934 = vpop.permute.xlu0 %933
  %935 = vrot.lane.b32.xlu0 %v928, 57
  %v936 = vpop.permute.xlu0 %935
  %v937 = vrot.slane %v930, 4
  %v938 = vrot.slane %v932, 4
  %v939 = vrot.slane %v934, 4
  %v940 = vrot.slane %v936, 4
  %v941 = vsel %vm137, %v937, %v938
  %v942 = vsel %vm889, %v930, %v941
  %v943 = vsel %vm137, %v939, %v940
  %v944 = vsel %vm889, %v934, %v943
  %947 = vst [vmem:[#allocation4 + $0xc8] sm:$0xff] %v942
  %948 = vst [vmem:[#allocation4 + $0xd8] sm:$0xff] %v944
  %s949 = scalar_lea.vmem %s6, 7
  %v950 = vld [vmem:[%s949] ss:$8 sm:$0x3]
  %v951 = vld [vmem:[#allocation2] sm:$0xff]
  %v952 = vld [vmem:[#allocation2 + $0x8] sm:$0xf]
  %v953 = vld [vmem:[#allocation2 + $0x10] sm:$0xff]
  %v954 = vld [vmem:[#allocation2 + $0x18] sm:$0xf]
  %v955 = vunpack.c.l.bf16 %v951
  %v956 = vunpack.c.h.bf16 %v951
  %v957 = vunpack.c.l.bf16 %v952
  %v958 = vunpack.c.l.bf16 %v953
  %v959 = vunpack.c.h.bf16 %v953
  %v960 = vunpack.c.l.bf16 %v954
  %v962 = vlaneseq
  %v963 = vshrl.u32 %v962, 7
  %v964 = vsub.s32 0, %v963
  %v965 = vrot.slane %v950, %v964
  %v966 = vlaneseq
  %v967 = vshrl.u32 %v966, 7
  %v968 = vsub.s32 1, %v967
  %v969 = vrot.slane %v950, %v968
  %970 = vrot.lane.b32.xlu0 %v965, 72
  %v971 = vpop.permute.xlu0 %970
  %972 = vrot.lane.b32.xlu0 %v969, 72
  %v973 = vpop.permute.xlu0 %972
  %vm974 = vcmask 588800
  %v975 = vsel %vm974, %v971, %v973
  %v979 = vmul.f32 %v955, %v971
  %v980 = vmul.f32 %v956, %v975
  %v981 = vmul.f32 %v957, %v973
  %v982 = vmul.f32 %v958, %v971
  %v983 = vmul.f32 %v959, %v975
  %v984 = vmul.f32 %v960, %v973
  %v985 = vpack.c.bf16 %v982, %v979
  %v986 = vpack.c.bf16 %v983, %v980
  %v987 = vpack.c.bf16 %v984, %v981
  %v991 = vunpack.c.l.b16 %v985
  %v992 = vunpack.c.l.b16 %v986
  %v993 = vunpack.c.l.b16 %v987
  %v994 = vunpack.c.h.b16 %v985
  %v995 = vunpack.c.h.b16 %v986
  %v996 = vunpack.c.h.b16 %v987
  %v997 = vpack.c.b16 %v992, %v991
  %v998 = vpack.c.b16 %v993, %v993
  %v999 = vpack.c.b16 %v995, %v994
  %v1000 = vpack.c.b16 %v996, %v996
  %1001 = vrot.lane.b32.xlu0 %v997, 56
  %v1002 = vpop.permute.xlu0 %1001
  %1003 = vrot.lane.b32.xlu0 %v998, 56
  %v1004 = vpop.permute.xlu0 %1003
  %1005 = vrot.lane.b32.xlu0 %v999, 56
  %v1006 = vpop.permute.xlu0 %1005
  %1007 = vrot.lane.b32.xlu0 %v1000, 56
  %v1008 = vpop.permute.xlu0 %1007
  %v1009 = vrot.slane %v1002, 4
  %v1010 = vrot.slane %v1004, 4
  %v1011 = vrot.slane %v1006, 4
  %v1012 = vrot.slane %v1008, 4
  %v1013 = vsel %vm137, %v1009, %v1010
  %vm1014 = vcmask 457728
  %v1015 = vsel %vm1014, %v1002, %v1013
  %v1016 = vsel %vm137, %v1011, %v1012
  %v1017 = vsel %vm1014, %v1006, %v1016
  %1020 = vst [vmem:[#allocation4 + $0xe0] sm:$0xff] %v1015
  %1021 = vst [vmem:[#allocation4 + $0xf0] sm:$0xff] %v1017
  %v1022 = vld [vmem:[#allocation3] sm:$0xff]
  %v1023 = vld [vmem:[#allocation3 + $0x8] sm:$0xf]
  %v1024 = vld [vmem:[#allocation3 + $0x10] sm:$0xff]
  %v1025 = vld [vmem:[#allocation3 + $0x18] sm:$0xf]
  %v1026 = vunpack.c.l.bf16 %v1022
  %v1027 = vunpack.c.h.bf16 %v1022
  %v1028 = vunpack.c.l.bf16 %v1023
  %v1029 = vunpack.c.l.bf16 %v1024
  %v1030 = vunpack.c.h.bf16 %v1024
  %v1031 = vunpack.c.l.bf16 %v1025
  %v1032 = vmul.f32 %v1026, %v971
  %v1033 = vmul.f32 %v1027, %v975
  %v1034 = vmul.f32 %v1028, %v973
  %v1035 = vmul.f32 %v1029, %v971
  %v1036 = vmul.f32 %v1030, %v975
  %v1037 = vmul.f32 %v1031, %v973
  %v1038 = vpack.c.bf16 %v1035, %v1032
  %v1039 = vpack.c.bf16 %v1036, %v1033
  %v1040 = vpack.c.bf16 %v1037, %v1034
  %v1044 = vunpack.c.l.b16 %v1038
  %v1045 = vunpack.c.l.b16 %v1039
  %v1046 = vunpack.c.l.b16 %v1040
  %v1047 = vunpack.c.h.b16 %v1038
  %v1048 = vunpack.c.h.b16 %v1039
  %v1049 = vunpack.c.h.b16 %v1040
  %v1050 = vpack.c.b16 %v1045, %v1044
  %v1051 = vpack.c.b16 %v1046, %v1046
  %v1052 = vpack.c.b16 %v1048, %v1047
  %v1053 = vpack.c.b16 %v1049, %v1049
  %1054 = vrot.lane.b32.xlu0 %v1050, 56
  %v1055 = vpop.permute.xlu0 %1054
  %1056 = vrot.lane.b32.xlu0 %v1051, 56
  %v1057 = vpop.permute.xlu0 %1056
  %1058 = vrot.lane.b32.xlu0 %v1052, 56
  %v1059 = vpop.permute.xlu0 %1058
  %1060 = vrot.lane.b32.xlu0 %v1053, 56
  %v1061 = vpop.permute.xlu0 %1060
  %v1062 = vrot.slane %v1055, 4
  %v1063 = vrot.slane %v1057, 4
  %v1064 = vrot.slane %v1059, 4
  %v1065 = vrot.slane %v1061, 4
  %v1066 = vsel %vm137, %v1062, %v1063
  %v1067 = vsel %vm1014, %v1055, %v1066
  %v1068 = vsel %vm137, %v1064, %v1065
  %v1069 = vsel %vm1014, %v1059, %v1068
  %1072 = vst [vmem:[#allocation4 + $0xe8] sm:$0xff] %v1067
  %1073 = vst [vmem:[#allocation4 + $0xf8] sm:$0xff] %v1069
  %s1074 = scalar_lea.vmem %s6, 16
  %v1075 = vld [vmem:[%s1074] ss:$8 sm:$0x3]
  %v1076 = vld [vmem:[#allocation2] sm:$0xff]
  %v1077 = vld [vmem:[#allocation2 + $0x8] sm:$0xf]
  %v1078 = vld [vmem:[#allocation2 + $0x10] sm:$0xff]
  %v1079 = vld [vmem:[#allocation2 + $0x18] sm:$0xf]
  %v1080 = vunpack.c.l.bf16 %v1076
  %v1081 = vunpack.c.h.bf16 %v1076
  %v1082 = vunpack.c.l.bf16 %v1077
  %v1083 = vunpack.c.l.bf16 %v1078
  %v1084 = vunpack.c.h.bf16 %v1078
  %v1085 = vunpack.c.l.bf16 %v1079
  %v1087 = vlaneseq
  %v1088 = vshrl.u32 %v1087, 7
  %v1089 = vsub.s32 0, %v1088
  %v1090 = vrot.slane %v1075, %v1089
  %v1091 = vlaneseq
  %v1092 = vshrl.u32 %v1091, 7
  %v1093 = vsub.s32 1, %v1092
  %v1094 = vrot.slane %v1075, %v1093
  %1095 = vrot.lane.b32.xlu0 %v1090, 73
  %v1096 = vpop.permute.xlu0 %1095
  %1097 = vrot.lane.b32.xlu0 %v1094, 73
  %v1098 = vpop.permute.xlu0 %1097
  %vm1099 = vcmask 596992
  %v1100 = vsel %vm1099, %v1096, %v1098
  %v1104 = vmul.f32 %v1080, %v1096
  %v1105 = vmul.f32 %v1081, %v1100
  %v1106 = vmul.f32 %v1082, %v1098
  %v1107 = vmul.f32 %v1083, %v1096
  %v1108 = vmul.f32 %v1084, %v1100
  %v1109 = vmul.f32 %v1085, %v1098
  %v1110 = vpack.c.bf16 %v1107, %v1104
  %v1111 = vpack.c.bf16 %v1108, %v1105
  %v1112 = vpack.c.bf16 %v1109, %v1106
  %v1116 = vunpack.c.l.b16 %v1110
  %v1117 = vunpack.c.l.b16 %v1111
  %v1118 = vunpack.c.l.b16 %v1112
  %v1119 = vunpack.c.h.b16 %v1110
  %v1120 = vunpack.c.h.b16 %v1111
  %v1121 = vunpack.c.h.b16 %v1112
  %v1122 = vpack.c.b16 %v1117, %v1116
  %v1123 = vpack.c.b16 %v1118, %v1118
  %v1124 = vpack.c.b16 %v1120, %v1119
  %v1125 = vpack.c.b16 %v1121, %v1121
  %1126 = vrot.lane.b32.xlu0 %v1122, 55
  %v1127 = vpop.permute.xlu0 %1126
  %1128 = vrot.lane.b32.xlu0 %v1123, 55
  %v1129 = vpop.permute.xlu0 %1128
  %1130 = vrot.lane.b32.xlu0 %v1124, 55
  %v1131 = vpop.permute.xlu0 %1130
  %1132 = vrot.lane.b32.xlu0 %v1125, 55
  %v1133 = vpop.permute.xlu0 %1132
  %v1134 = vrot.slane %v1127, 4
  %v1135 = vrot.slane %v1129, 4
  %v1136 = vrot.slane %v1131, 4
  %v1137 = vrot.slane %v1133, 4
  %v1138 = vsel %vm137, %v1134, %v1135
  %vm1139 = vcmask 449536
  %v1140 = vsel %vm1139, %v1127, %v1138
  %v1141 = vsel %vm137, %v1136, %v1137
  %v1142 = vsel %vm1139, %v1131, %v1141
  %1145 = vst [vmem:[#allocation4 + $0x100] sm:$0xff] %v1140
  %1146 = vst [vmem:[#allocation4 + $0x110] sm:$0xff] %v1142
  %v1147 = vld [vmem:[#allocation3] sm:$0xff]
  %v1148 = vld [vmem:[#allocation3 + $0x8] sm:$0xf]
  %v1149 = vld [vmem:[#allocation3 + $0x10] sm:$0xff]
  %v1150 = vld [vmem:[#allocation3 + $0x18] sm:$0xf]
  %v1151 = vunpack.c.l.bf16 %v1147
  %v1152 = vunpack.c.h.bf16 %v1147
  %v1153 = vunpack.c.l.bf16 %v1148
  %v1154 = vunpack.c.l.bf16 %v1149
  %v1155 = vunpack.c.h.bf16 %v1149
  %v1156 = vunpack.c.l.bf16 %v1150
  %v1157 = vmul.f32 %v1151, %v1096
  %v1158 = vmul.f32 %v1152, %v1100
  %v1159 = vmul.f32 %v1153, %v1098
  %v1160 = vmul.f32 %v1154, %v1096
  %v1161 = vmul.f32 %v1155, %v1100
  %v1162 = vmul.f32 %v1156, %v1098
  %v1163 = vpack.c.bf16 %v1160, %v1157
  %v1164 = vpack.c.bf16 %v1161, %v1158
  %v1165 = vpack.c.bf16 %v1162, %v1159
  %v1169 = vunpack.c.l.b16 %v1163
  %v1170 = vunpack.c.l.b16 %v1164
  %v1171 = vunpack.c.l.b16 %v1165
  %v1172 = vunpack.c.h.b16 %v1163
  %v1173 = vunpack.c.h.b16 %v1164
  %v1174 = vunpack.c.h.b16 %v1165
  %v1175 = vpack.c.b16 %v1170, %v1169
  %v1176 = vpack.c.b16 %v1171, %v1171
  %v1177 = vpack.c.b16 %v1173, %v1172
  %v1178 = vpack.c.b16 %v1174, %v1174
  %1179 = vrot.lane.b32.xlu0 %v1175, 55
  %v1180 = vpop.permute.xlu0 %1179
  %1181 = vrot.lane.b32.xlu0 %v1176, 55
  %v1182 = vpop.permute.xlu0 %1181
  %1183 = vrot.lane.b32.xlu0 %v1177, 55
  %v1184 = vpop.permute.xlu0 %1183
  %1185 = vrot.lane.b32.xlu0 %v1178, 55
  %v1186 = vpop.permute.xlu0 %1185
  %v1187 = vrot.slane %v1180, 4
  %v1188 = vrot.slane %v1182, 4
  %v1189 = vrot.slane %v1184, 4
  %v1190 = vrot.slane %v1186, 4
  %v1191 = vsel %vm137, %v1187, %v1188
  %v1192 = vsel %vm1139, %v1180, %v1191
  %v1193 = vsel %vm137, %v1189, %v1190
  %v1194 = vsel %vm1139, %v1184, %v1193
  %1197 = vst [vmem:[#allocation4 + $0x108] sm:$0xff] %v1192
  %1198 = vst [vmem:[#allocation4 + $0x118] sm:$0xff] %v1194
  %v1199 = vld [vmem:[%s1] sm:$0xff]
  %v1200 = vld [vmem:[%s1 + $0x8] sm:$0xff]
  %v1201 = vld [vmem:[#allocation4] sm:$0xff]
  %v1202 = vld [vmem:[#allocation4 + $0x8] sm:$0xff]
  %v1203 = vld [vmem:[#allocation4 + $0x10] sm:$0xff]
  %v1204 = vld [vmem:[#allocation4 + $0x18] sm:$0xff]
  %v1205 = vld [vmem:[#allocation4 + $0x20] sm:$0xff]
  %v1206 = vld [vmem:[#allocation4 + $0x28] sm:$0xff]
  %v1207 = vld [vmem:[#allocation4 + $0x30] sm:$0xff]
  %v1208 = vld [vmem:[#allocation4 + $0x38] sm:$0xff]
  %v1209 = vld [vmem:[#allocation4 + $0x40] sm:$0xff]
  %v1210 = vld [vmem:[#allocation4 + $0x48] sm:$0xff]
  %v1211 = vld [vmem:[#allocation4 + $0x50] sm:$0xff]
  %v1212 = vld [vmem:[#allocation4 + $0x58] sm:$0xff]
  %v1213 = vld [vmem:[#allocation4 + $0x60] sm:$0xff]
  %v1214 = vld [vmem:[#allocation4 + $0x68] sm:$0xff]
  %v1215 = vld [vmem:[#allocation4 + $0x70] sm:$0xff]
  %v1216 = vld [vmem:[#allocation4 + $0x78] sm:$0xff]
  %v1217 = vld [vmem:[#allocation4 + $0x80] sm:$0xff]
  %v1218 = vld [vmem:[#allocation4 + $0x88] sm:$0xff]
  %v1219 = vld [vmem:[#allocation4 + $0x90] sm:$0xff]
  %v1220 = vld [vmem:[#allocation4 + $0x98] sm:$0xff]
  %v1221 = vld [vmem:[#allocation4 + $0xa0] sm:$0xff]
  %v1222 = vld [vmem:[#allocation4 + $0xa8] sm:$0xff]
  %v1223 = vld [vmem:[#allocation4 + $0xb0] sm:$0xff]
  %v1224 = vld [vmem:[#allocation4 + $0xb8] sm:$0xff]
  %v1225 = vld [vmem:[#allocation4 + $0xc0] sm:$0xff]
  %v1226 = vld [vmem:[#allocation4 + $0xc8] sm:$0xff]
  %v1227 = vld [vmem:[#allocation4 + $0xd0] sm:$0xff]
  %v1228 = vld [vmem:[#allocation4 + $0xd8] sm:$0xff]
  %v1229 = vld [vmem:[#allocation4 + $0xe0] sm:$0xff]
  %v1230 = vld [vmem:[#allocation4 + $0xe8] sm:$0xff]
  %v1231 = vld [vmem:[#allocation4 + $0xf0] sm:$0xff]
  %v1232 = vld [vmem:[#allocation4 + $0xf8] sm:$0xff]
  %v1233 = vld [vmem:[#allocation4 + $0x100] sm:$0xff]
  %v1234 = vld [vmem:[#allocation4 + $0x108] sm:$0xff]
  %v1235 = vld [vmem:[#allocation4 + $0x110] sm:$0xff]
  %v1236 = vld [vmem:[#allocation4 + $0x118] sm:$0xff]
  %s1237 = scalar_lea.vmem %s6, 17
  %v1238 = vld [vmem:[%s1237] ss:$8 sm:$0x3]
  %v1239 = vld [vmem:[#allocation2] sm:$0xff]
  %v1240 = vld [vmem:[#allocation2 + $0x8] sm:$0xf]
  %v1241 = vld [vmem:[#allocation2 + $0x10] sm:$0xff]
  %v1242 = vld [vmem:[#allocation2 + $0x18] sm:$0xf]
  %v1243 = vunpack.c.l.bf16 %v1239
  %v1244 = vunpack.c.h.bf16 %v1239
  %v1245 = vunpack.c.l.bf16 %v1240
  %v1246 = vunpack.c.l.bf16 %v1241
  %v1247 = vunpack.c.h.bf16 %v1241
  %v1248 = vunpack.c.l.bf16 %v1242
  %v1250 = vlaneseq
  %v1251 = vshrl.u32 %v1250, 7
  %v1252 = vsub.s32 0, %v1251
  %v1253 = vrot.slane %v1238, %v1252
  %v1254 = vlaneseq
  %v1255 = vshrl.u32 %v1254, 7
  %v1256 = vsub.s32 1, %v1255
  %v1257 = vrot.slane %v1238, %v1256
  %1258 = vrot.lane.b32.xlu0 %v1253, 119
  %v1259 = vpop.permute.xlu0 %1258
  %1260 = vrot.lane.b32.xlu0 %v1257, 119
  %v1261 = vpop.permute.xlu0 %1260
  %vm1262 = vcmask 973824
  %v1263 = vsel %vm1262, %v1259, %v1261
  %v1267 = vmul.f32 %v1243, %v1259
  %v1268 = vmul.f32 %v1244, %v1263
  %v1269 = vmul.f32 %v1245, %v1261
  %v1270 = vmul.f32 %v1246, %v1259
  %v1271 = vmul.f32 %v1247, %v1263
  %v1272 = vmul.f32 %v1248, %v1261
  %v1273 = vpack.c.bf16 %v1270, %v1267
  %v1274 = vpack.c.bf16 %v1271, %v1268
  %v1275 = vpack.c.bf16 %v1272, %v1269
  %v1279 = vunpack.c.l.b16 %v1273
  %v1280 = vunpack.c.l.b16 %v1274
  %v1281 = vunpack.c.l.b16 %v1275
  %v1282 = vunpack.c.h.b16 %v1273
  %v1283 = vunpack.c.h.b16 %v1274
  %v1284 = vunpack.c.h.b16 %v1275
  %v1285 = vpack.c.b16 %v1280, %v1279
  %v1286 = vpack.c.b16 %v1281, %v1281
  %v1287 = vpack.c.b16 %v1283, %v1282
  %v1288 = vpack.c.b16 %v1284, %v1284
  %1289 = vrot.lane.b32.xlu0 %v1285, 9
  %v1290 = vpop.permute.xlu0 %1289
  %1291 = vrot.lane.b32.xlu0 %v1286, 9
  %v1292 = vpop.permute.xlu0 %1291
  %1293 = vrot.lane.b32.xlu0 %v1287, 9
  %v1294 = vpop.permute.xlu0 %1293
  %1295 = vrot.lane.b32.xlu0 %v1288, 9
  %v1296 = vpop.permute.xlu0 %1295
  %v1297 = vrot.slane %v1290, 4
  %v1298 = vrot.slane %v1292, 4
  %v1299 = vrot.slane %v1294, 4
  %v1300 = vrot.slane %v1296, 4
  %v1301 = vsel %vm137, %v1297, %v1298
  %vm1302 = vcmask 72704
  %v1303 = vsel %vm1302, %v1290, %v1301
  %v1304 = vsel %vm137, %v1299, %v1300
  %v1305 = vsel %vm1302, %v1294, %v1304
  %1308 = vst [vmem:[#allocation5] sm:$0xff] %v1303
  %1309 = vst [vmem:[#allocation5 + $0x10] sm:$0xff] %v1305
  %v1310 = vld [vmem:[#allocation3] sm:$0xff]
  %v1311 = vld [vmem:[#allocation3 + $0x8] sm:$0xf]
  %v1312 = vld [vmem:[#allocation3 + $0x10] sm:$0xff]
  %v1313 = vld [vmem:[#allocation3 + $0x18] sm:$0xf]
  %v1314 = vunpack.c.l.bf16 %v1310
  %v1315 = vunpack.c.h.bf16 %v1310
  %v1316 = vunpack.c.l.bf16 %v1311
  %v1317 = vunpack.c.l.bf16 %v1312
  %v1318 = vunpack.c.h.bf16 %v1312
  %v1319 = vunpack.c.l.bf16 %v1313
  %v1320 = vmul.f32 %v1314, %v1259
  %v1321 = vmul.f32 %v1315, %v1263
  %v1322 = vmul.f32 %v1316, %v1261
  %v1323 = vmul.f32 %v1317, %v1259
  %v1324 = vmul.f32 %v1318, %v1263
  %v1325 = vmul.f32 %v1319, %v1261
  %v1326 = vpack.c.bf16 %v1323, %v1320
  %v1327 = vpack.c.bf16 %v1324, %v1321
  %v1328 = vpack.c.bf16 %v1325, %v1322
  %v1332 = vunpack.c.l.b16 %v1326
  %v1333 = vunpack.c.l.b16 %v1327
  %v1334 = vunpack.c.l.b16 %v1328
  %v1335 = vunpack.c.h.b16 %v1326
  %v1336 = vunpack.c.h.b16 %v1327
  %v1337 = vunpack.c.h.b16 %v1328
  %v1338 = vpack.c.b16 %v1333, %v1332
  %v1339 = vpack.c.b16 %v1334, %v1334
  %v1340 = vpack.c.b16 %v1336, %v1335
  %v1341 = vpack.c.b16 %v1337, %v1337
  %1342 = vrot.lane.b32.xlu0 %v1338, 9
  %v1343 = vpop.permute.xlu0 %1342
  %1344 = vrot.lane.b32.xlu0 %v1339, 9
  %v1345 = vpop.permute.xlu0 %1344
  %1346 = vrot.lane.b32.xlu0 %v1340, 9
  %v1347 = vpop.permute.xlu0 %1346
  %1348 = vrot.lane.b32.xlu0 %v1341, 9
  %v1349 = vpop.permute.xlu0 %1348
  %v1350 = vrot.slane %v1343, 4
  %v1351 = vrot.slane %v1345, 4
  %v1352 = vrot.slane %v1347, 4
  %v1353 = vrot.slane %v1349, 4
  %v1354 = vsel %vm137, %v1350, %v1351
  %v1355 = vsel %vm1302, %v1343, %v1354
  %v1356 = vsel %vm137, %v1352, %v1353
  %v1357 = vsel %vm1302, %v1347, %v1356
  %1360 = vst [vmem:[#allocation5 + $0x8] sm:$0xff] %v1355
  %1361 = vst [vmem:[#allocation5 + $0x18] sm:$0xff] %v1357
  %s1362 = scalar_lea.vmem %s6, 18
  %v1363 = vld [vmem:[%s1362] ss:$8 sm:$0x3]
  %v1364 = vld [vmem:[#allocation2] sm:$0xff]
  %v1365 = vld [vmem:[#allocation2 + $0x8] sm:$0xf]
  %v1366 = vld [vmem:[#allocation2 + $0x10] sm:$0xff]
  %v1367 = vld [vmem:[#allocation2 + $0x18] sm:$0xf]
  %v1368 = vunpack.c.l.bf16 %v1364
  %v1369 = vunpack.c.h.bf16 %v1364
  %v1370 = vunpack.c.l.bf16 %v1365
  %v1371 = vunpack.c.l.bf16 %v1366
  %v1372 = vunpack.c.h.bf16 %v1366
  %v1373 = vunpack.c.l.bf16 %v1367
  %v1375 = vlaneseq
  %v1376 = vshrl.u32 %v1375, 7
  %v1377 = vsub.s32 0, %v1376
  %v1378 = vrot.slane %v1363, %v1377
  %v1379 = vlaneseq
  %v1380 = vshrl.u32 %v1379, 7
  %v1381 = vsub.s32 1, %v1380
  %v1382 = vrot.slane %v1363, %v1381
  %1383 = vrot.lane.b32.xlu0 %v1378, 120
  %v1384 = vpop.permute.xlu0 %1383
  %1385 = vrot.lane.b32.xlu0 %v1382, 120
  %v1386 = vpop.permute.xlu0 %1385
  %vm1387 = vcmask 982016
  %v1388 = vsel %vm1387, %v1384, %v1386
  %v1392 = vmul.f32 %v1368, %v1384
  %v1393 = vmul.f32 %v1369, %v1388
  %v1394 = vmul.f32 %v1370, %v1386
  %v1395 = vmul.f32 %v1371, %v1384
  %v1396 = vmul.f32 %v1372, %v1388
  %v1397 = vmul.f32 %v1373, %v1386
  %v1398 = vpack.c.bf16 %v1395, %v1392
  %v1399 = vpack.c.bf16 %v1396, %v1393
  %v1400 = vpack.c.bf16 %v1397, %v1394
  %v1404 = vunpack.c.l.b16 %v1398
  %v1405 = vunpack.c.l.b16 %v1399
  %v1406 = vunpack.c.l.b16 %v1400
  %v1407 = vunpack.c.h.b16 %v1398
  %v1408 = vunpack.c.h.b16 %v1399
  %v1409 = vunpack.c.h.b16 %v1400
  %v1410 = vpack.c.b16 %v1405, %v1404
  %v1411 = vpack.c.b16 %v1406, %v1406
  %v1412 = vpack.c.b16 %v1408, %v1407
  %v1413 = vpack.c.b16 %v1409, %v1409
  %1414 = vrot.lane.b32.xlu0 %v1410, 8
  %v1415 = vpop.permute.xlu0 %1414
  %1416 = vrot.lane.b32.xlu0 %v1411, 8
  %v1417 = vpop.permute.xlu0 %1416
  %1418 = vrot.lane.b32.xlu0 %v1412, 8
  %v1419 = vpop.permute.xlu0 %1418
  %1420 = vrot.lane.b32.xlu0 %v1413, 8
  %v1421 = vpop.permute.xlu0 %1420
  %v1422 = vrot.slane %v1415, 4
  %v1423 = vrot.slane %v1417, 4
  %v1424 = vrot.slane %v1419, 4
  %v1425 = vrot.slane %v1421, 4
  %v1426 = vsel %vm137, %v1422, %v1423
  %vm1427 = vcmask 64512
  %v1428 = vsel %vm1427, %v1415, %v1426
  %v1429 = vsel %vm137, %v1424, %v1425
  %v1430 = vsel %vm1427, %v1419, %v1429
  %1433 = vst [vmem:[#allocation5 + $0x20] sm:$0xff] %v1428
  %1434 = vst [vmem:[#allocation5 + $0x30] sm:$0xff] %v1430
  %v1435 = vld [vmem:[#allocation3] sm:$0xff]
  %v1436 = vld [vmem:[#allocation3 + $0x8] sm:$0xf]
  %v1437 = vld [vmem:[#allocation3 + $0x10] sm:$0xff]
  %v1438 = vld [vmem:[#allocation3 + $0x18] sm:$0xf]
  %v1439 = vunpack.c.l.bf16 %v1435
  %v1440 = vunpack.c.h.bf16 %v1435
  %v1441 = vunpack.c.l.bf16 %v1436
  %v1442 = vunpack.c.l.bf16 %v1437
  %v1443 = vunpack.c.h.bf16 %v1437
  %v1444 = vunpack.c.l.bf16 %v1438
  %v1445 = vmul.f32 %v1439, %v1384
  %v1446 = vmul.f32 %v1440, %v1388
  %v1447 = vmul.f32 %v1441, %v1386
  %v1448 = vmul.f32 %v1442, %v1384
  %v1449 = vmul.f32 %v1443, %v1388
  %v1450 = vmul.f32 %v1444, %v1386
  %v1451 = vpack.c.bf16 %v1448, %v1445
  %v1452 = vpack.c.bf16 %v1449, %v1446
  %v1453 = vpack.c.bf16 %v1450, %v1447
  %v1457 = vunpack.c.l.b16 %v1451
  %v1458 = vunpack.c.l.b16 %v1452
  %v1459 = vunpack.c.l.b16 %v1453
  %v1460 = vunpack.c.h.b16 %v1451
  %v1461 = vunpack.c.h.b16 %v1452
  %v1462 = vunpack.c.h.b16 %v1453
  %v1463 = vpack.c.b16 %v1458, %v1457
  %v1464 = vpack.c.b16 %v1459, %v1459
  %v1465 = vpack.c.b16 %v1461, %v1460
  %v1466 = vpack.c.b16 %v1462, %v1462
  %1467 = vrot.lane.b32.xlu0 %v1463, 8
  %v1468 = vpop.permute.xlu0 %1467
  %1469 = vrot.lane.b32.xlu0 %v1464, 8
  %v1470 = vpop.permute.xlu0 %1469
  %1471 = vrot.lane.b32.xlu0 %v1465, 8
  %v1472 = vpop.permute.xlu0 %1471
  %1473 = vrot.lane.b32.xlu0 %v1466, 8
  %v1474 = vpop.permute.xlu0 %1473
  %v1475 = vrot.slane %v1468, 4
  %v1476 = vrot.slane %v1470, 4
  %v1477 = vrot.slane %v1472, 4
  %v1478 = vrot.slane %v1474, 4
  %v1479 = vsel %vm137, %v1475, %v1476
  %v1480 = vsel %vm1427, %v1468, %v1479
  %v1481 = vsel %vm137, %v1477, %v1478
  %v1482 = vsel %vm1427, %v1472, %v1481
  %1485 = vst [vmem:[#allocation5 + $0x28] sm:$0xff] %v1480
  %1486 = vst [vmem:[#allocation5 + $0x38] sm:$0xff] %v1482
  %s1487 = scalar_lea.vmem %s6, 19
  %v1488 = vld [vmem:[%s1487] ss:$8 sm:$0x3]
  %v1489 = vld [vmem:[#allocation2] sm:$0xff]
  %v1490 = vld [vmem:[#allocation2 + $0x8] sm:$0xf]
  %v1491 = vld [vmem:[#allocation2 + $0x10] sm:$0xff]
  %v1492 = vld [vmem:[#allocation2 + $0x18] sm:$0xf]
  %v1493 = vunpack.c.l.bf16 %v1489
  %v1494 = vunpack.c.h.bf16 %v1489
  %v1495 = vunpack.c.l.bf16 %v1490
  %v1496 = vunpack.c.l.bf16 %v1491
  %v1497 = vunpack.c.h.bf16 %v1491
  %v1498 = vunpack.c.l.bf16 %v1492
  %v1500 = vlaneseq
  %v1501 = vshrl.u32 %v1500, 7
  %v1502 = vsub.s32 0, %v1501
  %v1503 = vrot.slane %v1488, %v1502
  %v1504 = vlaneseq
  %v1505 = vshrl.u32 %v1504, 7
  %v1506 = vsub.s32 1, %v1505
  %v1507 = vrot.slane %v1488, %v1506
  %1508 = vrot.lane.b32.xlu0 %v1503, 121
  %v1509 = vpop.permute.xlu0 %1508
  %1510 = vrot.lane.b32.xlu0 %v1507, 121
  %v1511 = vpop.permute.xlu0 %1510
  %vm1512 = vcmask 990208
  %v1513 = vsel %vm1512, %v1509, %v1511
  %v1517 = vmul.f32 %v1493, %v1509
  %v1518 = vmul.f32 %v1494, %v1513
  %v1519 = vmul.f32 %v1495, %v1511
  %v1520 = vmul.f32 %v1496, %v1509
  %v1521 = vmul.f32 %v1497, %v1513
  %v1522 = vmul.f32 %v1498, %v1511
  %v1523 = vpack.c.bf16 %v1520, %v1517
  %v1524 = vpack.c.bf16 %v1521, %v1518
  %v1525 = vpack.c.bf16 %v1522, %v1519
  %v1529 = vunpack.c.l.b16 %v1523
  %v1530 = vunpack.c.l.b16 %v1524
  %v1531 = vunpack.c.l.b16 %v1525
  %v1532 = vunpack.c.h.b16 %v1523
  %v1533 = vunpack.c.h.b16 %v1524
  %v1534 = vunpack.c.h.b16 %v1525
  %v1535 = vpack.c.b16 %v1530, %v1529
  %v1536 = vpack.c.b16 %v1531, %v1531
  %v1537 = vpack.c.b16 %v1533, %v1532
  %v1538 = vpack.c.b16 %v1534, %v1534
  %1539 = vrot.lane.b32.xlu0 %v1535, 7
  %v1540 = vpop.permute.xlu0 %1539
  %1541 = vrot.lane.b32.xlu0 %v1536, 7
  %v1542 = vpop.permute.xlu0 %1541
  %1543 = vrot.lane.b32.xlu0 %v1537, 7
  %v1544 = vpop.permute.xlu0 %1543
  %1545 = vrot.lane.b32.xlu0 %v1538, 7
  %v1546 = vpop.permute.xlu0 %1545
  %v1547 = vrot.slane %v1540, 4
  %v1548 = vrot.slane %v1542, 4
  %v1549 = vrot.slane %v1544, 4
  %v1550 = vrot.slane %v1546, 4
  %v1551 = vsel %vm137, %v1547, %v1548
  %vm1552 = vcmask 56320
  %v1553 = vsel %vm1552, %v1540, %v1551
  %v1554 = vsel %vm137, %v1549, %v1550
  %v1555 = vsel %vm1552, %v1544, %v1554
  %1558 = vst [vmem:[#allocation5 + $0x40] sm:$0xff] %v1553
  %1559 = vst [vmem:[#allocation5 + $0x50] sm:$0xff] %v1555
  %v1560 = vld [vmem:[#allocation3] sm:$0xff]
  %v1561 = vld [vmem:[#allocation3 + $0x8] sm:$0xf]
  %v1562 = vld [vmem:[#allocation3 + $0x10] sm:$0xff]
  %v1563 = vld [vmem:[#allocation3 + $0x18] sm:$0xf]
  %v1564 = vunpack.c.l.bf16 %v1560
  %v1565 = vunpack.c.h.bf16 %v1560
  %v1566 = vunpack.c.l.bf16 %v1561
  %v1567 = vunpack.c.l.bf16 %v1562
  %v1568 = vunpack.c.h.bf16 %v1562
  %v1569 = vunpack.c.l.bf16 %v1563
  %v1570 = vmul.f32 %v1564, %v1509
  %v1571 = vmul.f32 %v1565, %v1513
  %v1572 = vmul.f32 %v1566, %v1511
  %v1573 = vmul.f32 %v1567, %v1509
  %v1574 = vmul.f32 %v1568, %v1513
  %v1575 = vmul.f32 %v1569, %v1511
  %v1576 = vpack.c.bf16 %v1573, %v1570
  %v1577 = vpack.c.bf16 %v1574, %v1571
  %v1578 = vpack.c.bf16 %v1575, %v1572
  %v1582 = vunpack.c.l.b16 %v1576
  %v1583 = vunpack.c.l.b16 %v1577
  %v1584 = vunpack.c.l.b16 %v1578
  %v1585 = vunpack.c.h.b16 %v1576
  %v1586 = vunpack.c.h.b16 %v1577
  %v1587 = vunpack.c.h.b16 %v1578
  %v1588 = vpack.c.b16 %v1583, %v1582
  %v1589 = vpack.c.b16 %v1584, %v1584
  %v1590 = vpack.c.b16 %v1586, %v1585
  %v1591 = vpack.c.b16 %v1587, %v1587
  %1592 = vrot.lane.b32.xlu0 %v1588, 7
  %v1593 = vpop.permute.xlu0 %1592
  %1594 = vrot.lane.b32.xlu0 %v1589, 7
  %v1595 = vpop.permute.xlu0 %1594
  %1596 = vrot.lane.b32.xlu0 %v1590, 7
  %v1597 = vpop.permute.xlu0 %1596
  %1598 = vrot.lane.b32.xlu0 %v1591, 7
  %v1599 = vpop.permute.xlu0 %1598
  %v1600 = vrot.slane %v1593, 4
  %v1601 = vrot.slane %v1595, 4
  %v1602 = vrot.slane %v1597, 4
  %v1603 = vrot.slane %v1599, 4
  %v1604 = vsel %vm137, %v1600, %v1601
  %v1605 = vsel %vm1552, %v1593, %v1604
  %v1606 = vsel %vm137, %v1602, %v1603
  %v1607 = vsel %vm1552, %v1597, %v1606
  %1610 = vst [vmem:[#allocation5 + $0x48] sm:$0xff] %v1605
  %1611 = vst [vmem:[#allocation5 + $0x58] sm:$0xff] %v1607
  %s1612 = scalar_lea.vmem %s6, 20
  %v1613 = vld [vmem:[%s1612] ss:$8 sm:$0x3]
  %v1614 = vld [vmem:[#allocation2] sm:$0xff]
  %v1615 = vld [vmem:[#allocation2 + $0x8] sm:$0xf]
  %v1616 = vld [vmem:[#allocation2 + $0x10] sm:$0xff]
  %v1617 = vld [vmem:[#allocation2 + $0x18] sm:$0xf]
  %v1618 = vunpack.c.l.bf16 %v1614
  %v1619 = vunpack.c.h.bf16 %v1614
  %v1620 = vunpack.c.l.bf16 %v1615
  %v1621 = vunpack.c.l.bf16 %v1616
  %v1622 = vunpack.c.h.bf16 %v1616
  %v1623 = vunpack.c.l.bf16 %v1617
  %v1625 = vlaneseq
  %v1626 = vshrl.u32 %v1625, 7
  %v1627 = vsub.s32 0, %v1626
  %v1628 = vrot.slane %v1613, %v1627
  %v1629 = vlaneseq
  %v1630 = vshrl.u32 %v1629, 7
  %v1631 = vsub.s32 1, %v1630
  %v1632 = vrot.slane %v1613, %v1631
  %1633 = vrot.lane.b32.xlu0 %v1628, 127
  %v1634 = vpop.permute.xlu0 %1633
  %1635 = vrot.lane.b32.xlu0 %v1632, 127
  %v1636 = vpop.permute.xlu0 %1635
  %vm1637 = vcmask 1039360
  %v1638 = vsel %vm1637, %v1634, %v1636
  %v1642 = vmul.f32 %v1618, %v1634
  %v1643 = vmul.f32 %v1619, %v1638
  %v1644 = vmul.f32 %v1620, %v1636
  %v1645 = vmul.f32 %v1621, %v1634
  %v1646 = vmul.f32 %v1622, %v1638
  %v1647 = vmul.f32 %v1623, %v1636
  %v1648 = vpack.c.bf16 %v1645, %v1642
  %v1649 = vpack.c.bf16 %v1646, %v1643
  %v1650 = vpack.c.bf16 %v1647, %v1644
  %v1654 = vunpack.c.l.b16 %v1648
  %v1655 = vunpack.c.l.b16 %v1649
  %v1656 = vunpack.c.l.b16 %v1650
  %v1657 = vunpack.c.h.b16 %v1648
  %v1658 = vunpack.c.h.b16 %v1649
  %v1659 = vunpack.c.h.b16 %v1650
  %v1660 = vpack.c.b16 %v1655, %v1654
  %v1661 = vpack.c.b16 %v1656, %v1656
  %v1662 = vpack.c.b16 %v1658, %v1657
  %v1663 = vpack.c.b16 %v1659, %v1659
  %1664 = vrot.lane.b32.xlu0 %v1660, 1
  %v1665 = vpop.permute.xlu0 %1664
  %1666 = vrot.lane.b32.xlu0 %v1661, 1
  %v1667 = vpop.permute.xlu0 %1666
  %1668 = vrot.lane.b32.xlu0 %v1662, 1
  %v1669 = vpop.permute.xlu0 %1668
  %1670 = vrot.lane.b32.xlu0 %v1663, 1
  %v1671 = vpop.permute.xlu0 %1670
  %v1672 = vrot.slane %v1665, 4
  %v1673 = vrot.slane %v1667, 4
  %v1674 = vrot.slane %v1669, 4
  %v1675 = vrot.slane %v1671, 4
  %v1676 = vsel %vm137, %v1672, %v1673
  %vm1677 = vcmask 7168
  %v1678 = vsel %vm1677, %v1665, %v1676
  %v1679 = vsel %vm137, %v1674, %v1675
  %v1680 = vsel %vm1677, %v1669, %v1679
  %1683 = vst [vmem:[#allocation5 + $0x60] sm:$0xff] %v1678
  %1684 = vst [vmem:[#allocation5 + $0x70] sm:$0xff] %v1680
  %v1685 = vld [vmem:[#allocation3] sm:$0xff]
  %v1686 = vld [vmem:[#allocation3 + $0x8] sm:$0xf]
  %v1687 = vld [vmem:[#allocation3 + $0x10] sm:$0xff]
  %v1688 = vld [vmem:[#allocation3 + $0x18] sm:$0xf]
  %v1689 = vunpack.c.l.bf16 %v1685
  %v1690 = vunpack.c.h.bf16 %v1685
  %v1691 = vunpack.c.l.bf16 %v1686
  %v1692 = vunpack.c.l.bf16 %v1687
  %v1693 = vunpack.c.h.bf16 %v1687
  %v1694 = vunpack.c.l.bf16 %v1688
  %v1695 = vmul.f32 %v1689, %v1634
  %v1696 = vmul.f32 %v1690, %v1638
  %v1697 = vmul.f32 %v1691, %v1636
  %v1698 = vmul.f32 %v1692, %v1634
  %v1699 = vmul.f32 %v1693, %v1638
  %v1700 = vmul.f32 %v1694, %v1636
  %v1701 = vpack.c.bf16 %v1698, %v1695
  %v1702 = vpack.c.bf16 %v1699, %v1696
  %v1703 = vpack.c.bf16 %v1700, %v1697
  %v1707 = vunpack.c.l.b16 %v1701
  %v1708 = vunpack.c.l.b16 %v1702
  %v1709 = vunpack.c.l.b16 %v1703
  %v1710 = vunpack.c.h.b16 %v1701
  %v1711 = vunpack.c.h.b16 %v1702
  %v1712 = vunpack.c.h.b16 %v1703
  %v1713 = vpack.c.b16 %v1708, %v1707
  %v1714 = vpack.c.b16 %v1709, %v1709
  %v1715 = vpack.c.b16 %v1711, %v1710
  %v1716 = vpack.c.b16 %v1712, %v1712
  %1717 = vrot.lane.b32.xlu0 %v1713, 1
  %v1718 = vpop.permute.xlu0 %1717
  %1719 = vrot.lane.b32.xlu0 %v1714, 1
  %v1720 = vpop.permute.xlu0 %1719
  %1721 = vrot.lane.b32.xlu0 %v1715, 1
  %v1722 = vpop.permute.xlu0 %1721
  %1723 = vrot.lane.b32.xlu0 %v1716, 1
  %v1724 = vpop.permute.xlu0 %1723
  %v1725 = vrot.slane %v1718, 4
  %v1726 = vrot.slane %v1720, 4
  %v1727 = vrot.slane %v1722, 4
  %v1728 = vrot.slane %v1724, 4
  %v1729 = vsel %vm137, %v1725, %v1726
  %v1730 = vsel %vm1677, %v1718, %v1729
  %v1731 = vsel %vm137, %v1727, %v1728
  %v1732 = vsel %vm1677, %v1722, %v1731
  %1735 = vst [vmem:[#allocation5 + $0x68] sm:$0xff] %v1730
  %1736 = vst [vmem:[#allocation5 + $0x78] sm:$0xff] %v1732
  %s1737 = scalar_lea.vmem %s6, 21
  %v1738 = vld [vmem:[%s1737] ss:$8 sm:$0x3]
  %v1739 = vld [vmem:[#allocation2 + $0x4] sm:$0xff]
  %v1740 = vld [vmem:[#allocation2 + $0x14] sm:$0xff]
  %v1741 = vunpack.c.l.bf16 %v1739
  %v1742 = vunpack.c.h.bf16 %v1739
  %v1743 = vunpack.c.l.bf16 %v1740
  %v1744 = vunpack.c.h.bf16 %v1740
  %v1746 = vlaneseq
  %v1747 = vshrl.u32 %v1746, 7
  %v1748 = vsub.s32 0, %v1747
  %v1749 = vrot.slane %v1738, %v1748
  %v1750 = vlaneseq
  %v1751 = vshrl.u32 %v1750, 7
  %v1752 = vsub.s32 1, %v1751
  %v1753 = vrot.slane %v1738, %v1752
  %v1756 = vmul.f32 %v1741, %v1749
  %v1757 = vmul.f32 %v1742, %v1753
  %v1758 = vmul.f32 %v1743, %v1749
  %v1759 = vmul.f32 %v1744, %v1753
  %v1760 = vpack.c.bf16 %v1758, %v1756
  %v1761 = vpack.c.bf16 %v1759, %v1757
  %v1764 = vunpack.c.l.b16 %v1760
  %v1765 = vunpack.c.l.b16 %v1761
  %v1766 = vunpack.c.h.b16 %v1760
  %v1767 = vunpack.c.h.b16 %v1761
  %v1768 = vpack.c.b16 %v1765, %v1764
  %v1769 = vpack.c.b16 %v1767, %v1766
  %1772 = vst [vmem:[#allocation5 + $0x80] sm:$0xff] %v1768
  %1773 = vst [vmem:[#allocation5 + $0x90] sm:$0xff] %v1769
  %v1774 = vld [vmem:[#allocation3 + $0x4] sm:$0xff]
  %v1775 = vld [vmem:[#allocation3 + $0x14] sm:$0xff]
  %v1776 = vunpack.c.l.bf16 %v1774
  %v1777 = vunpack.c.h.bf16 %v1774
  %v1778 = vunpack.c.l.bf16 %v1775
  %v1779 = vunpack.c.h.bf16 %v1775
  %v1780 = vmul.f32 %v1776, %v1749
  %v1781 = vmul.f32 %v1777, %v1753
  %v1782 = vmul.f32 %v1778, %v1749
  %v1783 = vmul.f32 %v1779, %v1753
  %v1784 = vpack.c.bf16 %v1782, %v1780
  %v1785 = vpack.c.bf16 %v1783, %v1781
  %v1788 = vunpack.c.l.b16 %v1784
  %v1789 = vunpack.c.l.b16 %v1785
  %v1790 = vunpack.c.h.b16 %v1784
  %v1791 = vunpack.c.h.b16 %v1785
  %v1792 = vpack.c.b16 %v1789, %v1788
  %v1793 = vpack.c.b16 %v1791, %v1790
  %1796 = vst [vmem:[#allocation5 + $0x88] sm:$0xff] %v1792
  %1797 = vst [vmem:[#allocation5 + $0x98] sm:$0xff] %v1793
  %s1798 = scalar_lea.vmem %s6, 22
  %v1799 = vld [vmem:[%s1798] ss:$8 sm:$0x3]
  %v1800 = vld [vmem:[#allocation2 + $0x4] sm:$0xff]
  %v1801 = vld [vmem:[#allocation2 + $0xc] sm:$0xf]
  %v1802 = vld [vmem:[#allocation2 + $0x14] sm:$0xff]
  %v1803 = vld [vmem:[#allocation2 + $0x1c] sm:$0xf]
  %v1804 = vunpack.c.l.bf16 %v1800
  %v1805 = vunpack.c.h.bf16 %v1800
  %v1806 = vunpack.c.l.bf16 %v1801
  %v1807 = vunpack.c.l.bf16 %v1802
  %v1808 = vunpack.c.h.bf16 %v1802
  %v1809 = vunpack.c.l.bf16 %v1803
  %v1811 = vlaneseq
  %v1812 = vshrl.u32 %v1811, 7
  %v1813 = vsub.s32 0, %v1812
  %v1814 = vrot.slane %v1799, %v1813
  %v1815 = vlaneseq
  %v1816 = vshrl.u32 %v1815, 7
  %v1817 = vsub.s32 1, %v1816
  %v1818 = vrot.slane %v1799, %v1817
  %1819 = vrot.lane.b32.xlu0 %v1814, 1
  %v1820 = vpop.permute.xlu0 %1819
  %1821 = vrot.lane.b32.xlu0 %v1818, 1
  %v1822 = vpop.permute.xlu0 %1821
  %vm1823 = vcmask 7168
  %v1824 = vsel %vm1823, %v1820, %v1822
  %v1828 = vmul.f32 %v1804, %v1820
  %v1829 = vmul.f32 %v1805, %v1824
  %v1830 = vmul.f32 %v1806, %v1822
  %v1831 = vmul.f32 %v1807, %v1820
  %v1832 = vmul.f32 %v1808, %v1824
  %v1833 = vmul.f32 %v1809, %v1822
  %v1834 = vpack.c.bf16 %v1831, %v1828
  %v1835 = vpack.c.bf16 %v1832, %v1829
  %v1836 = vpack.c.bf16 %v1833, %v1830
  %v1840 = vunpack.c.l.b16 %v1834
  %v1841 = vunpack.c.l.b16 %v1835
  %v1842 = vunpack.c.l.b16 %v1836
  %v1843 = vunpack.c.h.b16 %v1834
  %v1844 = vunpack.c.h.b16 %v1835
  %v1845 = vunpack.c.h.b16 %v1836
  %v1846 = vpack.c.b16 %v1841, %v1840
  %v1847 = vpack.c.b16 %v1842, %v1842
  %v1848 = vpack.c.b16 %v1844, %v1843
  %v1849 = vpack.c.b16 %v1845, %v1845
  %1850 = vrot.lane.b32.xlu0 %v1846, 127
  %v1851 = vpop.permute.xlu0 %1850
  %1852 = vrot.lane.b32.xlu0 %v1847, 127
  %v1853 = vpop.permute.xlu0 %1852
  %1854 = vrot.lane.b32.xlu0 %v1848, 127
  %v1855 = vpop.permute.xlu0 %1854
  %1856 = vrot.lane.b32.xlu0 %v1849, 127
  %v1857 = vpop.permute.xlu0 %1856
  %v1858 = vrot.slane %v1851, 4
  %v1859 = vrot.slane %v1853, 4
  %v1860 = vrot.slane %v1855, 4
  %v1861 = vrot.slane %v1857, 4
  %v1862 = vsel %vm137, %v1858, %v1859
  %vm1863 = vcmask 1039360
  %v1864 = vsel %vm1863, %v1851, %v1862
  %v1865 = vsel %vm137, %v1860, %v1861
  %v1866 = vsel %vm1863, %v1855, %v1865
  %1869 = vst [vmem:[#allocation5 + $0xa0] sm:$0xff] %v1864
  %1870 = vst [vmem:[#allocation5 + $0xb0] sm:$0xff] %v1866
  %v1871 = vld [vmem:[#allocation3 + $0x4] sm:$0xff]
  %v1872 = vld [vmem:[#allocation3 + $0xc] sm:$0xf]
  %v1873 = vld [vmem:[#allocation3 + $0x14] sm:$0xff]
  %v1874 = vld [vmem:[#allocation3 + $0x1c] sm:$0xf]
  %v1875 = vunpack.c.l.bf16 %v1871
  %v1876 = vunpack.c.h.bf16 %v1871
  %v1877 = vunpack.c.l.bf16 %v1872
  %v1878 = vunpack.c.l.bf16 %v1873
  %v1879 = vunpack.c.h.bf16 %v1873
  %v1880 = vunpack.c.l.bf16 %v1874
  %v1881 = vmul.f32 %v1875, %v1820
  %v1882 = vmul.f32 %v1876, %v1824
  %v1883 = vmul.f32 %v1877, %v1822
  %v1884 = vmul.f32 %v1878, %v1820
  %v1885 = vmul.f32 %v1879, %v1824
  %v1886 = vmul.f32 %v1880, %v1822
  %v1887 = vpack.c.bf16 %v1884, %v1881
  %v1888 = vpack.c.bf16 %v1885, %v1882
  %v1889 = vpack.c.bf16 %v1886, %v1883
  %v1893 = vunpack.c.l.b16 %v1887
  %v1894 = vunpack.c.l.b16 %v1888
  %v1895 = vunpack.c.l.b16 %v1889
  %v1896 = vunpack.c.h.b16 %v1887
  %v1897 = vunpack.c.h.b16 %v1888
  %v1898 = vunpack.c.h.b16 %v1889
  %v1899 = vpack.c.b16 %v1894, %v1893
  %v1900 = vpack.c.b16 %v1895, %v1895
  %v1901 = vpack.c.b16 %v1897, %v1896
  %v1902 = vpack.c.b16 %v1898, %v1898
  %1903 = vrot.lane.b32.xlu0 %v1899, 127
  %v1904 = vpop.permute.xlu0 %1903
  %1905 = vrot.lane.b32.xlu0 %v1900, 127
  %v1906 = vpop.permute.xlu0 %1905
  %1907 = vrot.lane.b32.xlu0 %v1901, 127
  %v1908 = vpop.permute.xlu0 %1907
  %1909 = vrot.lane.b32.xlu0 %v1902, 127
  %v1910 = vpop.permute.xlu0 %1909
  %v1911 = vrot.slane %v1904, 4
  %v1912 = vrot.slane %v1906, 4
  %v1913 = vrot.slane %v1908, 4
  %v1914 = vrot.slane %v1910, 4
  %v1915 = vsel %vm137, %v1911, %v1912
  %v1916 = vsel %vm1863, %v1904, %v1915
  %v1917 = vsel %vm137, %v1913, %v1914
  %v1918 = vsel %vm1863, %v1908, %v1917
  %1921 = vst [vmem:[#allocation5 + $0xa8] sm:$0xff] %v1916
  %1922 = vst [vmem:[#allocation5 + $0xb8] sm:$0xff] %v1918
  %s1923 = scalar_lea.vmem %s6, 23
  %v1924 = vld [vmem:[%s1923] ss:$8 sm:$0x3]
  %v1925 = vld [vmem:[#allocation2 + $0x4] sm:$0xff]
  %v1926 = vld [vmem:[#allocation2 + $0xc] sm:$0xf]
  %v1927 = vld [vmem:[#allocation2 + $0x14] sm:$0xff]
  %v1928 = vld [vmem:[#allocation2 + $0x1c] sm:$0xf]
  %v1929 = vunpack.c.l.bf16 %v1925
  %v1930 = vunpack.c.h.bf16 %v1925
  %v1931 = vunpack.c.l.bf16 %v1926
  %v1932 = vunpack.c.l.bf16 %v1927
  %v1933 = vunpack.c.h.bf16 %v1927
  %v1934 = vunpack.c.l.bf16 %v1928
  %v1936 = vlaneseq
  %v1937 = vshrl.u32 %v1936, 7
  %v1938 = vsub.s32 0, %v1937
  %v1939 = vrot.slane %v1924, %v1938
  %v1940 = vlaneseq
  %v1941 = vshrl.u32 %v1940, 7
  %v1942 = vsub.s32 1, %v1941
  %v1943 = vrot.slane %v1924, %v1942
  %1944 = vrot.lane.b32.xlu0 %v1939, 7
  %v1945 = vpop.permute.xlu0 %1944
  %1946 = vrot.lane.b32.xlu0 %v1943, 7
  %v1947 = vpop.permute.xlu0 %1946
  %vm1948 = vcmask 56320
  %v1949 = vsel %vm1948, %v1945, %v1947
  %v1953 = vmul.f32 %v1929, %v1945
  %v1954 = vmul.f32 %v1930, %v1949
  %v1955 = vmul.f32 %v1931, %v1947
  %v1956 = vmul.f32 %v1932, %v1945
  %v1957 = vmul.f32 %v1933, %v1949
  %v1958 = vmul.f32 %v1934, %v1947
  %v1959 = vpack.c.bf16 %v1956, %v1953
  %v1960 = vpack.c.bf16 %v1957, %v1954
  %v1961 = vpack.c.bf16 %v1958, %v1955
  %v1965 = vunpack.c.l.b16 %v1959
  %v1966 = vunpack.c.l.b16 %v1960
  %v1967 = vunpack.c.l.b16 %v1961
  %v1968 = vunpack.c.h.b16 %v1959
  %v1969 = vunpack.c.h.b16 %v1960
  %v1970 = vunpack.c.h.b16 %v1961
  %v1971 = vpack.c.b16 %v1966, %v1965
  %v1972 = vpack.c.b16 %v1967, %v1967
  %v1973 = vpack.c.b16 %v1969, %v1968
  %v1974 = vpack.c.b16 %v1970, %v1970
  %1975 = vrot.lane.b32.xlu0 %v1971, 121
  %v1976 = vpop.permute.xlu0 %1975
  %1977 = vrot.lane.b32.xlu0 %v1972, 121
  %v1978 = vpop.permute.xlu0 %1977
  %1979 = vrot.lane.b32.xlu0 %v1973, 121
  %v1980 = vpop.permute.xlu0 %1979
  %1981 = vrot.lane.b32.xlu0 %v1974, 121
  %v1982 = vpop.permute.xlu0 %1981
  %v1983 = vrot.slane %v1976, 4
  %v1984 = vrot.slane %v1978, 4
  %v1985 = vrot.slane %v1980, 4
  %v1986 = vrot.slane %v1982, 4
  %v1987 = vsel %vm137, %v1983, %v1984
  %vm1988 = vcmask 990208
  %v1989 = vsel %vm1988, %v1976, %v1987
  %v1990 = vsel %vm137, %v1985, %v1986
  %v1991 = vsel %vm1988, %v1980, %v1990
  %1994 = vst [vmem:[#allocation5 + $0xc0] sm:$0xff] %v1989
  %1995 = vst [vmem:[#allocation5 + $0xd0] sm:$0xff] %v1991
  %v1996 = vld [vmem:[#allocation3 + $0x4] sm:$0xff]
  %v1997 = vld [vmem:[#allocation3 + $0xc] sm:$0xf]
  %v1998 = vld [vmem:[#allocation3 + $0x14] sm:$0xff]
  %v1999 = vld [vmem:[#allocation3 + $0x1c] sm:$0xf]
  %v2000 = vunpack.c.l.bf16 %v1996
  %v2001 = vunpack.c.h.bf16 %v1996
  %v2002 = vunpack.c.l.bf16 %v1997
  %v2003 = vunpack.c.l.bf16 %v1998
  %v2004 = vunpack.c.h.bf16 %v1998
  %v2005 = vunpack.c.l.bf16 %v1999
  %v2006 = vmul.f32 %v2000, %v1945
  %v2007 = vmul.f32 %v2001, %v1949
  %v2008 = vmul.f32 %v2002, %v1947
  %v2009 = vmul.f32 %v2003, %v1945
  %v2010 = vmul.f32 %v2004, %v1949
  %v2011 = vmul.f32 %v2005, %v1947
  %v2012 = vpack.c.bf16 %v2009, %v2006
  %v2013 = vpack.c.bf16 %v2010, %v2007
  %v2014 = vpack.c.bf16 %v2011, %v2008
  %v2018 = vunpack.c.l.b16 %v2012
  %v2019 = vunpack.c.l.b16 %v2013
  %v2020 = vunpack.c.l.b16 %v2014
  %v2021 = vunpack.c.h.b16 %v2012
  %v2022 = vunpack.c.h.b16 %v2013
  %v2023 = vunpack.c.h.b16 %v2014
  %v2024 = vpack.c.b16 %v2019, %v2018
  %v2025 = vpack.c.b16 %v2020, %v2020
  %v2026 = vpack.c.b16 %v2022, %v2021
  %v2027 = vpack.c.b16 %v2023, %v2023
  %2028 = vrot.lane.b32.xlu0 %v2024, 121
  %v2029 = vpop.permute.xlu0 %2028
  %2030 = vrot.lane.b32.xlu0 %v2025, 121
  %v2031 = vpop.permute.xlu0 %2030
  %2032 = vrot.lane.b32.xlu0 %v2026, 121
  %v2033 = vpop.permute.xlu0 %2032
  %2034 = vrot.lane.b32.xlu0 %v2027, 121
  %v2035 = vpop.permute.xlu0 %2034
  %v2036 = vrot.slane %v2029, 4
  %v2037 = vrot.slane %v2031, 4
  %v2038 = vrot.slane %v2033, 4
  %v2039 = vrot.slane %v2035, 4
  %v2040 = vsel %vm137, %v2036, %v2037
  %v2041 = vsel %vm1988, %v2029, %v2040
  %v2042 = vsel %vm137, %v2038, %v2039
  %v2043 = vsel %vm1988, %v2033, %v2042
  %2046 = vst [vmem:[#allocation5 + $0xc8] sm:$0xff] %v2041
  %2047 = vst [vmem:[#allocation5 + $0xd8] sm:$0xff] %v2043
  %s2048 = scalar_lea.vmem %s6, 32
  %v2049 = vld [vmem:[%s2048] ss:$8 sm:$0x3]
  %v2050 = vld [vmem:[#allocation2 + $0x4] sm:$0xff]
  %v2051 = vld [vmem:[#allocation2 + $0xc] sm:$0xf]
  %v2052 = vld [vmem:[#allocation2 + $0x14] sm:$0xff]
  %v2053 = vld [vmem:[#allocation2 + $0x1c] sm:$0xf]
  %v2054 = vunpack.c.l.bf16 %v2050
  %v2055 = vunpack.c.h.bf16 %v2050
  %v2056 = vunpack.c.l.bf16 %v2051
  %v2057 = vunpack.c.l.bf16 %v2052
  %v2058 = vunpack.c.h.bf16 %v2052
  %v2059 = vunpack.c.l.bf16 %v2053
  %v2061 = vlaneseq
  %v2062 = vshrl.u32 %v2061, 7
  %v2063 = vsub.s32 0, %v2062
  %v2064 = vrot.slane %v2049, %v2063
  %v2065 = vlaneseq
  %v2066 = vshrl.u32 %v2065, 7
  %v2067 = vsub.s32 1, %v2066
  %v2068 = vrot.slane %v2049, %v2067
  %2069 = vrot.lane.b32.xlu0 %v2064, 8
  %v2070 = vpop.permute.xlu0 %2069
  %2071 = vrot.lane.b32.xlu0 %v2068, 8
  %v2072 = vpop.permute.xlu0 %2071
  %vm2073 = vcmask 64512
  %v2074 = vsel %vm2073, %v2070, %v2072
  %v2078 = vmul.f32 %v2054, %v2070
  %v2079 = vmul.f32 %v2055, %v2074
  %v2080 = vmul.f32 %v2056, %v2072
  %v2081 = vmul.f32 %v2057, %v2070
  %v2082 = vmul.f32 %v2058, %v2074
  %v2083 = vmul.f32 %v2059, %v2072
  %v2084 = vpack.c.bf16 %v2081, %v2078
  %v2085 = vpack.c.bf16 %v2082, %v2079
  %v2086 = vpack.c.bf16 %v2083, %v2080
  %v2090 = vunpack.c.l.b16 %v2084
  %v2091 = vunpack.c.l.b16 %v2085
  %v2092 = vunpack.c.l.b16 %v2086
  %v2093 = vunpack.c.h.b16 %v2084
  %v2094 = vunpack.c.h.b16 %v2085
  %v2095 = vunpack.c.h.b16 %v2086
  %v2096 = vpack.c.b16 %v2091, %v2090
  %v2097 = vpack.c.b16 %v2092, %v2092
  %v2098 = vpack.c.b16 %v2094, %v2093
  %v2099 = vpack.c.b16 %v2095, %v2095
  %2100 = vrot.lane.b32.xlu0 %v2096, 120
  %v2101 = vpop.permute.xlu0 %2100
  %2102 = vrot.lane.b32.xlu0 %v2097, 120
  %v2103 = vpop.permute.xlu0 %2102
  %2104 = vrot.lane.b32.xlu0 %v2098, 120
  %v2105 = vpop.permute.xlu0 %2104
  %2106 = vrot.lane.b32.xlu0 %v2099, 120
  %v2107 = vpop.permute.xlu0 %2106
  %v2108 = vrot.slane %v2101, 4
  %v2109 = vrot.slane %v2103, 4
  %v2110 = vrot.slane %v2105, 4
  %v2111 = vrot.slane %v2107, 4
  %v2112 = vsel %vm137, %v2108, %v2109
  %vm2113 = vcmask 982016
  %v2114 = vsel %vm2113, %v2101, %v2112
  %v2115 = vsel %vm137, %v2110, %v2111
  %v2116 = vsel %vm2113, %v2105, %v2115
  %2119 = vst [vmem:[#allocation5 + $0xe0] sm:$0xff] %v2114
  %2120 = vst [vmem:[#allocation5 + $0xf0] sm:$0xff] %v2116
  %v2121 = vld [vmem:[#allocation3 + $0x4] sm:$0xff]
  %v2122 = vld [vmem:[#allocation3 + $0xc] sm:$0xf]
  %v2123 = vld [vmem:[#allocation3 + $0x14] sm:$0xff]
  %v2124 = vld [vmem:[#allocation3 + $0x1c] sm:$0xf]
  %v2125 = vunpack.c.l.bf16 %v2121
  %v2126 = vunpack.c.h.bf16 %v2121
  %v2127 = vunpack.c.l.bf16 %v2122
  %v2128 = vunpack.c.l.bf16 %v2123
  %v2129 = vunpack.c.h.bf16 %v2123
  %v2130 = vunpack.c.l.bf16 %v2124
  %v2131 = vmul.f32 %v2125, %v2070
  %v2132 = vmul.f32 %v2126, %v2074
  %v2133 = vmul.f32 %v2127, %v2072
  %v2134 = vmul.f32 %v2128, %v2070
  %v2135 = vmul.f32 %v2129, %v2074
  %v2136 = vmul.f32 %v2130, %v2072
  %v2137 = vpack.c.bf16 %v2134, %v2131
  %v2138 = vpack.c.bf16 %v2135, %v2132
  %v2139 = vpack.c.bf16 %v2136, %v2133
  %v2143 = vunpack.c.l.b16 %v2137
  %v2144 = vunpack.c.l.b16 %v2138
  %v2145 = vunpack.c.l.b16 %v2139
  %v2146 = vunpack.c.h.b16 %v2137
  %v2147 = vunpack.c.h.b16 %v2138
  %v2148 = vunpack.c.h.b16 %v2139
  %v2149 = vpack.c.b16 %v2144, %v2143
  %v2150 = vpack.c.b16 %v2145, %v2145
  %v2151 = vpack.c.b16 %v2147, %v2146
  %v2152 = vpack.c.b16 %v2148, %v2148
  %2153 = vrot.lane.b32.xlu0 %v2149, 120
  %v2154 = vpop.permute.xlu0 %2153
  %2155 = vrot.lane.b32.xlu0 %v2150, 120
  %v2156 = vpop.permute.xlu0 %2155
  %2157 = vrot.lane.b32.xlu0 %v2151, 120
  %v2158 = vpop.permute.xlu0 %2157
  %2159 = vrot.lane.b32.xlu0 %v2152, 120
  %v2160 = vpop.permute.xlu0 %2159
  %v2161 = vrot.slane %v2154, 4
  %v2162 = vrot.slane %v2156, 4
  %v2163 = vrot.slane %v2158, 4
  %v2164 = vrot.slane %v2160, 4
  %v2165 = vsel %vm137, %v2161, %v2162
  %v2166 = vsel %vm2113, %v2154, %v2165
  %v2167 = vsel %vm137, %v2163, %v2164
  %v2168 = vsel %vm2113, %v2158, %v2167
  %2171 = vst [vmem:[#allocation5 + $0xe8] sm:$0xff] %v2166
  %2172 = vst [vmem:[#allocation5 + $0xf8] sm:$0xff] %v2168
  %s2173 = scalar_lea.vmem %s6, 33
  %v2174 = vld [vmem:[%s2173] ss:$8 sm:$0x3]
  %v2175 = vld [vmem:[#allocation2 + $0x4] sm:$0xff]
  %v2176 = vld [vmem:[#allocation2 + $0xc] sm:$0xf]
  %v2177 = vld [vmem:[#allocation2 + $0x14] sm:$0xff]
  %v2178 = vld [vmem:[#allocation2 + $0x1c] sm:$0xf]
  %v2179 = vunpack.c.l.bf16 %v2175
  %v2180 = vunpack.c.h.bf16 %v2175
  %v2181 = vunpack.c.l.bf16 %v2176
  %v2182 = vunpack.c.l.bf16 %v2177
  %v2183 = vunpack.c.h.bf16 %v2177
  %v2184 = vunpack.c.l.bf16 %v2178
  %v2186 = vlaneseq
  %v2187 = vshrl.u32 %v2186, 7
  %v2188 = vsub.s32 0, %v2187
  %v2189 = vrot.slane %v2174, %v2188
  %v2190 = vlaneseq
  %v2191 = vshrl.u32 %v2190, 7
  %v2192 = vsub.s32 1, %v2191
  %v2193 = vrot.slane %v2174, %v2192
  %2194 = vrot.lane.b32.xlu0 %v2189, 9
  %v2195 = vpop.permute.xlu0 %2194
  %2196 = vrot.lane.b32.xlu0 %v2193, 9
  %v2197 = vpop.permute.xlu0 %2196
  %vm2198 = vcmask 72704
  %v2199 = vsel %vm2198, %v2195, %v2197
  %v2203 = vmul.f32 %v2179, %v2195
  %v2204 = vmul.f32 %v2180, %v2199
  %v2205 = vmul.f32 %v2181, %v2197
  %v2206 = vmul.f32 %v2182, %v2195
  %v2207 = vmul.f32 %v2183, %v2199
  %v2208 = vmul.f32 %v2184, %v2197
  %v2209 = vpack.c.bf16 %v2206, %v2203
  %v2210 = vpack.c.bf16 %v2207, %v2204
  %v2211 = vpack.c.bf16 %v2208, %v2205
  %v2215 = vunpack.c.l.b16 %v2209
  %v2216 = vunpack.c.l.b16 %v2210
  %v2217 = vunpack.c.l.b16 %v2211
  %v2218 = vunpack.c.h.b16 %v2209
  %v2219 = vunpack.c.h.b16 %v2210
  %v2220 = vunpack.c.h.b16 %v2211
  %v2221 = vpack.c.b16 %v2216, %v2215
  %v2222 = vpack.c.b16 %v2217, %v2217
  %v2223 = vpack.c.b16 %v2219, %v2218
  %v2224 = vpack.c.b16 %v2220, %v2220
  %2225 = vrot.lane.b32.xlu0 %v2221, 119
  %v2226 = vpop.permute.xlu0 %2225
  %2227 = vrot.lane.b32.xlu0 %v2222, 119
  %v2228 = vpop.permute.xlu0 %2227
  %2229 = vrot.lane.b32.xlu0 %v2223, 119
  %v2230 = vpop.permute.xlu0 %2229
  %2231 = vrot.lane.b32.xlu0 %v2224, 119
  %v2232 = vpop.permute.xlu0 %2231
  %v2233 = vrot.slane %v2226, 4
  %v2234 = vrot.slane %v2228, 4
  %v2235 = vrot.slane %v2230, 4
  %v2236 = vrot.slane %v2232, 4
  %v2237 = vsel %vm137, %v2233, %v2234
  %vm2238 = vcmask 973824
  %v2239 = vsel %vm2238, %v2226, %v2237
  %v2240 = vsel %vm137, %v2235, %v2236
  %v2241 = vsel %vm2238, %v2230, %v2240
  %2244 = vst [vmem:[#allocation5 + $0x100] sm:$0xff] %v2239
  %2245 = vst [vmem:[#allocation5 + $0x110] sm:$0xff] %v2241
  %v2246 = vld [vmem:[#allocation3 + $0x4] sm:$0xff]
  %v2247 = vld [vmem:[#allocation3 + $0xc] sm:$0xf]
  %v2248 = vld [vmem:[#allocation3 + $0x14] sm:$0xff]
  %v2249 = vld [vmem:[#allocation3 + $0x1c] sm:$0xf]
  %v2250 = vunpack.c.l.bf16 %v2246
  %v2251 = vunpack.c.h.bf16 %v2246
  %v2252 = vunpack.c.l.bf16 %v2247
  %v2253 = vunpack.c.l.bf16 %v2248
  %v2254 = vunpack.c.h.bf16 %v2248
  %v2255 = vunpack.c.l.bf16 %v2249
  %v2256 = vmul.f32 %v2250, %v2195
  %v2257 = vmul.f32 %v2251, %v2199
  %v2258 = vmul.f32 %v2252, %v2197
  %v2259 = vmul.f32 %v2253, %v2195
  %v2260 = vmul.f32 %v2254, %v2199
  %v2261 = vmul.f32 %v2255, %v2197
  %v2262 = vpack.c.bf16 %v2259, %v2256
  %v2263 = vpack.c.bf16 %v2260, %v2257
  %v2264 = vpack.c.bf16 %v2261, %v2258
  %v2268 = vunpack.c.l.b16 %v2262
  %v2269 = vunpack.c.l.b16 %v2263
  %v2270 = vunpack.c.l.b16 %v2264
  %v2271 = vunpack.c.h.b16 %v2262
  %v2272 = vunpack.c.h.b16 %v2263
  %v2273 = vunpack.c.h.b16 %v2264
  %v2274 = vpack.c.b16 %v2269, %v2268
  %v2275 = vpack.c.b16 %v2270, %v2270
  %v2276 = vpack.c.b16 %v2272, %v2271
  %v2277 = vpack.c.b16 %v2273, %v2273
  %2278 = vrot.lane.b32.xlu0 %v2274, 119
  %v2279 = vpop.permute.xlu0 %2278
  %2280 = vrot.lane.b32.xlu0 %v2275, 119
  %v2281 = vpop.permute.xlu0 %2280
  %2282 = vrot.lane.b32.xlu0 %v2276, 119
  %v2283 = vpop.permute.xlu0 %2282
  %2284 = vrot.lane.b32.xlu0 %v2277, 119
  %v2285 = vpop.permute.xlu0 %2284
  %v2286 = vrot.slane %v2279, 4
  %v2287 = vrot.slane %v2281, 4
  %v2288 = vrot.slane %v2283, 4
  %v2289 = vrot.slane %v2285, 4
  %v2290 = vsel %vm137, %v2286, %v2287
  %v2291 = vsel %vm2238, %v2279, %v2290
  %v2292 = vsel %vm137, %v2288, %v2289
  %v2293 = vsel %vm2238, %v2283, %v2292
  %2296 = vst [vmem:[#allocation5 + $0x108] sm:$0xff] %v2291
  %2297 = vst [vmem:[#allocation5 + $0x118] sm:$0xff] %v2293
  %s2298 = scalar_lea.vmem %s1, 16
  %v2299 = vld [vmem:[%s2298] sm:$0xff]
  %v2300 = vld [vmem:[%s2298 + $0x8] sm:$0xff]
  %v2301 = vld [vmem:[#allocation5] sm:$0xff]
  %v2302 = vld [vmem:[#allocation5 + $0x8] sm:$0xff]
  %v2303 = vld [vmem:[#allocation5 + $0x10] sm:$0xff]
  %v2304 = vld [vmem:[#allocation5 + $0x18] sm:$0xff]
  %v2305 = vld [vmem:[#allocation5 + $0x20] sm:$0xff]
  %v2306 = vld [vmem:[#allocation5 + $0x28] sm:$0xff]
  %v2307 = vld [vmem:[#allocation5 + $0x30] sm:$0xff]
  %v2308 = vld [vmem:[#allocation5 + $0x38] sm:$0xff]
  %v2309 = vld [vmem:[#allocation5 + $0x40] sm:$0xff]
  %v2310 = vld [vmem:[#allocation5 + $0x48] sm:$0xff]
  %v2311 = vld [vmem:[#allocation5 + $0x50] sm:$0xff]
  %v2312 = vld [vmem:[#allocation5 + $0x58] sm:$0xff]
  %v2313 = vld [vmem:[#allocation5 + $0x60] sm:$0xff]
  %v2314 = vld [vmem:[#allocation5 + $0x68] sm:$0xff]
  %v2315 = vld [vmem:[#allocation5 + $0x70] sm:$0xff]
  %v2316 = vld [vmem:[#allocation5 + $0x78] sm:$0xff]
  %v2317 = vld [vmem:[#allocation5 + $0x80] sm:$0xff]
  %v2318 = vld [vmem:[#allocation5 + $0x88] sm:$0xff]
  %v2319 = vld [vmem:[#allocation5 + $0x90] sm:$0xff]
  %v2320 = vld [vmem:[#allocation5 + $0x98] sm:$0xff]
  %v2321 = vld [vmem:[#allocation5 + $0xa0] sm:$0xff]
  %v2322 = vld [vmem:[#allocation5 + $0xa8] sm:$0xff]
  %v2323 = vld [vmem:[#allocation5 + $0xb0] sm:$0xff]
  %v2324 = vld [vmem:[#allocation5 + $0xb8] sm:$0xff]
  %v2325 = vld [vmem:[#allocation5 + $0xc0] sm:$0xff]
  %v2326 = vld [vmem:[#allocation5 + $0xc8] sm:$0xff]
  %v2327 = vld [vmem:[#allocation5 + $0xd0] sm:$0xff]
  %v2328 = vld [vmem:[#allocation5 + $0xd8] sm:$0xff]
  %v2329 = vld [vmem:[#allocation5 + $0xe0] sm:$0xff]
  %v2330 = vld [vmem:[#allocation5 + $0xe8] sm:$0xff]
  %v2331 = vld [vmem:[#allocation5 + $0xf0] sm:$0xff]
  %v2332 = vld [vmem:[#allocation5 + $0xf8] sm:$0xff]
  %v2333 = vld [vmem:[#allocation5 + $0x100] sm:$0xff]
  %v2334 = vld [vmem:[#allocation5 + $0x108] sm:$0xff]
  %v2335 = vld [vmem:[#allocation5 + $0x110] sm:$0xff]
  %v2336 = vld [vmem:[#allocation5 + $0x118] sm:$0xff]
  %v2339 = vunpack.c.l.b16 %v2299
  %v2340 = vunpack.c.h.b16 %v2299
  %v2341 = vunpack.c.l.b16 %v2300
  %v2342 = vunpack.c.h.b16 %v2300
  %v2343 = vpack.c.b16 %v2341, %v2339
  %v2344 = vpack.c.b16 %v2342, %v2340
  %v2382 = vunpack.c.l.b16 %v2301
  %v2383 = vunpack.c.h.b16 %v2301
  %v2384 = vunpack.c.l.b16 %v2302
  %v2385 = vunpack.c.h.b16 %v2302
  %v2386 = vunpack.c.l.b16 %v2303
  %v2387 = vunpack.c.h.b16 %v2303
  %v2388 = vunpack.c.l.b16 %v2304
  %v2389 = vunpack.c.h.b16 %v2304
  %v2390 = vunpack.c.l.b16 %v2305
  %v2391 = vunpack.c.h.b16 %v2305
  %v2392 = vunpack.c.l.b16 %v2306
  %v2393 = vunpack.c.h.b16 %v2306
  %v2394 = vunpack.c.l.b16 %v2307
  %v2395 = vunpack.c.h.b16 %v2307
  %v2396 = vunpack.c.l.b16 %v2308
  %v2397 = vunpack.c.h.b16 %v2308
  %v2398 = vunpack.c.l.b16 %v2309
  %v2399 = vunpack.c.h.b16 %v2309
  %v2400 = vunpack.c.l.b16 %v2310
  %v2401 = vunpack.c.h.b16 %v2310
  %v2402 = vunpack.c.l.b16 %v2311
  %v2403 = vunpack.c.h.b16 %v2311
  %v2404 = vunpack.c.l.b16 %v2312
  %v2405 = vunpack.c.h.b16 %v2312
  %v2406 = vunpack.c.l.b16 %v2313
  %v2407 = vunpack.c.h.b16 %v2313
  %v2408 = vunpack.c.l.b16 %v2314
  %v2409 = vunpack.c.h.b16 %v2314
  %v2410 = vunpack.c.l.b16 %v2315
  %v2411 = vunpack.c.h.b16 %v2315
  %v2412 = vunpack.c.l.b16 %v2316
  %v2413 = vunpack.c.h.b16 %v2316
  %v2414 = vunpack.c.l.b16 %v2317
  %v2415 = vunpack.c.h.b16 %v2317
  %v2416 = vunpack.c.l.b16 %v2318
  %v2417 = vunpack.c.h.b16 %v2318
  %v2418 = vunpack.c.l.b16 %v2319
  %v2419 = vunpack.c.h.b16 %v2319
  %v2420 = vunpack.c.l.b16 %v2320
  %v2421 = vunpack.c.h.b16 %v2320
  %v2422 = vunpack.c.l.b16 %v2321
  %v2423 = vunpack.c.h.b16 %v2321
  %v2424 = vunpack.c.l.b16 %v2322
  %v2425 = vunpack.c.h.b16 %v2322
  %v2426 = vunpack.c.l.b16 %v2323
  %v2427 = vunpack.c.h.b16 %v2323
  %v2428 = vunpack.c.l.b16 %v2324
  %v2429 = vunpack.c.h.b16 %v2324
  %v2430 = vunpack.c.l.b16 %v2325
  %v2431 = vunpack.c.h.b16 %v2325
  %v2432 = vunpack.c.l.b16 %v2326
  %v2433 = vunpack.c.h.b16 %v2326
  %v2434 = vunpack.c.l.b16 %v2327
  %v2435 = vunpack.c.h.b16 %v2327
  %v2436 = vunpack.c.l.b16 %v2328
  %v2437 = vunpack.c.h.b16 %v2328
  %v2438 = vunpack.c.l.b16 %v2329
  %v2439 = vunpack.c.h.b16 %v2329
  %v2440 = vunpack.c.l.b16 %v2330
  %v2441 = vunpack.c.h.b16 %v2330
  %v2442 = vunpack.c.l.b16 %v2331
  %v2443 = vunpack.c.h.b16 %v2331
  %v2444 = vunpack.c.l.b16 %v2332
  %v2445 = vunpack.c.h.b16 %v2332
  %v2446 = vunpack.c.l.b16 %v2333
  %v2447 = vunpack.c.h.b16 %v2333
  %v2448 = vunpack.c.l.b16 %v2334
  %v2449 = vunpack.c.h.b16 %v2334
  %v2450 = vunpack.c.l.b16 %v2335
  %v2451 = vunpack.c.h.b16 %v2335
  %v2452 = vunpack.c.l.b16 %v2336
  %v2453 = vunpack.c.h.b16 %v2336
  %v2454 = vpack.c.b16 %v2386, %v2382
  %v2455 = vpack.c.b16 %v2387, %v2383
  %v2456 = vpack.c.b16 %v2388, %v2384
  %v2457 = vpack.c.b16 %v2389, %v2385
  %v2458 = vpack.c.b16 %v2394, %v2390
  %v2459 = vpack.c.b16 %v2395, %v2391
  %v2460 = vpack.c.b16 %v2396, %v2392
  %v2461 = vpack.c.b16 %v2397, %v2393
  %v2462 = vpack.c.b16 %v2402, %v2398
  %v2463 = vpack.c.b16 %v2403, %v2399
  %v2464 = vpack.c.b16 %v2404, %v2400
  %v2465 = vpack.c.b16 %v2405, %v2401
  %v2466 = vpack.c.b16 %v2410, %v2406
  %v2467 = vpack.c.b16 %v2411, %v2407
  %v2468 = vpack.c.b16 %v2412, %v2408
  %v2469 = vpack.c.b16 %v2413, %v2409
  %v2470 = vpack.c.b16 %v2418, %v2414
  %v2471 = vpack.c.b16 %v2419, %v2415
  %v2472 = vpack.c.b16 %v2420, %v2416
  %v2473 = vpack.c.b16 %v2421, %v2417
  %v2474 = vpack.c.b16 %v2426, %v2422
  %v2475 = vpack.c.b16 %v2427, %v2423
  %v2476 = vpack.c.b16 %v2428, %v2424
  %v2477 = vpack.c.b16 %v2429, %v2425
  %v2478 = vpack.c.b16 %v2434, %v2430
  %v2479 = vpack.c.b16 %v2435, %v2431
  %v2480 = vpack.c.b16 %v2436, %v2432
  %v2481 = vpack.c.b16 %v2437, %v2433
  %v2482 = vpack.c.b16 %v2442, %v2438
  %v2483 = vpack.c.b16 %v2443, %v2439
  %v2484 = vpack.c.b16 %v2444, %v2440
  %v2485 = vpack.c.b16 %v2445, %v2441
  %v2486 = vpack.c.b16 %v2450, %v2446
  %v2487 = vpack.c.b16 %v2451, %v2447
  %v2488 = vpack.c.b16 %v2452, %v2448
  %v2489 = vpack.c.b16 %v2453, %v2449
  %vm2526 = vcmask 130048
  %v2528 = vsel %vm2526, %v2344, 0
  %2530 = vmatprep.subr.bf16.mxu0 %v2483
  %2531 = vmatpush1.bf16.msra.mxu0 %v2482
  %2532 = vmatprep.subr.bf16.mxu0 %v2479
  %2533 = vmatpush1.bf16.msra.mxu0 %v2478
  %2534 = vmatprep.subr.bf16.mxu0 %v2475
  %2535 = vmatpush1.bf16.msra.mxu0 %v2474
  %2536 = vmatprep.subr.bf16.mxu0 %v2471
  %2537 = vmatpush1.bf16.msra.mxu0 %v2470
  %2538 = vmatprep.subr.bf16.mxu0 %v2467
  %2539 = vmatpush1.bf16.msra.mxu0 %v2466
  %2540 = vmatprep.subr.bf16.mxu0 %v2463
  %2541 = vmatpush1.bf16.msra.mxu0 %v2462
  %2542 = vmatprep.subr.bf16.mxu0 %v2459
  %2543 = vmatpush1.bf16.msra.mxu0 %v2458
  %2544 = vmatprep.subr.bf16.mxu0 %v2455
  %2545 = vmatpush1.bf16.msra.mxu0 %v2454
  %2546 = vmatprep.subr.bf16.mxu0 0
  %2547 = vmatpush2.bf16.msra.mxu0 0
  %2548 = vmatprep.subr.bf16.mxu0 0
  %2549 = vmatpush2.bf16.msra.mxu0 0
  %2550 = vmatprep.subr.bf16.mxu0 0
  %2551 = vmatpush2.bf16.msra.mxu0 0
  %2552 = vmatprep.subr.bf16.mxu0 0
  %2553 = vmatpush2.bf16.msra.mxu0 0
  %2554 = vmatprep.subr.bf16.mxu0 0
  %2555 = vmatpush2.bf16.msra.mxu0 0
  %2556 = vmatprep.subr.bf16.mxu0 0
  %2557 = vmatpush2.bf16.msra.mxu0 0
  %2558 = vmatprep.subr.bf16.mxu0 0
  %2559 = vmatpush2.bf16.msra.mxu0 0
  %2560 = vmatprep.subr.bf16.mxu0 %v2487
  %2561 = vmatpush2.bf16.msra.mxu0 %v2486
  %2562 = vmatprep.mubr.bf16.mxu0 %v2528
  %2563 = vmatmul.mubr.bf16.gmra.mxu0 %v2343
  %v2564 = vpop.f32.mrf.mxu0
  %v2565 = vadd.f32 0.0, %v2564
  %v2566 = vpop.f32.mrf.mxu0
  %v2567 = vadd.f32 0.0, %v2566
  %v2568 = vpop.f32.mrf.mxu0
  %v2569 = vadd.f32 0.0, %v2568
  %v2570 = vpop.f32.mrf.mxu0
  %v2571 = vadd.f32 0.0, %v2570
  %2572 = vdwg.mxu0
  %2573 = vmatprep.subr.bf16.mxu0 %v2485
  %2574 = vmatpush1.bf16.msra.mxu0 %v2484
  %2575 = vmatprep.subr.bf16.mxu0 %v2481
  %2576 = vmatpush1.bf16.msra.mxu0 %v2480
  %2577 = vmatprep.subr.bf16.mxu0 %v2477
  %2578 = vmatpush1.bf16.msra.mxu0 %v2476
  %2579 = vmatprep.subr.bf16.mxu0 %v2473
  %2580 = vmatpush1.bf16.msra.mxu0 %v2472
  %2581 = vmatprep.subr.bf16.mxu0 %v2469
  %2582 = vmatpush1.bf16.msra.mxu0 %v2468
  %2583 = vmatprep.subr.bf16.mxu0 %v2465
  %2584 = vmatpush1.bf16.msra.mxu0 %v2464
  %2585 = vmatprep.subr.bf16.mxu0 %v2461
  %2586 = vmatpush1.bf16.msra.mxu0 %v2460
  %2587 = vmatprep.subr.bf16.mxu0 %v2457
  %2588 = vmatpush1.bf16.msra.mxu0 %v2456
  %2589 = vmatprep.subr.bf16.mxu0 0
  %2590 = vmatpush2.bf16.msra.mxu0 0
  %2591 = vmatprep.subr.bf16.mxu0 0
  %2592 = vmatpush2.bf16.msra.mxu0 0
  %2593 = vmatprep.subr.bf16.mxu0 0
  %2594 = vmatpush2.bf16.msra.mxu0 0
  %2595 = vmatprep.subr.bf16.mxu0 0
  %2596 = vmatpush2.bf16.msra.mxu0 0
  %2597 = vmatprep.subr.bf16.mxu0 0
  %2598 = vmatpush2.bf16.msra.mxu0 0
  %2599 = vmatprep.subr.bf16.mxu0 0
  %2600 = vmatpush2.bf16.msra.mxu0 0
  %2601 = vmatprep.subr.bf16.mxu0 0
  %2602 = vmatpush2.bf16.msra.mxu0 0
  %2603 = vmatprep.subr.bf16.mxu0 %v2489
  %2604 = vmatpush2.bf16.msra.mxu0 %v2488
  %2605 = vmatprep.mubr.bf16.mxu0 %v2528
  %2606 = vmatmul.mubr.bf16.gmra.mxu0 %v2343
  %v2607 = vpop.f32.mrf.mxu0
  %v2608 = vadd.f32 0.0, %v2607
  %v2609 = vpop.f32.mrf.mxu0
  %v2610 = vadd.f32 0.0, %v2609
  %v2611 = vpop.f32.mrf.mxu0
  %v2612 = vadd.f32 0.0, %v2611
  %v2613 = vpop.f32.mrf.mxu0
  %v2614 = vadd.f32 0.0, %v2613
  %2615 = vdwg.mxu0
  %v2618 = vunpack.c.l.b16 %v1199
  %v2619 = vunpack.c.h.b16 %v1199
  %v2620 = vunpack.c.l.b16 %v1200
  %v2621 = vunpack.c.h.b16 %v1200
  %v2622 = vpack.c.b16 %v2620, %v2618
  %v2623 = vpack.c.b16 %v2621, %v2619
  %v2661 = vunpack.c.l.b16 %v1201
  %v2662 = vunpack.c.h.b16 %v1201
  %v2663 = vunpack.c.l.b16 %v1202
  %v2664 = vunpack.c.h.b16 %v1202
  %v2665 = vunpack.c.l.b16 %v1203
  %v2666 = vunpack.c.h.b16 %v1203
  %v2667 = vunpack.c.l.b16 %v1204
  %v2668 = vunpack.c.h.b16 %v1204
  %v2669 = vunpack.c.l.b16 %v1205
  %v2670 = vunpack.c.h.b16 %v1205
  %v2671 = vunpack.c.l.b16 %v1206
  %v2672 = vunpack.c.h.b16 %v1206
  %v2673 = vunpack.c.l.b16 %v1207
  %v2674 = vunpack.c.h.b16 %v1207
  %v2675 = vunpack.c.l.b16 %v1208
  %v2676 = vunpack.c.h.b16 %v1208
  %v2677 = vunpack.c.l.b16 %v1209
  %v2678 = vunpack.c.h.b16 %v1209
  %v2679 = vunpack.c.l.b16 %v1210
  %v2680 = vunpack.c.h.b16 %v1210
  %v2681 = vunpack.c.l.b16 %v1211
  %v2682 = vunpack.c.h.b16 %v1211
  %v2683 = vunpack.c.l.b16 %v1212
  %v2684 = vunpack.c.h.b16 %v1212
  %v2685 = vunpack.c.l.b16 %v1213
  %v2686 = vunpack.c.h.b16 %v1213
  %v2687 = vunpack.c.l.b16 %v1214
  %v2688 = vunpack.c.h.b16 %v1214
  %v2689 = vunpack.c.l.b16 %v1215
  %v2690 = vunpack.c.h.b16 %v1215
  %v2691 = vunpack.c.l.b16 %v1216
  %v2692 = vunpack.c.h.b16 %v1216
  %v2693 = vunpack.c.l.b16 %v1217
  %v2694 = vunpack.c.h.b16 %v1217
  %v2695 = vunpack.c.l.b16 %v1218
  %v2696 = vunpack.c.h.b16 %v1218
  %v2697 = vunpack.c.l.b16 %v1219
  %v2698 = vunpack.c.h.b16 %v1219
  %v2699 = vunpack.c.l.b16 %v1220
  %v2700 = vunpack.c.h.b16 %v1220
  %v2701 = vunpack.c.l.b16 %v1221
  %v2702 = vunpack.c.h.b16 %v1221
  %v2703 = vunpack.c.l.b16 %v1222
  %v2704 = vunpack.c.h.b16 %v1222
  %v2705 = vunpack.c.l.b16 %v1223
  %v2706 = vunpack.c.h.b16 %v1223
  %v2707 = vunpack.c.l.b16 %v1224
  %v2708 = vunpack.c.h.b16 %v1224
  %v2709 = vunpack.c.l.b16 %v1225
  %v2710 = vunpack.c.h.b16 %v1225
  %v2711 = vunpack.c.l.b16 %v1226
  %v2712 = vunpack.c.h.b16 %v1226
  %v2713 = vunpack.c.l.b16 %v1227
  %v2714 = vunpack.c.h.b16 %v1227
  %v2715 = vunpack.c.l.b16 %v1228
  %v2716 = vunpack.c.h.b16 %v1228
  %v2717 = vunpack.c.l.b16 %v1229
  %v2718 = vunpack.c.h.b16 %v1229
  %v2719 = vunpack.c.l.b16 %v1230
  %v2720 = vunpack.c.h.b16 %v1230
  %v2721 = vunpack.c.l.b16 %v1231
  %v2722 = vunpack.c.h.b16 %v1231
  %v2723 = vunpack.c.l.b16 %v1232
  %v2724 = vunpack.c.h.b16 %v1232
  %v2725 = vunpack.c.l.b16 %v1233
  %v2726 = vunpack.c.h.b16 %v1233
  %v2727 = vunpack.c.l.b16 %v1234
  %v2728 = vunpack.c.h.b16 %v1234
  %v2729 = vunpack.c.l.b16 %v1235
  %v2730 = vunpack.c.h.b16 %v1235
  %v2731 = vunpack.c.l.b16 %v1236
  %v2732 = vunpack.c.h.b16 %v1236
  %v2733 = vpack.c.b16 %v2665, %v2661
  %v2734 = vpack.c.b16 %v2666, %v2662
  %v2735 = vpack.c.b16 %v2667, %v2663
  %v2736 = vpack.c.b16 %v2668, %v2664
  %v2737 = vpack.c.b16 %v2673, %v2669
  %v2738 = vpack.c.b16 %v2674, %v2670
  %v2739 = vpack.c.b16 %v2675, %v2671
  %v2740 = vpack.c.b16 %v2676, %v2672
  %v2741 = vpack.c.b16 %v2681, %v2677
  %v2742 = vpack.c.b16 %v2682, %v2678
  %v2743 = vpack.c.b16 %v2683, %v2679
  %v2744 = vpack.c.b16 %v2684, %v2680
  %v2745 = vpack.c.b16 %v2689, %v2685
  %v2746 = vpack.c.b16 %v2690, %v2686
  %v2747 = vpack.c.b16 %v2691, %v2687
  %v2748 = vpack.c.b16 %v2692, %v2688
  %v2749 = vpack.c.b16 %v2697, %v2693
  %v2750 = vpack.c.b16 %v2698, %v2694
  %v2751 = vpack.c.b16 %v2699, %v2695
  %v2752 = vpack.c.b16 %v2700, %v2696
  %v2753 = vpack.c.b16 %v2705, %v2701
  %v2754 = vpack.c.b16 %v2706, %v2702
  %v2755 = vpack.c.b16 %v2707, %v2703
  %v2756 = vpack.c.b16 %v2708, %v2704
  %v2757 = vpack.c.b16 %v2713, %v2709
  %v2758 = vpack.c.b16 %v2714, %v2710
  %v2759 = vpack.c.b16 %v2715, %v2711
  %v2760 = vpack.c.b16 %v2716, %v2712
  %v2761 = vpack.c.b16 %v2721, %v2717
  %v2762 = vpack.c.b16 %v2722, %v2718
  %v2763 = vpack.c.b16 %v2723, %v2719
  %v2764 = vpack.c.b16 %v2724, %v2720
  %v2765 = vpack.c.b16 %v2729, %v2725
  %v2766 = vpack.c.b16 %v2730, %v2726
  %v2767 = vpack.c.b16 %v2731, %v2727
  %v2768 = vpack.c.b16 %v2732, %v2728
  %v2806 = vsel %vm2526, %v2623, 0
  %2808 = vmatprep.subr.bf16.mxu0 %v2762
  %2809 = vmatpush1.bf16.msra.mxu0 %v2761
  %2810 = vmatprep.subr.bf16.mxu0 %v2758
  %2811 = vmatpush1.bf16.msra.mxu0 %v2757
  %2812 = vmatprep.subr.bf16.mxu0 %v2754
  %2813 = vmatpush1.bf16.msra.mxu0 %v2753
  %2814 = vmatprep.subr.bf16.mxu0 %v2750
  %2815 = vmatpush1.bf16.msra.mxu0 %v2749
  %2816 = vmatprep.subr.bf16.mxu0 %v2746
  %2817 = vmatpush1.bf16.msra.mxu0 %v2745
  %2818 = vmatprep.subr.bf16.mxu0 %v2742
  %2819 = vmatpush1.bf16.msra.mxu0 %v2741
  %2820 = vmatprep.subr.bf16.mxu0 %v2738
  %2821 = vmatpush1.bf16.msra.mxu0 %v2737
  %2822 = vmatprep.subr.bf16.mxu0 %v2734
  %2823 = vmatpush1.bf16.msra.mxu0 %v2733
  %2824 = vmatprep.subr.bf16.mxu0 0
  %2825 = vmatpush2.bf16.msra.mxu0 0
  %2826 = vmatprep.subr.bf16.mxu0 0
  %2827 = vmatpush2.bf16.msra.mxu0 0
  %2828 = vmatprep.subr.bf16.mxu0 0
  %2829 = vmatpush2.bf16.msra.mxu0 0
  %2830 = vmatprep.subr.bf16.mxu0 0
  %2831 = vmatpush2.bf16.msra.mxu0 0
  %2832 = vmatprep.subr.bf16.mxu0 0
  %2833 = vmatpush2.bf16.msra.mxu0 0
  %2834 = vmatprep.subr.bf16.mxu0 0
  %2835 = vmatpush2.bf16.msra.mxu0 0
  %2836 = vmatprep.subr.bf16.mxu0 0
  %2837 = vmatpush2.bf16.msra.mxu0 0
  %2838 = vmatprep.subr.bf16.mxu0 %v2766
  %2839 = vmatpush2.bf16.msra.mxu0 %v2765
  %2840 = vmatprep.mubr.bf16.mxu0 %v2806
  %2841 = vmatmul.mubr.bf16.gmra.mxu0 %v2622
  %v2842 = vpop.f32.mrf.mxu0
  %v2843 = vadd.f32 %v2565, %v2842
  %v2844 = vpop.f32.mrf.mxu0
  %v2845 = vadd.f32 %v2567, %v2844
  %v2846 = vpop.f32.mrf.mxu0
  %v2847 = vadd.f32 %v2569, %v2846
  %v2848 = vpop.f32.mrf.mxu0
  %v2849 = vadd.f32 %v2571, %v2848
  %2850 = vdwg.mxu0
  %2851 = vmatprep.subr.bf16.mxu0 %v2764
  %2852 = vmatpush1.bf16.msra.mxu0 %v2763
  %2853 = vmatprep.subr.bf16.mxu0 %v2760
  %2854 = vmatpush1.bf16.msra.mxu0 %v2759
  %2855 = vmatprep.subr.bf16.mxu0 %v2756
  %2856 = vmatpush1.bf16.msra.mxu0 %v2755
  %2857 = vmatprep.subr.bf16.mxu0 %v2752
  %2858 = vmatpush1.bf16.msra.mxu0 %v2751
  %2859 = vmatprep.subr.bf16.mxu0 %v2748
  %2860 = vmatpush1.bf16.msra.mxu0 %v2747
  %2861 = vmatprep.subr.bf16.mxu0 %v2744
  %2862 = vmatpush1.bf16.msra.mxu0 %v2743
  %2863 = vmatprep.subr.bf16.mxu0 %v2740
  %2864 = vmatpush1.bf16.msra.mxu0 %v2739
  %2865 = vmatprep.subr.bf16.mxu0 %v2736
  %2866 = vmatpush1.bf16.msra.mxu0 %v2735
  %2867 = vmatprep.subr.bf16.mxu0 0
  %2868 = vmatpush2.bf16.msra.mxu0 0
  %2869 = vmatprep.subr.bf16.mxu0 0
  %2870 = vmatpush2.bf16.msra.mxu0 0
  %2871 = vmatprep.subr.bf16.mxu0 0
  %2872 = vmatpush2.bf16.msra.mxu0 0
  %2873 = vmatprep.subr.bf16.mxu0 0
  %2874 = vmatpush2.bf16.msra.mxu0 0
  %2875 = vmatprep.subr.bf16.mxu0 0
  %2876 = vmatpush2.bf16.msra.mxu0 0
  %2877 = vmatprep.subr.bf16.mxu0 0
  %2878 = vmatpush2.bf16.msra.mxu0 0
  %2879 = vmatprep.subr.bf16.mxu0 0
  %2880 = vmatpush2.bf16.msra.mxu0 0
  %2881 = vmatprep.subr.bf16.mxu0 %v2768
  %2882 = vmatpush2.bf16.msra.mxu0 %v2767
  %2883 = vmatprep.mubr.bf16.mxu0 %v2806
  %2884 = vmatmul.mubr.bf16.gmra.mxu0 %v2622
  %v2885 = vpop.f32.mrf.mxu0
  %v2886 = vadd.f32 %v2608, %v2885
  %v2887 = vpop.f32.mrf.mxu0
  %v2888 = vadd.f32 %v2610, %v2887
  %v2889 = vpop.f32.mrf.mxu0
  %v2890 = vadd.f32 %v2612, %v2889
  %v2891 = vpop.f32.mrf.mxu0
  %v2892 = vadd.f32 %v2614, %v2891
  %2893 = vdwg.mxu0
  %s2894 = scalar_lea.vmem %s6, 34
  %v2895 = vld [vmem:[%s2894] ss:$8 sm:$0x3]
  %v2896 = vld [vmem:[#allocation2 + $0x4] sm:$0xff]
  %v2897 = vld [vmem:[#allocation2 + $0xc] sm:$0xf]
  %v2898 = vld [vmem:[#allocation2 + $0x14] sm:$0xff]
  %v2899 = vld [vmem:[#allocation2 + $0x1c] sm:$0xf]
  %v2900 = vunpack.c.l.bf16 %v2896
  %v2901 = vunpack.c.h.bf16 %v2896
  %v2902 = vunpack.c.l.bf16 %v2897
  %v2903 = vunpack.c.l.bf16 %v2898
  %v2904 = vunpack.c.h.bf16 %v2898
  %v2905 = vunpack.c.l.bf16 %v2899
  %v2907 = vlaneseq
  %v2908 = vshrl.u32 %v2907, 7
  %v2909 = vsub.s32 0, %v2908
  %v2910 = vrot.slane %v2895, %v2909
  %v2911 = vlaneseq
  %v2912 = vshrl.u32 %v2911, 7
  %v2913 = vsub.s32 1, %v2912
  %v2914 = vrot.slane %v2895, %v2913
  %2915 = vrot.lane.b32.xlu0 %v2910, 55
  %v2916 = vpop.permute.xlu0 %2915
  %2917 = vrot.lane.b32.xlu0 %v2914, 55
  %v2918 = vpop.permute.xlu0 %2917
  %v2919 = vsel %vm98, %v2916, %v2918
  %v2923 = vmul.f32 %v2900, %v2916
  %v2924 = vmul.f32 %v2901, %v2919
  %v2925 = vmul.f32 %v2902, %v2918
  %v2926 = vmul.f32 %v2903, %v2916
  %v2927 = vmul.f32 %v2904, %v2919
  %v2928 = vmul.f32 %v2905, %v2918
  %v2929 = vpack.c.bf16 %v2926, %v2923
  %v2930 = vpack.c.bf16 %v2927, %v2924
  %v2931 = vpack.c.bf16 %v2928, %v2925
  %v2935 = vunpack.c.l.b16 %v2929
  %v2936 = vunpack.c.l.b16 %v2930
  %v2937 = vunpack.c.l.b16 %v2931
  %v2938 = vunpack.c.h.b16 %v2929
  %v2939 = vunpack.c.h.b16 %v2930
  %v2940 = vunpack.c.h.b16 %v2931
  %v2941 = vpack.c.b16 %v2936, %v2935
  %v2942 = vpack.c.b16 %v2937, %v2937
  %v2943 = vpack.c.b16 %v2939, %v2938
  %v2944 = vpack.c.b16 %v2940, %v2940
  %2945 = vrot.lane.b32.xlu0 %v2941, 73
  %v2946 = vpop.permute.xlu0 %2945
  %2947 = vrot.lane.b32.xlu0 %v2942, 73
  %v2948 = vpop.permute.xlu0 %2947
  %2949 = vrot.lane.b32.xlu0 %v2943, 73
  %v2950 = vpop.permute.xlu0 %2949
  %2951 = vrot.lane.b32.xlu0 %v2944, 73
  %v2952 = vpop.permute.xlu0 %2951
  %v2953 = vrot.slane %v2946, 4
  %v2954 = vrot.slane %v2948, 4
  %v2955 = vrot.slane %v2950, 4
  %v2956 = vrot.slane %v2952, 4
  %v2957 = vsel %vm137, %v2953, %v2954
  %v2958 = vsel %vm139, %v2946, %v2957
  %v2959 = vsel %vm137, %v2955, %v2956
  %v2960 = vsel %vm139, %v2950, %v2959
  %2963 = vst [vmem:[#allocation4] sm:$0xff] %v2958
  %2964 = vst [vmem:[#allocation4 + $0x10] sm:$0xff] %v2960
  %v2965 = vld [vmem:[#allocation3 + $0x4] sm:$0xff]
  %v2966 = vld [vmem:[#allocation3 + $0xc] sm:$0xf]
  %v2967 = vld [vmem:[#allocation3 + $0x14] sm:$0xff]
  %v2968 = vld [vmem:[#allocation3 + $0x1c] sm:$0xf]
  %v2969 = vunpack.c.l.bf16 %v2965
  %v2970 = vunpack.c.h.bf16 %v2965
  %v2971 = vunpack.c.l.bf16 %v2966
  %v2972 = vunpack.c.l.bf16 %v2967
  %v2973 = vunpack.c.h.bf16 %v2967
  %v2974 = vunpack.c.l.bf16 %v2968
  %v2975 = vmul.f32 %v2969, %v2916
  %v2976 = vmul.f32 %v2970, %v2919
  %v2977 = vmul.f32 %v2971, %v2918
  %v2978 = vmul.f32 %v2972, %v2916
  %v2979 = vmul.f32 %v2973, %v2919
  %v2980 = vmul.f32 %v2974, %v2918
  %v2981 = vpack.c.bf16 %v2978, %v2975
  %v2982 = vpack.c.bf16 %v2979, %v2976
  %v2983 = vpack.c.bf16 %v2980, %v2977
  %v2987 = vunpack.c.l.b16 %v2981
  %v2988 = vunpack.c.l.b16 %v2982
  %v2989 = vunpack.c.l.b16 %v2983
  %v2990 = vunpack.c.h.b16 %v2981
  %v2991 = vunpack.c.h.b16 %v2982
  %v2992 = vunpack.c.h.b16 %v2983
  %v2993 = vpack.c.b16 %v2988, %v2987
  %v2994 = vpack.c.b16 %v2989, %v2989
  %v2995 = vpack.c.b16 %v2991, %v2990
  %v2996 = vpack.c.b16 %v2992, %v2992
  %2997 = vrot.lane.b32.xlu0 %v2993, 73
  %v2998 = vpop.permute.xlu0 %2997
  %2999 = vrot.lane.b32.xlu0 %v2994, 73
  %v3000 = vpop.permute.xlu0 %2999
  %3001 = vrot.lane.b32.xlu0 %v2995, 73
  %v3002 = vpop.permute.xlu0 %3001
  %3003 = vrot.lane.b32.xlu0 %v2996, 73
  %v3004 = vpop.permute.xlu0 %3003
  %v3005 = vrot.slane %v2998, 4
  %v3006 = vrot.slane %v3000, 4
  %v3007 = vrot.slane %v3002, 4
  %v3008 = vrot.slane %v3004, 4
  %v3009 = vsel %vm137, %v3005, %v3006
  %v3010 = vsel %vm139, %v2998, %v3009
  %v3011 = vsel %vm137, %v3007, %v3008
  %v3012 = vsel %vm139, %v3002, %v3011
  %3015 = vst [vmem:[#allocation4 + $0x8] sm:$0xff] %v3010
  %3016 = vst [vmem:[#allocation4 + $0x18] sm:$0xff] %v3012
  %s3017 = scalar_lea.vmem %s6, 35
  %v3018 = vld [vmem:[%s3017] ss:$8 sm:$0x3]
  %v3019 = vld [vmem:[#allocation2 + $0x4] sm:$0xff]
  %v3020 = vld [vmem:[#allocation2 + $0xc] sm:$0xf]
  %v3021 = vld [vmem:[#allocation2 + $0x14] sm:$0xff]
  %v3022 = vld [vmem:[#allocation2 + $0x1c] sm:$0xf]
  %v3023 = vunpack.c.l.bf16 %v3019
  %v3024 = vunpack.c.h.bf16 %v3019
  %v3025 = vunpack.c.l.bf16 %v3020
  %v3026 = vunpack.c.l.bf16 %v3021
  %v3027 = vunpack.c.h.bf16 %v3021
  %v3028 = vunpack.c.l.bf16 %v3022
  %v3030 = vlaneseq
  %v3031 = vshrl.u32 %v3030, 7
  %v3032 = vsub.s32 0, %v3031
  %v3033 = vrot.slane %v3018, %v3032
  %v3034 = vlaneseq
  %v3035 = vshrl.u32 %v3034, 7
  %v3036 = vsub.s32 1, %v3035
  %v3037 = vrot.slane %v3018, %v3036
  %3038 = vrot.lane.b32.xlu0 %v3033, 56
  %v3039 = vpop.permute.xlu0 %3038
  %3040 = vrot.lane.b32.xlu0 %v3037, 56
  %v3041 = vpop.permute.xlu0 %3040
  %v3042 = vsel %vm224, %v3039, %v3041
  %v3046 = vmul.f32 %v3023, %v3039
  %v3047 = vmul.f32 %v3024, %v3042
  %v3048 = vmul.f32 %v3025, %v3041
  %v3049 = vmul.f32 %v3026, %v3039
  %v3050 = vmul.f32 %v3027, %v3042
  %v3051 = vmul.f32 %v3028, %v3041
  %v3052 = vpack.c.bf16 %v3049, %v3046
  %v3053 = vpack.c.bf16 %v3050, %v3047
  %v3054 = vpack.c.bf16 %v3051, %v3048
  %v3058 = vunpack.c.l.b16 %v3052
  %v3059 = vunpack.c.l.b16 %v3053
  %v3060 = vunpack.c.l.b16 %v3054
  %v3061 = vunpack.c.h.b16 %v3052
  %v3062 = vunpack.c.h.b16 %v3053
  %v3063 = vunpack.c.h.b16 %v3054
  %v3064 = vpack.c.b16 %v3059, %v3058
  %v3065 = vpack.c.b16 %v3060, %v3060
  %v3066 = vpack.c.b16 %v3062, %v3061
  %v3067 = vpack.c.b16 %v3063, %v3063
  %3068 = vrot.lane.b32.xlu0 %v3064, 72
  %v3069 = vpop.permute.xlu0 %3068
  %3070 = vrot.lane.b32.xlu0 %v3065, 72
  %v3071 = vpop.permute.xlu0 %3070
  %3072 = vrot.lane.b32.xlu0 %v3066, 72
  %v3073 = vpop.permute.xlu0 %3072
  %3074 = vrot.lane.b32.xlu0 %v3067, 72
  %v3075 = vpop.permute.xlu0 %3074
  %v3076 = vrot.slane %v3069, 4
  %v3077 = vrot.slane %v3071, 4
  %v3078 = vrot.slane %v3073, 4
  %v3079 = vrot.slane %v3075, 4
  %v3080 = vsel %vm137, %v3076, %v3077
  %v3081 = vsel %vm264, %v3069, %v3080
  %v3082 = vsel %vm137, %v3078, %v3079
  %v3083 = vsel %vm264, %v3073, %v3082
  %3086 = vst [vmem:[#allocation4 + $0x20] sm:$0xff] %v3081
  %3087 = vst [vmem:[#allocation4 + $0x30] sm:$0xff] %v3083
  %v3088 = vld [vmem:[#allocation3 + $0x4] sm:$0xff]
  %v3089 = vld [vmem:[#allocation3 + $0xc] sm:$0xf]
  %v3090 = vld [vmem:[#allocation3 + $0x14] sm:$0xff]
  %v3091 = vld [vmem:[#allocation3 + $0x1c] sm:$0xf]
  %v3092 = vunpack.c.l.bf16 %v3088
  %v3093 = vunpack.c.h.bf16 %v3088
  %v3094 = vunpack.c.l.bf16 %v3089
  %v3095 = vunpack.c.l.bf16 %v3090
  %v3096 = vunpack.c.h.bf16 %v3090
  %v3097 = vunpack.c.l.bf16 %v3091
  %v3098 = vmul.f32 %v3092, %v3039
  %v3099 = vmul.f32 %v3093, %v3042
  %v3100 = vmul.f32 %v3094, %v3041
  %v3101 = vmul.f32 %v3095, %v3039
  %v3102 = vmul.f32 %v3096, %v3042
  %v3103 = vmul.f32 %v3097, %v3041
  %v3104 = vpack.c.bf16 %v3101, %v3098
  %v3105 = vpack.c.bf16 %v3102, %v3099
  %v3106 = vpack.c.bf16 %v3103, %v3100
  %v3110 = vunpack.c.l.b16 %v3104
  %v3111 = vunpack.c.l.b16 %v3105
  %v3112 = vunpack.c.l.b16 %v3106
  %v3113 = vunpack.c.h.b16 %v3104
  %v3114 = vunpack.c.h.b16 %v3105
  %v3115 = vunpack.c.h.b16 %v3106
  %v3116 = vpack.c.b16 %v3111, %v3110
  %v3117 = vpack.c.b16 %v3112, %v3112
  %v3118 = vpack.c.b16 %v3114, %v3113
  %v3119 = vpack.c.b16 %v3115, %v3115
  %3120 = vrot.lane.b32.xlu0 %v3116, 72
  %v3121 = vpop.permute.xlu0 %3120
  %3122 = vrot.lane.b32.xlu0 %v3117, 72
  %v3123 = vpop.permute.xlu0 %3122
  %3124 = vrot.lane.b32.xlu0 %v3118, 72
  %v3125 = vpop.permute.xlu0 %3124
  %3126 = vrot.lane.b32.xlu0 %v3119, 72
  %v3127 = vpop.permute.xlu0 %3126
  %v3128 = vrot.slane %v3121, 4
  %v3129 = vrot.slane %v3123, 4
  %v3130 = vrot.slane %v3125, 4
  %v3131 = vrot.slane %v3127, 4
  %v3132 = vsel %vm137, %v3128, %v3129
  %v3133 = vsel %vm264, %v3121, %v3132
  %v3134 = vsel %vm137, %v3130, %v3131
  %v3135 = vsel %vm264, %v3125, %v3134
  %3138 = vst [vmem:[#allocation4 + $0x28] sm:$0xff] %v3133
  %3139 = vst [vmem:[#allocation4 + $0x38] sm:$0xff] %v3135
  %s3140 = scalar_lea.vmem %s6, 36
  %v3141 = vld [vmem:[%s3140] ss:$8 sm:$0x3]
  %v3142 = vld [vmem:[#allocation2 + $0x4] sm:$0xff]
  %v3143 = vld [vmem:[#allocation2 + $0xc] sm:$0xf]
  %v3144 = vld [vmem:[#allocation2 + $0x14] sm:$0xff]
  %v3145 = vld [vmem:[#allocation2 + $0x1c] sm:$0xf]
  %v3146 = vunpack.c.l.bf16 %v3142
  %v3147 = vunpack.c.h.bf16 %v3142
  %v3148 = vunpack.c.l.bf16 %v3143
  %v3149 = vunpack.c.l.bf16 %v3144
  %v3150 = vunpack.c.h.bf16 %v3144
  %v3151 = vunpack.c.l.bf16 %v3145
  %v3153 = vlaneseq
  %v3154 = vshrl.u32 %v3153, 7
  %v3155 = vsub.s32 0, %v3154
  %v3156 = vrot.slane %v3141, %v3155
  %v3157 = vlaneseq
  %v3158 = vshrl.u32 %v3157, 7
  %v3159 = vsub.s32 1, %v3158
  %v3160 = vrot.slane %v3141, %v3159
  %3161 = vrot.lane.b32.xlu0 %v3156, 57
  %v3162 = vpop.permute.xlu0 %3161
  %3163 = vrot.lane.b32.xlu0 %v3160, 57
  %v3164 = vpop.permute.xlu0 %3163
  %v3165 = vsel %vm349, %v3162, %v3164
  %v3169 = vmul.f32 %v3146, %v3162
  %v3170 = vmul.f32 %v3147, %v3165
  %v3171 = vmul.f32 %v3148, %v3164
  %v3172 = vmul.f32 %v3149, %v3162
  %v3173 = vmul.f32 %v3150, %v3165
  %v3174 = vmul.f32 %v3151, %v3164
  %v3175 = vpack.c.bf16 %v3172, %v3169
  %v3176 = vpack.c.bf16 %v3173, %v3170
  %v3177 = vpack.c.bf16 %v3174, %v3171
  %v3181 = vunpack.c.l.b16 %v3175
  %v3182 = vunpack.c.l.b16 %v3176
  %v3183 = vunpack.c.l.b16 %v3177
  %v3184 = vunpack.c.h.b16 %v3175
  %v3185 = vunpack.c.h.b16 %v3176
  %v3186 = vunpack.c.h.b16 %v3177
  %v3187 = vpack.c.b16 %v3182, %v3181
  %v3188 = vpack.c.b16 %v3183, %v3183
  %v3189 = vpack.c.b16 %v3185, %v3184
  %v3190 = vpack.c.b16 %v3186, %v3186
  %3191 = vrot.lane.b32.xlu0 %v3187, 71
  %v3192 = vpop.permute.xlu0 %3191
  %3193 = vrot.lane.b32.xlu0 %v3188, 71
  %v3194 = vpop.permute.xlu0 %3193
  %3195 = vrot.lane.b32.xlu0 %v3189, 71
  %v3196 = vpop.permute.xlu0 %3195
  %3197 = vrot.lane.b32.xlu0 %v3190, 71
  %v3198 = vpop.permute.xlu0 %3197
  %v3199 = vrot.slane %v3192, 4
  %v3200 = vrot.slane %v3194, 4
  %v3201 = vrot.slane %v3196, 4
  %v3202 = vrot.slane %v3198, 4
  %v3203 = vsel %vm137, %v3199, %v3200
  %v3204 = vsel %vm389, %v3192, %v3203
  %v3205 = vsel %vm137, %v3201, %v3202
  %v3206 = vsel %vm389, %v3196, %v3205
  %3209 = vst [vmem:[#allocation4 + $0x40] sm:$0xff] %v3204
  %3210 = vst [vmem:[#allocation4 + $0x50] sm:$0xff] %v3206
  %v3211 = vld [vmem:[#allocation3 + $0x4] sm:$0xff]
  %v3212 = vld [vmem:[#allocation3 + $0xc] sm:$0xf]
  %v3213 = vld [vmem:[#allocation3 + $0x14] sm:$0xff]
  %v3214 = vld [vmem:[#allocation3 + $0x1c] sm:$0xf]
  %v3215 = vunpack.c.l.bf16 %v3211
  %v3216 = vunpack.c.h.bf16 %v3211
  %v3217 = vunpack.c.l.bf16 %v3212
  %v3218 = vunpack.c.l.bf16 %v3213
  %v3219 = vunpack.c.h.bf16 %v3213
  %v3220 = vunpack.c.l.bf16 %v3214
  %v3221 = vmul.f32 %v3215, %v3162
  %v3222 = vmul.f32 %v3216, %v3165
  %v3223 = vmul.f32 %v3217, %v3164
  %v3224 = vmul.f32 %v3218, %v3162
  %v3225 = vmul.f32 %v3219, %v3165
  %v3226 = vmul.f32 %v3220, %v3164
  %v3227 = vpack.c.bf16 %v3224, %v3221
  %v3228 = vpack.c.bf16 %v3225, %v3222
  %v3229 = vpack.c.bf16 %v3226, %v3223
  %v3233 = vunpack.c.l.b16 %v3227
  %v3234 = vunpack.c.l.b16 %v3228
  %v3235 = vunpack.c.l.b16 %v3229
  %v3236 = vunpack.c.h.b16 %v3227
  %v3237 = vunpack.c.h.b16 %v3228
  %v3238 = vunpack.c.h.b16 %v3229
  %v3239 = vpack.c.b16 %v3234, %v3233
  %v3240 = vpack.c.b16 %v3235, %v3235
  %v3241 = vpack.c.b16 %v3237, %v3236
  %v3242 = vpack.c.b16 %v3238, %v3238
  %3243 = vrot.lane.b32.xlu0 %v3239, 71
  %v3244 = vpop.permute.xlu0 %3243
  %3245 = vrot.lane.b32.xlu0 %v3240, 71
  %v3246 = vpop.permute.xlu0 %3245
  %3247 = vrot.lane.b32.xlu0 %v3241, 71
  %v3248 = vpop.permute.xlu0 %3247
  %3249 = vrot.lane.b32.xlu0 %v3242, 71
  %v3250 = vpop.permute.xlu0 %3249
  %v3251 = vrot.slane %v3244, 4
  %v3252 = vrot.slane %v3246, 4
  %v3253 = vrot.slane %v3248, 4
  %v3254 = vrot.slane %v3250, 4
  %v3255 = vsel %vm137, %v3251, %v3252
  %v3256 = vsel %vm389, %v3244, %v3255
  %v3257 = vsel %vm137, %v3253, %v3254
  %v3258 = vsel %vm389, %v3248, %v3257
  %3261 = vst [vmem:[#allocation4 + $0x48] sm:$0xff] %v3256
  %3262 = vst [vmem:[#allocation4 + $0x58] sm:$0xff] %v3258
  %s3263 = scalar_lea.vmem %s6, 37
  %v3264 = vld [vmem:[%s3263] ss:$8 sm:$0x3]
  %v3265 = vld [vmem:[#allocation2 + $0x4] sm:$0xff]
  %v3266 = vld [vmem:[#allocation2 + $0xc] sm:$0xf]
  %v3267 = vld [vmem:[#allocation2 + $0x14] sm:$0xff]
  %v3268 = vld [vmem:[#allocation2 + $0x1c] sm:$0xf]
  %v3269 = vunpack.c.l.bf16 %v3265
  %v3270 = vunpack.c.h.bf16 %v3265
  %v3271 = vunpack.c.l.bf16 %v3266
  %v3272 = vunpack.c.l.bf16 %v3267
  %v3273 = vunpack.c.h.bf16 %v3267
  %v3274 = vunpack.c.l.bf16 %v3268
  %v3276 = vlaneseq
  %v3277 = vshrl.u32 %v3276, 7
  %v3278 = vsub.s32 0, %v3277
  %v3279 = vrot.slane %v3264, %v3278
  %v3280 = vlaneseq
  %v3281 = vshrl.u32 %v3280, 7
  %v3282 = vsub.s32 1, %v3281
  %v3283 = vrot.slane %v3264, %v3282
  %3284 = vrot.lane.b32.xlu0 %v3279, 63
  %v3285 = vpop.permute.xlu0 %3284
  %3286 = vrot.lane.b32.xlu0 %v3283, 63
  %v3287 = vpop.permute.xlu0 %3286
  %v3288 = vsel %vm474, %v3285, %v3287
  %v3292 = vmul.f32 %v3269, %v3285
  %v3293 = vmul.f32 %v3270, %v3288
  %v3294 = vmul.f32 %v3271, %v3287
  %v3295 = vmul.f32 %v3272, %v3285
  %v3296 = vmul.f32 %v3273, %v3288
  %v3297 = vmul.f32 %v3274, %v3287
  %v3298 = vpack.c.bf16 %v3295, %v3292
  %v3299 = vpack.c.bf16 %v3296, %v3293
  %v3300 = vpack.c.bf16 %v3297, %v3294
  %v3304 = vunpack.c.l.b16 %v3298
  %v3305 = vunpack.c.l.b16 %v3299
  %v3306 = vunpack.c.l.b16 %v3300
  %v3307 = vunpack.c.h.b16 %v3298
  %v3308 = vunpack.c.h.b16 %v3299
  %v3309 = vunpack.c.h.b16 %v3300
  %v3310 = vpack.c.b16 %v3305, %v3304
  %v3311 = vpack.c.b16 %v3306, %v3306
  %v3312 = vpack.c.b16 %v3308, %v3307
  %v3313 = vpack.c.b16 %v3309, %v3309
  %3314 = vrot.lane.b32.xlu0 %v3310, 65
  %v3315 = vpop.permute.xlu0 %3314
  %3316 = vrot.lane.b32.xlu0 %v3311, 65
  %v3317 = vpop.permute.xlu0 %3316
  %3318 = vrot.lane.b32.xlu0 %v3312, 65
  %v3319 = vpop.permute.xlu0 %3318
  %3320 = vrot.lane.b32.xlu0 %v3313, 65
  %v3321 = vpop.permute.xlu0 %3320
  %v3322 = vrot.slane %v3315, 4
  %v3323 = vrot.slane %v3317, 4
  %v3324 = vrot.slane %v3319, 4
  %v3325 = vrot.slane %v3321, 4
  %v3326 = vsel %vm137, %v3322, %v3323
  %v3327 = vsel %vm514, %v3315, %v3326
  %v3328 = vsel %vm137, %v3324, %v3325
  %v3329 = vsel %vm514, %v3319, %v3328
  %3332 = vst [vmem:[#allocation4 + $0x60] sm:$0xff] %v3327
  %3333 = vst [vmem:[#allocation4 + $0x70] sm:$0xff] %v3329
  %v3334 = vld [vmem:[#allocation3 + $0x4] sm:$0xff]
  %v3335 = vld [vmem:[#allocation3 + $0xc] sm:$0xf]
  %v3336 = vld [vmem:[#allocation3 + $0x14] sm:$0xff]
  %v3337 = vld [vmem:[#allocation3 + $0x1c] sm:$0xf]
  %v3338 = vunpack.c.l.bf16 %v3334
  %v3339 = vunpack.c.h.bf16 %v3334
  %v3340 = vunpack.c.l.bf16 %v3335
  %v3341 = vunpack.c.l.bf16 %v3336
  %v3342 = vunpack.c.h.bf16 %v3336
  %v3343 = vunpack.c.l.bf16 %v3337
  %v3344 = vmul.f32 %v3338, %v3285
  %v3345 = vmul.f32 %v3339, %v3288
  %v3346 = vmul.f32 %v3340, %v3287
  %v3347 = vmul.f32 %v3341, %v3285
  %v3348 = vmul.f32 %v3342, %v3288
  %v3349 = vmul.f32 %v3343, %v3287
  %v3350 = vpack.c.bf16 %v3347, %v3344
  %v3351 = vpack.c.bf16 %v3348, %v3345
  %v3352 = vpack.c.bf16 %v3349, %v3346
  %v3356 = vunpack.c.l.b16 %v3350
  %v3357 = vunpack.c.l.b16 %v3351
  %v3358 = vunpack.c.l.b16 %v3352
  %v3359 = vunpack.c.h.b16 %v3350
  %v3360 = vunpack.c.h.b16 %v3351
  %v3361 = vunpack.c.h.b16 %v3352
  %v3362 = vpack.c.b16 %v3357, %v3356
  %v3363 = vpack.c.b16 %v3358, %v3358
  %v3364 = vpack.c.b16 %v3360, %v3359
  %v3365 = vpack.c.b16 %v3361, %v3361
  %3366 = vrot.lane.b32.xlu0 %v3362, 65
  %v3367 = vpop.permute.xlu0 %3366
  %3368 = vrot.lane.b32.xlu0 %v3363, 65
  %v3369 = vpop.permute.xlu0 %3368
  %3370 = vrot.lane.b32.xlu0 %v3364, 65
  %v3371 = vpop.permute.xlu0 %3370
  %3372 = vrot.lane.b32.xlu0 %v3365, 65
  %v3373 = vpop.permute.xlu0 %3372
  %v3374 = vrot.slane %v3367, 4
  %v3375 = vrot.slane %v3369, 4
  %v3376 = vrot.slane %v3371, 4
  %v3377 = vrot.slane %v3373, 4
  %v3378 = vsel %vm137, %v3374, %v3375
  %v3379 = vsel %vm514, %v3367, %v3378
  %v3380 = vsel %vm137, %v3376, %v3377
  %v3381 = vsel %vm514, %v3371, %v3380
  %3384 = vst [vmem:[#allocation4 + $0x68] sm:$0xff] %v3379
  %3385 = vst [vmem:[#allocation4 + $0x78] sm:$0xff] %v3381
  %s3386 = scalar_lea.vmem %s6, 38
  %v3387 = vld [vmem:[%s3386] ss:$8 sm:$0x3]
  %v3388 = vld [vmem:[#allocation2 + $0x4] sm:$0xff]
  %v3389 = vld [vmem:[#allocation2 + $0xc] sm:$0xf]
  %v3390 = vld [vmem:[#allocation2 + $0x14] sm:$0xff]
  %v3391 = vld [vmem:[#allocation2 + $0x1c] sm:$0xf]
  %v3392 = vunpack.c.l.bf16 %v3388
  %v3393 = vunpack.c.h.bf16 %v3388
  %v3394 = vunpack.c.l.bf16 %v3389
  %v3395 = vunpack.c.l.bf16 %v3390
  %v3396 = vunpack.c.h.bf16 %v3390
  %v3397 = vunpack.c.l.bf16 %v3391
  %v3399 = vlaneseq
  %v3400 = vshrl.u32 %v3399, 7
  %v3401 = vsub.s32 0, %v3400
  %v3402 = vrot.slane %v3387, %v3401
  %v3403 = vlaneseq
  %v3404 = vshrl.u32 %v3403, 7
  %v3405 = vsub.s32 1, %v3404
  %v3406 = vrot.slane %v3387, %v3405
  %3407 = vrot.lane.b32.xlu0 %v3402, 64
  %v3408 = vpop.permute.xlu0 %3407
  %3409 = vrot.lane.b32.xlu0 %v3406, 64
  %v3410 = vpop.permute.xlu0 %3409
  %v3411 = vsel %vm599, %v3408, %v3410
  %v3415 = vmul.f32 %v3392, %v3408
  %v3416 = vmul.f32 %v3393, %v3411
  %v3417 = vmul.f32 %v3394, %v3410
  %v3418 = vmul.f32 %v3395, %v3408
  %v3419 = vmul.f32 %v3396, %v3411
  %v3420 = vmul.f32 %v3397, %v3410
  %v3421 = vpack.c.bf16 %v3418, %v3415
  %v3422 = vpack.c.bf16 %v3419, %v3416
  %v3423 = vpack.c.bf16 %v3420, %v3417
  %v3427 = vunpack.c.l.b16 %v3421
  %v3428 = vunpack.c.l.b16 %v3422
  %v3429 = vunpack.c.l.b16 %v3423
  %v3430 = vunpack.c.h.b16 %v3421
  %v3431 = vunpack.c.h.b16 %v3422
  %v3432 = vunpack.c.h.b16 %v3423
  %v3433 = vpack.c.b16 %v3428, %v3427
  %v3434 = vpack.c.b16 %v3429, %v3429
  %v3435 = vpack.c.b16 %v3431, %v3430
  %v3436 = vpack.c.b16 %v3432, %v3432
  %3437 = vrot.lane.b32.xlu0 %v3433, 64
  %v3438 = vpop.permute.xlu0 %3437
  %3439 = vrot.lane.b32.xlu0 %v3434, 64
  %v3440 = vpop.permute.xlu0 %3439
  %3441 = vrot.lane.b32.xlu0 %v3435, 64
  %v3442 = vpop.permute.xlu0 %3441
  %3443 = vrot.lane.b32.xlu0 %v3436, 64
  %v3444 = vpop.permute.xlu0 %3443
  %v3445 = vrot.slane %v3438, 4
  %v3446 = vrot.slane %v3440, 4
  %v3447 = vrot.slane %v3442, 4
  %v3448 = vrot.slane %v3444, 4
  %v3449 = vsel %vm137, %v3445, %v3446
  %v3450 = vsel %vm639, %v3438, %v3449
  %v3451 = vsel %vm137, %v3447, %v3448
  %v3452 = vsel %vm639, %v3442, %v3451
  %3455 = vst [vmem:[#allocation4 + $0x80] sm:$0xff] %v3450
  %3456 = vst [vmem:[#allocation4 + $0x90] sm:$0xff] %v3452
  %v3457 = vld [vmem:[#allocation3 + $0x4] sm:$0xff]
  %v3458 = vld [vmem:[#allocation3 + $0xc] sm:$0xf]
  %v3459 = vld [vmem:[#allocation3 + $0x14] sm:$0xff]
  %v3460 = vld [vmem:[#allocation3 + $0x1c] sm:$0xf]
  %v3461 = vunpack.c.l.bf16 %v3457
  %v3462 = vunpack.c.h.bf16 %v3457
  %v3463 = vunpack.c.l.bf16 %v3458
  %v3464 = vunpack.c.l.bf16 %v3459
  %v3465 = vunpack.c.h.bf16 %v3459
  %v3466 = vunpack.c.l.bf16 %v3460
  %v3467 = vmul.f32 %v3461, %v3408
  %v3468 = vmul.f32 %v3462, %v3411
  %v3469 = vmul.f32 %v3463, %v3410
  %v3470 = vmul.f32 %v3464, %v3408
  %v3471 = vmul.f32 %v3465, %v3411
  %v3472 = vmul.f32 %v3466, %v3410
  %v3473 = vpack.c.bf16 %v3470, %v3467
  %v3474 = vpack.c.bf16 %v3471, %v3468
  %v3475 = vpack.c.bf16 %v3472, %v3469
  %v3479 = vunpack.c.l.b16 %v3473
  %v3480 = vunpack.c.l.b16 %v3474
  %v3481 = vunpack.c.l.b16 %v3475
  %v3482 = vunpack.c.h.b16 %v3473
  %v3483 = vunpack.c.h.b16 %v3474
  %v3484 = vunpack.c.h.b16 %v3475
  %v3485 = vpack.c.b16 %v3480, %v3479
  %v3486 = vpack.c.b16 %v3481, %v3481
  %v3487 = vpack.c.b16 %v3483, %v3482
  %v3488 = vpack.c.b16 %v3484, %v3484
  %3489 = vrot.lane.b32.xlu0 %v3485, 64
  %v3490 = vpop.permute.xlu0 %3489
  %3491 = vrot.lane.b32.xlu0 %v3486, 64
  %v3492 = vpop.permute.xlu0 %3491
  %3493 = vrot.lane.b32.xlu0 %v3487, 64
  %v3494 = vpop.permute.xlu0 %3493
  %3495 = vrot.lane.b32.xlu0 %v3488, 64
  %v3496 = vpop.permute.xlu0 %3495
  %v3497 = vrot.slane %v3490, 4
  %v3498 = vrot.slane %v3492, 4
  %v3499 = vrot.slane %v3494, 4
  %v3500 = vrot.slane %v3496, 4
  %v3501 = vsel %vm137, %v3497, %v3498
  %v3502 = vsel %vm639, %v3490, %v3501
  %v3503 = vsel %vm137, %v3499, %v3500
  %v3504 = vsel %vm639, %v3494, %v3503
  %3507 = vst [vmem:[#allocation4 + $0x88] sm:$0xff] %v3502
  %3508 = vst [vmem:[#allocation4 + $0x98] sm:$0xff] %v3504
  %s3509 = scalar_lea.vmem %s6, 39
  %v3510 = vld [vmem:[%s3509] ss:$8 sm:$0x3]
  %v3511 = vld [vmem:[#allocation2 + $0x4] sm:$0xff]
  %v3512 = vld [vmem:[#allocation2 + $0xc] sm:$0xf]
  %v3513 = vld [vmem:[#allocation2 + $0x14] sm:$0xff]
  %v3514 = vld [vmem:[#allocation2 + $0x1c] sm:$0xf]
  %v3515 = vunpack.c.l.bf16 %v3511
  %v3516 = vunpack.c.h.bf16 %v3511
  %v3517 = vunpack.c.l.bf16 %v3512
  %v3518 = vunpack.c.l.bf16 %v3513
  %v3519 = vunpack.c.h.bf16 %v3513
  %v3520 = vunpack.c.l.bf16 %v3514
  %v3522 = vlaneseq
  %v3523 = vshrl.u32 %v3522, 7
  %v3524 = vsub.s32 0, %v3523
  %v3525 = vrot.slane %v3510, %v3524
  %v3526 = vlaneseq
  %v3527 = vshrl.u32 %v3526, 7
  %v3528 = vsub.s32 1, %v3527
  %v3529 = vrot.slane %v3510, %v3528
  %3530 = vrot.lane.b32.xlu0 %v3525, 65
  %v3531 = vpop.permute.xlu0 %3530
  %3532 = vrot.lane.b32.xlu0 %v3529, 65
  %v3533 = vpop.permute.xlu0 %3532
  %v3534 = vsel %vm724, %v3531, %v3533
  %v3538 = vmul.f32 %v3515, %v3531
  %v3539 = vmul.f32 %v3516, %v3534
  %v3540 = vmul.f32 %v3517, %v3533
  %v3541 = vmul.f32 %v3518, %v3531
  %v3542 = vmul.f32 %v3519, %v3534
  %v3543 = vmul.f32 %v3520, %v3533
  %v3544 = vpack.c.bf16 %v3541, %v3538
  %v3545 = vpack.c.bf16 %v3542, %v3539
  %v3546 = vpack.c.bf16 %v3543, %v3540
  %v3550 = vunpack.c.l.b16 %v3544
  %v3551 = vunpack.c.l.b16 %v3545
  %v3552 = vunpack.c.l.b16 %v3546
  %v3553 = vunpack.c.h.b16 %v3544
  %v3554 = vunpack.c.h.b16 %v3545
  %v3555 = vunpack.c.h.b16 %v3546
  %v3556 = vpack.c.b16 %v3551, %v3550
  %v3557 = vpack.c.b16 %v3552, %v3552
  %v3558 = vpack.c.b16 %v3554, %v3553
  %v3559 = vpack.c.b16 %v3555, %v3555
  %3560 = vrot.lane.b32.xlu0 %v3556, 63
  %v3561 = vpop.permute.xlu0 %3560
  %3562 = vrot.lane.b32.xlu0 %v3557, 63
  %v3563 = vpop.permute.xlu0 %3562
  %3564 = vrot.lane.b32.xlu0 %v3558, 63
  %v3565 = vpop.permute.xlu0 %3564
  %3566 = vrot.lane.b32.xlu0 %v3559, 63
  %v3567 = vpop.permute.xlu0 %3566
  %v3568 = vrot.slane %v3561, 4
  %v3569 = vrot.slane %v3563, 4
  %v3570 = vrot.slane %v3565, 4
  %v3571 = vrot.slane %v3567, 4
  %v3572 = vsel %vm137, %v3568, %v3569
  %v3573 = vsel %vm764, %v3561, %v3572
  %v3574 = vsel %vm137, %v3570, %v3571
  %v3575 = vsel %vm764, %v3565, %v3574
  %3578 = vst [vmem:[#allocation4 + $0xa0] sm:$0xff] %v3573
  %3579 = vst [vmem:[#allocation4 + $0xb0] sm:$0xff] %v3575
  %v3580 = vld [vmem:[#allocation3 + $0x4] sm:$0xff]
  %v3581 = vld [vmem:[#allocation3 + $0xc] sm:$0xf]
  %v3582 = vld [vmem:[#allocation3 + $0x14] sm:$0xff]
  %v3583 = vld [vmem:[#allocation3 + $0x1c] sm:$0xf]
  %v3584 = vunpack.c.l.bf16 %v3580
  %v3585 = vunpack.c.h.bf16 %v3580
  %v3586 = vunpack.c.l.bf16 %v3581
  %v3587 = vunpack.c.l.bf16 %v3582
  %v3588 = vunpack.c.h.bf16 %v3582
  %v3589 = vunpack.c.l.bf16 %v3583
  %v3590 = vmul.f32 %v3584, %v3531
  %v3591 = vmul.f32 %v3585, %v3534
  %v3592 = vmul.f32 %v3586, %v3533
  %v3593 = vmul.f32 %v3587, %v3531
  %v3594 = vmul.f32 %v3588, %v3534
  %v3595 = vmul.f32 %v3589, %v3533
  %v3596 = vpack.c.bf16 %v3593, %v3590
  %v3597 = vpack.c.bf16 %v3594, %v3591
  %v3598 = vpack.c.bf16 %v3595, %v3592
  %v3602 = vunpack.c.l.b16 %v3596
  %v3603 = vunpack.c.l.b16 %v3597
  %v3604 = vunpack.c.l.b16 %v3598
  %v3605 = vunpack.c.h.b16 %v3596
  %v3606 = vunpack.c.h.b16 %v3597
  %v3607 = vunpack.c.h.b16 %v3598
  %v3608 = vpack.c.b16 %v3603, %v3602
  %v3609 = vpack.c.b16 %v3604, %v3604
  %v3610 = vpack.c.b16 %v3606, %v3605
  %v3611 = vpack.c.b16 %v3607, %v3607
  %3612 = vrot.lane.b32.xlu0 %v3608, 63
  %v3613 = vpop.permute.xlu0 %3612
  %3614 = vrot.lane.b32.xlu0 %v3609, 63
  %v3615 = vpop.permute.xlu0 %3614
  %3616 = vrot.lane.b32.xlu0 %v3610, 63
  %v3617 = vpop.permute.xlu0 %3616
  %3618 = vrot.lane.b32.xlu0 %v3611, 63
  %v3619 = vpop.permute.xlu0 %3618
  %v3620 = vrot.slane %v3613, 4
  %v3621 = vrot.slane %v3615, 4
  %v3622 = vrot.slane %v3617, 4
  %v3623 = vrot.slane %v3619, 4
  %v3624 = vsel %vm137, %v3620, %v3621
  %v3625 = vsel %vm764, %v3613, %v3624
  %v3626 = vsel %vm137, %v3622, %v3623
  %v3627 = vsel %vm764, %v3617, %v3626
  %3630 = vst [vmem:[#allocation4 + $0xa8] sm:$0xff] %v3625
  %3631 = vst [vmem:[#allocation4 + $0xb8] sm:$0xff] %v3627
  %s3632 = scalar_lea.vmem %s6, 48
  %v3633 = vld [vmem:[%s3632] ss:$8 sm:$0x3]
  %v3634 = vld [vmem:[#allocation2 + $0x4] sm:$0xff]
  %v3635 = vld [vmem:[#allocation2 + $0xc] sm:$0xf]
  %v3636 = vld [vmem:[#allocation2 + $0x14] sm:$0xff]
  %v3637 = vld [vmem:[#allocation2 + $0x1c] sm:$0xf]
  %v3638 = vunpack.c.l.bf16 %v3634
  %v3639 = vunpack.c.h.bf16 %v3634
  %v3640 = vunpack.c.l.bf16 %v3635
  %v3641 = vunpack.c.l.bf16 %v3636
  %v3642 = vunpack.c.h.bf16 %v3636
  %v3643 = vunpack.c.l.bf16 %v3637
  %v3645 = vlaneseq
  %v3646 = vshrl.u32 %v3645, 7
  %v3647 = vsub.s32 0, %v3646
  %v3648 = vrot.slane %v3633, %v3647
  %v3649 = vlaneseq
  %v3650 = vshrl.u32 %v3649, 7
  %v3651 = vsub.s32 1, %v3650
  %v3652 = vrot.slane %v3633, %v3651
  %3653 = vrot.lane.b32.xlu0 %v3648, 71
  %v3654 = vpop.permute.xlu0 %3653
  %3655 = vrot.lane.b32.xlu0 %v3652, 71
  %v3656 = vpop.permute.xlu0 %3655
  %v3657 = vsel %vm849, %v3654, %v3656
  %v3661 = vmul.f32 %v3638, %v3654
  %v3662 = vmul.f32 %v3639, %v3657
  %v3663 = vmul.f32 %v3640, %v3656
  %v3664 = vmul.f32 %v3641, %v3654
  %v3665 = vmul.f32 %v3642, %v3657
  %v3666 = vmul.f32 %v3643, %v3656
  %v3667 = vpack.c.bf16 %v3664, %v3661
  %v3668 = vpack.c.bf16 %v3665, %v3662
  %v3669 = vpack.c.bf16 %v3666, %v3663
  %v3673 = vunpack.c.l.b16 %v3667
  %v3674 = vunpack.c.l.b16 %v3668
  %v3675 = vunpack.c.l.b16 %v3669
  %v3676 = vunpack.c.h.b16 %v3667
  %v3677 = vunpack.c.h.b16 %v3668
  %v3678 = vunpack.c.h.b16 %v3669
  %v3679 = vpack.c.b16 %v3674, %v3673
  %v3680 = vpack.c.b16 %v3675, %v3675
  %v3681 = vpack.c.b16 %v3677, %v3676
  %v3682 = vpack.c.b16 %v3678, %v3678
  %3683 = vrot.lane.b32.xlu0 %v3679, 57
  %v3684 = vpop.permute.xlu0 %3683
  %3685 = vrot.lane.b32.xlu0 %v3680, 57
  %v3686 = vpop.permute.xlu0 %3685
  %3687 = vrot.lane.b32.xlu0 %v3681, 57
  %v3688 = vpop.permute.xlu0 %3687
  %3689 = vrot.lane.b32.xlu0 %v3682, 57
  %v3690 = vpop.permute.xlu0 %3689
  %v3691 = vrot.slane %v3684, 4
  %v3692 = vrot.slane %v3686, 4
  %v3693 = vrot.slane %v3688, 4
  %v3694 = vrot.slane %v3690, 4
  %v3695 = vsel %vm137, %v3691, %v3692
  %v3696 = vsel %vm889, %v3684, %v3695
  %v3697 = vsel %vm137, %v3693, %v3694
  %v3698 = vsel %vm889, %v3688, %v3697
  %3701 = vst [vmem:[#allocation4 + $0xc0] sm:$0xff] %v3696
  %3702 = vst [vmem:[#allocation4 + $0xd0] sm:$0xff] %v3698
  %v3703 = vld [vmem:[#allocation3 + $0x4] sm:$0xff]
  %v3704 = vld [vmem:[#allocation3 + $0xc] sm:$0xf]
  %v3705 = vld [vmem:[#allocation3 + $0x14] sm:$0xff]
  %v3706 = vld [vmem:[#allocation3 + $0x1c] sm:$0xf]
  %v3707 = vunpack.c.l.bf16 %v3703
  %v3708 = vunpack.c.h.bf16 %v3703
  %v3709 = vunpack.c.l.bf16 %v3704
  %v3710 = vunpack.c.l.bf16 %v3705
  %v3711 = vunpack.c.h.bf16 %v3705
  %v3712 = vunpack.c.l.bf16 %v3706
  %v3713 = vmul.f32 %v3707, %v3654
  %v3714 = vmul.f32 %v3708, %v3657
  %v3715 = vmul.f32 %v3709, %v3656
  %v3716 = vmul.f32 %v3710, %v3654
  %v3717 = vmul.f32 %v3711, %v3657
  %v3718 = vmul.f32 %v3712, %v3656
  %v3719 = vpack.c.bf16 %v3716, %v3713
  %v3720 = vpack.c.bf16 %v3717, %v3714
  %v3721 = vpack.c.bf16 %v3718, %v3715
  %v3725 = vunpack.c.l.b16 %v3719
  %v3726 = vunpack.c.l.b16 %v3720
  %v3727 = vunpack.c.l.b16 %v3721
  %v3728 = vunpack.c.h.b16 %v3719
  %v3729 = vunpack.c.h.b16 %v3720
  %v3730 = vunpack.c.h.b16 %v3721
  %v3731 = vpack.c.b16 %v3726, %v3725
  %v3732 = vpack.c.b16 %v3727, %v3727
  %v3733 = vpack.c.b16 %v3729, %v3728
  %v3734 = vpack.c.b16 %v3730, %v3730
  %3735 = vrot.lane.b32.xlu0 %v3731, 57
  %v3736 = vpop.permute.xlu0 %3735
  %3737 = vrot.lane.b32.xlu0 %v3732, 57
  %v3738 = vpop.permute.xlu0 %3737
  %3739 = vrot.lane.b32.xlu0 %v3733, 57
  %v3740 = vpop.permute.xlu0 %3739
  %3741 = vrot.lane.b32.xlu0 %v3734, 57
  %v3742 = vpop.permute.xlu0 %3741
  %v3743 = vrot.slane %v3736, 4
  %v3744 = vrot.slane %v3738, 4
  %v3745 = vrot.slane %v3740, 4
  %v3746 = vrot.slane %v3742, 4
  %v3747 = vsel %vm137, %v3743, %v3744
  %v3748 = vsel %vm889, %v3736, %v3747
  %v3749 = vsel %vm137, %v3745, %v3746
  %v3750 = vsel %vm889, %v3740, %v3749
  %3753 = vst [vmem:[#allocation4 + $0xc8] sm:$0xff] %v3748
  %3754 = vst [vmem:[#allocation4 + $0xd8] sm:$0xff] %v3750
  %s3755 = scalar_lea.vmem %s6, 49
  %v3756 = vld [vmem:[%s3755] ss:$8 sm:$0x3]
  %v3757 = vld [vmem:[#allocation2 + $0x4] sm:$0xff]
  %v3758 = vld [vmem:[#allocation2 + $0xc] sm:$0xf]
  %v3759 = vld [vmem:[#allocation2 + $0x14] sm:$0xff]
  %v3760 = vld [vmem:[#allocation2 + $0x1c] sm:$0xf]
  %v3761 = vunpack.c.l.bf16 %v3757
  %v3762 = vunpack.c.h.bf16 %v3757
  %v3763 = vunpack.c.l.bf16 %v3758
  %v3764 = vunpack.c.l.bf16 %v3759
  %v3765 = vunpack.c.h.bf16 %v3759
  %v3766 = vunpack.c.l.bf16 %v3760
  %v3768 = vlaneseq
  %v3769 = vshrl.u32 %v3768, 7
  %v3770 = vsub.s32 0, %v3769
  %v3771 = vrot.slane %v3756, %v3770
  %v3772 = vlaneseq
  %v3773 = vshrl.u32 %v3772, 7
  %v3774 = vsub.s32 1, %v3773
  %v3775 = vrot.slane %v3756, %v3774
  %3776 = vrot.lane.b32.xlu0 %v3771, 72
  %v3777 = vpop.permute.xlu0 %3776
  %3778 = vrot.lane.b32.xlu0 %v3775, 72
  %v3779 = vpop.permute.xlu0 %3778
  %v3780 = vsel %vm974, %v3777, %v3779
  %v3784 = vmul.f32 %v3761, %v3777
  %v3785 = vmul.f32 %v3762, %v3780
  %v3786 = vmul.f32 %v3763, %v3779
  %v3787 = vmul.f32 %v3764, %v3777
  %v3788 = vmul.f32 %v3765, %v3780
  %v3789 = vmul.f32 %v3766, %v3779
  %v3790 = vpack.c.bf16 %v3787, %v3784
  %v3791 = vpack.c.bf16 %v3788, %v3785
  %v3792 = vpack.c.bf16 %v3789, %v3786
  %v3796 = vunpack.c.l.b16 %v3790
  %v3797 = vunpack.c.l.b16 %v3791
  %v3798 = vunpack.c.l.b16 %v3792
  %v3799 = vunpack.c.h.b16 %v3790
  %v3800 = vunpack.c.h.b16 %v3791
  %v3801 = vunpack.c.h.b16 %v3792
  %v3802 = vpack.c.b16 %v3797, %v3796
  %v3803 = vpack.c.b16 %v3798, %v3798
  %v3804 = vpack.c.b16 %v3800, %v3799
  %v3805 = vpack.c.b16 %v3801, %v3801
  %3806 = vrot.lane.b32.xlu0 %v3802, 56
  %v3807 = vpop.permute.xlu0 %3806
  %3808 = vrot.lane.b32.xlu0 %v3803, 56
  %v3809 = vpop.permute.xlu0 %3808
  %3810 = vrot.lane.b32.xlu0 %v3804, 56
  %v3811 = vpop.permute.xlu0 %3810
  %3812 = vrot.lane.b32.xlu0 %v3805, 56
  %v3813 = vpop.permute.xlu0 %3812
  %v3814 = vrot.slane %v3807, 4
  %v3815 = vrot.slane %v3809, 4
  %v3816 = vrot.slane %v3811, 4
  %v3817 = vrot.slane %v3813, 4
  %v3818 = vsel %vm137, %v3814, %v3815
  %v3819 = vsel %vm1014, %v3807, %v3818
  %v3820 = vsel %vm137, %v3816, %v3817
  %v3821 = vsel %vm1014, %v3811, %v3820
  %3824 = vst [vmem:[#allocation4 + $0xe0] sm:$0xff] %v3819
  %3825 = vst [vmem:[#allocation4 + $0xf0] sm:$0xff] %v3821
  %v3826 = vld [vmem:[#allocation3 + $0x4] sm:$0xff]
  %v3827 = vld [vmem:[#allocation3 + $0xc] sm:$0xf]
  %v3828 = vld [vmem:[#allocation3 + $0x14] sm:$0xff]
  %v3829 = vld [vmem:[#allocation3 + $0x1c] sm:$0xf]
  %v3830 = vunpack.c.l.bf16 %v3826
  %v3831 = vunpack.c.h.bf16 %v3826
  %v3832 = vunpack.c.l.bf16 %v3827
  %v3833 = vunpack.c.l.bf16 %v3828
  %v3834 = vunpack.c.h.bf16 %v3828
  %v3835 = vunpack.c.l.bf16 %v3829
  %v3836 = vmul.f32 %v3830, %v3777
  %v3837 = vmul.f32 %v3831, %v3780
  %v3838 = vmul.f32 %v3832, %v3779
  %v3839 = vmul.f32 %v3833, %v3777
  %v3840 = vmul.f32 %v3834, %v3780
  %v3841 = vmul.f32 %v3835, %v3779
  %v3842 = vpack.c.bf16 %v3839, %v3836
  %v3843 = vpack.c.bf16 %v3840, %v3837
  %v3844 = vpack.c.bf16 %v3841, %v3838
  %v3848 = vunpack.c.l.b16 %v3842
  %v3849 = vunpack.c.l.b16 %v3843
  %v3850 = vunpack.c.l.b16 %v3844
  %v3851 = vunpack.c.h.b16 %v3842
  %v3852 = vunpack.c.h.b16 %v3843
  %v3853 = vunpack.c.h.b16 %v3844
  %v3854 = vpack.c.b16 %v3849, %v3848
  %v3855 = vpack.c.b16 %v3850, %v3850
  %v3856 = vpack.c.b16 %v3852, %v3851
  %v3857 = vpack.c.b16 %v3853, %v3853
  %3858 = vrot.lane.b32.xlu0 %v3854, 56
  %v3859 = vpop.permute.xlu0 %3858
  %3860 = vrot.lane.b32.xlu0 %v3855, 56
  %v3861 = vpop.permute.xlu0 %3860
  %3862 = vrot.lane.b32.xlu0 %v3856, 56
  %v3863 = vpop.permute.xlu0 %3862
  %3864 = vrot.lane.b32.xlu0 %v3857, 56
  %v3865 = vpop.permute.xlu0 %3864
  %v3866 = vrot.slane %v3859, 4
  %v3867 = vrot.slane %v3861, 4
  %v3868 = vrot.slane %v3863, 4
  %v3869 = vrot.slane %v3865, 4
  %v3870 = vsel %vm137, %v3866, %v3867
  %v3871 = vsel %vm1014, %v3859, %v3870
  %v3872 = vsel %vm137, %v3868, %v3869
  %v3873 = vsel %vm1014, %v3863, %v3872
  %3876 = vst [vmem:[#allocation4 + $0xe8] sm:$0xff] %v3871
  %3877 = vst [vmem:[#allocation4 + $0xf8] sm:$0xff] %v3873
  %s3878 = scalar_lea.vmem %s6, 50
  %v3879 = vld [vmem:[%s3878] ss:$8 sm:$0x3]
  %v3880 = vld [vmem:[#allocation2 + $0x4] sm:$0xff]
  %v3881 = vld [vmem:[#allocation2 + $0xc] sm:$0xf]
  %v3882 = vld [vmem:[#allocation2 + $0x14] sm:$0xff]
  %v3883 = vld [vmem:[#allocation2 + $0x1c] sm:$0xf]
  %v3884 = vunpack.c.l.bf16 %v3880
  %v3885 = vunpack.c.h.bf16 %v3880
  %v3886 = vunpack.c.l.bf16 %v3881
  %v3887 = vunpack.c.l.bf16 %v3882
  %v3888 = vunpack.c.h.bf16 %v3882
  %v3889 = vunpack.c.l.bf16 %v3883
  %v3891 = vlaneseq
  %v3892 = vshrl.u32 %v3891, 7
  %v3893 = vsub.s32 0, %v3892
  %v3894 = vrot.slane %v3879, %v3893
  %v3895 = vlaneseq
  %v3896 = vshrl.u32 %v3895, 7
  %v3897 = vsub.s32 1, %v3896
  %v3898 = vrot.slane %v3879, %v3897
  %3899 = vrot.lane.b32.xlu0 %v3894, 73
  %v3900 = vpop.permute.xlu0 %3899
  %3901 = vrot.lane.b32.xlu0 %v3898, 73
  %v3902 = vpop.permute.xlu0 %3901
  %v3903 = vsel %vm1099, %v3900, %v3902
  %v3907 = vmul.f32 %v3884, %v3900
  %v3908 = vmul.f32 %v3885, %v3903
  %v3909 = vmul.f32 %v3886, %v3902
  %v3910 = vmul.f32 %v3887, %v3900
  %v3911 = vmul.f32 %v3888, %v3903
  %v3912 = vmul.f32 %v3889, %v3902
  %v3913 = vpack.c.bf16 %v3910, %v3907
  %v3914 = vpack.c.bf16 %v3911, %v3908
  %v3915 = vpack.c.bf16 %v3912, %v3909
  %v3919 = vunpack.c.l.b16 %v3913
  %v3920 = vunpack.c.l.b16 %v3914
  %v3921 = vunpack.c.l.b16 %v3915
  %v3922 = vunpack.c.h.b16 %v3913
  %v3923 = vunpack.c.h.b16 %v3914
  %v3924 = vunpack.c.h.b16 %v3915
  %v3925 = vpack.c.b16 %v3920, %v3919
  %v3926 = vpack.c.b16 %v3921, %v3921
  %v3927 = vpack.c.b16 %v3923, %v3922
  %v3928 = vpack.c.b16 %v3924, %v3924
  %3929 = vrot.lane.b32.xlu0 %v3925, 55
  %v3930 = vpop.permute.xlu0 %3929
  %3931 = vrot.lane.b32.xlu0 %v3926, 55
  %v3932 = vpop.permute.xlu0 %3931
  %3933 = vrot.lane.b32.xlu0 %v3927, 55
  %v3934 = vpop.permute.xlu0 %3933
  %3935 = vrot.lane.b32.xlu0 %v3928, 55
  %v3936 = vpop.permute.xlu0 %3935
  %v3937 = vrot.slane %v3930, 4
  %v3938 = vrot.slane %v3932, 4
  %v3939 = vrot.slane %v3934, 4
  %v3940 = vrot.slane %v3936, 4
  %v3941 = vsel %vm137, %v3937, %v3938
  %v3942 = vsel %vm1139, %v3930, %v3941
  %v3943 = vsel %vm137, %v3939, %v3940
  %v3944 = vsel %vm1139, %v3934, %v3943
  %3947 = vst [vmem:[#allocation4 + $0x100] sm:$0xff] %v3942
  %3948 = vst [vmem:[#allocation4 + $0x110] sm:$0xff] %v3944
  %v3949 = vld [vmem:[#allocation3 + $0x4] sm:$0xff]
  %v3950 = vld [vmem:[#allocation3 + $0xc] sm:$0xf]
  %v3951 = vld [vmem:[#allocation3 + $0x14] sm:$0xff]
  %v3952 = vld [vmem:[#allocation3 + $0x1c] sm:$0xf]
  %v3953 = vunpack.c.l.bf16 %v3949
  %v3954 = vunpack.c.h.bf16 %v3949
  %v3955 = vunpack.c.l.bf16 %v3950
  %v3956 = vunpack.c.l.bf16 %v3951
  %v3957 = vunpack.c.h.bf16 %v3951
  %v3958 = vunpack.c.l.bf16 %v3952
  %v3959 = vmul.f32 %v3953, %v3900
  %v3960 = vmul.f32 %v3954, %v3903
  %v3961 = vmul.f32 %v3955, %v3902
  %v3962 = vmul.f32 %v3956, %v3900
  %v3963 = vmul.f32 %v3957, %v3903
  %v3964 = vmul.f32 %v3958, %v3902
  %v3965 = vpack.c.bf16 %v3962, %v3959
  %v3966 = vpack.c.bf16 %v3963, %v3960
  %v3967 = vpack.c.bf16 %v3964, %v3961
  %v3971 = vunpack.c.l.b16 %v3965
  %v3972 = vunpack.c.l.b16 %v3966
  %v3973 = vunpack.c.l.b16 %v3967
  %v3974 = vunpack.c.h.b16 %v3965
  %v3975 = vunpack.c.h.b16 %v3966
  %v3976 = vunpack.c.h.b16 %v3967
  %v3977 = vpack.c.b16 %v3972, %v3971
  %v3978 = vpack.c.b16 %v3973, %v3973
  %v3979 = vpack.c.b16 %v3975, %v3974
  %v3980 = vpack.c.b16 %v3976, %v3976
  %3981 = vrot.lane.b32.xlu0 %v3977, 55
  %v3982 = vpop.permute.xlu0 %3981
  %3983 = vrot.lane.b32.xlu0 %v3978, 55
  %v3984 = vpop.permute.xlu0 %3983
  %3985 = vrot.lane.b32.xlu0 %v3979, 55
  %v3986 = vpop.permute.xlu0 %3985
  %3987 = vrot.lane.b32.xlu0 %v3980, 55
  %v3988 = vpop.permute.xlu0 %3987
  %v3989 = vrot.slane %v3982, 4
  %v3990 = vrot.slane %v3984, 4
  %v3991 = vrot.slane %v3986, 4
  %v3992 = vrot.slane %v3988, 4
  %v3993 = vsel %vm137, %v3989, %v3990
  %v3994 = vsel %vm1139, %v3982, %v3993
  %v3995 = vsel %vm137, %v3991, %v3992
  %v3996 = vsel %vm1139, %v3986, %v3995
  %3999 = vst [vmem:[#allocation4 + $0x108] sm:$0xff] %v3994
  %4000 = vst [vmem:[#allocation4 + $0x118] sm:$0xff] %v3996
  %s4001 = scalar_lea.vmem %s1, 32
  %v4002 = vld [vmem:[%s4001] sm:$0xff]
  %v4003 = vld [vmem:[%s4001 + $0x8] sm:$0xff]
  %v4004 = vld [vmem:[#allocation4] sm:$0xff]
  %v4005 = vld [vmem:[#allocation4 + $0x8] sm:$0xff]
  %v4006 = vld [vmem:[#allocation4 + $0x10] sm:$0xff]
  %v4007 = vld [vmem:[#allocation4 + $0x18] sm:$0xff]
  %v4008 = vld [vmem:[#allocation4 + $0x20] sm:$0xff]
  %v4009 = vld [vmem:[#allocation4 + $0x28] sm:$0xff]
  %v4010 = vld [vmem:[#allocation4 + $0x30] sm:$0xff]
  %v4011 = vld [vmem:[#allocation4 + $0x38] sm:$0xff]
  %v4012 = vld [vmem:[#allocation4 + $0x40] sm:$0xff]
  %v4013 = vld [vmem:[#allocation4 + $0x48] sm:$0xff]
  %v4014 = vld [vmem:[#allocation4 + $0x50] sm:$0xff]
  %v4015 = vld [vmem:[#allocation4 + $0x58] sm:$0xff]
  %v4016 = vld [vmem:[#allocation4 + $0x60] sm:$0xff]
  %v4017 = vld [vmem:[#allocation4 + $0x68] sm:$0xff]
  %v4018 = vld [vmem:[#allocation4 + $0x70] sm:$0xff]
  %v4019 = vld [vmem:[#allocation4 + $0x78] sm:$0xff]
  %v4020 = vld [vmem:[#allocation4 + $0x80] sm:$0xff]
  %v4021 = vld [vmem:[#allocation4 + $0x88] sm:$0xff]
  %v4022 = vld [vmem:[#allocation4 + $0x90] sm:$0xff]
  %v4023 = vld [vmem:[#allocation4 + $0x98] sm:$0xff]
  %v4024 = vld [vmem:[#allocation4 + $0xa0] sm:$0xff]
  %v4025 = vld [vmem:[#allocation4 + $0xa8] sm:$0xff]
  %v4026 = vld [vmem:[#allocation4 + $0xb0] sm:$0xff]
  %v4027 = vld [vmem:[#allocation4 + $0xb8] sm:$0xff]
  %v4028 = vld [vmem:[#allocation4 + $0xc0] sm:$0xff]
  %v4029 = vld [vmem:[#allocation4 + $0xc8] sm:$0xff]
  %v4030 = vld [vmem:[#allocation4 + $0xd0] sm:$0xff]
  %v4031 = vld [vmem:[#allocation4 + $0xd8] sm:$0xff]
  %v4032 = vld [vmem:[#allocation4 + $0xe0] sm:$0xff]
  %v4033 = vld [vmem:[#allocation4 + $0xe8] sm:$0xff]
  %v4034 = vld [vmem:[#allocation4 + $0xf0] sm:$0xff]
  %v4035 = vld [vmem:[#allocation4 + $0xf8] sm:$0xff]
  %v4036 = vld [vmem:[#allocation4 + $0x100] sm:$0xff]
  %v4037 = vld [vmem:[#allocation4 + $0x108] sm:$0xff]
  %v4038 = vld [vmem:[#allocation4 + $0x110] sm:$0xff]
  %v4039 = vld [vmem:[#allocation4 + $0x118] sm:$0xff]
  %v4042 = vunpack.c.l.b16 %v4002
  %v4043 = vunpack.c.h.b16 %v4002
  %v4044 = vunpack.c.l.b16 %v4003
  %v4045 = vunpack.c.h.b16 %v4003
  %v4046 = vpack.c.b16 %v4044, %v4042
  %v4047 = vpack.c.b16 %v4045, %v4043
  %v4085 = vunpack.c.l.b16 %v4004
  %v4086 = vunpack.c.h.b16 %v4004
  %v4087 = vunpack.c.l.b16 %v4005
  %v4088 = vunpack.c.h.b16 %v4005
  %v4089 = vunpack.c.l.b16 %v4006
  %v4090 = vunpack.c.h.b16 %v4006
  %v4091 = vunpack.c.l.b16 %v4007
  %v4092 = vunpack.c.h.b16 %v4007
  %v4093 = vunpack.c.l.b16 %v4008
  %v4094 = vunpack.c.h.b16 %v4008
  %v4095 = vunpack.c.l.b16 %v4009
  %v4096 = vunpack.c.h.b16 %v4009
  %v4097 = vunpack.c.l.b16 %v4010
  %v4098 = vunpack.c.h.b16 %v4010
  %v4099 = vunpack.c.l.b16 %v4011
  %v4100 = vunpack.c.h.b16 %v4011
  %v4101 = vunpack.c.l.b16 %v4012
  %v4102 = vunpack.c.h.b16 %v4012
  %v4103 = vunpack.c.l.b16 %v4013
  %v4104 = vunpack.c.h.b16 %v4013
  %v4105 = vunpack.c.l.b16 %v4014
  %v4106 = vunpack.c.h.b16 %v4014
  %v4107 = vunpack.c.l.b16 %v4015
  %v4108 = vunpack.c.h.b16 %v4015
  %v4109 = vunpack.c.l.b16 %v4016
  %v4110 = vunpack.c.h.b16 %v4016
  %v4111 = vunpack.c.l.b16 %v4017
  %v4112 = vunpack.c.h.b16 %v4017
  %v4113 = vunpack.c.l.b16 %v4018
  %v4114 = vunpack.c.h.b16 %v4018
  %v4115 = vunpack.c.l.b16 %v4019
  %v4116 = vunpack.c.h.b16 %v4019
  %v4117 = vunpack.c.l.b16 %v4020
  %v4118 = vunpack.c.h.b16 %v4020
  %v4119 = vunpack.c.l.b16 %v4021
  %v4120 = vunpack.c.h.b16 %v4021
  %v4121 = vunpack.c.l.b16 %v4022
  %v4122 = vunpack.c.h.b16 %v4022
  %v4123 = vunpack.c.l.b16 %v4023
  %v4124 = vunpack.c.h.b16 %v4023
  %v4125 = vunpack.c.l.b16 %v4024
  %v4126 = vunpack.c.h.b16 %v4024
  %v4127 = vunpack.c.l.b16 %v4025
  %v4128 = vunpack.c.h.b16 %v4025
  %v4129 = vunpack.c.l.b16 %v4026
  %v4130 = vunpack.c.h.b16 %v4026
  %v4131 = vunpack.c.l.b16 %v4027
  %v4132 = vunpack.c.h.b16 %v4027
  %v4133 = vunpack.c.l.b16 %v4028
  %v4134 = vunpack.c.h.b16 %v4028
  %v4135 = vunpack.c.l.b16 %v4029
  %v4136 = vunpack.c.h.b16 %v4029
  %v4137 = vunpack.c.l.b16 %v4030
  %v4138 = vunpack.c.h.b16 %v4030
  %v4139 = vunpack.c.l.b16 %v4031
  %v4140 = vunpack.c.h.b16 %v4031
  %v4141 = vunpack.c.l.b16 %v4032
  %v4142 = vunpack.c.h.b16 %v4032
  %v4143 = vunpack.c.l.b16 %v4033
  %v4144 = vunpack.c.h.b16 %v4033
  %v4145 = vunpack.c.l.b16 %v4034
  %v4146 = vunpack.c.h.b16 %v4034
  %v4147 = vunpack.c.l.b16 %v4035
  %v4148 = vunpack.c.h.b16 %v4035
  %v4149 = vunpack.c.l.b16 %v4036
  %v4150 = vunpack.c.h.b16 %v4036
  %v4151 = vunpack.c.l.b16 %v4037
  %v4152 = vunpack.c.h.b16 %v4037
  %v4153 = vunpack.c.l.b16 %v4038
  %v4154 = vunpack.c.h.b16 %v4038
  %v4155 = vunpack.c.l.b16 %v4039
  %v4156 = vunpack.c.h.b16 %v4039
  %v4157 = vpack.c.b16 %v4089, %v4085
  %v4158 = vpack.c.b16 %v4090, %v4086
  %v4159 = vpack.c.b16 %v4091, %v4087
  %v4160 = vpack.c.b16 %v4092, %v4088
  %v4161 = vpack.c.b16 %v4097, %v4093
  %v4162 = vpack.c.b16 %v4098, %v4094
  %v4163 = vpack.c.b16 %v4099, %v4095
  %v4164 = vpack.c.b16 %v4100, %v4096
  %v4165 = vpack.c.b16 %v4105, %v4101
  %v4166 = vpack.c.b16 %v4106, %v4102
  %v4167 = vpack.c.b16 %v4107, %v4103
  %v4168 = vpack.c.b16 %v4108, %v4104
  %v4169 = vpack.c.b16 %v4113, %v4109
  %v4170 = vpack.c.b16 %v4114, %v4110
  %v4171 = vpack.c.b16 %v4115, %v4111
  %v4172 = vpack.c.b16 %v4116, %v4112
  %v4173 = vpack.c.b16 %v4121, %v4117
  %v4174 = vpack.c.b16 %v4122, %v4118
  %v4175 = vpack.c.b16 %v4123, %v4119
  %v4176 = vpack.c.b16 %v4124, %v4120
  %v4177 = vpack.c.b16 %v4129, %v4125
  %v4178 = vpack.c.b16 %v4130, %v4126
  %v4179 = vpack.c.b16 %v4131, %v4127
  %v4180 = vpack.c.b16 %v4132, %v4128
  %v4181 = vpack.c.b16 %v4137, %v4133
  %v4182 = vpack.c.b16 %v4138, %v4134
  %v4183 = vpack.c.b16 %v4139, %v4135
  %v4184 = vpack.c.b16 %v4140, %v4136
  %v4185 = vpack.c.b16 %v4145, %v4141
  %v4186 = vpack.c.b16 %v4146, %v4142
  %v4187 = vpack.c.b16 %v4147, %v4143
  %v4188 = vpack.c.b16 %v4148, %v4144
  %v4189 = vpack.c.b16 %v4153, %v4149
  %v4190 = vpack.c.b16 %v4154, %v4150
  %v4191 = vpack.c.b16 %v4155, %v4151
  %v4192 = vpack.c.b16 %v4156, %v4152
  %v4230 = vsel %vm2526, %v4047, 0
  %4232 = vmatprep.subr.bf16.mxu0 %v4186
  %4233 = vmatpush1.bf16.msra.mxu0 %v4185
  %4234 = vmatprep.subr.bf16.mxu0 %v4182
  %4235 = vmatpush1.bf16.msra.mxu0 %v4181
  %4236 = vmatprep.subr.bf16.mxu0 %v4178
  %4237 = vmatpush1.bf16.msra.mxu0 %v4177
  %4238 = vmatprep.subr.bf16.mxu0 %v4174
  %4239 = vmatpush1.bf16.msra.mxu0 %v4173
  %4240 = vmatprep.subr.bf16.mxu0 %v4170
  %4241 = vmatpush1.bf16.msra.mxu0 %v4169
  %4242 = vmatprep.subr.bf16.mxu0 %v4166
  %4243 = vmatpush1.bf16.msra.mxu0 %v4165
  %4244 = vmatprep.subr.bf16.mxu0 %v4162
  %4245 = vmatpush1.bf16.msra.mxu0 %v4161
  %4246 = vmatprep.subr.bf16.mxu0 %v4158
  %4247 = vmatpush1.bf16.msra.mxu0 %v4157
  %4248 = vmatprep.subr.bf16.mxu0 0
  %4249 = vmatpush2.bf16.msra.mxu0 0
  %4250 = vmatprep.subr.bf16.mxu0 0
  %4251 = vmatpush2.bf16.msra.mxu0 0
  %4252 = vmatprep.subr.bf16.mxu0 0
  %4253 = vmatpush2.bf16.msra.mxu0 0
  %4254 = vmatprep.subr.bf16.mxu0 0
  %4255 = vmatpush2.bf16.msra.mxu0 0
  %4256 = vmatprep.subr.bf16.mxu0 0
  %4257 = vmatpush2.bf16.msra.mxu0 0
  %4258 = vmatprep.subr.bf16.mxu0 0
  %4259 = vmatpush2.bf16.msra.mxu0 0
  %4260 = vmatprep.subr.bf16.mxu0 0
  %4261 = vmatpush2.bf16.msra.mxu0 0
  %4262 = vmatprep.subr.bf16.mxu0 %v4190
  %4263 = vmatpush2.bf16.msra.mxu0 %v4189
  %4264 = vmatprep.mubr.bf16.mxu0 %v4230
  %4265 = vmatmul.mubr.bf16.gmra.mxu0 %v4046
  %v4266 = vpop.f32.mrf.mxu0
  %v4267 = vadd.f32 0.0, %v4266
  %v4268 = vpop.f32.mrf.mxu0
  %v4269 = vadd.f32 0.0, %v4268
  %v4270 = vpop.f32.mrf.mxu0
  %v4271 = vadd.f32 0.0, %v4270
  %v4272 = vpop.f32.mrf.mxu0
  %v4273 = vadd.f32 0.0, %v4272
  %4274 = vdwg.mxu0
  %4275 = vmatprep.subr.bf16.mxu0 %v4188
  %4276 = vmatpush1.bf16.msra.mxu0 %v4187
  %4277 = vmatprep.subr.bf16.mxu0 %v4184
  %4278 = vmatpush1.bf16.msra.mxu0 %v4183
  %4279 = vmatprep.subr.bf16.mxu0 %v4180
  %4280 = vmatpush1.bf16.msra.mxu0 %v4179
  %4281 = vmatprep.subr.bf16.mxu0 %v4176
  %4282 = vmatpush1.bf16.msra.mxu0 %v4175
  %4283 = vmatprep.subr.bf16.mxu0 %v4172
  %4284 = vmatpush1.bf16.msra.mxu0 %v4171
  %4285 = vmatprep.subr.bf16.mxu0 %v4168
  %4286 = vmatpush1.bf16.msra.mxu0 %v4167
  %4287 = vmatprep.subr.bf16.mxu0 %v4164
  %4288 = vmatpush1.bf16.msra.mxu0 %v4163
  %4289 = vmatprep.subr.bf16.mxu0 %v4160
  %4290 = vmatpush1.bf16.msra.mxu0 %v4159
  %4291 = vmatprep.subr.bf16.mxu0 0
  %4292 = vmatpush2.bf16.msra.mxu0 0
  %4293 = vmatprep.subr.bf16.mxu0 0
  %4294 = vmatpush2.bf16.msra.mxu0 0
  %4295 = vmatprep.subr.bf16.mxu0 0
  %4296 = vmatpush2.bf16.msra.mxu0 0
  %4297 = vmatprep.subr.bf16.mxu0 0
  %4298 = vmatpush2.bf16.msra.mxu0 0
  %4299 = vmatprep.subr.bf16.mxu0 0
  %4300 = vmatpush2.bf16.msra.mxu0 0
  %4301 = vmatprep.subr.bf16.mxu0 0
  %4302 = vmatpush2.bf16.msra.mxu0 0
  %4303 = vmatprep.subr.bf16.mxu0 0
  %4304 = vmatpush2.bf16.msra.mxu0 0
  %4305 = vmatprep.subr.bf16.mxu0 %v4192
  %4306 = vmatpush2.bf16.msra.mxu0 %v4191
  %4307 = vmatprep.mubr.bf16.mxu0 %v4230
  %4308 = vmatmul.mubr.bf16.gmra.mxu0 %v4046
  %v4309 = vpop.f32.mrf.mxu0
  %v4310 = vadd.f32 0.0, %v4309
  %v4311 = vpop.f32.mrf.mxu0
  %v4312 = vadd.f32 0.0, %v4311
  %v4313 = vpop.f32.mrf.mxu0
  %v4314 = vadd.f32 0.0, %v4313
  %v4315 = vpop.f32.mrf.mxu0
  %v4316 = vadd.f32 0.0, %v4315
  %4317 = vdwg.mxu0
  %v4318 = vadd.f32 %v2843, %v4267
  %v4319 = vadd.f32 %v2845, %v4269
  %v4320 = vadd.f32 %v2886, %v4310
  %v4321 = vadd.f32 %v2888, %v4312
  %v4322 = vadd.f32 %v2847, %v4271
  %v4323 = vadd.f32 %v2849, %v4273
  %v4324 = vadd.f32 %v2890, %v4314
  %v4325 = vadd.f32 %v2892, %v4316
  %v4326 = vld [vmem:[%s2] sm:$0xff]
  %v4327 = vld [vmem:[%s2 + $0x8] sm:$0xff]
  %4329 = vset.pattern.permute.xlu0 0
  %4330 = vperm.xlu0 %4329, %v4326
  %v4331 = vpop.permute.xlu0 %4330
  %4334 = vset.pattern.permute.xlu0 0
  %4335 = vperm.xlu0 %4334, %v4327
  %v4336 = vpop.permute.xlu0 %4335
  %v4338 = vadd.f32 %v4318, %v4331
  %v4339 = vadd.f32 %v4319, %v4331
  %v4340 = vadd.f32 %v4320, %v4331
  %v4341 = vadd.f32 %v4321, %v4331
  %v4342 = vadd.f32 %v4322, %v4336
  %v4343 = vadd.f32 %v4323, %v4336
  %v4344 = vadd.f32 %v4324, %v4336
  %v4345 = vadd.f32 %v4325, %v4336
  %vm4346 = vcmp.gt.f32.partialorder %v4338, 0.0
  %vm4347 = vcmp.gt.f32.partialorder %v4339, 0.0
  %vm4348 = vcmp.gt.f32.partialorder %v4340, 0.0
  %vm4349 = vcmp.gt.f32.partialorder %v4341, 0.0
  %vm4350 = vcmp.gt.f32.partialorder %v4342, 0.0
  %vm4351 = vcmp.gt.f32.partialorder %v4343, 0.0
  %vm4352 = vcmp.gt.f32.partialorder %v4344, 0.0
  %vm4353 = vcmp.gt.f32.partialorder %v4345, 0.0
  %v4354 = vstv %s36
  %v4355 = vmul.f32 %v4354, %v4338
  %v4356 = vmul.f32 %v4354, %v4339
  %v4357 = vmul.f32 %v4354, %v4340
  %v4358 = vmul.f32 %v4354, %v4341
  %v4359 = vmul.f32 %v4354, %v4342
  %v4360 = vmul.f32 %v4354, %v4343
  %v4361 = vmul.f32 %v4354, %v4344
  %v4362 = vmul.f32 %v4354, %v4345
  %v4363 = vsel %vm4346, %v4338, %v4355
  %v4364 = vsel %vm4347, %v4339, %v4356
  %v4365 = vsel %vm4348, %v4340, %v4357
  %v4366 = vsel %vm4349, %v4341, %v4358
  %v4367 = vsel %vm4350, %v4342, %v4359
  %v4368 = vsel %vm4351, %v4343, %v4360
  %v4369 = vsel %vm4352, %v4344, %v4361
  %v4370 = vsel %vm4353, %v4345, %v4362
  %v4371 = vpack.c.bf16 %v4367, %v4363
  %v4372 = vpack.c.bf16 %v4368, %v4364
  %v4375 = vunpack.c.l.b16 %v4371
  %v4376 = vunpack.c.l.b16 %v4372
  %v4377 = vunpack.c.h.b16 %v4371
  %v4378 = vunpack.c.h.b16 %v4372
  %v4379 = vpack.c.b16 %v4376, %v4375
  %v4380 = vpack.c.b16 %v4378, %v4377
  %4383 = vst [vmem:[#allocation2 + $0x4] sm:$0xff] %v4379
  %4384 = vst [vmem:[#allocation2 + $0x14] sm:$0xff] %v4380
  %v4385 = vpack.c.bf16 %v4369, %v4365
  %v4386 = vpack.c.bf16 %v4370, %v4366
  %v4389 = vunpack.c.l.b16 %v4385
  %v4390 = vunpack.c.l.b16 %v4386
  %v4391 = vunpack.c.h.b16 %v4385
  %v4392 = vunpack.c.h.b16 %v4386
  %v4393 = vpack.c.b16 %v4390, %v4389
  %v4394 = vpack.c.b16 %v4392, %v4391
  %4397 = vst [vmem:[#allocation3 + $0x4] sm:$0xff] %v4393
  %4398 = vst [vmem:[#allocation3 + $0x14] sm:$0xff] %v4394
  %v4399 = vld [vmem:[%s6] ss:$8 sm:$0x3]
  %v4400 = vld [vmem:[#allocation2] sm:$0xff]
  %v4401 = vld [vmem:[#allocation2 + $0x8] sm:$0xf]
  %v4402 = vld [vmem:[#allocation2 + $0x10] sm:$0xff]
  %v4403 = vld [vmem:[#allocation2 + $0x18] sm:$0xf]
  %v4404 = vunpack.c.l.bf16 %v4400
  %v4405 = vunpack.c.h.bf16 %v4400
  %v4406 = vunpack.c.l.bf16 %v4401
  %v4407 = vunpack.c.l.bf16 %v4402
  %v4408 = vunpack.c.h.bf16 %v4402
  %v4409 = vunpack.c.l.bf16 %v4403
  %v4411 = vlaneseq
  %v4412 = vshrl.u32 %v4411, 7
  %v4413 = vsub.s32 0, %v4412
  %v4414 = vrot.slane %v4399, %v4413
  %v4415 = vlaneseq
  %v4416 = vshrl.u32 %v4415, 7
  %v4417 = vsub.s32 1, %v4416
  %v4418 = vrot.slane %v4399, %v4417
  %4419 = vrot.lane.b32.xlu0 %v4414, 55
  %v4420 = vpop.permute.xlu0 %4419
  %4421 = vrot.lane.b32.xlu0 %v4418, 55
  %v4422 = vpop.permute.xlu0 %4421
  %v4423 = vsel %vm98, %v4420, %v4422
  %v4427 = vmul.f32 %v4404, %v4420
  %v4428 = vmul.f32 %v4405, %v4423
  %v4429 = vmul.f32 %v4406, %v4422
  %v4430 = vmul.f32 %v4407, %v4420
  %v4431 = vmul.f32 %v4408, %v4423
  %v4432 = vmul.f32 %v4409, %v4422
  %v4433 = vpack.c.bf16 %v4430, %v4427
  %v4434 = vpack.c.bf16 %v4431, %v4428
  %v4435 = vpack.c.bf16 %v4432, %v4429
  %v4439 = vunpack.c.l.b16 %v4433
  %v4440 = vunpack.c.l.b16 %v4434
  %v4441 = vunpack.c.l.b16 %v4435
  %v4442 = vunpack.c.h.b16 %v4433
  %v4443 = vunpack.c.h.b16 %v4434
  %v4444 = vunpack.c.h.b16 %v4435
  %v4445 = vpack.c.b16 %v4440, %v4439
  %v4446 = vpack.c.b16 %v4441, %v4441
  %v4447 = vpack.c.b16 %v4443, %v4442
  %v4448 = vpack.c.b16 %v4444, %v4444
  %4449 = vrot.lane.b32.xlu0 %v4445, 73
  %v4450 = vpop.permute.xlu0 %4449
  %4451 = vrot.lane.b32.xlu0 %v4446, 73
  %v4452 = vpop.permute.xlu0 %4451
  %4453 = vrot.lane.b32.xlu0 %v4447, 73
  %v4454 = vpop.permute.xlu0 %4453
  %4455 = vrot.lane.b32.xlu0 %v4448, 73
  %v4456 = vpop.permute.xlu0 %4455
  %v4457 = vrot.slane %v4450, 4
  %v4458 = vrot.slane %v4452, 4
  %v4459 = vrot.slane %v4454, 4
  %v4460 = vrot.slane %v4456, 4
  %v4461 = vsel %vm137, %v4457, %v4458
  %v4462 = vsel %vm139, %v4450, %v4461
  %v4463 = vsel %vm137, %v4459, %v4460
  %v4464 = vsel %vm139, %v4454, %v4463
  %4467 = vst [vmem:[#allocation4] sm:$0xff] %v4462
  %4468 = vst [vmem:[#allocation4 + $0x10] sm:$0xff] %v4464
  %v4469 = vld [vmem:[#allocation3] sm:$0xff]
  %v4470 = vld [vmem:[#allocation3 + $0x8] sm:$0xf]
  %v4471 = vld [vmem:[#allocation3 + $0x10] sm:$0xff]
  %v4472 = vld [vmem:[#allocation3 + $0x18] sm:$0xf]
  %v4473 = vunpack.c.l.bf16 %v4469
  %v4474 = vunpack.c.h.bf16 %v4469
  %v4475 = vunpack.c.l.bf16 %v4470
  %v4476 = vunpack.c.l.bf16 %v4471
  %v4477 = vunpack.c.h.bf16 %v4471
  %v4478 = vunpack.c.l.bf16 %v4472
  %v4479 = vmul.f32 %v4473, %v4420
  %v4480 = vmul.f32 %v4474, %v4423
  %v4481 = vmul.f32 %v4475, %v4422
  %v4482 = vmul.f32 %v4476, %v4420
  %v4483 = vmul.f32 %v4477, %v4423
  %v4484 = vmul.f32 %v4478, %v4422
  %v4485 = vpack.c.bf16 %v4482, %v4479
  %v4486 = vpack.c.bf16 %v4483, %v4480
  %v4487 = vpack.c.bf16 %v4484, %v4481
  %v4491 = vunpack.c.l.b16 %v4485
  %v4492 = vunpack.c.l.b16 %v4486
  %v4493 = vunpack.c.l.b16 %v4487
  %v4494 = vunpack.c.h.b16 %v4485
  %v4495 = vunpack.c.h.b16 %v4486
  %v4496 = vunpack.c.h.b16 %v4487
  %v4497 = vpack.c.b16 %v4492, %v4491
  %v4498 = vpack.c.b16 %v4493, %v4493
  %v4499 = vpack.c.b16 %v4495, %v4494
  %v4500 = vpack.c.b16 %v4496, %v4496
  %4501 = vrot.lane.b32.xlu0 %v4497, 73
  %v4502 = vpop.permute.xlu0 %4501
  %4503 = vrot.lane.b32.xlu0 %v4498, 73
  %v4504 = vpop.permute.xlu0 %4503
  %4505 = vrot.lane.b32.xlu0 %v4499, 73
  %v4506 = vpop.permute.xlu0 %4505
  %4507 = vrot.lane.b32.xlu0 %v4500, 73
  %v4508 = vpop.permute.xlu0 %4507
  %v4509 = vrot.slane %v4502, 4
  %v4510 = vrot.slane %v4504, 4
  %v4511 = vrot.slane %v4506, 4
  %v4512 = vrot.slane %v4508, 4
  %v4513 = vsel %vm137, %v4509, %v4510
  %v4514 = vsel %vm139, %v4502, %v4513
  %v4515 = vsel %vm137, %v4511, %v4512
  %v4516 = vsel %vm139, %v4506, %v4515
  %4519 = vst [vmem:[#allocation4 + $0x8] sm:$0xff] %v4514
  %4520 = vst [vmem:[#allocation4 + $0x18] sm:$0xff] %v4516
  %v4521 = vld [vmem:[%s199] ss:$8 sm:$0x3]
  %v4522 = vld [vmem:[#allocation2] sm:$0xff]
  %v4523 = vld [vmem:[#allocation2 + $0x8] sm:$0xf]
  %v4524 = vld [vmem:[#allocation2 + $0x10] sm:$0xff]
  %v4525 = vld [vmem:[#allocation2 + $0x18] sm:$0xf]
  %v4526 = vunpack.c.l.bf16 %v4522
  %v4527 = vunpack.c.h.bf16 %v4522
  %v4528 = vunpack.c.l.bf16 %v4523
  %v4529 = vunpack.c.l.bf16 %v4524
  %v4530 = vunpack.c.h.bf16 %v4524
  %v4531 = vunpack.c.l.bf16 %v4525
  %v4533 = vlaneseq
  %v4534 = vshrl.u32 %v4533, 7
  %v4535 = vsub.s32 0, %v4534
  %v4536 = vrot.slane %v4521, %v4535
  %v4537 = vlaneseq
  %v4538 = vshrl.u32 %v4537, 7
  %v4539 = vsub.s32 1, %v4538
  %v4540 = vrot.slane %v4521, %v4539
  %4541 = vrot.lane.b32.xlu0 %v4536, 56
  %v4542 = vpop.permute.xlu0 %4541
  %4543 = vrot.lane.b32.xlu0 %v4540, 56
  %v4544 = vpop.permute.xlu0 %4543
  %v4545 = vsel %vm224, %v4542, %v4544
  %v4549 = vmul.f32 %v4526, %v4542
  %v4550 = vmul.f32 %v4527, %v4545
  %v4551 = vmul.f32 %v4528, %v4544
  %v4552 = vmul.f32 %v4529, %v4542
  %v4553 = vmul.f32 %v4530, %v4545
  %v4554 = vmul.f32 %v4531, %v4544
  %v4555 = vpack.c.bf16 %v4552, %v4549
  %v4556 = vpack.c.bf16 %v4553, %v4550
  %v4557 = vpack.c.bf16 %v4554, %v4551
  %v4561 = vunpack.c.l.b16 %v4555
  %v4562 = vunpack.c.l.b16 %v4556
  %v4563 = vunpack.c.l.b16 %v4557
  %v4564 = vunpack.c.h.b16 %v4555
  %v4565 = vunpack.c.h.b16 %v4556
  %v4566 = vunpack.c.h.b16 %v4557
  %v4567 = vpack.c.b16 %v4562, %v4561
  %v4568 = vpack.c.b16 %v4563, %v4563
  %v4569 = vpack.c.b16 %v4565, %v4564
  %v4570 = vpack.c.b16 %v4566, %v4566
  %4571 = vrot.lane.b32.xlu0 %v4567, 72
  %v4572 = vpop.permute.xlu0 %4571
  %4573 = vrot.lane.b32.xlu0 %v4568, 72
  %v4574 = vpop.permute.xlu0 %4573
  %4575 = vrot.lane.b32.xlu0 %v4569, 72
  %v4576 = vpop.permute.xlu0 %4575
  %4577 = vrot.lane.b32.xlu0 %v4570, 72
  %v4578 = vpop.permute.xlu0 %4577
  %v4579 = vrot.slane %v4572, 4
  %v4580 = vrot.slane %v4574, 4
  %v4581 = vrot.slane %v4576, 4
  %v4582 = vrot.slane %v4578, 4
  %v4583 = vsel %vm137, %v4579, %v4580
  %v4584 = vsel %vm264, %v4572, %v4583
  %v4585 = vsel %vm137, %v4581, %v4582
  %v4586 = vsel %vm264, %v4576, %v4585
  %4589 = vst [vmem:[#allocation4 + $0x20] sm:$0xff] %v4584
  %4590 = vst [vmem:[#allocation4 + $0x30] sm:$0xff] %v4586
  %v4591 = vld [vmem:[#allocation3] sm:$0xff]
  %v4592 = vld [vmem:[#allocation3 + $0x8] sm:$0xf]
  %v4593 = vld [vmem:[#allocation3 + $0x10] sm:$0xff]
  %v4594 = vld [vmem:[#allocation3 + $0x18] sm:$0xf]
  %v4595 = vunpack.c.l.bf16 %v4591
  %v4596 = vunpack.c.h.bf16 %v4591
  %v4597 = vunpack.c.l.bf16 %v4592
  %v4598 = vunpack.c.l.bf16 %v4593
  %v4599 = vunpack.c.h.bf16 %v4593
  %v4600 = vunpack.c.l.bf16 %v4594
  %v4601 = vmul.f32 %v4595, %v4542
  %v4602 = vmul.f32 %v4596, %v4545
  %v4603 = vmul.f32 %v4597, %v4544
  %v4604 = vmul.f32 %v4598, %v4542
  %v4605 = vmul.f32 %v4599, %v4545
  %v4606 = vmul.f32 %v4600, %v4544
  %v4607 = vpack.c.bf16 %v4604, %v4601
  %v4608 = vpack.c.bf16 %v4605, %v4602
  %v4609 = vpack.c.bf16 %v4606, %v4603
  %v4613 = vunpack.c.l.b16 %v4607
  %v4614 = vunpack.c.l.b16 %v4608
  %v4615 = vunpack.c.l.b16 %v4609
  %v4616 = vunpack.c.h.b16 %v4607
  %v4617 = vunpack.c.h.b16 %v4608
  %v4618 = vunpack.c.h.b16 %v4609
  %v4619 = vpack.c.b16 %v4614, %v4613
  %v4620 = vpack.c.b16 %v4615, %v4615
  %v4621 = vpack.c.b16 %v4617, %v4616
  %v4622 = vpack.c.b16 %v4618, %v4618
  %4623 = vrot.lane.b32.xlu0 %v4619, 72
  %v4624 = vpop.permute.xlu0 %4623
  %4625 = vrot.lane.b32.xlu0 %v4620, 72
  %v4626 = vpop.permute.xlu0 %4625
  %4627 = vrot.lane.b32.xlu0 %v4621, 72
  %v4628 = vpop.permute.xlu0 %4627
  %4629 = vrot.lane.b32.xlu0 %v4622, 72
  %v4630 = vpop.permute.xlu0 %4629
  %v4631 = vrot.slane %v4624, 4
  %v4632 = vrot.slane %v4626, 4
  %v4633 = vrot.slane %v4628, 4
  %v4634 = vrot.slane %v4630, 4
  %v4635 = vsel %vm137, %v4631, %v4632
  %v4636 = vsel %vm264, %v4624, %v4635
  %v4637 = vsel %vm137, %v4633, %v4634
  %v4638 = vsel %vm264, %v4628, %v4637
  %4641 = vst [vmem:[#allocation4 + $0x28] sm:$0xff] %v4636
  %4642 = vst [vmem:[#allocation4 + $0x38] sm:$0xff] %v4638
  %v4643 = vld [vmem:[%s324] ss:$8 sm:$0x3]
  %v4644 = vld [vmem:[#allocation2] sm:$0xff]
  %v4645 = vld [vmem:[#allocation2 + $0x8] sm:$0xf]
  %v4646 = vld [vmem:[#allocation2 + $0x10] sm:$0xff]
  %v4647 = vld [vmem:[#allocation2 + $0x18] sm:$0xf]
  %v4648 = vunpack.c.l.bf16 %v4644
  %v4649 = vunpack.c.h.bf16 %v4644
  %v4650 = vunpack.c.l.bf16 %v4645
  %v4651 = vunpack.c.l.bf16 %v4646
  %v4652 = vunpack.c.h.bf16 %v4646
  %v4653 = vunpack.c.l.bf16 %v4647
  %v4655 = vlaneseq
  %v4656 = vshrl.u32 %v4655, 7
  %v4657 = vsub.s32 0, %v4656
  %v4658 = vrot.slane %v4643, %v4657
  %v4659 = vlaneseq
  %v4660 = vshrl.u32 %v4659, 7
  %v4661 = vsub.s32 1, %v4660
  %v4662 = vrot.slane %v4643, %v4661
  %4663 = vrot.lane.b32.xlu0 %v4658, 57
  %v4664 = vpop.permute.xlu0 %4663
  %4665 = vrot.lane.b32.xlu0 %v4662, 57
  %v4666 = vpop.permute.xlu0 %4665
  %v4667 = vsel %vm349, %v4664, %v4666
  %v4671 = vmul.f32 %v4648, %v4664
  %v4672 = vmul.f32 %v4649, %v4667
  %v4673 = vmul.f32 %v4650, %v4666
  %v4674 = vmul.f32 %v4651, %v4664
  %v4675 = vmul.f32 %v4652, %v4667
  %v4676 = vmul.f32 %v4653, %v4666
  %v4677 = vpack.c.bf16 %v4674, %v4671
  %v4678 = vpack.c.bf16 %v4675, %v4672
  %v4679 = vpack.c.bf16 %v4676, %v4673
  %v4683 = vunpack.c.l.b16 %v4677
  %v4684 = vunpack.c.l.b16 %v4678
  %v4685 = vunpack.c.l.b16 %v4679
  %v4686 = vunpack.c.h.b16 %v4677
  %v4687 = vunpack.c.h.b16 %v4678
  %v4688 = vunpack.c.h.b16 %v4679
  %v4689 = vpack.c.b16 %v4684, %v4683
  %v4690 = vpack.c.b16 %v4685, %v4685
  %v4691 = vpack.c.b16 %v4687, %v4686
  %v4692 = vpack.c.b16 %v4688, %v4688
  %4693 = vrot.lane.b32.xlu0 %v4689, 71
  %v4694 = vpop.permute.xlu0 %4693
  %4695 = vrot.lane.b32.xlu0 %v4690, 71
  %v4696 = vpop.permute.xlu0 %4695
  %4697 = vrot.lane.b32.xlu0 %v4691, 71
  %v4698 = vpop.permute.xlu0 %4697
  %4699 = vrot.lane.b32.xlu0 %v4692, 71
  %v4700 = vpop.permute.xlu0 %4699
  %v4701 = vrot.slane %v4694, 4
  %v4702 = vrot.slane %v4696, 4
  %v4703 = vrot.slane %v4698, 4
  %v4704 = vrot.slane %v4700, 4
  %v4705 = vsel %vm137, %v4701, %v4702
  %v4706 = vsel %vm389, %v4694, %v4705
  %v4707 = vsel %vm137, %v4703, %v4704
  %v4708 = vsel %vm389, %v4698, %v4707
  %4711 = vst [vmem:[#allocation4 + $0x40] sm:$0xff] %v4706
  %4712 = vst [vmem:[#allocation4 + $0x50] sm:$0xff] %v4708
  %v4713 = vld [vmem:[#allocation3] sm:$0xff]
  %v4714 = vld [vmem:[#allocation3 + $0x8] sm:$0xf]
  %v4715 = vld [vmem:[#allocation3 + $0x10] sm:$0xff]
  %v4716 = vld [vmem:[#allocation3 + $0x18] sm:$0xf]
  %v4717 = vunpack.c.l.bf16 %v4713
  %v4718 = vunpack.c.h.bf16 %v4713
  %v4719 = vunpack.c.l.bf16 %v4714
  %v4720 = vunpack.c.l.bf16 %v4715
  %v4721 = vunpack.c.h.bf16 %v4715
  %v4722 = vunpack.c.l.bf16 %v4716
  %v4723 = vmul.f32 %v4717, %v4664
  %v4724 = vmul.f32 %v4718, %v4667
  %v4725 = vmul.f32 %v4719, %v4666
  %v4726 = vmul.f32 %v4720, %v4664
  %v4727 = vmul.f32 %v4721, %v4667
  %v4728 = vmul.f32 %v4722, %v4666
  %v4729 = vpack.c.bf16 %v4726, %v4723
  %v4730 = vpack.c.bf16 %v4727, %v4724
  %v4731 = vpack.c.bf16 %v4728, %v4725
  %v4735 = vunpack.c.l.b16 %v4729
  %v4736 = vunpack.c.l.b16 %v4730
  %v4737 = vunpack.c.l.b16 %v4731
  %v4738 = vunpack.c.h.b16 %v4729
  %v4739 = vunpack.c.h.b16 %v4730
  %v4740 = vunpack.c.h.b16 %v4731
  %v4741 = vpack.c.b16 %v4736, %v4735
  %v4742 = vpack.c.b16 %v4737, %v4737
  %v4743 = vpack.c.b16 %v4739, %v4738
  %v4744 = vpack.c.b16 %v4740, %v4740
  %4745 = vrot.lane.b32.xlu0 %v4741, 71
  %v4746 = vpop.permute.xlu0 %4745
  %4747 = vrot.lane.b32.xlu0 %v4742, 71
  %v4748 = vpop.permute.xlu0 %4747
  %4749 = vrot.lane.b32.xlu0 %v4743, 71
  %v4750 = vpop.permute.xlu0 %4749
  %4751 = vrot.lane.b32.xlu0 %v4744, 71
  %v4752 = vpop.permute.xlu0 %4751
  %v4753 = vrot.slane %v4746, 4
  %v4754 = vrot.slane %v4748, 4
  %v4755 = vrot.slane %v4750, 4
  %v4756 = vrot.slane %v4752, 4
  %v4757 = vsel %vm137, %v4753, %v4754
  %v4758 = vsel %vm389, %v4746, %v4757
  %v4759 = vsel %vm137, %v4755, %v4756
  %v4760 = vsel %vm389, %v4750, %v4759
  %4763 = vst [vmem:[#allocation4 + $0x48] sm:$0xff] %v4758
  %4764 = vst [vmem:[#allocation4 + $0x58] sm:$0xff] %v4760
  %v4765 = vld [vmem:[%s449] ss:$8 sm:$0x3]
  %v4766 = vld [vmem:[#allocation2] sm:$0xff]
  %v4767 = vld [vmem:[#allocation2 + $0x8] sm:$0xf]
  %v4768 = vld [vmem:[#allocation2 + $0x10] sm:$0xff]
  %v4769 = vld [vmem:[#allocation2 + $0x18] sm:$0xf]
  %v4770 = vunpack.c.l.bf16 %v4766
  %v4771 = vunpack.c.h.bf16 %v4766
  %v4772 = vunpack.c.l.bf16 %v4767
  %v4773 = vunpack.c.l.bf16 %v4768
  %v4774 = vunpack.c.h.bf16 %v4768
  %v4775 = vunpack.c.l.bf16 %v4769
  %v4777 = vlaneseq
  %v4778 = vshrl.u32 %v4777, 7
  %v4779 = vsub.s32 0, %v4778
  %v4780 = vrot.slane %v4765, %v4779
  %v4781 = vlaneseq
  %v4782 = vshrl.u32 %v4781, 7
  %v4783 = vsub.s32 1, %v4782
  %v4784 = vrot.slane %v4765, %v4783
  %4785 = vrot.lane.b32.xlu0 %v4780, 63
  %v4786 = vpop.permute.xlu0 %4785
  %4787 = vrot.lane.b32.xlu0 %v4784, 63
  %v4788 = vpop.permute.xlu0 %4787
  %v4789 = vsel %vm474, %v4786, %v4788
  %v4793 = vmul.f32 %v4770, %v4786
  %v4794 = vmul.f32 %v4771, %v4789
  %v4795 = vmul.f32 %v4772, %v4788
  %v4796 = vmul.f32 %v4773, %v4786
  %v4797 = vmul.f32 %v4774, %v4789
  %v4798 = vmul.f32 %v4775, %v4788
  %v4799 = vpack.c.bf16 %v4796, %v4793
  %v4800 = vpack.c.bf16 %v4797, %v4794
  %v4801 = vpack.c.bf16 %v4798, %v4795
  %v4805 = vunpack.c.l.b16 %v4799
  %v4806 = vunpack.c.l.b16 %v4800
  %v4807 = vunpack.c.l.b16 %v4801
  %v4808 = vunpack.c.h.b16 %v4799
  %v4809 = vunpack.c.h.b16 %v4800
  %v4810 = vunpack.c.h.b16 %v4801
  %v4811 = vpack.c.b16 %v4806, %v4805
  %v4812 = vpack.c.b16 %v4807, %v4807
  %v4813 = vpack.c.b16 %v4809, %v4808
  %v4814 = vpack.c.b16 %v4810, %v4810
  %4815 = vrot.lane.b32.xlu0 %v4811, 65
  %v4816 = vpop.permute.xlu0 %4815
  %4817 = vrot.lane.b32.xlu0 %v4812, 65
  %v4818 = vpop.permute.xlu0 %4817
  %4819 = vrot.lane.b32.xlu0 %v4813, 65
  %v4820 = vpop.permute.xlu0 %4819
  %4821 = vrot.lane.b32.xlu0 %v4814, 65
  %v4822 = vpop.permute.xlu0 %4821
  %v4823 = vrot.slane %v4816, 4
  %v4824 = vrot.slane %v4818, 4
  %v4825 = vrot.slane %v4820, 4
  %v4826 = vrot.slane %v4822, 4
  %v4827 = vsel %vm137, %v4823, %v4824
  %v4828 = vsel %vm514, %v4816, %v4827
  %v4829 = vsel %vm137, %v4825, %v4826
  %v4830 = vsel %vm514, %v4820, %v4829
  %4833 = vst [vmem:[#allocation4 + $0x60] sm:$0xff] %v4828
  %4834 = vst [vmem:[#allocation4 + $0x70] sm:$0xff] %v4830
  %v4835 = vld [vmem:[#allocation3] sm:$0xff]
  %v4836 = vld [vmem:[#allocation3 + $0x8] sm:$0xf]
  %v4837 = vld [vmem:[#allocation3 + $0x10] sm:$0xff]
  %v4838 = vld [vmem:[#allocation3 + $0x18] sm:$0xf]
  %v4839 = vunpack.c.l.bf16 %v4835
  %v4840 = vunpack.c.h.bf16 %v4835
  %v4841 = vunpack.c.l.bf16 %v4836
  %v4842 = vunpack.c.l.bf16 %v4837
  %v4843 = vunpack.c.h.bf16 %v4837
  %v4844 = vunpack.c.l.bf16 %v4838
  %v4845 = vmul.f32 %v4839, %v4786
  %v4846 = vmul.f32 %v4840, %v4789
  %v4847 = vmul.f32 %v4841, %v4788
  %v4848 = vmul.f32 %v4842, %v4786
  %v4849 = vmul.f32 %v4843, %v4789
  %v4850 = vmul.f32 %v4844, %v4788
  %v4851 = vpack.c.bf16 %v4848, %v4845
  %v4852 = vpack.c.bf16 %v4849, %v4846
  %v4853 = vpack.c.bf16 %v4850, %v4847
  %v4857 = vunpack.c.l.b16 %v4851
  %v4858 = vunpack.c.l.b16 %v4852
  %v4859 = vunpack.c.l.b16 %v4853
  %v4860 = vunpack.c.h.b16 %v4851
  %v4861 = vunpack.c.h.b16 %v4852
  %v4862 = vunpack.c.h.b16 %v4853
  %v4863 = vpack.c.b16 %v4858, %v4857
  %v4864 = vpack.c.b16 %v4859, %v4859
  %v4865 = vpack.c.b16 %v4861, %v4860
  %v4866 = vpack.c.b16 %v4862, %v4862
  %4867 = vrot.lane.b32.xlu0 %v4863, 65
  %v4868 = vpop.permute.xlu0 %4867
  %4869 = vrot.lane.b32.xlu0 %v4864, 65
  %v4870 = vpop.permute.xlu0 %4869
  %4871 = vrot.lane.b32.xlu0 %v4865, 65
  %v4872 = vpop.permute.xlu0 %4871
  %4873 = vrot.lane.b32.xlu0 %v4866, 65
  %v4874 = vpop.permute.xlu0 %4873
  %v4875 = vrot.slane %v4868, 4
  %v4876 = vrot.slane %v4870, 4
  %v4877 = vrot.slane %v4872, 4
  %v4878 = vrot.slane %v4874, 4
  %v4879 = vsel %vm137, %v4875, %v4876
  %v4880 = vsel %vm514, %v4868, %v4879
  %v4881 = vsel %vm137, %v4877, %v4878
  %v4882 = vsel %vm514, %v4872, %v4881
  %4885 = vst [vmem:[#allocation4 + $0x68] sm:$0xff] %v4880
  %4886 = vst [vmem:[#allocation4 + $0x78] sm:$0xff] %v4882
  %v4887 = vld [vmem:[%s574] ss:$8 sm:$0x3]
  %v4888 = vld [vmem:[#allocation2] sm:$0xff]
  %v4889 = vld [vmem:[#allocation2 + $0x8] sm:$0xf]
  %v4890 = vld [vmem:[#allocation2 + $0x10] sm:$0xff]
  %v4891 = vld [vmem:[#allocation2 + $0x18] sm:$0xf]
  %v4892 = vunpack.c.l.bf16 %v4888
  %v4893 = vunpack.c.h.bf16 %v4888
  %v4894 = vunpack.c.l.bf16 %v4889
  %v4895 = vunpack.c.l.bf16 %v4890
  %v4896 = vunpack.c.h.bf16 %v4890
  %v4897 = vunpack.c.l.bf16 %v4891
  %v4899 = vlaneseq
  %v4900 = vshrl.u32 %v4899, 7
  %v4901 = vsub.s32 0, %v4900
  %v4902 = vrot.slane %v4887, %v4901
  %v4903 = vlaneseq
  %v4904 = vshrl.u32 %v4903, 7
  %v4905 = vsub.s32 1, %v4904
  %v4906 = vrot.slane %v4887, %v4905
  %4907 = vrot.lane.b32.xlu0 %v4902, 64
  %v4908 = vpop.permute.xlu0 %4907
  %4909 = vrot.lane.b32.xlu0 %v4906, 64
  %v4910 = vpop.permute.xlu0 %4909
  %v4911 = vsel %vm599, %v4908, %v4910
  %v4915 = vmul.f32 %v4892, %v4908
  %v4916 = vmul.f32 %v4893, %v4911
  %v4917 = vmul.f32 %v4894, %v4910
  %v4918 = vmul.f32 %v4895, %v4908
  %v4919 = vmul.f32 %v4896, %v4911
  %v4920 = vmul.f32 %v4897, %v4910
  %v4921 = vpack.c.bf16 %v4918, %v4915
  %v4922 = vpack.c.bf16 %v4919, %v4916
  %v4923 = vpack.c.bf16 %v4920, %v4917
  %v4927 = vunpack.c.l.b16 %v4921
  %v4928 = vunpack.c.l.b16 %v4922
  %v4929 = vunpack.c.l.b16 %v4923
  %v4930 = vunpack.c.h.b16 %v4921
  %v4931 = vunpack.c.h.b16 %v4922
  %v4932 = vunpack.c.h.b16 %v4923
  %v4933 = vpack.c.b16 %v4928, %v4927
  %v4934 = vpack.c.b16 %v4929, %v4929
  %v4935 = vpack.c.b16 %v4931, %v4930
  %v4936 = vpack.c.b16 %v4932, %v4932
  %4937 = vrot.lane.b32.xlu0 %v4933, 64
  %v4938 = vpop.permute.xlu0 %4937
  %4939 = vrot.lane.b32.xlu0 %v4934, 64
  %v4940 = vpop.permute.xlu0 %4939
  %4941 = vrot.lane.b32.xlu0 %v4935, 64
  %v4942 = vpop.permute.xlu0 %4941
  %4943 = vrot.lane.b32.xlu0 %v4936, 64
  %v4944 = vpop.permute.xlu0 %4943
  %v4945 = vrot.slane %v4938, 4
  %v4946 = vrot.slane %v4940, 4
  %v4947 = vrot.slane %v4942, 4
  %v4948 = vrot.slane %v4944, 4
  %v4949 = vsel %vm137, %v4945, %v4946
  %v4950 = vsel %vm639, %v4938, %v4949
  %v4951 = vsel %vm137, %v4947, %v4948
  %v4952 = vsel %vm639, %v4942, %v4951
  %4955 = vst [vmem:[#allocation4 + $0x80] sm:$0xff] %v4950
  %4956 = vst [vmem:[#allocation4 + $0x90] sm:$0xff] %v4952
  %v4957 = vld [vmem:[#allocation3] sm:$0xff]
  %v4958 = vld [vmem:[#allocation3 + $0x8] sm:$0xf]
  %v4959 = vld [vmem:[#allocation3 + $0x10] sm:$0xff]
  %v4960 = vld [vmem:[#allocation3 + $0x18] sm:$0xf]
  %v4961 = vunpack.c.l.bf16 %v4957
  %v4962 = vunpack.c.h.bf16 %v4957
  %v4963 = vunpack.c.l.bf16 %v4958
  %v4964 = vunpack.c.l.bf16 %v4959
  %v4965 = vunpack.c.h.bf16 %v4959
  %v4966 = vunpack.c.l.bf16 %v4960
  %v4967 = vmul.f32 %v4961, %v4908
  %v4968 = vmul.f32 %v4962, %v4911
  %v4969 = vmul.f32 %v4963, %v4910
  %v4970 = vmul.f32 %v4964, %v4908
  %v4971 = vmul.f32 %v4965, %v4911
  %v4972 = vmul.f32 %v4966, %v4910
  %v4973 = vpack.c.bf16 %v4970, %v4967
  %v4974 = vpack.c.bf16 %v4971, %v4968
  %v4975 = vpack.c.bf16 %v4972, %v4969
  %v4979 = vunpack.c.l.b16 %v4973
  %v4980 = vunpack.c.l.b16 %v4974
  %v4981 = vunpack.c.l.b16 %v4975
  %v4982 = vunpack.c.h.b16 %v4973
  %v4983 = vunpack.c.h.b16 %v4974
  %v4984 = vunpack.c.h.b16 %v4975
  %v4985 = vpack.c.b16 %v4980, %v4979
  %v4986 = vpack.c.b16 %v4981, %v4981
  %v4987 = vpack.c.b16 %v4983, %v4982
  %v4988 = vpack.c.b16 %v4984, %v4984
  %4989 = vrot.lane.b32.xlu0 %v4985, 64
  %v4990 = vpop.permute.xlu0 %4989
  %4991 = vrot.lane.b32.xlu0 %v4986, 64
  %v4992 = vpop.permute.xlu0 %4991
  %4993 = vrot.lane.b32.xlu0 %v4987, 64
  %v4994 = vpop.permute.xlu0 %4993
  %4995 = vrot.lane.b32.xlu0 %v4988, 64
  %v4996 = vpop.permute.xlu0 %4995
  %v4997 = vrot.slane %v4990, 4
  %v4998 = vrot.slane %v4992, 4
  %v4999 = vrot.slane %v4994, 4
  %v5000 = vrot.slane %v4996, 4
  %v5001 = vsel %vm137, %v4997, %v4998
  %v5002 = vsel %vm639, %v4990, %v5001
  %v5003 = vsel %vm137, %v4999, %v5000
  %v5004 = vsel %vm639, %v4994, %v5003
  %5007 = vst [vmem:[#allocation4 + $0x88] sm:$0xff] %v5002
  %5008 = vst [vmem:[#allocation4 + $0x98] sm:$0xff] %v5004
  %v5009 = vld [vmem:[%s699] ss:$8 sm:$0x3]
  %v5010 = vld [vmem:[#allocation2] sm:$0xff]
  %v5011 = vld [vmem:[#allocation2 + $0x8] sm:$0xf]
  %v5012 = vld [vmem:[#allocation2 + $0x10] sm:$0xff]
  %v5013 = vld [vmem:[#allocation2 + $0x18] sm:$0xf]
  %v5014 = vunpack.c.l.bf16 %v5010
  %v5015 = vunpack.c.h.bf16 %v5010
  %v5016 = vunpack.c.l.bf16 %v5011
  %v5017 = vunpack.c.l.bf16 %v5012
  %v5018 = vunpack.c.h.bf16 %v5012
  %v5019 = vunpack.c.l.bf16 %v5013
  %v5021 = vlaneseq
  %v5022 = vshrl.u32 %v5021, 7
  %v5023 = vsub.s32 0, %v5022
  %v5024 = vrot.slane %v5009, %v5023
  %v5025 = vlaneseq
  %v5026 = vshrl.u32 %v5025, 7
  %v5027 = vsub.s32 1, %v5026
  %v5028 = vrot.slane %v5009, %v5027
  %5029 = vrot.lane.b32.xlu0 %v5024, 65
  %v5030 = vpop.permute.xlu0 %5029
  %5031 = vrot.lane.b32.xlu0 %v5028, 65
  %v5032 = vpop.permute.xlu0 %5031
  %v5033 = vsel %vm724, %v5030, %v5032
  %v5037 = vmul.f32 %v5014, %v5030
  %v5038 = vmul.f32 %v5015, %v5033
  %v5039 = vmul.f32 %v5016, %v5032
  %v5040 = vmul.f32 %v5017, %v5030
  %v5041 = vmul.f32 %v5018, %v5033
  %v5042 = vmul.f32 %v5019, %v5032
  %v5043 = vpack.c.bf16 %v5040, %v5037
  %v5044 = vpack.c.bf16 %v5041, %v5038
  %v5045 = vpack.c.bf16 %v5042, %v5039
  %v5049 = vunpack.c.l.b16 %v5043
  %v5050 = vunpack.c.l.b16 %v5044
  %v5051 = vunpack.c.l.b16 %v5045
  %v5052 = vunpack.c.h.b16 %v5043
  %v5053 = vunpack.c.h.b16 %v5044
  %v5054 = vunpack.c.h.b16 %v5045
  %v5055 = vpack.c.b16 %v5050, %v5049
  %v5056 = vpack.c.b16 %v5051, %v5051
  %v5057 = vpack.c.b16 %v5053, %v5052
  %v5058 = vpack.c.b16 %v5054, %v5054
  %5059 = vrot.lane.b32.xlu0 %v5055, 63
  %v5060 = vpop.permute.xlu0 %5059
  %5061 = vrot.lane.b32.xlu0 %v5056, 63
  %v5062 = vpop.permute.xlu0 %5061
  %5063 = vrot.lane.b32.xlu0 %v5057, 63
  %v5064 = vpop.permute.xlu0 %5063
  %5065 = vrot.lane.b32.xlu0 %v5058, 63
  %v5066 = vpop.permute.xlu0 %5065
  %v5067 = vrot.slane %v5060, 4
  %v5068 = vrot.slane %v5062, 4
  %v5069 = vrot.slane %v5064, 4
  %v5070 = vrot.slane %v5066, 4
  %v5071 = vsel %vm137, %v5067, %v5068
  %v5072 = vsel %vm764, %v5060, %v5071
  %v5073 = vsel %vm137, %v5069, %v5070
  %v5074 = vsel %vm764, %v5064, %v5073
  %5077 = vst [vmem:[#allocation4 + $0xa0] sm:$0xff] %v5072
  %5078 = vst [vmem:[#allocation4 + $0xb0] sm:$0xff] %v5074
  %v5079 = vld [vmem:[#allocation3] sm:$0xff]
  %v5080 = vld [vmem:[#allocation3 + $0x8] sm:$0xf]
  %v5081 = vld [vmem:[#allocation3 + $0x10] sm:$0xff]
  %v5082 = vld [vmem:[#allocation3 + $0x18] sm:$0xf]
  %v5083 = vunpack.c.l.bf16 %v5079
  %v5084 = vunpack.c.h.bf16 %v5079
  %v5085 = vunpack.c.l.bf16 %v5080
  %v5086 = vunpack.c.l.bf16 %v5081
  %v5087 = vunpack.c.h.bf16 %v5081
  %v5088 = vunpack.c.l.bf16 %v5082
  %v5089 = vmul.f32 %v5083, %v5030
  %v5090 = vmul.f32 %v5084, %v5033
  %v5091 = vmul.f32 %v5085, %v5032
  %v5092 = vmul.f32 %v5086, %v5030
  %v5093 = vmul.f32 %v5087, %v5033
  %v5094 = vmul.f32 %v5088, %v5032
  %v5095 = vpack.c.bf16 %v5092, %v5089
  %v5096 = vpack.c.bf16 %v5093, %v5090
  %v5097 = vpack.c.bf16 %v5094, %v5091
  %v5101 = vunpack.c.l.b16 %v5095
  %v5102 = vunpack.c.l.b16 %v5096
  %v5103 = vunpack.c.l.b16 %v5097
  %v5104 = vunpack.c.h.b16 %v5095
  %v5105 = vunpack.c.h.b16 %v5096
  %v5106 = vunpack.c.h.b16 %v5097
  %v5107 = vpack.c.b16 %v5102, %v5101
  %v5108 = vpack.c.b16 %v5103, %v5103
  %v5109 = vpack.c.b16 %v5105, %v5104
  %v5110 = vpack.c.b16 %v5106, %v5106
  %5111 = vrot.lane.b32.xlu0 %v5107, 63
  %v5112 = vpop.permute.xlu0 %5111
  %5113 = vrot.lane.b32.xlu0 %v5108, 63
  %v5114 = vpop.permute.xlu0 %5113
  %5115 = vrot.lane.b32.xlu0 %v5109, 63
  %v5116 = vpop.permute.xlu0 %5115
  %5117 = vrot.lane.b32.xlu0 %v5110, 63
  %v5118 = vpop.permute.xlu0 %5117
  %v5119 = vrot.slane %v5112, 4
  %v5120 = vrot.slane %v5114, 4
  %v5121 = vrot.slane %v5116, 4
  %v5122 = vrot.slane %v5118, 4
  %v5123 = vsel %vm137, %v5119, %v5120
  %v5124 = vsel %vm764, %v5112, %v5123
  %v5125 = vsel %vm137, %v5121, %v5122
  %v5126 = vsel %vm764, %v5116, %v5125
  %5129 = vst [vmem:[#allocation4 + $0xa8] sm:$0xff] %v5124
  %5130 = vst [vmem:[#allocation4 + $0xb8] sm:$0xff] %v5126
  %v5131 = vld [vmem:[%s824] ss:$8 sm:$0x3]
  %v5132 = vld [vmem:[#allocation2] sm:$0xff]
  %v5133 = vld [vmem:[#allocation2 + $0x8] sm:$0xf]
  %v5134 = vld [vmem:[#allocation2 + $0x10] sm:$0xff]
  %v5135 = vld [vmem:[#allocation2 + $0x18] sm:$0xf]
  %v5136 = vunpack.c.l.bf16 %v5132
  %v5137 = vunpack.c.h.bf16 %v5132
  %v5138 = vunpack.c.l.bf16 %v5133
  %v5139 = vunpack.c.l.bf16 %v5134
  %v5140 = vunpack.c.h.bf16 %v5134
  %v5141 = vunpack.c.l.bf16 %v5135
  %v5143 = vlaneseq
  %v5144 = vshrl.u32 %v5143, 7
  %v5145 = vsub.s32 0, %v5144
  %v5146 = vrot.slane %v5131, %v5145
  %v5147 = vlaneseq
  %v5148 = vshrl.u32 %v5147, 7
  %v5149 = vsub.s32 1, %v5148
  %v5150 = vrot.slane %v5131, %v5149
  %5151 = vrot.lane.b32.xlu0 %v5146, 71
  %v5152 = vpop.permute.xlu0 %5151
  %5153 = vrot.lane.b32.xlu0 %v5150, 71
  %v5154 = vpop.permute.xlu0 %5153
  %v5155 = vsel %vm849, %v5152, %v5154
  %v5159 = vmul.f32 %v5136, %v5152
  %v5160 = vmul.f32 %v5137, %v5155
  %v5161 = vmul.f32 %v5138, %v5154
  %v5162 = vmul.f32 %v5139, %v5152
  %v5163 = vmul.f32 %v5140, %v5155
  %v5164 = vmul.f32 %v5141, %v5154
  %v5165 = vpack.c.bf16 %v5162, %v5159
  %v5166 = vpack.c.bf16 %v5163, %v5160
  %v5167 = vpack.c.bf16 %v5164, %v5161
  %v5171 = vunpack.c.l.b16 %v5165
  %v5172 = vunpack.c.l.b16 %v5166
  %v5173 = vunpack.c.l.b16 %v5167
  %v5174 = vunpack.c.h.b16 %v5165
  %v5175 = vunpack.c.h.b16 %v5166
  %v5176 = vunpack.c.h.b16 %v5167
  %v5177 = vpack.c.b16 %v5172, %v5171
  %v5178 = vpack.c.b16 %v5173, %v5173
  %v5179 = vpack.c.b16 %v5175, %v5174
  %v5180 = vpack.c.b16 %v5176, %v5176
  %5181 = vrot.lane.b32.xlu0 %v5177, 57
  %v5182 = vpop.permute.xlu0 %5181
  %5183 = vrot.lane.b32.xlu0 %v5178, 57
  %v5184 = vpop.permute.xlu0 %5183
  %5185 = vrot.lane.b32.xlu0 %v5179, 57
  %v5186 = vpop.permute.xlu0 %5185
  %5187 = vrot.lane.b32.xlu0 %v5180, 57
  %v5188 = vpop.permute.xlu0 %5187
  %v5189 = vrot.slane %v5182, 4
  %v5190 = vrot.slane %v5184, 4
  %v5191 = vrot.slane %v5186, 4
  %v5192 = vrot.slane %v5188, 4
  %v5193 = vsel %vm137, %v5189, %v5190
  %v5194 = vsel %vm889, %v5182, %v5193
  %v5195 = vsel %vm137, %v5191, %v5192
  %v5196 = vsel %vm889, %v5186, %v5195
  %5199 = vst [vmem:[#allocation4 + $0xc0] sm:$0xff] %v5194
  %5200 = vst [vmem:[#allocation4 + $0xd0] sm:$0xff] %v5196
  %v5201 = vld [vmem:[#allocation3] sm:$0xff]
  %v5202 = vld [vmem:[#allocation3 + $0x8] sm:$0xf]
  %v5203 = vld [vmem:[#allocation3 + $0x10] sm:$0xff]
  %v5204 = vld [vmem:[#allocation3 + $0x18] sm:$0xf]
  %v5205 = vunpack.c.l.bf16 %v5201
  %v5206 = vunpack.c.h.bf16 %v5201
  %v5207 = vunpack.c.l.bf16 %v5202
  %v5208 = vunpack.c.l.bf16 %v5203
  %v5209 = vunpack.c.h.bf16 %v5203
  %v5210 = vunpack.c.l.bf16 %v5204
  %v5211 = vmul.f32 %v5205, %v5152
  %v5212 = vmul.f32 %v5206, %v5155
  %v5213 = vmul.f32 %v5207, %v5154
  %v5214 = vmul.f32 %v5208, %v5152
  %v5215 = vmul.f32 %v5209, %v5155
  %v5216 = vmul.f32 %v5210, %v5154
  %v5217 = vpack.c.bf16 %v5214, %v5211
  %v5218 = vpack.c.bf16 %v5215, %v5212
  %v5219 = vpack.c.bf16 %v5216, %v5213
  %v5223 = vunpack.c.l.b16 %v5217
  %v5224 = vunpack.c.l.b16 %v5218
  %v5225 = vunpack.c.l.b16 %v5219
  %v5226 = vunpack.c.h.b16 %v5217
  %v5227 = vunpack.c.h.b16 %v5218
  %v5228 = vunpack.c.h.b16 %v5219
  %v5229 = vpack.c.b16 %v5224, %v5223
  %v5230 = vpack.c.b16 %v5225, %v5225
  %v5231 = vpack.c.b16 %v5227, %v5226
  %v5232 = vpack.c.b16 %v5228, %v5228
  %5233 = vrot.lane.b32.xlu0 %v5229, 57
  %v5234 = vpop.permute.xlu0 %5233
  %5235 = vrot.lane.b32.xlu0 %v5230, 57
  %v5236 = vpop.permute.xlu0 %5235
  %5237 = vrot.lane.b32.xlu0 %v5231, 57
  %v5238 = vpop.permute.xlu0 %5237
  %5239 = vrot.lane.b32.xlu0 %v5232, 57
  %v5240 = vpop.permute.xlu0 %5239
  %v5241 = vrot.slane %v5234, 4
  %v5242 = vrot.slane %v5236, 4
  %v5243 = vrot.slane %v5238, 4
  %v5244 = vrot.slane %v5240, 4
  %v5245 = vsel %vm137, %v5241, %v5242
  %v5246 = vsel %vm889, %v5234, %v5245
  %v5247 = vsel %vm137, %v5243, %v5244
  %v5248 = vsel %vm889, %v5238, %v5247
  %5251 = vst [vmem:[#allocation4 + $0xc8] sm:$0xff] %v5246
  %5252 = vst [vmem:[#allocation4 + $0xd8] sm:$0xff] %v5248
  %v5253 = vld [vmem:[%s949] ss:$8 sm:$0x3]
  %v5254 = vld [vmem:[#allocation2] sm:$0xff]
  %v5255 = vld [vmem:[#allocation2 + $0x8] sm:$0xf]
  %v5256 = vld [vmem:[#allocation2 + $0x10] sm:$0xff]
  %v5257 = vld [vmem:[#allocation2 + $0x18] sm:$0xf]
  %v5258 = vunpack.c.l.bf16 %v5254
  %v5259 = vunpack.c.h.bf16 %v5254
  %v5260 = vunpack.c.l.bf16 %v5255
  %v5261 = vunpack.c.l.bf16 %v5256
  %v5262 = vunpack.c.h.bf16 %v5256
  %v5263 = vunpack.c.l.bf16 %v5257
  %v5265 = vlaneseq
  %v5266 = vshrl.u32 %v5265, 7
  %v5267 = vsub.s32 0, %v5266
  %v5268 = vrot.slane %v5253, %v5267
  %v5269 = vlaneseq
  %v5270 = vshrl.u32 %v5269, 7
  %v5271 = vsub.s32 1, %v5270
  %v5272 = vrot.slane %v5253, %v5271
  %5273 = vrot.lane.b32.xlu0 %v5268, 72
  %v5274 = vpop.permute.xlu0 %5273
  %5275 = vrot.lane.b32.xlu0 %v5272, 72
  %v5276 = vpop.permute.xlu0 %5275
  %v5277 = vsel %vm974, %v5274, %v5276
  %v5281 = vmul.f32 %v5258, %v5274
  %v5282 = vmul.f32 %v5259, %v5277
  %v5283 = vmul.f32 %v5260, %v5276
  %v5284 = vmul.f32 %v5261, %v5274
  %v5285 = vmul.f32 %v5262, %v5277
  %v5286 = vmul.f32 %v5263, %v5276
  %v5287 = vpack.c.bf16 %v5284, %v5281
  %v5288 = vpack.c.bf16 %v5285, %v5282
  %v5289 = vpack.c.bf16 %v5286, %v5283
  %v5293 = vunpack.c.l.b16 %v5287
  %v5294 = vunpack.c.l.b16 %v5288
  %v5295 = vunpack.c.l.b16 %v5289
  %v5296 = vunpack.c.h.b16 %v5287
  %v5297 = vunpack.c.h.b16 %v5288
  %v5298 = vunpack.c.h.b16 %v5289
  %v5299 = vpack.c.b16 %v5294, %v5293
  %v5300 = vpack.c.b16 %v5295, %v5295
  %v5301 = vpack.c.b16 %v5297, %v5296
  %v5302 = vpack.c.b16 %v5298, %v5298
  %5303 = vrot.lane.b32.xlu0 %v5299, 56
  %v5304 = vpop.permute.xlu0 %5303
  %5305 = vrot.lane.b32.xlu0 %v5300, 56
  %v5306 = vpop.permute.xlu0 %5305
  %5307 = vrot.lane.b32.xlu0 %v5301, 56
  %v5308 = vpop.permute.xlu0 %5307
  %5309 = vrot.lane.b32.xlu0 %v5302, 56
  %v5310 = vpop.permute.xlu0 %5309
  %v5311 = vrot.slane %v5304, 4
  %v5312 = vrot.slane %v5306, 4
  %v5313 = vrot.slane %v5308, 4
  %v5314 = vrot.slane %v5310, 4
  %v5315 = vsel %vm137, %v5311, %v5312
  %v5316 = vsel %vm1014, %v5304, %v5315
  %v5317 = vsel %vm137, %v5313, %v5314
  %v5318 = vsel %vm1014, %v5308, %v5317
  %5321 = vst [vmem:[#allocation4 + $0xe0] sm:$0xff] %v5316
  %5322 = vst [vmem:[#allocation4 + $0xf0] sm:$0xff] %v5318
  %v5323 = vld [vmem:[#allocation3] sm:$0xff]
  %v5324 = vld [vmem:[#allocation3 + $0x8] sm:$0xf]
  %v5325 = vld [vmem:[#allocation3 + $0x10] sm:$0xff]
  %v5326 = vld [vmem:[#allocation3 + $0x18] sm:$0xf]
  %v5327 = vunpack.c.l.bf16 %v5323
  %v5328 = vunpack.c.h.bf16 %v5323
  %v5329 = vunpack.c.l.bf16 %v5324
  %v5330 = vunpack.c.l.bf16 %v5325
  %v5331 = vunpack.c.h.bf16 %v5325
  %v5332 = vunpack.c.l.bf16 %v5326
  %v5333 = vmul.f32 %v5327, %v5274
  %v5334 = vmul.f32 %v5328, %v5277
  %v5335 = vmul.f32 %v5329, %v5276
  %v5336 = vmul.f32 %v5330, %v5274
  %v5337 = vmul.f32 %v5331, %v5277
  %v5338 = vmul.f32 %v5332, %v5276
  %v5339 = vpack.c.bf16 %v5336, %v5333
  %v5340 = vpack.c.bf16 %v5337, %v5334
  %v5341 = vpack.c.bf16 %v5338, %v5335
  %v5345 = vunpack.c.l.b16 %v5339
  %v5346 = vunpack.c.l.b16 %v5340
  %v5347 = vunpack.c.l.b16 %v5341
  %v5348 = vunpack.c.h.b16 %v5339
  %v5349 = vunpack.c.h.b16 %v5340
  %v5350 = vunpack.c.h.b16 %v5341
  %v5351 = vpack.c.b16 %v5346, %v5345
  %v5352 = vpack.c.b16 %v5347, %v5347
  %v5353 = vpack.c.b16 %v5349, %v5348
  %v5354 = vpack.c.b16 %v5350, %v5350
  %5355 = vrot.lane.b32.xlu0 %v5351, 56
  %v5356 = vpop.permute.xlu0 %5355
  %5357 = vrot.lane.b32.xlu0 %v5352, 56
  %v5358 = vpop.permute.xlu0 %5357
  %5359 = vrot.lane.b32.xlu0 %v5353, 56
  %v5360 = vpop.permute.xlu0 %5359
  %5361 = vrot.lane.b32.xlu0 %v5354, 56
  %v5362 = vpop.permute.xlu0 %5361
  %v5363 = vrot.slane %v5356, 4
  %v5364 = vrot.slane %v5358, 4
  %v5365 = vrot.slane %v5360, 4
  %v5366 = vrot.slane %v5362, 4
  %v5367 = vsel %vm137, %v5363, %v5364
  %v5368 = vsel %vm1014, %v5356, %v5367
  %v5369 = vsel %vm137, %v5365, %v5366
  %v5370 = vsel %vm1014, %v5360, %v5369
  %5373 = vst [vmem:[#allocation4 + $0xe8] sm:$0xff] %v5368
  %5374 = vst [vmem:[#allocation4 + $0xf8] sm:$0xff] %v5370
  %v5375 = vld [vmem:[%s1074] ss:$8 sm:$0x3]
  %v5376 = vld [vmem:[#allocation2] sm:$0xff]
  %v5377 = vld [vmem:[#allocation2 + $0x8] sm:$0xf]
  %v5378 = vld [vmem:[#allocation2 + $0x10] sm:$0xff]
  %v5379 = vld [vmem:[#allocation2 + $0x18] sm:$0xf]
  %v5380 = vunpack.c.l.bf16 %v5376
  %v5381 = vunpack.c.h.bf16 %v5376
  %v5382 = vunpack.c.l.bf16 %v5377
  %v5383 = vunpack.c.l.bf16 %v5378
  %v5384 = vunpack.c.h.bf16 %v5378
  %v5385 = vunpack.c.l.bf16 %v5379
  %v5387 = vlaneseq
  %v5388 = vshrl.u32 %v5387, 7
  %v5389 = vsub.s32 0, %v5388
  %v5390 = vrot.slane %v5375, %v5389
  %v5391 = vlaneseq
  %v5392 = vshrl.u32 %v5391, 7
  %v5393 = vsub.s32 1, %v5392
  %v5394 = vrot.slane %v5375, %v5393
  %5395 = vrot.lane.b32.xlu0 %v5390, 73
  %v5396 = vpop.permute.xlu0 %5395
  %5397 = vrot.lane.b32.xlu0 %v5394, 73
  %v5398 = vpop.permute.xlu0 %5397
  %v5399 = vsel %vm1099, %v5396, %v5398
  %v5403 = vmul.f32 %v5380, %v5396
  %v5404 = vmul.f32 %v5381, %v5399
  %v5405 = vmul.f32 %v5382, %v5398
  %v5406 = vmul.f32 %v5383, %v5396
  %v5407 = vmul.f32 %v5384, %v5399
  %v5408 = vmul.f32 %v5385, %v5398
  %v5409 = vpack.c.bf16 %v5406, %v5403
  %v5410 = vpack.c.bf16 %v5407, %v5404
  %v5411 = vpack.c.bf16 %v5408, %v5405
  %v5415 = vunpack.c.l.b16 %v5409
  %v5416 = vunpack.c.l.b16 %v5410
  %v5417 = vunpack.c.l.b16 %v5411
  %v5418 = vunpack.c.h.b16 %v5409
  %v5419 = vunpack.c.h.b16 %v5410
  %v5420 = vunpack.c.h.b16 %v5411
  %v5421 = vpack.c.b16 %v5416, %v5415
  %v5422 = vpack.c.b16 %v5417, %v5417
  %v5423 = vpack.c.b16 %v5419, %v5418
  %v5424 = vpack.c.b16 %v5420, %v5420
  %5425 = vrot.lane.b32.xlu0 %v5421, 55
  %v5426 = vpop.permute.xlu0 %5425
  %5427 = vrot.lane.b32.xlu0 %v5422, 55
  %v5428 = vpop.permute.xlu0 %5427
  %5429 = vrot.lane.b32.xlu0 %v5423, 55
  %v5430 = vpop.permute.xlu0 %5429
  %5431 = vrot.lane.b32.xlu0 %v5424, 55
  %v5432 = vpop.permute.xlu0 %5431
  %v5433 = vrot.slane %v5426, 4
  %v5434 = vrot.slane %v5428, 4
  %v5435 = vrot.slane %v5430, 4
  %v5436 = vrot.slane %v5432, 4
  %v5437 = vsel %vm137, %v5433, %v5434
  %v5438 = vsel %vm1139, %v5426, %v5437
  %v5439 = vsel %vm137, %v5435, %v5436
  %v5440 = vsel %vm1139, %v5430, %v5439
  %5443 = vst [vmem:[#allocation4 + $0x100] sm:$0xff] %v5438
  %5444 = vst [vmem:[#allocation4 + $0x110] sm:$0xff] %v5440
  %v5445 = vld [vmem:[#allocation3] sm:$0xff]
  %v5446 = vld [vmem:[#allocation3 + $0x8] sm:$0xf]
  %v5447 = vld [vmem:[#allocation3 + $0x10] sm:$0xff]
  %v5448 = vld [vmem:[#allocation3 + $0x18] sm:$0xf]
  %v5449 = vunpack.c.l.bf16 %v5445
  %v5450 = vunpack.c.h.bf16 %v5445
  %v5451 = vunpack.c.l.bf16 %v5446
  %v5452 = vunpack.c.l.bf16 %v5447
  %v5453 = vunpack.c.h.bf16 %v5447
  %v5454 = vunpack.c.l.bf16 %v5448
  %v5455 = vmul.f32 %v5449, %v5396
  %v5456 = vmul.f32 %v5450, %v5399
  %v5457 = vmul.f32 %v5451, %v5398
  %v5458 = vmul.f32 %v5452, %v5396
  %v5459 = vmul.f32 %v5453, %v5399
  %v5460 = vmul.f32 %v5454, %v5398
  %v5461 = vpack.c.bf16 %v5458, %v5455
  %v5462 = vpack.c.bf16 %v5459, %v5456
  %v5463 = vpack.c.bf16 %v5460, %v5457
  %v5467 = vunpack.c.l.b16 %v5461
  %v5468 = vunpack.c.l.b16 %v5462
  %v5469 = vunpack.c.l.b16 %v5463
  %v5470 = vunpack.c.h.b16 %v5461
  %v5471 = vunpack.c.h.b16 %v5462
  %v5472 = vunpack.c.h.b16 %v5463
  %v5473 = vpack.c.b16 %v5468, %v5467
  %v5474 = vpack.c.b16 %v5469, %v5469
  %v5475 = vpack.c.b16 %v5471, %v5470
  %v5476 = vpack.c.b16 %v5472, %v5472
  %5477 = vrot.lane.b32.xlu0 %v5473, 55
  %v5478 = vpop.permute.xlu0 %5477
  %5479 = vrot.lane.b32.xlu0 %v5474, 55
  %v5480 = vpop.permute.xlu0 %5479
  %5481 = vrot.lane.b32.xlu0 %v5475, 55
  %v5482 = vpop.permute.xlu0 %5481
  %5483 = vrot.lane.b32.xlu0 %v5476, 55
  %v5484 = vpop.permute.xlu0 %5483
  %v5485 = vrot.slane %v5478, 4
  %v5486 = vrot.slane %v5480, 4
  %v5487 = vrot.slane %v5482, 4
  %v5488 = vrot.slane %v5484, 4
  %v5489 = vsel %vm137, %v5485, %v5486
  %v5490 = vsel %vm1139, %v5478, %v5489
  %v5491 = vsel %vm137, %v5487, %v5488
  %v5492 = vsel %vm1139, %v5482, %v5491
  %5495 = vst [vmem:[#allocation4 + $0x108] sm:$0xff] %v5490
  %5496 = vst [vmem:[#allocation4 + $0x118] sm:$0xff] %v5492
  %v5497 = vld [vmem:[%s3] sm:$0xff]
  %v5498 = vld [vmem:[%s3 + $0x8] sm:$0xff]
  %v5499 = vld [vmem:[#allocation4] sm:$0xff]
  %v5500 = vld [vmem:[#allocation4 + $0x8] sm:$0xff]
  %v5501 = vld [vmem:[#allocation4 + $0x10] sm:$0xff]
  %v5502 = vld [vmem:[#allocation4 + $0x18] sm:$0xff]
  %v5503 = vld [vmem:[#allocation4 + $0x20] sm:$0xff]
  %v5504 = vld [vmem:[#allocation4 + $0x28] sm:$0xff]
  %v5505 = vld [vmem:[#allocation4 + $0x30] sm:$0xff]
  %v5506 = vld [vmem:[#allocation4 + $0x38] sm:$0xff]
  %v5507 = vld [vmem:[#allocation4 + $0x40] sm:$0xff]
  %v5508 = vld [vmem:[#allocation4 + $0x48] sm:$0xff]
  %v5509 = vld [vmem:[#allocation4 + $0x50] sm:$0xff]
  %v5510 = vld [vmem:[#allocation4 + $0x58] sm:$0xff]
  %v5511 = vld [vmem:[#allocation4 + $0x60] sm:$0xff]
  %v5512 = vld [vmem:[#allocation4 + $0x68] sm:$0xff]
  %v5513 = vld [vmem:[#allocation4 + $0x70] sm:$0xff]
  %v5514 = vld [vmem:[#allocation4 + $0x78] sm:$0xff]
  %v5515 = vld [vmem:[#allocation4 + $0x80] sm:$0xff]
  %v5516 = vld [vmem:[#allocation4 + $0x88] sm:$0xff]
  %v5517 = vld [vmem:[#allocation4 + $0x90] sm:$0xff]
  %v5518 = vld [vmem:[#allocation4 + $0x98] sm:$0xff]
  %v5519 = vld [vmem:[#allocation4 + $0xa0] sm:$0xff]
  %v5520 = vld [vmem:[#allocation4 + $0xa8] sm:$0xff]
  %v5521 = vld [vmem:[#allocation4 + $0xb0] sm:$0xff]
  %v5522 = vld [vmem:[#allocation4 + $0xb8] sm:$0xff]
  %v5523 = vld [vmem:[#allocation4 + $0xc0] sm:$0xff]
  %v5524 = vld [vmem:[#allocation4 + $0xc8] sm:$0xff]
  %v5525 = vld [vmem:[#allocation4 + $0xd0] sm:$0xff]
  %v5526 = vld [vmem:[#allocation4 + $0xd8] sm:$0xff]
  %v5527 = vld [vmem:[#allocation4 + $0xe0] sm:$0xff]
  %v5528 = vld [vmem:[#allocation4 + $0xe8] sm:$0xff]
  %v5529 = vld [vmem:[#allocation4 + $0xf0] sm:$0xff]
  %v5530 = vld [vmem:[#allocation4 + $0xf8] sm:$0xff]
  %v5531 = vld [vmem:[#allocation4 + $0x100] sm:$0xff]
  %v5532 = vld [vmem:[#allocation4 + $0x108] sm:$0xff]
  %v5533 = vld [vmem:[#allocation4 + $0x110] sm:$0xff]
  %v5534 = vld [vmem:[#allocation4 + $0x118] sm:$0xff]
  %v5535 = vld [vmem:[%s1237] ss:$8 sm:$0x3]
  %v5536 = vld [vmem:[#allocation2] sm:$0xff]
  %v5537 = vld [vmem:[#allocation2 + $0x8] sm:$0xf]
  %v5538 = vld [vmem:[#allocation2 + $0x10] sm:$0xff]
  %v5539 = vld [vmem:[#allocation2 + $0x18] sm:$0xf]
  %v5540 = vunpack.c.l.bf16 %v5536
  %v5541 = vunpack.c.h.bf16 %v5536
  %v5542 = vunpack.c.l.bf16 %v5537
  %v5543 = vunpack.c.l.bf16 %v5538
  %v5544 = vunpack.c.h.bf16 %v5538
  %v5545 = vunpack.c.l.bf16 %v5539
  %v5547 = vlaneseq
  %v5548 = vshrl.u32 %v5547, 7
  %v5549 = vsub.s32 0, %v5548
  %v5550 = vrot.slane %v5535, %v5549
  %v5551 = vlaneseq
  %v5552 = vshrl.u32 %v5551, 7
  %v5553 = vsub.s32 1, %v5552
  %v5554 = vrot.slane %v5535, %v5553
  %5555 = vrot.lane.b32.xlu0 %v5550, 119
  %v5556 = vpop.permute.xlu0 %5555
  %5557 = vrot.lane.b32.xlu0 %v5554, 119
  %v5558 = vpop.permute.xlu0 %5557
  %v5559 = vsel %vm1262, %v5556, %v5558
  %v5563 = vmul.f32 %v5540, %v5556
  %v5564 = vmul.f32 %v5541, %v5559
  %v5565 = vmul.f32 %v5542, %v5558
  %v5566 = vmul.f32 %v5543, %v5556
  %v5567 = vmul.f32 %v5544, %v5559
  %v5568 = vmul.f32 %v5545, %v5558
  %v5569 = vpack.c.bf16 %v5566, %v5563
  %v5570 = vpack.c.bf16 %v5567, %v5564
  %v5571 = vpack.c.bf16 %v5568, %v5565
  %v5575 = vunpack.c.l.b16 %v5569
  %v5576 = vunpack.c.l.b16 %v5570
  %v5577 = vunpack.c.l.b16 %v5571
  %v5578 = vunpack.c.h.b16 %v5569
  %v5579 = vunpack.c.h.b16 %v5570
  %v5580 = vunpack.c.h.b16 %v5571
  %v5581 = vpack.c.b16 %v5576, %v5575
  %v5582 = vpack.c.b16 %v5577, %v5577
  %v5583 = vpack.c.b16 %v5579, %v5578
  %v5584 = vpack.c.b16 %v5580, %v5580
  %5585 = vrot.lane.b32.xlu0 %v5581, 9
  %v5586 = vpop.permute.xlu0 %5585
  %5587 = vrot.lane.b32.xlu0 %v5582, 9
  %v5588 = vpop.permute.xlu0 %5587
  %5589 = vrot.lane.b32.xlu0 %v5583, 9
  %v5590 = vpop.permute.xlu0 %5589
  %5591 = vrot.lane.b32.xlu0 %v5584, 9
  %v5592 = vpop.permute.xlu0 %5591
  %v5593 = vrot.slane %v5586, 4
  %v5594 = vrot.slane %v5588, 4
  %v5595 = vrot.slane %v5590, 4
  %v5596 = vrot.slane %v5592, 4
  %v5597 = vsel %vm137, %v5593, %v5594
  %v5598 = vsel %vm1302, %v5586, %v5597
  %v5599 = vsel %vm137, %v5595, %v5596
  %v5600 = vsel %vm1302, %v5590, %v5599
  %5603 = vst [vmem:[#allocation5] sm:$0xff] %v5598
  %5604 = vst [vmem:[#allocation5 + $0x10] sm:$0xff] %v5600
  %v5605 = vld [vmem:[#allocation3] sm:$0xff]
  %v5606 = vld [vmem:[#allocation3 + $0x8] sm:$0xf]
  %v5607 = vld [vmem:[#allocation3 + $0x10] sm:$0xff]
  %v5608 = vld [vmem:[#allocation3 + $0x18] sm:$0xf]
  %v5609 = vunpack.c.l.bf16 %v5605
  %v5610 = vunpack.c.h.bf16 %v5605
  %v5611 = vunpack.c.l.bf16 %v5606
  %v5612 = vunpack.c.l.bf16 %v5607
  %v5613 = vunpack.c.h.bf16 %v5607
  %v5614 = vunpack.c.l.bf16 %v5608
  %v5615 = vmul.f32 %v5609, %v5556
  %v5616 = vmul.f32 %v5610, %v5559
  %v5617 = vmul.f32 %v5611, %v5558
  %v5618 = vmul.f32 %v5612, %v5556
  %v5619 = vmul.f32 %v5613, %v5559
  %v5620 = vmul.f32 %v5614, %v5558
  %v5621 = vpack.c.bf16 %v5618, %v5615
  %v5622 = vpack.c.bf16 %v5619, %v5616
  %v5623 = vpack.c.bf16 %v5620, %v5617
  %v5627 = vunpack.c.l.b16 %v5621
  %v5628 = vunpack.c.l.b16 %v5622
  %v5629 = vunpack.c.l.b16 %v5623
  %v5630 = vunpack.c.h.b16 %v5621
  %v5631 = vunpack.c.h.b16 %v5622
  %v5632 = vunpack.c.h.b16 %v5623
  %v5633 = vpack.c.b16 %v5628, %v5627
  %v5634 = vpack.c.b16 %v5629, %v5629
  %v5635 = vpack.c.b16 %v5631, %v5630
  %v5636 = vpack.c.b16 %v5632, %v5632
  %5637 = vrot.lane.b32.xlu0 %v5633, 9
  %v5638 = vpop.permute.xlu0 %5637
  %5639 = vrot.lane.b32.xlu0 %v5634, 9
  %v5640 = vpop.permute.xlu0 %5639
  %5641 = vrot.lane.b32.xlu0 %v5635, 9
  %v5642 = vpop.permute.xlu0 %5641
  %5643 = vrot.lane.b32.xlu0 %v5636, 9
  %v5644 = vpop.permute.xlu0 %5643
  %v5645 = vrot.slane %v5638, 4
  %v5646 = vrot.slane %v5640, 4
  %v5647 = vrot.slane %v5642, 4
  %v5648 = vrot.slane %v5644, 4
  %v5649 = vsel %vm137, %v5645, %v5646
  %v5650 = vsel %vm1302, %v5638, %v5649
  %v5651 = vsel %vm137, %v5647, %v5648
  %v5652 = vsel %vm1302, %v5642, %v5651
  %5655 = vst [vmem:[#allocation5 + $0x8] sm:$0xff] %v5650
  %5656 = vst [vmem:[#allocation5 + $0x18] sm:$0xff] %v5652
  %v5657 = vld [vmem:[%s1362] ss:$8 sm:$0x3]
  %v5658 = vld [vmem:[#allocation2] sm:$0xff]
  %v5659 = vld [vmem:[#allocation2 + $0x8] sm:$0xf]
  %v5660 = vld [vmem:[#allocation2 + $0x10] sm:$0xff]
  %v5661 = vld [vmem:[#allocation2 + $0x18] sm:$0xf]
  %v5662 = vunpack.c.l.bf16 %v5658
  %v5663 = vunpack.c.h.bf16 %v5658
  %v5664 = vunpack.c.l.bf16 %v5659
  %v5665 = vunpack.c.l.bf16 %v5660
  %v5666 = vunpack.c.h.bf16 %v5660
  %v5667 = vunpack.c.l.bf16 %v5661
  %v5669 = vlaneseq
  %v5670 = vshrl.u32 %v5669, 7
  %v5671 = vsub.s32 0, %v5670
  %v5672 = vrot.slane %v5657, %v5671
  %v5673 = vlaneseq
  %v5674 = vshrl.u32 %v5673, 7
  %v5675 = vsub.s32 1, %v5674
  %v5676 = vrot.slane %v5657, %v5675
  %5677 = vrot.lane.b32.xlu0 %v5672, 120
  %v5678 = vpop.permute.xlu0 %5677
  %5679 = vrot.lane.b32.xlu0 %v5676, 120
  %v5680 = vpop.permute.xlu0 %5679
  %v5681 = vsel %vm1387, %v5678, %v5680
  %v5685 = vmul.f32 %v5662, %v5678
  %v5686 = vmul.f32 %v5663, %v5681
  %v5687 = vmul.f32 %v5664, %v5680
  %v5688 = vmul.f32 %v5665, %v5678
  %v5689 = vmul.f32 %v5666, %v5681
  %v5690 = vmul.f32 %v5667, %v5680
  %v5691 = vpack.c.bf16 %v5688, %v5685
  %v5692 = vpack.c.bf16 %v5689, %v5686
  %v5693 = vpack.c.bf16 %v5690, %v5687
  %v5697 = vunpack.c.l.b16 %v5691
  %v5698 = vunpack.c.l.b16 %v5692
  %v5699 = vunpack.c.l.b16 %v5693
  %v5700 = vunpack.c.h.b16 %v5691
  %v5701 = vunpack.c.h.b16 %v5692
  %v5702 = vunpack.c.h.b16 %v5693
  %v5703 = vpack.c.b16 %v5698, %v5697
  %v5704 = vpack.c.b16 %v5699, %v5699
  %v5705 = vpack.c.b16 %v5701, %v5700
  %v5706 = vpack.c.b16 %v5702, %v5702
  %5707 = vrot.lane.b32.xlu0 %v5703, 8
  %v5708 = vpop.permute.xlu0 %5707
  %5709 = vrot.lane.b32.xlu0 %v5704, 8
  %v5710 = vpop.permute.xlu0 %5709
  %5711 = vrot.lane.b32.xlu0 %v5705, 8
  %v5712 = vpop.permute.xlu0 %5711
  %5713 = vrot.lane.b32.xlu0 %v5706, 8
  %v5714 = vpop.permute.xlu0 %5713
  %v5715 = vrot.slane %v5708, 4
  %v5716 = vrot.slane %v5710, 4
  %v5717 = vrot.slane %v5712, 4
  %v5718 = vrot.slane %v5714, 4
  %v5719 = vsel %vm137, %v5715, %v5716
  %v5720 = vsel %vm1427, %v5708, %v5719
  %v5721 = vsel %vm137, %v5717, %v5718
  %v5722 = vsel %vm1427, %v5712, %v5721
  %5725 = vst [vmem:[#allocation5 + $0x20] sm:$0xff] %v5720
  %5726 = vst [vmem:[#allocation5 + $0x30] sm:$0xff] %v5722
  %v5727 = vld [vmem:[#allocation3] sm:$0xff]
  %v5728 = vld [vmem:[#allocation3 + $0x8] sm:$0xf]
  %v5729 = vld [vmem:[#allocation3 + $0x10] sm:$0xff]
  %v5730 = vld [vmem:[#allocation3 + $0x18] sm:$0xf]
  %v5731 = vunpack.c.l.bf16 %v5727
  %v5732 = vunpack.c.h.bf16 %v5727
  %v5733 = vunpack.c.l.bf16 %v5728
  %v5734 = vunpack.c.l.bf16 %v5729
  %v5735 = vunpack.c.h.bf16 %v5729
  %v5736 = vunpack.c.l.bf16 %v5730
  %v5737 = vmul.f32 %v5731, %v5678
  %v5738 = vmul.f32 %v5732, %v5681
  %v5739 = vmul.f32 %v5733, %v5680
  %v5740 = vmul.f32 %v5734, %v5678
  %v5741 = vmul.f32 %v5735, %v5681
  %v5742 = vmul.f32 %v5736, %v5680
  %v5743 = vpack.c.bf16 %v5740, %v5737
  %v5744 = vpack.c.bf16 %v5741, %v5738
  %v5745 = vpack.c.bf16 %v5742, %v5739
  %v5749 = vunpack.c.l.b16 %v5743
  %v5750 = vunpack.c.l.b16 %v5744
  %v5751 = vunpack.c.l.b16 %v5745
  %v5752 = vunpack.c.h.b16 %v5743
  %v5753 = vunpack.c.h.b16 %v5744
  %v5754 = vunpack.c.h.b16 %v5745
  %v5755 = vpack.c.b16 %v5750, %v5749
  %v5756 = vpack.c.b16 %v5751, %v5751
  %v5757 = vpack.c.b16 %v5753, %v5752
  %v5758 = vpack.c.b16 %v5754, %v5754
  %5759 = vrot.lane.b32.xlu0 %v5755, 8
  %v5760 = vpop.permute.xlu0 %5759
  %5761 = vrot.lane.b32.xlu0 %v5756, 8
  %v5762 = vpop.permute.xlu0 %5761
  %5763 = vrot.lane.b32.xlu0 %v5757, 8
  %v5764 = vpop.permute.xlu0 %5763
  %5765 = vrot.lane.b32.xlu0 %v5758, 8
  %v5766 = vpop.permute.xlu0 %5765
  %v5767 = vrot.slane %v5760, 4
  %v5768 = vrot.slane %v5762, 4
  %v5769 = vrot.slane %v5764, 4
  %v5770 = vrot.slane %v5766, 4
  %v5771 = vsel %vm137, %v5767, %v5768
  %v5772 = vsel %vm1427, %v5760, %v5771
  %v5773 = vsel %vm137, %v5769, %v5770
  %v5774 = vsel %vm1427, %v5764, %v5773
  %5777 = vst [vmem:[#allocation5 + $0x28] sm:$0xff] %v5772
  %5778 = vst [vmem:[#allocation5 + $0x38] sm:$0xff] %v5774
  %v5779 = vld [vmem:[%s1487] ss:$8 sm:$0x3]
  %v5780 = vld [vmem:[#allocation2] sm:$0xff]
  %v5781 = vld [vmem:[#allocation2 + $0x8] sm:$0xf]
  %v5782 = vld [vmem:[#allocation2 + $0x10] sm:$0xff]
  %v5783 = vld [vmem:[#allocation2 + $0x18] sm:$0xf]
  %v5784 = vunpack.c.l.bf16 %v5780
  %v5785 = vunpack.c.h.bf16 %v5780
  %v5786 = vunpack.c.l.bf16 %v5781
  %v5787 = vunpack.c.l.bf16 %v5782
  %v5788 = vunpack.c.h.bf16 %v5782
  %v5789 = vunpack.c.l.bf16 %v5783
  %v5791 = vlaneseq
  %v5792 = vshrl.u32 %v5791, 7
  %v5793 = vsub.s32 0, %v5792
  %v5794 = vrot.slane %v5779, %v5793
  %v5795 = vlaneseq
  %v5796 = vshrl.u32 %v5795, 7
  %v5797 = vsub.s32 1, %v5796
  %v5798 = vrot.slane %v5779, %v5797
  %5799 = vrot.lane.b32.xlu0 %v5794, 121
  %v5800 = vpop.permute.xlu0 %5799
  %5801 = vrot.lane.b32.xlu0 %v5798, 121
  %v5802 = vpop.permute.xlu0 %5801
  %v5803 = vsel %vm1512, %v5800, %v5802
  %v5807 = vmul.f32 %v5784, %v5800
  %v5808 = vmul.f32 %v5785, %v5803
  %v5809 = vmul.f32 %v5786, %v5802
  %v5810 = vmul.f32 %v5787, %v5800
  %v5811 = vmul.f32 %v5788, %v5803
  %v5812 = vmul.f32 %v5789, %v5802
  %v5813 = vpack.c.bf16 %v5810, %v5807
  %v5814 = vpack.c.bf16 %v5811, %v5808
  %v5815 = vpack.c.bf16 %v5812, %v5809
  %v5819 = vunpack.c.l.b16 %v5813
  %v5820 = vunpack.c.l.b16 %v5814
  %v5821 = vunpack.c.l.b16 %v5815
  %v5822 = vunpack.c.h.b16 %v5813
  %v5823 = vunpack.c.h.b16 %v5814
  %v5824 = vunpack.c.h.b16 %v5815
  %v5825 = vpack.c.b16 %v5820, %v5819
  %v5826 = vpack.c.b16 %v5821, %v5821
  %v5827 = vpack.c.b16 %v5823, %v5822
  %v5828 = vpack.c.b16 %v5824, %v5824
  %5829 = vrot.lane.b32.xlu0 %v5825, 7
  %v5830 = vpop.permute.xlu0 %5829
  %5831 = vrot.lane.b32.xlu0 %v5826, 7
  %v5832 = vpop.permute.xlu0 %5831
  %5833 = vrot.lane.b32.xlu0 %v5827, 7
  %v5834 = vpop.permute.xlu0 %5833
  %5835 = vrot.lane.b32.xlu0 %v5828, 7
  %v5836 = vpop.permute.xlu0 %5835
  %v5837 = vrot.slane %v5830, 4
  %v5838 = vrot.slane %v5832, 4
  %v5839 = vrot.slane %v5834, 4
  %v5840 = vrot.slane %v5836, 4
  %v5841 = vsel %vm137, %v5837, %v5838
  %v5842 = vsel %vm1552, %v5830, %v5841
  %v5843 = vsel %vm137, %v5839, %v5840
  %v5844 = vsel %vm1552, %v5834, %v5843
  %5847 = vst [vmem:[#allocation5 + $0x40] sm:$0xff] %v5842
  %5848 = vst [vmem:[#allocation5 + $0x50] sm:$0xff] %v5844
  %v5849 = vld [vmem:[#allocation3] sm:$0xff]
  %v5850 = vld [vmem:[#allocation3 + $0x8] sm:$0xf]
  %v5851 = vld [vmem:[#allocation3 + $0x10] sm:$0xff]
  %v5852 = vld [vmem:[#allocation3 + $0x18] sm:$0xf]
  %v5853 = vunpack.c.l.bf16 %v5849
  %v5854 = vunpack.c.h.bf16 %v5849
  %v5855 = vunpack.c.l.bf16 %v5850
  %v5856 = vunpack.c.l.bf16 %v5851
  %v5857 = vunpack.c.h.bf16 %v5851
  %v5858 = vunpack.c.l.bf16 %v5852
  %v5859 = vmul.f32 %v5853, %v5800
  %v5860 = vmul.f32 %v5854, %v5803
  %v5861 = vmul.f32 %v5855, %v5802
  %v5862 = vmul.f32 %v5856, %v5800
  %v5863 = vmul.f32 %v5857, %v5803
  %v5864 = vmul.f32 %v5858, %v5802
  %v5865 = vpack.c.bf16 %v5862, %v5859
  %v5866 = vpack.c.bf16 %v5863, %v5860
  %v5867 = vpack.c.bf16 %v5864, %v5861
  %v5871 = vunpack.c.l.b16 %v5865
  %v5872 = vunpack.c.l.b16 %v5866
  %v5873 = vunpack.c.l.b16 %v5867
  %v5874 = vunpack.c.h.b16 %v5865
  %v5875 = vunpack.c.h.b16 %v5866
  %v5876 = vunpack.c.h.b16 %v5867
  %v5877 = vpack.c.b16 %v5872, %v5871
  %v5878 = vpack.c.b16 %v5873, %v5873
  %v5879 = vpack.c.b16 %v5875, %v5874
  %v5880 = vpack.c.b16 %v5876, %v5876
  %5881 = vrot.lane.b32.xlu0 %v5877, 7
  %v5882 = vpop.permute.xlu0 %5881
  %5883 = vrot.lane.b32.xlu0 %v5878, 7
  %v5884 = vpop.permute.xlu0 %5883
  %5885 = vrot.lane.b32.xlu0 %v5879, 7
  %v5886 = vpop.permute.xlu0 %5885
  %5887 = vrot.lane.b32.xlu0 %v5880, 7
  %v5888 = vpop.permute.xlu0 %5887
  %v5889 = vrot.slane %v5882, 4
  %v5890 = vrot.slane %v5884, 4
  %v5891 = vrot.slane %v5886, 4
  %v5892 = vrot.slane %v5888, 4
  %v5893 = vsel %vm137, %v5889, %v5890
  %v5894 = vsel %vm1552, %v5882, %v5893
  %v5895 = vsel %vm137, %v5891, %v5892
  %v5896 = vsel %vm1552, %v5886, %v5895
  %5899 = vst [vmem:[#allocation5 + $0x48] sm:$0xff] %v5894
  %5900 = vst [vmem:[#allocation5 + $0x58] sm:$0xff] %v5896
  %v5901 = vld [vmem:[%s1612] ss:$8 sm:$0x3]
  %v5902 = vld [vmem:[#allocation2] sm:$0xff]
  %v5903 = vld [vmem:[#allocation2 + $0x8] sm:$0xf]
  %v5904 = vld [vmem:[#allocation2 + $0x10] sm:$0xff]
  %v5905 = vld [vmem:[#allocation2 + $0x18] sm:$0xf]
  %v5906 = vunpack.c.l.bf16 %v5902
  %v5907 = vunpack.c.h.bf16 %v5902
  %v5908 = vunpack.c.l.bf16 %v5903
  %v5909 = vunpack.c.l.bf16 %v5904
  %v5910 = vunpack.c.h.bf16 %v5904
  %v5911 = vunpack.c.l.bf16 %v5905
  %v5913 = vlaneseq
  %v5914 = vshrl.u32 %v5913, 7
  %v5915 = vsub.s32 0, %v5914
  %v5916 = vrot.slane %v5901, %v5915
  %v5917 = vlaneseq
  %v5918 = vshrl.u32 %v5917, 7
  %v5919 = vsub.s32 1, %v5918
  %v5920 = vrot.slane %v5901, %v5919
  %5921 = vrot.lane.b32.xlu0 %v5916, 127
  %v5922 = vpop.permute.xlu0 %5921
  %5923 = vrot.lane.b32.xlu0 %v5920, 127
  %v5924 = vpop.permute.xlu0 %5923
  %v5925 = vsel %vm1637, %v5922, %v5924
  %v5929 = vmul.f32 %v5906, %v5922
  %v5930 = vmul.f32 %v5907, %v5925
  %v5931 = vmul.f32 %v5908, %v5924
  %v5932 = vmul.f32 %v5909, %v5922
  %v5933 = vmul.f32 %v5910, %v5925
  %v5934 = vmul.f32 %v5911, %v5924
  %v5935 = vpack.c.bf16 %v5932, %v5929
  %v5936 = vpack.c.bf16 %v5933, %v5930
  %v5937 = vpack.c.bf16 %v5934, %v5931
  %v5941 = vunpack.c.l.b16 %v5935
  %v5942 = vunpack.c.l.b16 %v5936
  %v5943 = vunpack.c.l.b16 %v5937
  %v5944 = vunpack.c.h.b16 %v5935
  %v5945 = vunpack.c.h.b16 %v5936
  %v5946 = vunpack.c.h.b16 %v5937
  %v5947 = vpack.c.b16 %v5942, %v5941
  %v5948 = vpack.c.b16 %v5943, %v5943
  %v5949 = vpack.c.b16 %v5945, %v5944
  %v5950 = vpack.c.b16 %v5946, %v5946
  %5951 = vrot.lane.b32.xlu0 %v5947, 1
  %v5952 = vpop.permute.xlu0 %5951
  %5953 = vrot.lane.b32.xlu0 %v5948, 1
  %v5954 = vpop.permute.xlu0 %5953
  %5955 = vrot.lane.b32.xlu0 %v5949, 1
  %v5956 = vpop.permute.xlu0 %5955
  %5957 = vrot.lane.b32.xlu0 %v5950, 1
  %v5958 = vpop.permute.xlu0 %5957
  %v5959 = vrot.slane %v5952, 4
  %v5960 = vrot.slane %v5954, 4
  %v5961 = vrot.slane %v5956, 4
  %v5962 = vrot.slane %v5958, 4
  %v5963 = vsel %vm137, %v5959, %v5960
  %v5964 = vsel %vm1677, %v5952, %v5963
  %v5965 = vsel %vm137, %v5961, %v5962
  %v5966 = vsel %vm1677, %v5956, %v5965
  %5969 = vst [vmem:[#allocation5 + $0x60] sm:$0xff] %v5964
  %5970 = vst [vmem:[#allocation5 + $0x70] sm:$0xff] %v5966
  %v5971 = vld [vmem:[#allocation3] sm:$0xff]
  %v5972 = vld [vmem:[#allocation3 + $0x8] sm:$0xf]
  %v5973 = vld [vmem:[#allocation3 + $0x10] sm:$0xff]
  %v5974 = vld [vmem:[#allocation3 + $0x18] sm:$0xf]
  %v5975 = vunpack.c.l.bf16 %v5971
  %v5976 = vunpack.c.h.bf16 %v5971
  %v5977 = vunpack.c.l.bf16 %v5972
  %v5978 = vunpack.c.l.bf16 %v5973
  %v5979 = vunpack.c.h.bf16 %v5973
  %v5980 = vunpack.c.l.bf16 %v5974
  %v5981 = vmul.f32 %v5975, %v5922
  %v5982 = vmul.f32 %v5976, %v5925
  %v5983 = vmul.f32 %v5977, %v5924
  %v5984 = vmul.f32 %v5978, %v5922
  %v5985 = vmul.f32 %v5979, %v5925
  %v5986 = vmul.f32 %v5980, %v5924
  %v5987 = vpack.c.bf16 %v5984, %v5981
  %v5988 = vpack.c.bf16 %v5985, %v5982
  %v5989 = vpack.c.bf16 %v5986, %v5983
  %v5993 = vunpack.c.l.b16 %v5987
  %v5994 = vunpack.c.l.b16 %v5988
  %v5995 = vunpack.c.l.b16 %v5989
  %v5996 = vunpack.c.h.b16 %v5987
  %v5997 = vunpack.c.h.b16 %v5988
  %v5998 = vunpack.c.h.b16 %v5989
  %v5999 = vpack.c.b16 %v5994, %v5993
  %v6000 = vpack.c.b16 %v5995, %v5995
  %v6001 = vpack.c.b16 %v5997, %v5996
  %v6002 = vpack.c.b16 %v5998, %v5998
  %6003 = vrot.lane.b32.xlu0 %v5999, 1
  %v6004 = vpop.permute.xlu0 %6003
  %6005 = vrot.lane.b32.xlu0 %v6000, 1
  %v6006 = vpop.permute.xlu0 %6005
  %6007 = vrot.lane.b32.xlu0 %v6001, 1
  %v6008 = vpop.permute.xlu0 %6007
  %6009 = vrot.lane.b32.xlu0 %v6002, 1
  %v6010 = vpop.permute.xlu0 %6009
  %v6011 = vrot.slane %v6004, 4
  %v6012 = vrot.slane %v6006, 4
  %v6013 = vrot.slane %v6008, 4
  %v6014 = vrot.slane %v6010, 4
  %v6015 = vsel %vm137, %v6011, %v6012
  %v6016 = vsel %vm1677, %v6004, %v6015
  %v6017 = vsel %vm137, %v6013, %v6014
  %v6018 = vsel %vm1677, %v6008, %v6017
  %6021 = vst [vmem:[#allocation5 + $0x68] sm:$0xff] %v6016
  %6022 = vst [vmem:[#allocation5 + $0x78] sm:$0xff] %v6018
  %v6023 = vld [vmem:[%s1737] ss:$8 sm:$0x3]
  %v6024 = vld [vmem:[#allocation2 + $0x4] sm:$0xff]
  %v6025 = vld [vmem:[#allocation2 + $0x14] sm:$0xff]
  %v6026 = vunpack.c.l.bf16 %v6024
  %v6027 = vunpack.c.h.bf16 %v6024
  %v6028 = vunpack.c.l.bf16 %v6025
  %v6029 = vunpack.c.h.bf16 %v6025
  %v6031 = vlaneseq
  %v6032 = vshrl.u32 %v6031, 7
  %v6033 = vsub.s32 0, %v6032
  %v6034 = vrot.slane %v6023, %v6033
  %v6035 = vlaneseq
  %v6036 = vshrl.u32 %v6035, 7
  %v6037 = vsub.s32 1, %v6036
  %v6038 = vrot.slane %v6023, %v6037
  %v6041 = vmul.f32 %v6026, %v6034
  %v6042 = vmul.f32 %v6027, %v6038
  %v6043 = vmul.f32 %v6028, %v6034
  %v6044 = vmul.f32 %v6029, %v6038
  %v6045 = vpack.c.bf16 %v6043, %v6041
  %v6046 = vpack.c.bf16 %v6044, %v6042
  %v6049 = vunpack.c.l.b16 %v6045
  %v6050 = vunpack.c.l.b16 %v6046
  %v6051 = vunpack.c.h.b16 %v6045
  %v6052 = vunpack.c.h.b16 %v6046
  %v6053 = vpack.c.b16 %v6050, %v6049
  %v6054 = vpack.c.b16 %v6052, %v6051
  %6057 = vst [vmem:[#allocation5 + $0x80] sm:$0xff] %v6053
  %6058 = vst [vmem:[#allocation5 + $0x90] sm:$0xff] %v6054
  %v6059 = vld [vmem:[#allocation3 + $0x4] sm:$0xff]
  %v6060 = vld [vmem:[#allocation3 + $0x14] sm:$0xff]
  %v6061 = vunpack.c.l.bf16 %v6059
  %v6062 = vunpack.c.h.bf16 %v6059
  %v6063 = vunpack.c.l.bf16 %v6060
  %v6064 = vunpack.c.h.bf16 %v6060
  %v6065 = vmul.f32 %v6061, %v6034
  %v6066 = vmul.f32 %v6062, %v6038
  %v6067 = vmul.f32 %v6063, %v6034
  %v6068 = vmul.f32 %v6064, %v6038
  %v6069 = vpack.c.bf16 %v6067, %v6065
  %v6070 = vpack.c.bf16 %v6068, %v6066
  %v6073 = vunpack.c.l.b16 %v6069
  %v6074 = vunpack.c.l.b16 %v6070
  %v6075 = vunpack.c.h.b16 %v6069
  %v6076 = vunpack.c.h.b16 %v6070
  %v6077 = vpack.c.b16 %v6074, %v6073
  %v6078 = vpack.c.b16 %v6076, %v6075
  %6081 = vst [vmem:[#allocation5 + $0x88] sm:$0xff] %v6077
  %6082 = vst [vmem:[#allocation5 + $0x98] sm:$0xff] %v6078
  %v6083 = vld [vmem:[%s1798] ss:$8 sm:$0x3]
  %v6084 = vld [vmem:[#allocation2 + $0x4] sm:$0xff]
  %v6085 = vld [vmem:[#allocation2 + $0xc] sm:$0xf]
  %v6086 = vld [vmem:[#allocation2 + $0x14] sm:$0xff]
  %v6087 = vld [vmem:[#allocation2 + $0x1c] sm:$0xf]
  %v6088 = vunpack.c.l.bf16 %v6084
  %v6089 = vunpack.c.h.bf16 %v6084
  %v6090 = vunpack.c.l.bf16 %v6085
  %v6091 = vunpack.c.l.bf16 %v6086
  %v6092 = vunpack.c.h.bf16 %v6086
  %v6093 = vunpack.c.l.bf16 %v6087
  %v6095 = vlaneseq
  %v6096 = vshrl.u32 %v6095, 7
  %v6097 = vsub.s32 0, %v6096
  %v6098 = vrot.slane %v6083, %v6097
  %v6099 = vlaneseq
  %v6100 = vshrl.u32 %v6099, 7
  %v6101 = vsub.s32 1, %v6100
  %v6102 = vrot.slane %v6083, %v6101
  %6103 = vrot.lane.b32.xlu0 %v6098, 1
  %v6104 = vpop.permute.xlu0 %6103
  %6105 = vrot.lane.b32.xlu0 %v6102, 1
  %v6106 = vpop.permute.xlu0 %6105
  %v6107 = vsel %vm1823, %v6104, %v6106
  %v6111 = vmul.f32 %v6088, %v6104
  %v6112 = vmul.f32 %v6089, %v6107
  %v6113 = vmul.f32 %v6090, %v6106
  %v6114 = vmul.f32 %v6091, %v6104
  %v6115 = vmul.f32 %v6092, %v6107
  %v6116 = vmul.f32 %v6093, %v6106
  %v6117 = vpack.c.bf16 %v6114, %v6111
  %v6118 = vpack.c.bf16 %v6115, %v6112
  %v6119 = vpack.c.bf16 %v6116, %v6113
  %v6123 = vunpack.c.l.b16 %v6117
  %v6124 = vunpack.c.l.b16 %v6118
  %v6125 = vunpack.c.l.b16 %v6119
  %v6126 = vunpack.c.h.b16 %v6117
  %v6127 = vunpack.c.h.b16 %v6118
  %v6128 = vunpack.c.h.b16 %v6119
  %v6129 = vpack.c.b16 %v6124, %v6123
  %v6130 = vpack.c.b16 %v6125, %v6125
  %v6131 = vpack.c.b16 %v6127, %v6126
  %v6132 = vpack.c.b16 %v6128, %v6128
  %6133 = vrot.lane.b32.xlu0 %v6129, 127
  %v6134 = vpop.permute.xlu0 %6133
  %6135 = vrot.lane.b32.xlu0 %v6130, 127
  %v6136 = vpop.permute.xlu0 %6135
  %6137 = vrot.lane.b32.xlu0 %v6131, 127
  %v6138 = vpop.permute.xlu0 %6137
  %6139 = vrot.lane.b32.xlu0 %v6132, 127
  %v6140 = vpop.permute.xlu0 %6139
  %v6141 = vrot.slane %v6134, 4
  %v6142 = vrot.slane %v6136, 4
  %v6143 = vrot.slane %v6138, 4
  %v6144 = vrot.slane %v6140, 4
  %v6145 = vsel %vm137, %v6141, %v6142
  %v6146 = vsel %vm1863, %v6134, %v6145
  %v6147 = vsel %vm137, %v6143, %v6144
  %v6148 = vsel %vm1863, %v6138, %v6147
  %6151 = vst [vmem:[#allocation5 + $0xa0] sm:$0xff] %v6146
  %6152 = vst [vmem:[#allocation5 + $0xb0] sm:$0xff] %v6148
  %v6153 = vld [vmem:[#allocation3 + $0x4] sm:$0xff]
  %v6154 = vld [vmem:[#allocation3 + $0xc] sm:$0xf]
  %v6155 = vld [vmem:[#allocation3 + $0x14] sm:$0xff]
  %v6156 = vld [vmem:[#allocation3 + $0x1c] sm:$0xf]
  %v6157 = vunpack.c.l.bf16 %v6153
  %v6158 = vunpack.c.h.bf16 %v6153
  %v6159 = vunpack.c.l.bf16 %v6154
  %v6160 = vunpack.c.l.bf16 %v6155
  %v6161 = vunpack.c.h.bf16 %v6155
  %v6162 = vunpack.c.l.bf16 %v6156
  %v6163 = vmul.f32 %v6157, %v6104
  %v6164 = vmul.f32 %v6158, %v6107
  %v6165 = vmul.f32 %v6159, %v6106
  %v6166 = vmul.f32 %v6160, %v6104
  %v6167 = vmul.f32 %v6161, %v6107
  %v6168 = vmul.f32 %v6162, %v6106
  %v6169 = vpack.c.bf16 %v6166, %v6163
  %v6170 = vpack.c.bf16 %v6167, %v6164
  %v6171 = vpack.c.bf16 %v6168, %v6165
  %v6175 = vunpack.c.l.b16 %v6169
  %v6176 = vunpack.c.l.b16 %v6170
  %v6177 = vunpack.c.l.b16 %v6171
  %v6178 = vunpack.c.h.b16 %v6169
  %v6179 = vunpack.c.h.b16 %v6170
  %v6180 = vunpack.c.h.b16 %v6171
  %v6181 = vpack.c.b16 %v6176, %v6175
  %v6182 = vpack.c.b16 %v6177, %v6177
  %v6183 = vpack.c.b16 %v6179, %v6178
  %v6184 = vpack.c.b16 %v6180, %v6180
  %6185 = vrot.lane.b32.xlu0 %v6181, 127
  %v6186 = vpop.permute.xlu0 %6185
  %6187 = vrot.lane.b32.xlu0 %v6182, 127
  %v6188 = vpop.permute.xlu0 %6187
  %6189 = vrot.lane.b32.xlu0 %v6183, 127
  %v6190 = vpop.permute.xlu0 %6189
  %6191 = vrot.lane.b32.xlu0 %v6184, 127
  %v6192 = vpop.permute.xlu0 %6191
  %v6193 = vrot.slane %v6186, 4
  %v6194 = vrot.slane %v6188, 4
  %v6195 = vrot.slane %v6190, 4
  %v6196 = vrot.slane %v6192, 4
  %v6197 = vsel %vm137, %v6193, %v6194
  %v6198 = vsel %vm1863, %v6186, %v6197
  %v6199 = vsel %vm137, %v6195, %v6196
  %v6200 = vsel %vm1863, %v6190, %v6199
  %6203 = vst [vmem:[#allocation5 + $0xa8] sm:$0xff] %v6198
  %6204 = vst [vmem:[#allocation5 + $0xb8] sm:$0xff] %v6200
  %v6205 = vld [vmem:[%s1923] ss:$8 sm:$0x3]
  %v6206 = vld [vmem:[#allocation2 + $0x4] sm:$0xff]
  %v6207 = vld [vmem:[#allocation2 + $0xc] sm:$0xf]
  %v6208 = vld [vmem:[#allocation2 + $0x14] sm:$0xff]
  %v6209 = vld [vmem:[#allocation2 + $0x1c] sm:$0xf]
  %v6210 = vunpack.c.l.bf16 %v6206
  %v6211 = vunpack.c.h.bf16 %v6206
  %v6212 = vunpack.c.l.bf16 %v6207
  %v6213 = vunpack.c.l.bf16 %v6208
  %v6214 = vunpack.c.h.bf16 %v6208
  %v6215 = vunpack.c.l.bf16 %v6209
  %v6217 = vlaneseq
  %v6218 = vshrl.u32 %v6217, 7
  %v6219 = vsub.s32 0, %v6218
  %v6220 = vrot.slane %v6205, %v6219
  %v6221 = vlaneseq
  %v6222 = vshrl.u32 %v6221, 7
  %v6223 = vsub.s32 1, %v6222
  %v6224 = vrot.slane %v6205, %v6223
  %6225 = vrot.lane.b32.xlu0 %v6220, 7
  %v6226 = vpop.permute.xlu0 %6225
  %6227 = vrot.lane.b32.xlu0 %v6224, 7
  %v6228 = vpop.permute.xlu0 %6227
  %v6229 = vsel %vm1948, %v6226, %v6228
  %v6233 = vmul.f32 %v6210, %v6226
  %v6234 = vmul.f32 %v6211, %v6229
  %v6235 = vmul.f32 %v6212, %v6228
  %v6236 = vmul.f32 %v6213, %v6226
  %v6237 = vmul.f32 %v6214, %v6229
  %v6238 = vmul.f32 %v6215, %v6228
  %v6239 = vpack.c.bf16 %v6236, %v6233
  %v6240 = vpack.c.bf16 %v6237, %v6234
  %v6241 = vpack.c.bf16 %v6238, %v6235
  %v6245 = vunpack.c.l.b16 %v6239
  %v6246 = vunpack.c.l.b16 %v6240
  %v6247 = vunpack.c.l.b16 %v6241
  %v6248 = vunpack.c.h.b16 %v6239
  %v6249 = vunpack.c.h.b16 %v6240
  %v6250 = vunpack.c.h.b16 %v6241
  %v6251 = vpack.c.b16 %v6246, %v6245
  %v6252 = vpack.c.b16 %v6247, %v6247
  %v6253 = vpack.c.b16 %v6249, %v6248
  %v6254 = vpack.c.b16 %v6250, %v6250
  %6255 = vrot.lane.b32.xlu0 %v6251, 121
  %v6256 = vpop.permute.xlu0 %6255
  %6257 = vrot.lane.b32.xlu0 %v6252, 121
  %v6258 = vpop.permute.xlu0 %6257
  %6259 = vrot.lane.b32.xlu0 %v6253, 121
  %v6260 = vpop.permute.xlu0 %6259
  %6261 = vrot.lane.b32.xlu0 %v6254, 121
  %v6262 = vpop.permute.xlu0 %6261
  %v6263 = vrot.slane %v6256, 4
  %v6264 = vrot.slane %v6258, 4
  %v6265 = vrot.slane %v6260, 4
  %v6266 = vrot.slane %v6262, 4
  %v6267 = vsel %vm137, %v6263, %v6264
  %v6268 = vsel %vm1988, %v6256, %v6267
  %v6269 = vsel %vm137, %v6265, %v6266
  %v6270 = vsel %vm1988, %v6260, %v6269
  %6273 = vst [vmem:[#allocation5 + $0xc0] sm:$0xff] %v6268
  %6274 = vst [vmem:[#allocation5 + $0xd0] sm:$0xff] %v6270
  %v6275 = vld [vmem:[#allocation3 + $0x4] sm:$0xff]
  %v6276 = vld [vmem:[#allocation3 + $0xc] sm:$0xf]
  %v6277 = vld [vmem:[#allocation3 + $0x14] sm:$0xff]
  %v6278 = vld [vmem:[#allocation3 + $0x1c] sm:$0xf]
  %v6279 = vunpack.c.l.bf16 %v6275
  %v6280 = vunpack.c.h.bf16 %v6275
  %v6281 = vunpack.c.l.bf16 %v6276
  %v6282 = vunpack.c.l.bf16 %v6277
  %v6283 = vunpack.c.h.bf16 %v6277
  %v6284 = vunpack.c.l.bf16 %v6278
  %v6285 = vmul.f32 %v6279, %v6226
  %v6286 = vmul.f32 %v6280, %v6229
  %v6287 = vmul.f32 %v6281, %v6228
  %v6288 = vmul.f32 %v6282, %v6226
  %v6289 = vmul.f32 %v6283, %v6229
  %v6290 = vmul.f32 %v6284, %v6228
  %v6291 = vpack.c.bf16 %v6288, %v6285
  %v6292 = vpack.c.bf16 %v6289, %v6286
  %v6293 = vpack.c.bf16 %v6290, %v6287
  %v6297 = vunpack.c.l.b16 %v6291
  %v6298 = vunpack.c.l.b16 %v6292
  %v6299 = vunpack.c.l.b16 %v6293
  %v6300 = vunpack.c.h.b16 %v6291
  %v6301 = vunpack.c.h.b16 %v6292
  %v6302 = vunpack.c.h.b16 %v6293
  %v6303 = vpack.c.b16 %v6298, %v6297
  %v6304 = vpack.c.b16 %v6299, %v6299
  %v6305 = vpack.c.b16 %v6301, %v6300
  %v6306 = vpack.c.b16 %v6302, %v6302
  %6307 = vrot.lane.b32.xlu0 %v6303, 121
  %v6308 = vpop.permute.xlu0 %6307
  %6309 = vrot.lane.b32.xlu0 %v6304, 121
  %v6310 = vpop.permute.xlu0 %6309
  %6311 = vrot.lane.b32.xlu0 %v6305, 121
  %v6312 = vpop.permute.xlu0 %6311
  %6313 = vrot.lane.b32.xlu0 %v6306, 121
  %v6314 = vpop.permute.xlu0 %6313
  %v6315 = vrot.slane %v6308, 4
  %v6316 = vrot.slane %v6310, 4
  %v6317 = vrot.slane %v6312, 4
  %v6318 = vrot.slane %v6314, 4
  %v6319 = vsel %vm137, %v6315, %v6316
  %v6320 = vsel %vm1988, %v6308, %v6319
  %v6321 = vsel %vm137, %v6317, %v6318
  %v6322 = vsel %vm1988, %v6312, %v6321
  %6325 = vst [vmem:[#allocation5 + $0xc8] sm:$0xff] %v6320
  %6326 = vst [vmem:[#allocation5 + $0xd8] sm:$0xff] %v6322
  %v6327 = vld [vmem:[%s2048] ss:$8 sm:$0x3]
  %v6328 = vld [vmem:[#allocation2 + $0x4] sm:$0xff]
  %v6329 = vld [vmem:[#allocation2 + $0xc] sm:$0xf]
  %v6330 = vld [vmem:[#allocation2 + $0x14] sm:$0xff]
  %v6331 = vld [vmem:[#allocation2 + $0x1c] sm:$0xf]
  %v6332 = vunpack.c.l.bf16 %v6328
  %v6333 = vunpack.c.h.bf16 %v6328
  %v6334 = vunpack.c.l.bf16 %v6329
  %v6335 = vunpack.c.l.bf16 %v6330
  %v6336 = vunpack.c.h.bf16 %v6330
  %v6337 = vunpack.c.l.bf16 %v6331
  %v6339 = vlaneseq
  %v6340 = vshrl.u32 %v6339, 7
  %v6341 = vsub.s32 0, %v6340
  %v6342 = vrot.slane %v6327, %v6341
  %v6343 = vlaneseq
  %v6344 = vshrl.u32 %v6343, 7
  %v6345 = vsub.s32 1, %v6344
  %v6346 = vrot.slane %v6327, %v6345
  %6347 = vrot.lane.b32.xlu0 %v6342, 8
  %v6348 = vpop.permute.xlu0 %6347
  %6349 = vrot.lane.b32.xlu0 %v6346, 8
  %v6350 = vpop.permute.xlu0 %6349
  %v6351 = vsel %vm2073, %v6348, %v6350
  %v6355 = vmul.f32 %v6332, %v6348
  %v6356 = vmul.f32 %v6333, %v6351
  %v6357 = vmul.f32 %v6334, %v6350
  %v6358 = vmul.f32 %v6335, %v6348
  %v6359 = vmul.f32 %v6336, %v6351
  %v6360 = vmul.f32 %v6337, %v6350
  %v6361 = vpack.c.bf16 %v6358, %v6355
  %v6362 = vpack.c.bf16 %v6359, %v6356
  %v6363 = vpack.c.bf16 %v6360, %v6357
  %v6367 = vunpack.c.l.b16 %v6361
  %v6368 = vunpack.c.l.b16 %v6362
  %v6369 = vunpack.c.l.b16 %v6363
  %v6370 = vunpack.c.h.b16 %v6361
  %v6371 = vunpack.c.h.b16 %v6362
  %v6372 = vunpack.c.h.b16 %v6363
  %v6373 = vpack.c.b16 %v6368, %v6367
  %v6374 = vpack.c.b16 %v6369, %v6369
  %v6375 = vpack.c.b16 %v6371, %v6370
  %v6376 = vpack.c.b16 %v6372, %v6372
  %6377 = vrot.lane.b32.xlu0 %v6373, 120
  %v6378 = vpop.permute.xlu0 %6377
  %6379 = vrot.lane.b32.xlu0 %v6374, 120
  %v6380 = vpop.permute.xlu0 %6379
  %6381 = vrot.lane.b32.xlu0 %v6375, 120
  %v6382 = vpop.permute.xlu0 %6381
  %6383 = vrot.lane.b32.xlu0 %v6376, 120
  %v6384 = vpop.permute.xlu0 %6383
  %v6385 = vrot.slane %v6378, 4
  %v6386 = vrot.slane %v6380, 4
  %v6387 = vrot.slane %v6382, 4
  %v6388 = vrot.slane %v6384, 4
  %v6389 = vsel %vm137, %v6385, %v6386
  %v6390 = vsel %vm2113, %v6378, %v6389
  %v6391 = vsel %vm137, %v6387, %v6388
  %v6392 = vsel %vm2113, %v6382, %v6391
  %6395 = vst [vmem:[#allocation5 + $0xe0] sm:$0xff] %v6390
  %6396 = vst [vmem:[#allocation5 + $0xf0] sm:$0xff] %v6392
  %v6397 = vld [vmem:[#allocation3 + $0x4] sm:$0xff]
  %v6398 = vld [vmem:[#allocation3 + $0xc] sm:$0xf]
  %v6399 = vld [vmem:[#allocation3 + $0x14] sm:$0xff]
  %v6400 = vld [vmem:[#allocation3 + $0x1c] sm:$0xf]
  %v6401 = vunpack.c.l.bf16 %v6397
  %v6402 = vunpack.c.h.bf16 %v6397
  %v6403 = vunpack.c.l.bf16 %v6398
  %v6404 = vunpack.c.l.bf16 %v6399
  %v6405 = vunpack.c.h.bf16 %v6399
  %v6406 = vunpack.c.l.bf16 %v6400
  %v6407 = vmul.f32 %v6401, %v6348
  %v6408 = vmul.f32 %v6402, %v6351
  %v6409 = vmul.f32 %v6403, %v6350
  %v6410 = vmul.f32 %v6404, %v6348
  %v6411 = vmul.f32 %v6405, %v6351
  %v6412 = vmul.f32 %v6406, %v6350
  %v6413 = vpack.c.bf16 %v6410, %v6407
  %v6414 = vpack.c.bf16 %v6411, %v6408
  %v6415 = vpack.c.bf16 %v6412, %v6409
  %v6419 = vunpack.c.l.b16 %v6413
  %v6420 = vunpack.c.l.b16 %v6414
  %v6421 = vunpack.c.l.b16 %v6415
  %v6422 = vunpack.c.h.b16 %v6413
  %v6423 = vunpack.c.h.b16 %v6414
  %v6424 = vunpack.c.h.b16 %v6415
  %v6425 = vpack.c.b16 %v6420, %v6419
  %v6426 = vpack.c.b16 %v6421, %v6421
  %v6427 = vpack.c.b16 %v6423, %v6422
  %v6428 = vpack.c.b16 %v6424, %v6424
  %6429 = vrot.lane.b32.xlu0 %v6425, 120
  %v6430 = vpop.permute.xlu0 %6429
  %6431 = vrot.lane.b32.xlu0 %v6426, 120
  %v6432 = vpop.permute.xlu0 %6431
  %6433 = vrot.lane.b32.xlu0 %v6427, 120
  %v6434 = vpop.permute.xlu0 %6433
  %6435 = vrot.lane.b32.xlu0 %v6428, 120
  %v6436 = vpop.permute.xlu0 %6435
  %v6437 = vrot.slane %v6430, 4
  %v6438 = vrot.slane %v6432, 4
  %v6439 = vrot.slane %v6434, 4
  %v6440 = vrot.slane %v6436, 4
  %v6441 = vsel %vm137, %v6437, %v6438
  %v6442 = vsel %vm2113, %v6430, %v6441
  %v6443 = vsel %vm137, %v6439, %v6440
  %v6444 = vsel %vm2113, %v6434, %v6443
  %6447 = vst [vmem:[#allocation5 + $0xe8] sm:$0xff] %v6442
  %6448 = vst [vmem:[#allocation5 + $0xf8] sm:$0xff] %v6444
  %v6449 = vld [vmem:[%s2173] ss:$8 sm:$0x3]
  %v6450 = vld [vmem:[#allocation2 + $0x4] sm:$0xff]
  %v6451 = vld [vmem:[#allocation2 + $0xc] sm:$0xf]
  %v6452 = vld [vmem:[#allocation2 + $0x14] sm:$0xff]
  %v6453 = vld [vmem:[#allocation2 + $0x1c] sm:$0xf]
  %v6454 = vunpack.c.l.bf16 %v6450
  %v6455 = vunpack.c.h.bf16 %v6450
  %v6456 = vunpack.c.l.bf16 %v6451
  %v6457 = vunpack.c.l.bf16 %v6452
  %v6458 = vunpack.c.h.bf16 %v6452
  %v6459 = vunpack.c.l.bf16 %v6453
  %v6461 = vlaneseq
  %v6462 = vshrl.u32 %v6461, 7
  %v6463 = vsub.s32 0, %v6462
  %v6464 = vrot.slane %v6449, %v6463
  %v6465 = vlaneseq
  %v6466 = vshrl.u32 %v6465, 7
  %v6467 = vsub.s32 1, %v6466
  %v6468 = vrot.slane %v6449, %v6467
  %6469 = vrot.lane.b32.xlu0 %v6464, 9
  %v6470 = vpop.permute.xlu0 %6469
  %6471 = vrot.lane.b32.xlu0 %v6468, 9
  %v6472 = vpop.permute.xlu0 %6471
  %v6473 = vsel %vm2198, %v6470, %v6472
  %v6477 = vmul.f32 %v6454, %v6470
  %v6478 = vmul.f32 %v6455, %v6473
  %v6479 = vmul.f32 %v6456, %v6472
  %v6480 = vmul.f32 %v6457, %v6470
  %v6481 = vmul.f32 %v6458, %v6473
  %v6482 = vmul.f32 %v6459, %v6472
  %v6483 = vpack.c.bf16 %v6480, %v6477
  %v6484 = vpack.c.bf16 %v6481, %v6478
  %v6485 = vpack.c.bf16 %v6482, %v6479
  %v6489 = vunpack.c.l.b16 %v6483
  %v6490 = vunpack.c.l.b16 %v6484
  %v6491 = vunpack.c.l.b16 %v6485
  %v6492 = vunpack.c.h.b16 %v6483
  %v6493 = vunpack.c.h.b16 %v6484
  %v6494 = vunpack.c.h.b16 %v6485
  %v6495 = vpack.c.b16 %v6490, %v6489
  %v6496 = vpack.c.b16 %v6491, %v6491
  %v6497 = vpack.c.b16 %v6493, %v6492
  %v6498 = vpack.c.b16 %v6494, %v6494
  %6499 = vrot.lane.b32.xlu0 %v6495, 119
  %v6500 = vpop.permute.xlu0 %6499
  %6501 = vrot.lane.b32.xlu0 %v6496, 119
  %v6502 = vpop.permute.xlu0 %6501
  %6503 = vrot.lane.b32.xlu0 %v6497, 119
  %v6504 = vpop.permute.xlu0 %6503
  %6505 = vrot.lane.b32.xlu0 %v6498, 119
  %v6506 = vpop.permute.xlu0 %6505
  %v6507 = vrot.slane %v6500, 4
  %v6508 = vrot.slane %v6502, 4
  %v6509 = vrot.slane %v6504, 4
  %v6510 = vrot.slane %v6506, 4
  %v6511 = vsel %vm137, %v6507, %v6508
  %v6512 = vsel %vm2238, %v6500, %v6511
  %v6513 = vsel %vm137, %v6509, %v6510
  %v6514 = vsel %vm2238, %v6504, %v6513
  %6517 = vst [vmem:[#allocation5 + $0x100] sm:$0xff] %v6512
  %6518 = vst [vmem:[#allocation5 + $0x110] sm:$0xff] %v6514
  %v6519 = vld [vmem:[#allocation3 + $0x4] sm:$0xff]
  %v6520 = vld [vmem:[#allocation3 + $0xc] sm:$0xf]
  %v6521 = vld [vmem:[#allocation3 + $0x14] sm:$0xff]
  %v6522 = vld [vmem:[#allocation3 + $0x1c] sm:$0xf]
  %v6523 = vunpack.c.l.bf16 %v6519
  %v6524 = vunpack.c.h.bf16 %v6519
  %v6525 = vunpack.c.l.bf16 %v6520
  %v6526 = vunpack.c.l.bf16 %v6521
  %v6527 = vunpack.c.h.bf16 %v6521
  %v6528 = vunpack.c.l.bf16 %v6522
  %v6529 = vmul.f32 %v6523, %v6470
  %v6530 = vmul.f32 %v6524, %v6473
  %v6531 = vmul.f32 %v6525, %v6472
  %v6532 = vmul.f32 %v6526, %v6470
  %v6533 = vmul.f32 %v6527, %v6473
  %v6534 = vmul.f32 %v6528, %v6472
  %v6535 = vpack.c.bf16 %v6532, %v6529
  %v6536 = vpack.c.bf16 %v6533, %v6530
  %v6537 = vpack.c.bf16 %v6534, %v6531
  %v6541 = vunpack.c.l.b16 %v6535
  %v6542 = vunpack.c.l.b16 %v6536
  %v6543 = vunpack.c.l.b16 %v6537
  %v6544 = vunpack.c.h.b16 %v6535
  %v6545 = vunpack.c.h.b16 %v6536
  %v6546 = vunpack.c.h.b16 %v6537
  %v6547 = vpack.c.b16 %v6542, %v6541
  %v6548 = vpack.c.b16 %v6543, %v6543
  %v6549 = vpack.c.b16 %v6545, %v6544
  %v6550 = vpack.c.b16 %v6546, %v6546
  %6551 = vrot.lane.b32.xlu0 %v6547, 119
  %v6552 = vpop.permute.xlu0 %6551
  %6553 = vrot.lane.b32.xlu0 %v6548, 119
  %v6554 = vpop.permute.xlu0 %6553
  %6555 = vrot.lane.b32.xlu0 %v6549, 119
  %v6556 = vpop.permute.xlu0 %6555
  %6557 = vrot.lane.b32.xlu0 %v6550, 119
  %v6558 = vpop.permute.xlu0 %6557
  %v6559 = vrot.slane %v6552, 4
  %v6560 = vrot.slane %v6554, 4
  %v6561 = vrot.slane %v6556, 4
  %v6562 = vrot.slane %v6558, 4
  %v6563 = vsel %vm137, %v6559, %v6560
  %v6564 = vsel %vm2238, %v6552, %v6563
  %v6565 = vsel %vm137, %v6561, %v6562
  %v6566 = vsel %vm2238, %v6556, %v6565
  %6569 = vst [vmem:[#allocation5 + $0x108] sm:$0xff] %v6564
  %6570 = vst [vmem:[#allocation5 + $0x118] sm:$0xff] %v6566
  %s6571 = scalar_lea.vmem %s3, 16
  %v6572 = vld [vmem:[%s6571] sm:$0xff]
  %v6573 = vld [vmem:[%s6571 + $0x8] sm:$0xff]
  %v6574 = vld [vmem:[#allocation5] sm:$0xff]
  %v6575 = vld [vmem:[#allocation5 + $0x8] sm:$0xff]
  %v6576 = vld [vmem:[#allocation5 + $0x10] sm:$0xff]
  %v6577 = vld [vmem:[#allocation5 + $0x18] sm:$0xff]
  %v6578 = vld [vmem:[#allocation5 + $0x20] sm:$0xff]
  %v6579 = vld [vmem:[#allocation5 + $0x28] sm:$0xff]
  %v6580 = vld [vmem:[#allocation5 + $0x30] sm:$0xff]
  %v6581 = vld [vmem:[#allocation5 + $0x38] sm:$0xff]
  %v6582 = vld [vmem:[#allocation5 + $0x40] sm:$0xff]
  %v6583 = vld [vmem:[#allocation5 + $0x48] sm:$0xff]
  %v6584 = vld [vmem:[#allocation5 + $0x50] sm:$0xff]
  %v6585 = vld [vmem:[#allocation5 + $0x58] sm:$0xff]
  %v6586 = vld [vmem:[#allocation5 + $0x60] sm:$0xff]
  %v6587 = vld [vmem:[#allocation5 + $0x68] sm:$0xff]
  %v6588 = vld [vmem:[#allocation5 + $0x70] sm:$0xff]
  %v6589 = vld [vmem:[#allocation5 + $0x78] sm:$0xff]
  %v6590 = vld [vmem:[#allocation5 + $0x80] sm:$0xff]
  %v6591 = vld [vmem:[#allocation5 + $0x88] sm:$0xff]
  %v6592 = vld [vmem:[#allocation5 + $0x90] sm:$0xff]
  %v6593 = vld [vmem:[#allocation5 + $0x98] sm:$0xff]
  %v6594 = vld [vmem:[#allocation5 + $0xa0] sm:$0xff]
  %v6595 = vld [vmem:[#allocation5 + $0xa8] sm:$0xff]
  %v6596 = vld [vmem:[#allocation5 + $0xb0] sm:$0xff]
  %v6597 = vld [vmem:[#allocation5 + $0xb8] sm:$0xff]
  %v6598 = vld [vmem:[#allocation5 + $0xc0] sm:$0xff]
  %v6599 = vld [vmem:[#allocation5 + $0xc8] sm:$0xff]
  %v6600 = vld [vmem:[#allocation5 + $0xd0] sm:$0xff]
  %v6601 = vld [vmem:[#allocation5 + $0xd8] sm:$0xff]
  %v6602 = vld [vmem:[#allocation5 + $0xe0] sm:$0xff]
  %v6603 = vld [vmem:[#allocation5 + $0xe8] sm:$0xff]
  %v6604 = vld [vmem:[#allocation5 + $0xf0] sm:$0xff]
  %v6605 = vld [vmem:[#allocation5 + $0xf8] sm:$0xff]
  %v6606 = vld [vmem:[#allocation5 + $0x100] sm:$0xff]
  %v6607 = vld [vmem:[#allocation5 + $0x108] sm:$0xff]
  %v6608 = vld [vmem:[#allocation5 + $0x110] sm:$0xff]
  %v6609 = vld [vmem:[#allocation5 + $0x118] sm:$0xff]
  %v6612 = vunpack.c.l.b16 %v6572
  %v6613 = vunpack.c.h.b16 %v6572
  %v6614 = vunpack.c.l.b16 %v6573
  %v6615 = vunpack.c.h.b16 %v6573
  %v6616 = vpack.c.b16 %v6614, %v6612
  %v6617 = vpack.c.b16 %v6615, %v6613
  %v6655 = vunpack.c.l.b16 %v6574
  %v6656 = vunpack.c.h.b16 %v6574
  %v6657 = vunpack.c.l.b16 %v6575
  %v6658 = vunpack.c.h.b16 %v6575
  %v6659 = vunpack.c.l.b16 %v6576
  %v6660 = vunpack.c.h.b16 %v6576
  %v6661 = vunpack.c.l.b16 %v6577
  %v6662 = vunpack.c.h.b16 %v6577
  %v6663 = vunpack.c.l.b16 %v6578
  %v6664 = vunpack.c.h.b16 %v6578
  %v6665 = vunpack.c.l.b16 %v6579
  %v6666 = vunpack.c.h.b16 %v6579
  %v6667 = vunpack.c.l.b16 %v6580
  %v6668 = vunpack.c.h.b16 %v6580
  %v6669 = vunpack.c.l.b16 %v6581
  %v6670 = vunpack.c.h.b16 %v6581
  %v6671 = vunpack.c.l.b16 %v6582
  %v6672 = vunpack.c.h.b16 %v6582
  %v6673 = vunpack.c.l.b16 %v6583
  %v6674 = vunpack.c.h.b16 %v6583
  %v6675 = vunpack.c.l.b16 %v6584
  %v6676 = vunpack.c.h.b16 %v6584
  %v6677 = vunpack.c.l.b16 %v6585
  %v6678 = vunpack.c.h.b16 %v6585
  %v6679 = vunpack.c.l.b16 %v6586
  %v6680 = vunpack.c.h.b16 %v6586
  %v6681 = vunpack.c.l.b16 %v6587
  %v6682 = vunpack.c.h.b16 %v6587
  %v6683 = vunpack.c.l.b16 %v6588
  %v6684 = vunpack.c.h.b16 %v6588
  %v6685 = vunpack.c.l.b16 %v6589
  %v6686 = vunpack.c.h.b16 %v6589
  %v6687 = vunpack.c.l.b16 %v6590
  %v6688 = vunpack.c.h.b16 %v6590
  %v6689 = vunpack.c.l.b16 %v6591
  %v6690 = vunpack.c.h.b16 %v6591
  %v6691 = vunpack.c.l.b16 %v6592
  %v6692 = vunpack.c.h.b16 %v6592
  %v6693 = vunpack.c.l.b16 %v6593
  %v6694 = vunpack.c.h.b16 %v6593
  %v6695 = vunpack.c.l.b16 %v6594
  %v6696 = vunpack.c.h.b16 %v6594
  %v6697 = vunpack.c.l.b16 %v6595
  %v6698 = vunpack.c.h.b16 %v6595
  %v6699 = vunpack.c.l.b16 %v6596
  %v6700 = vunpack.c.h.b16 %v6596
  %v6701 = vunpack.c.l.b16 %v6597
  %v6702 = vunpack.c.h.b16 %v6597
  %v6703 = vunpack.c.l.b16 %v6598
  %v6704 = vunpack.c.h.b16 %v6598
  %v6705 = vunpack.c.l.b16 %v6599
  %v6706 = vunpack.c.h.b16 %v6599
  %v6707 = vunpack.c.l.b16 %v6600
  %v6708 = vunpack.c.h.b16 %v6600
  %v6709 = vunpack.c.l.b16 %v6601
  %v6710 = vunpack.c.h.b16 %v6601
  %v6711 = vunpack.c.l.b16 %v6602
  %v6712 = vunpack.c.h.b16 %v6602
  %v6713 = vunpack.c.l.b16 %v6603
  %v6714 = vunpack.c.h.b16 %v6603
  %v6715 = vunpack.c.l.b16 %v6604
  %v6716 = vunpack.c.h.b16 %v6604
  %v6717 = vunpack.c.l.b16 %v6605
  %v6718 = vunpack.c.h.b16 %v6605
  %v6719 = vunpack.c.l.b16 %v6606
  %v6720 = vunpack.c.h.b16 %v6606
  %v6721 = vunpack.c.l.b16 %v6607
  %v6722 = vunpack.c.h.b16 %v6607
  %v6723 = vunpack.c.l.b16 %v6608
  %v6724 = vunpack.c.h.b16 %v6608
  %v6725 = vunpack.c.l.b16 %v6609
  %v6726 = vunpack.c.h.b16 %v6609
  %v6727 = vpack.c.b16 %v6659, %v6655
  %v6728 = vpack.c.b16 %v6660, %v6656
  %v6729 = vpack.c.b16 %v6661, %v6657
  %v6730 = vpack.c.b16 %v6662, %v6658
  %v6731 = vpack.c.b16 %v6667, %v6663
  %v6732 = vpack.c.b16 %v6668, %v6664
  %v6733 = vpack.c.b16 %v6669, %v6665
  %v6734 = vpack.c.b16 %v6670, %v6666
  %v6735 = vpack.c.b16 %v6675, %v6671
  %v6736 = vpack.c.b16 %v6676, %v6672
  %v6737 = vpack.c.b16 %v6677, %v6673
  %v6738 = vpack.c.b16 %v6678, %v6674
  %v6739 = vpack.c.b16 %v6683, %v6679
  %v6740 = vpack.c.b16 %v6684, %v6680
  %v6741 = vpack.c.b16 %v6685, %v6681
  %v6742 = vpack.c.b16 %v6686, %v6682
  %v6743 = vpack.c.b16 %v6691, %v6687
  %v6744 = vpack.c.b16 %v6692, %v6688
  %v6745 = vpack.c.b16 %v6693, %v6689
  %v6746 = vpack.c.b16 %v6694, %v6690
  %v6747 = vpack.c.b16 %v6699, %v6695
  %v6748 = vpack.c.b16 %v6700, %v6696
  %v6749 = vpack.c.b16 %v6701, %v6697
  %v6750 = vpack.c.b16 %v6702, %v6698
  %v6751 = vpack.c.b16 %v6707, %v6703
  %v6752 = vpack.c.b16 %v6708, %v6704
  %v6753 = vpack.c.b16 %v6709, %v6705
  %v6754 = vpack.c.b16 %v6710, %v6706
  %v6755 = vpack.c.b16 %v6715, %v6711
  %v6756 = vpack.c.b16 %v6716, %v6712
  %v6757 = vpack.c.b16 %v6717, %v6713
  %v6758 = vpack.c.b16 %v6718, %v6714
  %v6759 = vpack.c.b16 %v6723, %v6719
  %v6760 = vpack.c.b16 %v6724, %v6720
  %v6761 = vpack.c.b16 %v6725, %v6721
  %v6762 = vpack.c.b16 %v6726, %v6722
  %v6800 = vsel %vm2526, %v6617, 0
  %6802 = vmatprep.subr.bf16.mxu0 %v6756
  %6803 = vmatpush1.bf16.msra.mxu0 %v6755
  %6804 = vmatprep.subr.bf16.mxu0 %v6752
  %6805 = vmatpush1.bf16.msra.mxu0 %v6751
  %6806 = vmatprep.subr.bf16.mxu0 %v6748
  %6807 = vmatpush1.bf16.msra.mxu0 %v6747
  %6808 = vmatprep.subr.bf16.mxu0 %v6744
  %6809 = vmatpush1.bf16.msra.mxu0 %v6743
  %6810 = vmatprep.subr.bf16.mxu0 %v6740
  %6811 = vmatpush1.bf16.msra.mxu0 %v6739
  %6812 = vmatprep.subr.bf16.mxu0 %v6736
  %6813 = vmatpush1.bf16.msra.mxu0 %v6735
  %6814 = vmatprep.subr.bf16.mxu0 %v6732
  %6815 = vmatpush1.bf16.msra.mxu0 %v6731
  %6816 = vmatprep.subr.bf16.mxu0 %v6728
  %6817 = vmatpush1.bf16.msra.mxu0 %v6727
  %6818 = vmatprep.subr.bf16.mxu0 0
  %6819 = vmatpush2.bf16.msra.mxu0 0
  %6820 = vmatprep.subr.bf16.mxu0 0
  %6821 = vmatpush2.bf16.msra.mxu0 0
  %6822 = vmatprep.subr.bf16.mxu0 0
  %6823 = vmatpush2.bf16.msra.mxu0 0
  %6824 = vmatprep.subr.bf16.mxu0 0
  %6825 = vmatpush2.bf16.msra.mxu0 0
  %6826 = vmatprep.subr.bf16.mxu0 0
  %6827 = vmatpush2.bf16.msra.mxu0 0
  %6828 = vmatprep.subr.bf16.mxu0 0
  %6829 = vmatpush2.bf16.msra.mxu0 0
  %6830 = vmatprep.subr.bf16.mxu0 0
  %6831 = vmatpush2.bf16.msra.mxu0 0
  %6832 = vmatprep.subr.bf16.mxu0 %v6760
  %6833 = vmatpush2.bf16.msra.mxu0 %v6759
  %6834 = vmatprep.mubr.bf16.mxu0 %v6800
  %6835 = vmatmul.mubr.bf16.gmra.mxu0 %v6616
  %v6836 = vpop.f32.mrf.mxu0
  %v6837 = vadd.f32 0.0, %v6836
  %v6838 = vpop.f32.mrf.mxu0
  %v6839 = vadd.f32 0.0, %v6838
  %v6840 = vpop.f32.mrf.mxu0
  %v6841 = vadd.f32 0.0, %v6840
  %v6842 = vpop.f32.mrf.mxu0
  %v6843 = vadd.f32 0.0, %v6842
  %6844 = vdwg.mxu0
  %6845 = vmatprep.subr.bf16.mxu0 %v6758
  %6846 = vmatpush1.bf16.msra.mxu0 %v6757
  %6847 = vmatprep.subr.bf16.mxu0 %v6754
  %6848 = vmatpush1.bf16.msra.mxu0 %v6753
  %6849 = vmatprep.subr.bf16.mxu0 %v6750
  %6850 = vmatpush1.bf16.msra.mxu0 %v6749
  %6851 = vmatprep.subr.bf16.mxu0 %v6746
  %6852 = vmatpush1.bf16.msra.mxu0 %v6745
  %6853 = vmatprep.subr.bf16.mxu0 %v6742
  %6854 = vmatpush1.bf16.msra.mxu0 %v6741
  %6855 = vmatprep.subr.bf16.mxu0 %v6738
  %6856 = vmatpush1.bf16.msra.mxu0 %v6737
  %6857 = vmatprep.subr.bf16.mxu0 %v6734
  %6858 = vmatpush1.bf16.msra.mxu0 %v6733
  %6859 = vmatprep.subr.bf16.mxu0 %v6730
  %6860 = vmatpush1.bf16.msra.mxu0 %v6729
  %6861 = vmatprep.subr.bf16.mxu0 0
  %6862 = vmatpush2.bf16.msra.mxu0 0
  %6863 = vmatprep.subr.bf16.mxu0 0
  %6864 = vmatpush2.bf16.msra.mxu0 0
  %6865 = vmatprep.subr.bf16.mxu0 0
  %6866 = vmatpush2.bf16.msra.mxu0 0
  %6867 = vmatprep.subr.bf16.mxu0 0
  %6868 = vmatpush2.bf16.msra.mxu0 0
  %6869 = vmatprep.subr.bf16.mxu0 0
  %6870 = vmatpush2.bf16.msra.mxu0 0
  %6871 = vmatprep.subr.bf16.mxu0 0
  %6872 = vmatpush2.bf16.msra.mxu0 0
  %6873 = vmatprep.subr.bf16.mxu0 0
  %6874 = vmatpush2.bf16.msra.mxu0 0
  %6875 = vmatprep.subr.bf16.mxu0 %v6762
  %6876 = vmatpush2.bf16.msra.mxu0 %v6761
  %6877 = vmatprep.mubr.bf16.mxu0 %v6800
  %6878 = vmatmul.mubr.bf16.gmra.mxu0 %v6616
  %v6879 = vpop.f32.mrf.mxu0
  %v6880 = vadd.f32 0.0, %v6879
  %v6881 = vpop.f32.mrf.mxu0
  %v6882 = vadd.f32 0.0, %v6881
  %v6883 = vpop.f32.mrf.mxu0
  %v6884 = vadd.f32 0.0, %v6883
  %v6885 = vpop.f32.mrf.mxu0
  %v6886 = vadd.f32 0.0, %v6885
  %6887 = vdwg.mxu0
  %v6890 = vunpack.c.l.b16 %v5497
  %v6891 = vunpack.c.h.b16 %v5497
  %v6892 = vunpack.c.l.b16 %v5498
  %v6893 = vunpack.c.h.b16 %v5498
  %v6894 = vpack.c.b16 %v6892, %v6890
  %v6895 = vpack.c.b16 %v6893, %v6891
  %v6933 = vunpack.c.l.b16 %v5499
  %v6934 = vunpack.c.h.b16 %v5499
  %v6935 = vunpack.c.l.b16 %v5500
  %v6936 = vunpack.c.h.b16 %v5500
  %v6937 = vunpack.c.l.b16 %v5501
  %v6938 = vunpack.c.h.b16 %v5501
  %v6939 = vunpack.c.l.b16 %v5502
  %v6940 = vunpack.c.h.b16 %v5502
  %v6941 = vunpack.c.l.b16 %v5503
  %v6942 = vunpack.c.h.b16 %v5503
  %v6943 = vunpack.c.l.b16 %v5504
  %v6944 = vunpack.c.h.b16 %v5504
  %v6945 = vunpack.c.l.b16 %v5505
  %v6946 = vunpack.c.h.b16 %v5505
  %v6947 = vunpack.c.l.b16 %v5506
  %v6948 = vunpack.c.h.b16 %v5506
  %v6949 = vunpack.c.l.b16 %v5507
  %v6950 = vunpack.c.h.b16 %v5507
  %v6951 = vunpack.c.l.b16 %v5508
  %v6952 = vunpack.c.h.b16 %v5508
  %v6953 = vunpack.c.l.b16 %v5509
  %v6954 = vunpack.c.h.b16 %v5509
  %v6955 = vunpack.c.l.b16 %v5510
  %v6956 = vunpack.c.h.b16 %v5510
  %v6957 = vunpack.c.l.b16 %v5511
  %v6958 = vunpack.c.h.b16 %v5511
  %v6959 = vunpack.c.l.b16 %v5512
  %v6960 = vunpack.c.h.b16 %v5512
  %v6961 = vunpack.c.l.b16 %v5513
  %v6962 = vunpack.c.h.b16 %v5513
  %v6963 = vunpack.c.l.b16 %v5514
  %v6964 = vunpack.c.h.b16 %v5514
  %v6965 = vunpack.c.l.b16 %v5515
  %v6966 = vunpack.c.h.b16 %v5515
  %v6967 = vunpack.c.l.b16 %v5516
  %v6968 = vunpack.c.h.b16 %v5516
  %v6969 = vunpack.c.l.b16 %v5517
  %v6970 = vunpack.c.h.b16 %v5517
  %v6971 = vunpack.c.l.b16 %v5518
  %v6972 = vunpack.c.h.b16 %v5518
  %v6973 = vunpack.c.l.b16 %v5519
  %v6974 = vunpack.c.h.b16 %v5519
  %v6975 = vunpack.c.l.b16 %v5520
  %v6976 = vunpack.c.h.b16 %v5520
  %v6977 = vunpack.c.l.b16 %v5521
  %v6978 = vunpack.c.h.b16 %v5521
  %v6979 = vunpack.c.l.b16 %v5522
  %v6980 = vunpack.c.h.b16 %v5522
  %v6981 = vunpack.c.l.b16 %v5523
  %v6982 = vunpack.c.h.b16 %v5523
  %v6983 = vunpack.c.l.b16 %v5524
  %v6984 = vunpack.c.h.b16 %v5524
  %v6985 = vunpack.c.l.b16 %v5525
  %v6986 = vunpack.c.h.b16 %v5525
  %v6987 = vunpack.c.l.b16 %v5526
  %v6988 = vunpack.c.h.b16 %v5526
  %v6989 = vunpack.c.l.b16 %v5527
  %v6990 = vunpack.c.h.b16 %v5527
  %v6991 = vunpack.c.l.b16 %v5528
  %v6992 = vunpack.c.h.b16 %v5528
  %v6993 = vunpack.c.l.b16 %v5529
  %v6994 = vunpack.c.h.b16 %v5529
  %v6995 = vunpack.c.l.b16 %v5530
  %v6996 = vunpack.c.h.b16 %v5530
  %v6997 = vunpack.c.l.b16 %v5531
  %v6998 = vunpack.c.h.b16 %v5531
  %v6999 = vunpack.c.l.b16 %v5532
  %v7000 = vunpack.c.h.b16 %v5532
  %v7001 = vunpack.c.l.b16 %v5533
  %v7002 = vunpack.c.h.b16 %v5533
  %v7003 = vunpack.c.l.b16 %v5534
  %v7004 = vunpack.c.h.b16 %v5534
  %v7005 = vpack.c.b16 %v6937, %v6933
  %v7006 = vpack.c.b16 %v6938, %v6934
  %v7007 = vpack.c.b16 %v6939, %v6935
  %v7008 = vpack.c.b16 %v6940, %v6936
  %v7009 = vpack.c.b16 %v6945, %v6941
  %v7010 = vpack.c.b16 %v6946, %v6942
  %v7011 = vpack.c.b16 %v6947, %v6943
  %v7012 = vpack.c.b16 %v6948, %v6944
  %v7013 = vpack.c.b16 %v6953, %v6949
  %v7014 = vpack.c.b16 %v6954, %v6950
  %v7015 = vpack.c.b16 %v6955, %v6951
  %v7016 = vpack.c.b16 %v6956, %v6952
  %v7017 = vpack.c.b16 %v6961, %v6957
  %v7018 = vpack.c.b16 %v6962, %v6958
  %v7019 = vpack.c.b16 %v6963, %v6959
  %v7020 = vpack.c.b16 %v6964, %v6960
  %v7021 = vpack.c.b16 %v6969, %v6965
  %v7022 = vpack.c.b16 %v6970, %v6966
  %v7023 = vpack.c.b16 %v6971, %v6967
  %v7024 = vpack.c.b16 %v6972, %v6968
  %v7025 = vpack.c.b16 %v6977, %v6973
  %v7026 = vpack.c.b16 %v6978, %v6974
  %v7027 = vpack.c.b16 %v6979, %v6975
  %v7028 = vpack.c.b16 %v6980, %v6976
  %v7029 = vpack.c.b16 %v6985, %v6981
  %v7030 = vpack.c.b16 %v6986, %v6982
  %v7031 = vpack.c.b16 %v6987, %v6983
  %v7032 = vpack.c.b16 %v6988, %v6984
  %v7033 = vpack.c.b16 %v6993, %v6989
  %v7034 = vpack.c.b16 %v6994, %v6990
  %v7035 = vpack.c.b16 %v6995, %v6991
  %v7036 = vpack.c.b16 %v6996, %v6992
  %v7037 = vpack.c.b16 %v7001, %v6997
  %v7038 = vpack.c.b16 %v7002, %v6998
  %v7039 = vpack.c.b16 %v7003, %v6999
  %v7040 = vpack.c.b16 %v7004, %v7000
  %v7078 = vsel %vm2526, %v6895, 0
  %7080 = vmatprep.subr.bf16.mxu0 %v7034
  %7081 = vmatpush1.bf16.msra.mxu0 %v7033
  %7082 = vmatprep.subr.bf16.mxu0 %v7030
  %7083 = vmatpush1.bf16.msra.mxu0 %v7029
  %7084 = vmatprep.subr.bf16.mxu0 %v7026
  %7085 = vmatpush1.bf16.msra.mxu0 %v7025
  %7086 = vmatprep.subr.bf16.mxu0 %v7022
  %7087 = vmatpush1.bf16.msra.mxu0 %v7021
  %7088 = vmatprep.subr.bf16.mxu0 %v7018
  %7089 = vmatpush1.bf16.msra.mxu0 %v7017
  %7090 = vmatprep.subr.bf16.mxu0 %v7014
  %7091 = vmatpush1.bf16.msra.mxu0 %v7013
  %7092 = vmatprep.subr.bf16.mxu0 %v7010
  %7093 = vmatpush1.bf16.msra.mxu0 %v7009
  %7094 = vmatprep.subr.bf16.mxu0 %v7006
  %7095 = vmatpush1.bf16.msra.mxu0 %v7005
  %7096 = vmatprep.subr.bf16.mxu0 0
  %7097 = vmatpush2.bf16.msra.mxu0 0
  %7098 = vmatprep.subr.bf16.mxu0 0
  %7099 = vmatpush2.bf16.msra.mxu0 0
  %7100 = vmatprep.subr.bf16.mxu0 0
  %7101 = vmatpush2.bf16.msra.mxu0 0
  %7102 = vmatprep.subr.bf16.mxu0 0
  %7103 = vmatpush2.bf16.msra.mxu0 0
  %7104 = vmatprep.subr.bf16.mxu0 0
  %7105 = vmatpush2.bf16.msra.mxu0 0
  %7106 = vmatprep.subr.bf16.mxu0 0
  %7107 = vmatpush2.bf16.msra.mxu0 0
  %7108 = vmatprep.subr.bf16.mxu0 0
  %7109 = vmatpush2.bf16.msra.mxu0 0
  %7110 = vmatprep.subr.bf16.mxu0 %v7038
  %7111 = vmatpush2.bf16.msra.mxu0 %v7037
  %7112 = vmatprep.mubr.bf16.mxu0 %v7078
  %7113 = vmatmul.mubr.bf16.gmra.mxu0 %v6894
  %v7114 = vpop.f32.mrf.mxu0
  %v7115 = vadd.f32 %v6837, %v7114
  %v7116 = vpop.f32.mrf.mxu0
  %v7117 = vadd.f32 %v6839, %v7116
  %v7118 = vpop.f32.mrf.mxu0
  %v7119 = vadd.f32 %v6841, %v7118
  %v7120 = vpop.f32.mrf.mxu0
  %v7121 = vadd.f32 %v6843, %v7120
  %7122 = vdwg.mxu0
  %7123 = vmatprep.subr.bf16.mxu0 %v7036
  %7124 = vmatpush1.bf16.msra.mxu0 %v7035
  %7125 = vmatprep.subr.bf16.mxu0 %v7032
  %7126 = vmatpush1.bf16.msra.mxu0 %v7031
  %7127 = vmatprep.subr.bf16.mxu0 %v7028
  %7128 = vmatpush1.bf16.msra.mxu0 %v7027
  %7129 = vmatprep.subr.bf16.mxu0 %v7024
  %7130 = vmatpush1.bf16.msra.mxu0 %v7023
  %7131 = vmatprep.subr.bf16.mxu0 %v7020
  %7132 = vmatpush1.bf16.msra.mxu0 %v7019
  %7133 = vmatprep.subr.bf16.mxu0 %v7016
  %7134 = vmatpush1.bf16.msra.mxu0 %v7015
  %7135 = vmatprep.subr.bf16.mxu0 %v7012
  %7136 = vmatpush1.bf16.msra.mxu0 %v7011
  %7137 = vmatprep.subr.bf16.mxu0 %v7008
  %7138 = vmatpush1.bf16.msra.mxu0 %v7007
  %7139 = vmatprep.subr.bf16.mxu0 0
  %7140 = vmatpush2.bf16.msra.mxu0 0
  %7141 = vmatprep.subr.bf16.mxu0 0
  %7142 = vmatpush2.bf16.msra.mxu0 0
  %7143 = vmatprep.subr.bf16.mxu0 0
  %7144 = vmatpush2.bf16.msra.mxu0 0
  %7145 = vmatprep.subr.bf16.mxu0 0
  %7146 = vmatpush2.bf16.msra.mxu0 0
  %7147 = vmatprep.subr.bf16.mxu0 0
  %7148 = vmatpush2.bf16.msra.mxu0 0
  %7149 = vmatprep.subr.bf16.mxu0 0
  %7150 = vmatpush2.bf16.msra.mxu0 0
  %7151 = vmatprep.subr.bf16.mxu0 0
  %7152 = vmatpush2.bf16.msra.mxu0 0
  %7153 = vmatprep.subr.bf16.mxu0 %v7040
  %7154 = vmatpush2.bf16.msra.mxu0 %v7039
  %7155 = vmatprep.mubr.bf16.mxu0 %v7078
  %7156 = vmatmul.mubr.bf16.gmra.mxu0 %v6894
  %v7157 = vpop.f32.mrf.mxu0
  %v7158 = vadd.f32 %v6880, %v7157
  %v7159 = vpop.f32.mrf.mxu0
  %v7160 = vadd.f32 %v6882, %v7159
  %v7161 = vpop.f32.mrf.mxu0
  %v7162 = vadd.f32 %v6884, %v7161
  %v7163 = vpop.f32.mrf.mxu0
  %v7164 = vadd.f32 %v6886, %v7163
  %7165 = vdwg.mxu0
  %v7166 = vld [vmem:[%s2894] ss:$8 sm:$0x3]
  %v7167 = vld [vmem:[#allocation2 + $0x4] sm:$0xff]
  %v7168 = vld [vmem:[#allocation2 + $0xc] sm:$0xf]
  %v7169 = vld [vmem:[#allocation2 + $0x14] sm:$0xff]
  %v7170 = vld [vmem:[#allocation2 + $0x1c] sm:$0xf]
  %v7171 = vunpack.c.l.bf16 %v7167
  %v7172 = vunpack.c.h.bf16 %v7167
  %v7173 = vunpack.c.l.bf16 %v7168
  %v7174 = vunpack.c.l.bf16 %v7169
  %v7175 = vunpack.c.h.bf16 %v7169
  %v7176 = vunpack.c.l.bf16 %v7170
  %v7178 = vlaneseq
  %v7179 = vshrl.u32 %v7178, 7
  %v7180 = vsub.s32 0, %v7179
  %v7181 = vrot.slane %v7166, %v7180
  %v7182 = vlaneseq
  %v7183 = vshrl.u32 %v7182, 7
  %v7184 = vsub.s32 1, %v7183
  %v7185 = vrot.slane %v7166, %v7184
  %7186 = vrot.lane.b32.xlu0 %v7181, 55
  %v7187 = vpop.permute.xlu0 %7186
  %7188 = vrot.lane.b32.xlu0 %v7185, 55
  %v7189 = vpop.permute.xlu0 %7188
  %v7190 = vsel %vm98, %v7187, %v7189
  %v7194 = vmul.f32 %v7171, %v7187
  %v7195 = vmul.f32 %v7172, %v7190
  %v7196 = vmul.f32 %v7173, %v7189
  %v7197 = vmul.f32 %v7174, %v7187
  %v7198 = vmul.f32 %v7175, %v7190
  %v7199 = vmul.f32 %v7176, %v7189
  %v7200 = vpack.c.bf16 %v7197, %v7194
  %v7201 = vpack.c.bf16 %v7198, %v7195
  %v7202 = vpack.c.bf16 %v7199, %v7196
  %v7206 = vunpack.c.l.b16 %v7200
  %v7207 = vunpack.c.l.b16 %v7201
  %v7208 = vunpack.c.l.b16 %v7202
  %v7209 = vunpack.c.h.b16 %v7200
  %v7210 = vunpack.c.h.b16 %v7201
  %v7211 = vunpack.c.h.b16 %v7202
  %v7212 = vpack.c.b16 %v7207, %v7206
  %v7213 = vpack.c.b16 %v7208, %v7208
  %v7214 = vpack.c.b16 %v7210, %v7209
  %v7215 = vpack.c.b16 %v7211, %v7211
  %7216 = vrot.lane.b32.xlu0 %v7212, 73
  %v7217 = vpop.permute.xlu0 %7216
  %7218 = vrot.lane.b32.xlu0 %v7213, 73
  %v7219 = vpop.permute.xlu0 %7218
  %7220 = vrot.lane.b32.xlu0 %v7214, 73
  %v7221 = vpop.permute.xlu0 %7220
  %7222 = vrot.lane.b32.xlu0 %v7215, 73
  %v7223 = vpop.permute.xlu0 %7222
  %v7224 = vrot.slane %v7217, 4
  %v7225 = vrot.slane %v7219, 4
  %v7226 = vrot.slane %v7221, 4
  %v7227 = vrot.slane %v7223, 4
  %v7228 = vsel %vm137, %v7224, %v7225
  %v7229 = vsel %vm139, %v7217, %v7228
  %v7230 = vsel %vm137, %v7226, %v7227
  %v7231 = vsel %vm139, %v7221, %v7230
  %7234 = vst [vmem:[#allocation4] sm:$0xff] %v7229
  %7235 = vst [vmem:[#allocation4 + $0x10] sm:$0xff] %v7231
  %v7236 = vld [vmem:[#allocation3 + $0x4] sm:$0xff]
  %v7237 = vld [vmem:[#allocation3 + $0xc] sm:$0xf]
  %v7238 = vld [vmem:[#allocation3 + $0x14] sm:$0xff]
  %v7239 = vld [vmem:[#allocation3 + $0x1c] sm:$0xf]
  %v7240 = vunpack.c.l.bf16 %v7236
  %v7241 = vunpack.c.h.bf16 %v7236
  %v7242 = vunpack.c.l.bf16 %v7237
  %v7243 = vunpack.c.l.bf16 %v7238
  %v7244 = vunpack.c.h.bf16 %v7238
  %v7245 = vunpack.c.l.bf16 %v7239
  %v7246 = vmul.f32 %v7240, %v7187
  %v7247 = vmul.f32 %v7241, %v7190
  %v7248 = vmul.f32 %v7242, %v7189
  %v7249 = vmul.f32 %v7243, %v7187
  %v7250 = vmul.f32 %v7244, %v7190
  %v7251 = vmul.f32 %v7245, %v7189
  %v7252 = vpack.c.bf16 %v7249, %v7246
  %v7253 = vpack.c.bf16 %v7250, %v7247
  %v7254 = vpack.c.bf16 %v7251, %v7248
  %v7258 = vunpack.c.l.b16 %v7252
  %v7259 = vunpack.c.l.b16 %v7253
  %v7260 = vunpack.c.l.b16 %v7254
  %v7261 = vunpack.c.h.b16 %v7252
  %v7262 = vunpack.c.h.b16 %v7253
  %v7263 = vunpack.c.h.b16 %v7254
  %v7264 = vpack.c.b16 %v7259, %v7258
  %v7265 = vpack.c.b16 %v7260, %v7260
  %v7266 = vpack.c.b16 %v7262, %v7261
  %v7267 = vpack.c.b16 %v7263, %v7263
  %7268 = vrot.lane.b32.xlu0 %v7264, 73
  %v7269 = vpop.permute.xlu0 %7268
  %7270 = vrot.lane.b32.xlu0 %v7265, 73
  %v7271 = vpop.permute.xlu0 %7270
  %7272 = vrot.lane.b32.xlu0 %v7266, 73
  %v7273 = vpop.permute.xlu0 %7272
  %7274 = vrot.lane.b32.xlu0 %v7267, 73
  %v7275 = vpop.permute.xlu0 %7274
  %v7276 = vrot.slane %v7269, 4
  %v7277 = vrot.slane %v7271, 4
  %v7278 = vrot.slane %v7273, 4
  %v7279 = vrot.slane %v7275, 4
  %v7280 = vsel %vm137, %v7276, %v7277
  %v7281 = vsel %vm139, %v7269, %v7280
  %v7282 = vsel %vm137, %v7278, %v7279
  %v7283 = vsel %vm139, %v7273, %v7282
  %7286 = vst [vmem:[#allocation4 + $0x8] sm:$0xff] %v7281
  %7287 = vst [vmem:[#allocation4 + $0x18] sm:$0xff] %v7283
  %v7288 = vld [vmem:[%s3017] ss:$8 sm:$0x3]
  %v7289 = vld [vmem:[#allocation2 + $0x4] sm:$0xff]
  %v7290 = vld [vmem:[#allocation2 + $0xc] sm:$0xf]
  %v7291 = vld [vmem:[#allocation2 + $0x14] sm:$0xff]
  %v7292 = vld [vmem:[#allocation2 + $0x1c] sm:$0xf]
  %v7293 = vunpack.c.l.bf16 %v7289
  %v7294 = vunpack.c.h.bf16 %v7289
  %v7295 = vunpack.c.l.bf16 %v7290
  %v7296 = vunpack.c.l.bf16 %v7291
  %v7297 = vunpack.c.h.bf16 %v7291
  %v7298 = vunpack.c.l.bf16 %v7292
  %v7300 = vlaneseq
  %v7301 = vshrl.u32 %v7300, 7
  %v7302 = vsub.s32 0, %v7301
  %v7303 = vrot.slane %v7288, %v7302
  %v7304 = vlaneseq
  %v7305 = vshrl.u32 %v7304, 7
  %v7306 = vsub.s32 1, %v7305
  %v7307 = vrot.slane %v7288, %v7306
  %7308 = vrot.lane.b32.xlu0 %v7303, 56
  %v7309 = vpop.permute.xlu0 %7308
  %7310 = vrot.lane.b32.xlu0 %v7307, 56
  %v7311 = vpop.permute.xlu0 %7310
  %v7312 = vsel %vm224, %v7309, %v7311
  %v7316 = vmul.f32 %v7293, %v7309
  %v7317 = vmul.f32 %v7294, %v7312
  %v7318 = vmul.f32 %v7295, %v7311
  %v7319 = vmul.f32 %v7296, %v7309
  %v7320 = vmul.f32 %v7297, %v7312
  %v7321 = vmul.f32 %v7298, %v7311
  %v7322 = vpack.c.bf16 %v7319, %v7316
  %v7323 = vpack.c.bf16 %v7320, %v7317
  %v7324 = vpack.c.bf16 %v7321, %v7318
  %v7328 = vunpack.c.l.b16 %v7322
  %v7329 = vunpack.c.l.b16 %v7323
  %v7330 = vunpack.c.l.b16 %v7324
  %v7331 = vunpack.c.h.b16 %v7322
  %v7332 = vunpack.c.h.b16 %v7323
  %v7333 = vunpack.c.h.b16 %v7324
  %v7334 = vpack.c.b16 %v7329, %v7328
  %v7335 = vpack.c.b16 %v7330, %v7330
  %v7336 = vpack.c.b16 %v7332, %v7331
  %v7337 = vpack.c.b16 %v7333, %v7333
  %7338 = vrot.lane.b32.xlu0 %v7334, 72
  %v7339 = vpop.permute.xlu0 %7338
  %7340 = vrot.lane.b32.xlu0 %v7335, 72
  %v7341 = vpop.permute.xlu0 %7340
  %7342 = vrot.lane.b32.xlu0 %v7336, 72
  %v7343 = vpop.permute.xlu0 %7342
  %7344 = vrot.lane.b32.xlu0 %v7337, 72
  %v7345 = vpop.permute.xlu0 %7344
  %v7346 = vrot.slane %v7339, 4
  %v7347 = vrot.slane %v7341, 4
  %v7348 = vrot.slane %v7343, 4
  %v7349 = vrot.slane %v7345, 4
  %v7350 = vsel %vm137, %v7346, %v7347
  %v7351 = vsel %vm264, %v7339, %v7350
  %v7352 = vsel %vm137, %v7348, %v7349
  %v7353 = vsel %vm264, %v7343, %v7352
  %7356 = vst [vmem:[#allocation4 + $0x20] sm:$0xff] %v7351
  %7357 = vst [vmem:[#allocation4 + $0x30] sm:$0xff] %v7353
  %v7358 = vld [vmem:[#allocation3 + $0x4] sm:$0xff]
  %v7359 = vld [vmem:[#allocation3 + $0xc] sm:$0xf]
  %v7360 = vld [vmem:[#allocation3 + $0x14] sm:$0xff]
  %v7361 = vld [vmem:[#allocation3 + $0x1c] sm:$0xf]
  %v7362 = vunpack.c.l.bf16 %v7358
  %v7363 = vunpack.c.h.bf16 %v7358
  %v7364 = vunpack.c.l.bf16 %v7359
  %v7365 = vunpack.c.l.bf16 %v7360
  %v7366 = vunpack.c.h.bf16 %v7360
  %v7367 = vunpack.c.l.bf16 %v7361
  %v7368 = vmul.f32 %v7362, %v7309
  %v7369 = vmul.f32 %v7363, %v7312
  %v7370 = vmul.f32 %v7364, %v7311
  %v7371 = vmul.f32 %v7365, %v7309
  %v7372 = vmul.f32 %v7366, %v7312
  %v7373 = vmul.f32 %v7367, %v7311
  %v7374 = vpack.c.bf16 %v7371, %v7368
  %v7375 = vpack.c.bf16 %v7372, %v7369
  %v7376 = vpack.c.bf16 %v7373, %v7370
  %v7380 = vunpack.c.l.b16 %v7374
  %v7381 = vunpack.c.l.b16 %v7375
  %v7382 = vunpack.c.l.b16 %v7376
  %v7383 = vunpack.c.h.b16 %v7374
  %v7384 = vunpack.c.h.b16 %v7375
  %v7385 = vunpack.c.h.b16 %v7376
  %v7386 = vpack.c.b16 %v7381, %v7380
  %v7387 = vpack.c.b16 %v7382, %v7382
  %v7388 = vpack.c.b16 %v7384, %v7383
  %v7389 = vpack.c.b16 %v7385, %v7385
  %7390 = vrot.lane.b32.xlu0 %v7386, 72
  %v7391 = vpop.permute.xlu0 %7390
  %7392 = vrot.lane.b32.xlu0 %v7387, 72
  %v7393 = vpop.permute.xlu0 %7392
  %7394 = vrot.lane.b32.xlu0 %v7388, 72
  %v7395 = vpop.permute.xlu0 %7394
  %7396 = vrot.lane.b32.xlu0 %v7389, 72
  %v7397 = vpop.permute.xlu0 %7396
  %v7398 = vrot.slane %v7391, 4
  %v7399 = vrot.slane %v7393, 4
  %v7400 = vrot.slane %v7395, 4
  %v7401 = vrot.slane %v7397, 4
  %v7402 = vsel %vm137, %v7398, %v7399
  %v7403 = vsel %vm264, %v7391, %v7402
  %v7404 = vsel %vm137, %v7400, %v7401
  %v7405 = vsel %vm264, %v7395, %v7404
  %7408 = vst [vmem:[#allocation4 + $0x28] sm:$0xff] %v7403
  %7409 = vst [vmem:[#allocation4 + $0x38] sm:$0xff] %v7405
  %v7410 = vld [vmem:[%s3140] ss:$8 sm:$0x3]
  %v7411 = vld [vmem:[#allocation2 + $0x4] sm:$0xff]
  %v7412 = vld [vmem:[#allocation2 + $0xc] sm:$0xf]
  %v7413 = vld [vmem:[#allocation2 + $0x14] sm:$0xff]
  %v7414 = vld [vmem:[#allocation2 + $0x1c] sm:$0xf]
  %v7415 = vunpack.c.l.bf16 %v7411
  %v7416 = vunpack.c.h.bf16 %v7411
  %v7417 = vunpack.c.l.bf16 %v7412
  %v7418 = vunpack.c.l.bf16 %v7413
  %v7419 = vunpack.c.h.bf16 %v7413
  %v7420 = vunpack.c.l.bf16 %v7414
  %v7422 = vlaneseq
  %v7423 = vshrl.u32 %v7422, 7
  %v7424 = vsub.s32 0, %v7423
  %v7425 = vrot.slane %v7410, %v7424
  %v7426 = vlaneseq
  %v7427 = vshrl.u32 %v7426, 7
  %v7428 = vsub.s32 1, %v7427
  %v7429 = vrot.slane %v7410, %v7428
  %7430 = vrot.lane.b32.xlu0 %v7425, 57
  %v7431 = vpop.permute.xlu0 %7430
  %7432 = vrot.lane.b32.xlu0 %v7429, 57
  %v7433 = vpop.permute.xlu0 %7432
  %v7434 = vsel %vm349, %v7431, %v7433
  %v7438 = vmul.f32 %v7415, %v7431
  %v7439 = vmul.f32 %v7416, %v7434
  %v7440 = vmul.f32 %v7417, %v7433
  %v7441 = vmul.f32 %v7418, %v7431
  %v7442 = vmul.f32 %v7419, %v7434
  %v7443 = vmul.f32 %v7420, %v7433
  %v7444 = vpack.c.bf16 %v7441, %v7438
  %v7445 = vpack.c.bf16 %v7442, %v7439
  %v7446 = vpack.c.bf16 %v7443, %v7440
  %v7450 = vunpack.c.l.b16 %v7444
  %v7451 = vunpack.c.l.b16 %v7445
  %v7452 = vunpack.c.l.b16 %v7446
  %v7453 = vunpack.c.h.b16 %v7444
  %v7454 = vunpack.c.h.b16 %v7445
  %v7455 = vunpack.c.h.b16 %v7446
  %v7456 = vpack.c.b16 %v7451, %v7450
  %v7457 = vpack.c.b16 %v7452, %v7452
  %v7458 = vpack.c.b16 %v7454, %v7453
  %v7459 = vpack.c.b16 %v7455, %v7455
  %7460 = vrot.lane.b32.xlu0 %v7456, 71
  %v7461 = vpop.permute.xlu0 %7460
  %7462 = vrot.lane.b32.xlu0 %v7457, 71
  %v7463 = vpop.permute.xlu0 %7462
  %7464 = vrot.lane.b32.xlu0 %v7458, 71
  %v7465 = vpop.permute.xlu0 %7464
  %7466 = vrot.lane.b32.xlu0 %v7459, 71
  %v7467 = vpop.permute.xlu0 %7466
  %v7468 = vrot.slane %v7461, 4
  %v7469 = vrot.slane %v7463, 4
  %v7470 = vrot.slane %v7465, 4
  %v7471 = vrot.slane %v7467, 4
  %v7472 = vsel %vm137, %v7468, %v7469
  %v7473 = vsel %vm389, %v7461, %v7472
  %v7474 = vsel %vm137, %v7470, %v7471
  %v7475 = vsel %vm389, %v7465, %v7474
  %7478 = vst [vmem:[#allocation4 + $0x40] sm:$0xff] %v7473
  %7479 = vst [vmem:[#allocation4 + $0x50] sm:$0xff] %v7475
  %v7480 = vld [vmem:[#allocation3 + $0x4] sm:$0xff]
  %v7481 = vld [vmem:[#allocation3 + $0xc] sm:$0xf]
  %v7482 = vld [vmem:[#allocation3 + $0x14] sm:$0xff]
  %v7483 = vld [vmem:[#allocation3 + $0x1c] sm:$0xf]
  %v7484 = vunpack.c.l.bf16 %v7480
  %v7485 = vunpack.c.h.bf16 %v7480
  %v7486 = vunpack.c.l.bf16 %v7481
  %v7487 = vunpack.c.l.bf16 %v7482
  %v7488 = vunpack.c.h.bf16 %v7482
  %v7489 = vunpack.c.l.bf16 %v7483
  %v7490 = vmul.f32 %v7484, %v7431
  %v7491 = vmul.f32 %v7485, %v7434
  %v7492 = vmul.f32 %v7486, %v7433
  %v7493 = vmul.f32 %v7487, %v7431
  %v7494 = vmul.f32 %v7488, %v7434
  %v7495 = vmul.f32 %v7489, %v7433
  %v7496 = vpack.c.bf16 %v7493, %v7490
  %v7497 = vpack.c.bf16 %v7494, %v7491
  %v7498 = vpack.c.bf16 %v7495, %v7492
  %v7502 = vunpack.c.l.b16 %v7496
  %v7503 = vunpack.c.l.b16 %v7497
  %v7504 = vunpack.c.l.b16 %v7498
  %v7505 = vunpack.c.h.b16 %v7496
  %v7506 = vunpack.c.h.b16 %v7497
  %v7507 = vunpack.c.h.b16 %v7498
  %v7508 = vpack.c.b16 %v7503, %v7502
  %v7509 = vpack.c.b16 %v7504, %v7504
  %v7510 = vpack.c.b16 %v7506, %v7505
  %v7511 = vpack.c.b16 %v7507, %v7507
  %7512 = vrot.lane.b32.xlu0 %v7508, 71
  %v7513 = vpop.permute.xlu0 %7512
  %7514 = vrot.lane.b32.xlu0 %v7509, 71
  %v7515 = vpop.permute.xlu0 %7514
  %7516 = vrot.lane.b32.xlu0 %v7510, 71
  %v7517 = vpop.permute.xlu0 %7516
  %7518 = vrot.lane.b32.xlu0 %v7511, 71
  %v7519 = vpop.permute.xlu0 %7518
  %v7520 = vrot.slane %v7513, 4
  %v7521 = vrot.slane %v7515, 4
  %v7522 = vrot.slane %v7517, 4
  %v7523 = vrot.slane %v7519, 4
  %v7524 = vsel %vm137, %v7520, %v7521
  %v7525 = vsel %vm389, %v7513, %v7524
  %v7526 = vsel %vm137, %v7522, %v7523
  %v7527 = vsel %vm389, %v7517, %v7526
  %7530 = vst [vmem:[#allocation4 + $0x48] sm:$0xff] %v7525
  %7531 = vst [vmem:[#allocation4 + $0x58] sm:$0xff] %v7527
  %v7532 = vld [vmem:[%s3263] ss:$8 sm:$0x3]
  %v7533 = vld [vmem:[#allocation2 + $0x4] sm:$0xff]
  %v7534 = vld [vmem:[#allocation2 + $0xc] sm:$0xf]
  %v7535 = vld [vmem:[#allocation2 + $0x14] sm:$0xff]
  %v7536 = vld [vmem:[#allocation2 + $0x1c] sm:$0xf]
  %v7537 = vunpack.c.l.bf16 %v7533
  %v7538 = vunpack.c.h.bf16 %v7533
  %v7539 = vunpack.c.l.bf16 %v7534
  %v7540 = vunpack.c.l.bf16 %v7535
  %v7541 = vunpack.c.h.bf16 %v7535
  %v7542 = vunpack.c.l.bf16 %v7536
  %v7544 = vlaneseq
  %v7545 = vshrl.u32 %v7544, 7
  %v7546 = vsub.s32 0, %v7545
  %v7547 = vrot.slane %v7532, %v7546
  %v7548 = vlaneseq
  %v7549 = vshrl.u32 %v7548, 7
  %v7550 = vsub.s32 1, %v7549
  %v7551 = vrot.slane %v7532, %v7550
  %7552 = vrot.lane.b32.xlu0 %v7547, 63
  %v7553 = vpop.permute.xlu0 %7552
  %7554 = vrot.lane.b32.xlu0 %v7551, 63
  %v7555 = vpop.permute.xlu0 %7554
  %v7556 = vsel %vm474, %v7553, %v7555
  %v7560 = vmul.f32 %v7537, %v7553
  %v7561 = vmul.f32 %v7538, %v7556
  %v7562 = vmul.f32 %v7539, %v7555
  %v7563 = vmul.f32 %v7540, %v7553
  %v7564 = vmul.f32 %v7541, %v7556
  %v7565 = vmul.f32 %v7542, %v7555
  %v7566 = vpack.c.bf16 %v7563, %v7560
  %v7567 = vpack.c.bf16 %v7564, %v7561
  %v7568 = vpack.c.bf16 %v7565, %v7562
  %v7572 = vunpack.c.l.b16 %v7566
  %v7573 = vunpack.c.l.b16 %v7567
  %v7574 = vunpack.c.l.b16 %v7568
  %v7575 = vunpack.c.h.b16 %v7566
  %v7576 = vunpack.c.h.b16 %v7567
  %v7577 = vunpack.c.h.b16 %v7568
  %v7578 = vpack.c.b16 %v7573, %v7572
  %v7579 = vpack.c.b16 %v7574, %v7574
  %v7580 = vpack.c.b16 %v7576, %v7575
  %v7581 = vpack.c.b16 %v7577, %v7577
  %7582 = vrot.lane.b32.xlu0 %v7578, 65
  %v7583 = vpop.permute.xlu0 %7582
  %7584 = vrot.lane.b32.xlu0 %v7579, 65
  %v7585 = vpop.permute.xlu0 %7584
  %7586 = vrot.lane.b32.xlu0 %v7580, 65
  %v7587 = vpop.permute.xlu0 %7586
  %7588 = vrot.lane.b32.xlu0 %v7581, 65
  %v7589 = vpop.permute.xlu0 %7588
  %v7590 = vrot.slane %v7583, 4
  %v7591 = vrot.slane %v7585, 4
  %v7592 = vrot.slane %v7587, 4
  %v7593 = vrot.slane %v7589, 4
  %v7594 = vsel %vm137, %v7590, %v7591
  %v7595 = vsel %vm514, %v7583, %v7594
  %v7596 = vsel %vm137, %v7592, %v7593
  %v7597 = vsel %vm514, %v7587, %v7596
  %7600 = vst [vmem:[#allocation4 + $0x60] sm:$0xff] %v7595
  %7601 = vst [vmem:[#allocation4 + $0x70] sm:$0xff] %v7597
  %v7602 = vld [vmem:[#allocation3 + $0x4] sm:$0xff]
  %v7603 = vld [vmem:[#allocation3 + $0xc] sm:$0xf]
  %v7604 = vld [vmem:[#allocation3 + $0x14] sm:$0xff]
  %v7605 = vld [vmem:[#allocation3 + $0x1c] sm:$0xf]
  %v7606 = vunpack.c.l.bf16 %v7602
  %v7607 = vunpack.c.h.bf16 %v7602
  %v7608 = vunpack.c.l.bf16 %v7603
  %v7609 = vunpack.c.l.bf16 %v7604
  %v7610 = vunpack.c.h.bf16 %v7604
  %v7611 = vunpack.c.l.bf16 %v7605
  %v7612 = vmul.f32 %v7606, %v7553
  %v7613 = vmul.f32 %v7607, %v7556
  %v7614 = vmul.f32 %v7608, %v7555
  %v7615 = vmul.f32 %v7609, %v7553
  %v7616 = vmul.f32 %v7610, %v7556
  %v7617 = vmul.f32 %v7611, %v7555
  %v7618 = vpack.c.bf16 %v7615, %v7612
  %v7619 = vpack.c.bf16 %v7616, %v7613
  %v7620 = vpack.c.bf16 %v7617, %v7614
  %v7624 = vunpack.c.l.b16 %v7618
  %v7625 = vunpack.c.l.b16 %v7619
  %v7626 = vunpack.c.l.b16 %v7620
  %v7627 = vunpack.c.h.b16 %v7618
  %v7628 = vunpack.c.h.b16 %v7619
  %v7629 = vunpack.c.h.b16 %v7620
  %v7630 = vpack.c.b16 %v7625, %v7624
  %v7631 = vpack.c.b16 %v7626, %v7626
  %v7632 = vpack.c.b16 %v7628, %v7627
  %v7633 = vpack.c.b16 %v7629, %v7629
  %7634 = vrot.lane.b32.xlu0 %v7630, 65
  %v7635 = vpop.permute.xlu0 %7634
  %7636 = vrot.lane.b32.xlu0 %v7631, 65
  %v7637 = vpop.permute.xlu0 %7636
  %7638 = vrot.lane.b32.xlu0 %v7632, 65
  %v7639 = vpop.permute.xlu0 %7638
  %7640 = vrot.lane.b32.xlu0 %v7633, 65
  %v7641 = vpop.permute.xlu0 %7640
  %v7642 = vrot.slane %v7635, 4
  %v7643 = vrot.slane %v7637, 4
  %v7644 = vrot.slane %v7639, 4
  %v7645 = vrot.slane %v7641, 4
  %v7646 = vsel %vm137, %v7642, %v7643
  %v7647 = vsel %vm514, %v7635, %v7646
  %v7648 = vsel %vm137, %v7644, %v7645
  %v7649 = vsel %vm514, %v7639, %v7648
  %7652 = vst [vmem:[#allocation4 + $0x68] sm:$0xff] %v7647
  %7653 = vst [vmem:[#allocation4 + $0x78] sm:$0xff] %v7649
  %v7654 = vld [vmem:[%s3386] ss:$8 sm:$0x3]
  %v7655 = vld [vmem:[#allocation2 + $0x4] sm:$0xff]
  %v7656 = vld [vmem:[#allocation2 + $0xc] sm:$0xf]
  %v7657 = vld [vmem:[#allocation2 + $0x14] sm:$0xff]
  %v7658 = vld [vmem:[#allocation2 + $0x1c] sm:$0xf]
  %v7659 = vunpack.c.l.bf16 %v7655
  %v7660 = vunpack.c.h.bf16 %v7655
  %v7661 = vunpack.c.l.bf16 %v7656
  %v7662 = vunpack.c.l.bf16 %v7657
  %v7663 = vunpack.c.h.bf16 %v7657
  %v7664 = vunpack.c.l.bf16 %v7658
  %v7666 = vlaneseq
  %v7667 = vshrl.u32 %v7666, 7
  %v7668 = vsub.s32 0, %v7667
  %v7669 = vrot.slane %v7654, %v7668
  %v7670 = vlaneseq
  %v7671 = vshrl.u32 %v7670, 7
  %v7672 = vsub.s32 1, %v7671
  %v7673 = vrot.slane %v7654, %v7672
  %7674 = vrot.lane.b32.xlu0 %v7669, 64
  %v7675 = vpop.permute.xlu0 %7674
  %7676 = vrot.lane.b32.xlu0 %v7673, 64
  %v7677 = vpop.permute.xlu0 %7676
  %v7678 = vsel %vm599, %v7675, %v7677
  %v7682 = vmul.f32 %v7659, %v7675
  %v7683 = vmul.f32 %v7660, %v7678
  %v7684 = vmul.f32 %v7661, %v7677
  %v7685 = vmul.f32 %v7662, %v7675
  %v7686 = vmul.f32 %v7663, %v7678
  %v7687 = vmul.f32 %v7664, %v7677
  %v7688 = vpack.c.bf16 %v7685, %v7682
  %v7689 = vpack.c.bf16 %v7686, %v7683
  %v7690 = vpack.c.bf16 %v7687, %v7684
  %v7694 = vunpack.c.l.b16 %v7688
  %v7695 = vunpack.c.l.b16 %v7689
  %v7696 = vunpack.c.l.b16 %v7690
  %v7697 = vunpack.c.h.b16 %v7688
  %v7698 = vunpack.c.h.b16 %v7689
  %v7699 = vunpack.c.h.b16 %v7690
  %v7700 = vpack.c.b16 %v7695, %v7694
  %v7701 = vpack.c.b16 %v7696, %v7696
  %v7702 = vpack.c.b16 %v7698, %v7697
  %v7703 = vpack.c.b16 %v7699, %v7699
  %7704 = vrot.lane.b32.xlu0 %v7700, 64
  %v7705 = vpop.permute.xlu0 %7704
  %7706 = vrot.lane.b32.xlu0 %v7701, 64
  %v7707 = vpop.permute.xlu0 %7706
  %7708 = vrot.lane.b32.xlu0 %v7702, 64
  %v7709 = vpop.permute.xlu0 %7708
  %7710 = vrot.lane.b32.xlu0 %v7703, 64
  %v7711 = vpop.permute.xlu0 %7710
  %v7712 = vrot.slane %v7705, 4
  %v7713 = vrot.slane %v7707, 4
  %v7714 = vrot.slane %v7709, 4
  %v7715 = vrot.slane %v7711, 4
  %v7716 = vsel %vm137, %v7712, %v7713
  %v7717 = vsel %vm639, %v7705, %v7716
  %v7718 = vsel %vm137, %v7714, %v7715
  %v7719 = vsel %vm639, %v7709, %v7718
  %7722 = vst [vmem:[#allocation4 + $0x80] sm:$0xff] %v7717
  %7723 = vst [vmem:[#allocation4 + $0x90] sm:$0xff] %v7719
  %v7724 = vld [vmem:[#allocation3 + $0x4] sm:$0xff]
  %v7725 = vld [vmem:[#allocation3 + $0xc] sm:$0xf]
  %v7726 = vld [vmem:[#allocation3 + $0x14] sm:$0xff]
  %v7727 = vld [vmem:[#allocation3 + $0x1c] sm:$0xf]
  %v7728 = vunpack.c.l.bf16 %v7724
  %v7729 = vunpack.c.h.bf16 %v7724
  %v7730 = vunpack.c.l.bf16 %v7725
  %v7731 = vunpack.c.l.bf16 %v7726
  %v7732 = vunpack.c.h.bf16 %v7726
  %v7733 = vunpack.c.l.bf16 %v7727
  %v7734 = vmul.f32 %v7728, %v7675
  %v7735 = vmul.f32 %v7729, %v7678
  %v7736 = vmul.f32 %v7730, %v7677
  %v7737 = vmul.f32 %v7731, %v7675
  %v7738 = vmul.f32 %v7732, %v7678
  %v7739 = vmul.f32 %v7733, %v7677
  %v7740 = vpack.c.bf16 %v7737, %v7734
  %v7741 = vpack.c.bf16 %v7738, %v7735
  %v7742 = vpack.c.bf16 %v7739, %v7736
  %v7746 = vunpack.c.l.b16 %v7740
  %v7747 = vunpack.c.l.b16 %v7741
  %v7748 = vunpack.c.l.b16 %v7742
  %v7749 = vunpack.c.h.b16 %v7740
  %v7750 = vunpack.c.h.b16 %v7741
  %v7751 = vunpack.c.h.b16 %v7742
  %v7752 = vpack.c.b16 %v7747, %v7746
  %v7753 = vpack.c.b16 %v7748, %v7748
  %v7754 = vpack.c.b16 %v7750, %v7749
  %v7755 = vpack.c.b16 %v7751, %v7751
  %7756 = vrot.lane.b32.xlu0 %v7752, 64
  %v7757 = vpop.permute.xlu0 %7756
  %7758 = vrot.lane.b32.xlu0 %v7753, 64
  %v7759 = vpop.permute.xlu0 %7758
  %7760 = vrot.lane.b32.xlu0 %v7754, 64
  %v7761 = vpop.permute.xlu0 %7760
  %7762 = vrot.lane.b32.xlu0 %v7755, 64
  %v7763 = vpop.permute.xlu0 %7762
  %v7764 = vrot.slane %v7757, 4
  %v7765 = vrot.slane %v7759, 4
  %v7766 = vrot.slane %v7761, 4
  %v7767 = vrot.slane %v7763, 4
  %v7768 = vsel %vm137, %v7764, %v7765
  %v7769 = vsel %vm639, %v7757, %v7768
  %v7770 = vsel %vm137, %v7766, %v7767
  %v7771 = vsel %vm639, %v7761, %v7770
  %7774 = vst [vmem:[#allocation4 + $0x88] sm:$0xff] %v7769
  %7775 = vst [vmem:[#allocation4 + $0x98] sm:$0xff] %v7771
  %v7776 = vld [vmem:[%s3509] ss:$8 sm:$0x3]
  %v7777 = vld [vmem:[#allocation2 + $0x4] sm:$0xff]
  %v7778 = vld [vmem:[#allocation2 + $0xc] sm:$0xf]
  %v7779 = vld [vmem:[#allocation2 + $0x14] sm:$0xff]
  %v7780 = vld [vmem:[#allocation2 + $0x1c] sm:$0xf]
  %v7781 = vunpack.c.l.bf16 %v7777
  %v7782 = vunpack.c.h.bf16 %v7777
  %v7783 = vunpack.c.l.bf16 %v7778
  %v7784 = vunpack.c.l.bf16 %v7779
  %v7785 = vunpack.c.h.bf16 %v7779
  %v7786 = vunpack.c.l.bf16 %v7780
  %v7788 = vlaneseq
  %v7789 = vshrl.u32 %v7788, 7
  %v7790 = vsub.s32 0, %v7789
  %v7791 = vrot.slane %v7776, %v7790
  %v7792 = vlaneseq
  %v7793 = vshrl.u32 %v7792, 7
  %v7794 = vsub.s32 1, %v7793
  %v7795 = vrot.slane %v7776, %v7794
  %7796 = vrot.lane.b32.xlu0 %v7791, 65
  %v7797 = vpop.permute.xlu0 %7796
  %7798 = vrot.lane.b32.xlu0 %v7795, 65
  %v7799 = vpop.permute.xlu0 %7798
  %v7800 = vsel %vm724, %v7797, %v7799
  %v7804 = vmul.f32 %v7781, %v7797
  %v7805 = vmul.f32 %v7782, %v7800
  %v7806 = vmul.f32 %v7783, %v7799
  %v7807 = vmul.f32 %v7784, %v7797
  %v7808 = vmul.f32 %v7785, %v7800
  %v7809 = vmul.f32 %v7786, %v7799
  %v7810 = vpack.c.bf16 %v7807, %v7804
  %v7811 = vpack.c.bf16 %v7808, %v7805
  %v7812 = vpack.c.bf16 %v7809, %v7806
  %v7816 = vunpack.c.l.b16 %v7810
  %v7817 = vunpack.c.l.b16 %v7811
  %v7818 = vunpack.c.l.b16 %v7812
  %v7819 = vunpack.c.h.b16 %v7810
  %v7820 = vunpack.c.h.b16 %v7811
  %v7821 = vunpack.c.h.b16 %v7812
  %v7822 = vpack.c.b16 %v7817, %v7816
  %v7823 = vpack.c.b16 %v7818, %v7818
  %v7824 = vpack.c.b16 %v7820, %v7819
  %v7825 = vpack.c.b16 %v7821, %v7821
  %7826 = vrot.lane.b32.xlu0 %v7822, 63
  %v7827 = vpop.permute.xlu0 %7826
  %7828 = vrot.lane.b32.xlu0 %v7823, 63
  %v7829 = vpop.permute.xlu0 %7828
  %7830 = vrot.lane.b32.xlu0 %v7824, 63
  %v7831 = vpop.permute.xlu0 %7830
  %7832 = vrot.lane.b32.xlu0 %v7825, 63
  %v7833 = vpop.permute.xlu0 %7832
  %v7834 = vrot.slane %v7827, 4
  %v7835 = vrot.slane %v7829, 4
  %v7836 = vrot.slane %v7831, 4
  %v7837 = vrot.slane %v7833, 4
  %v7838 = vsel %vm137, %v7834, %v7835
  %v7839 = vsel %vm764, %v7827, %v7838
  %v7840 = vsel %vm137, %v7836, %v7837
  %v7841 = vsel %vm764, %v7831, %v7840
  %7844 = vst [vmem:[#allocation4 + $0xa0] sm:$0xff] %v7839
  %7845 = vst [vmem:[#allocation4 + $0xb0] sm:$0xff] %v7841
  %v7846 = vld [vmem:[#allocation3 + $0x4] sm:$0xff]
  %v7847 = vld [vmem:[#allocation3 + $0xc] sm:$0xf]
  %v7848 = vld [vmem:[#allocation3 + $0x14] sm:$0xff]
  %v7849 = vld [vmem:[#allocation3 + $0x1c] sm:$0xf]
  %v7850 = vunpack.c.l.bf16 %v7846
  %v7851 = vunpack.c.h.bf16 %v7846
  %v7852 = vunpack.c.l.bf16 %v7847
  %v7853 = vunpack.c.l.bf16 %v7848
  %v7854 = vunpack.c.h.bf16 %v7848
  %v7855 = vunpack.c.l.bf16 %v7849
  %v7856 = vmul.f32 %v7850, %v7797
  %v7857 = vmul.f32 %v7851, %v7800
  %v7858 = vmul.f32 %v7852, %v7799
  %v7859 = vmul.f32 %v7853, %v7797
  %v7860 = vmul.f32 %v7854, %v7800
  %v7861 = vmul.f32 %v7855, %v7799
  %v7862 = vpack.c.bf16 %v7859, %v7856
  %v7863 = vpack.c.bf16 %v7860, %v7857
  %v7864 = vpack.c.bf16 %v7861, %v7858
  %v7868 = vunpack.c.l.b16 %v7862
  %v7869 = vunpack.c.l.b16 %v7863
  %v7870 = vunpack.c.l.b16 %v7864
  %v7871 = vunpack.c.h.b16 %v7862
  %v7872 = vunpack.c.h.b16 %v7863
  %v7873 = vunpack.c.h.b16 %v7864
  %v7874 = vpack.c.b16 %v7869, %v7868
  %v7875 = vpack.c.b16 %v7870, %v7870
  %v7876 = vpack.c.b16 %v7872, %v7871
  %v7877 = vpack.c.b16 %v7873, %v7873
  %7878 = vrot.lane.b32.xlu0 %v7874, 63
  %v7879 = vpop.permute.xlu0 %7878
  %7880 = vrot.lane.b32.xlu0 %v7875, 63
  %v7881 = vpop.permute.xlu0 %7880
  %7882 = vrot.lane.b32.xlu0 %v7876, 63
  %v7883 = vpop.permute.xlu0 %7882
  %7884 = vrot.lane.b32.xlu0 %v7877, 63
  %v7885 = vpop.permute.xlu0 %7884
  %v7886 = vrot.slane %v7879, 4
  %v7887 = vrot.slane %v7881, 4
  %v7888 = vrot.slane %v7883, 4
  %v7889 = vrot.slane %v7885, 4
  %v7890 = vsel %vm137, %v7886, %v7887
  %v7891 = vsel %vm764, %v7879, %v7890
  %v7892 = vsel %vm137, %v7888, %v7889
  %v7893 = vsel %vm764, %v7883, %v7892
  %7896 = vst [vmem:[#allocation4 + $0xa8] sm:$0xff] %v7891
  %7897 = vst [vmem:[#allocation4 + $0xb8] sm:$0xff] %v7893
  %v7898 = vld [vmem:[%s3632] ss:$8 sm:$0x3]
  %v7899 = vld [vmem:[#allocation2 + $0x4] sm:$0xff]
  %v7900 = vld [vmem:[#allocation2 + $0xc] sm:$0xf]
  %v7901 = vld [vmem:[#allocation2 + $0x14] sm:$0xff]
  %v7902 = vld [vmem:[#allocation2 + $0x1c] sm:$0xf]
  %v7903 = vunpack.c.l.bf16 %v7899
  %v7904 = vunpack.c.h.bf16 %v7899
  %v7905 = vunpack.c.l.bf16 %v7900
  %v7906 = vunpack.c.l.bf16 %v7901
  %v7907 = vunpack.c.h.bf16 %v7901
  %v7908 = vunpack.c.l.bf16 %v7902
  %v7910 = vlaneseq
  %v7911 = vshrl.u32 %v7910, 7
  %v7912 = vsub.s32 0, %v7911
  %v7913 = vrot.slane %v7898, %v7912
  %v7914 = vlaneseq
  %v7915 = vshrl.u32 %v7914, 7
  %v7916 = vsub.s32 1, %v7915
  %v7917 = vrot.slane %v7898, %v7916
  %7918 = vrot.lane.b32.xlu0 %v7913, 71
  %v7919 = vpop.permute.xlu0 %7918
  %7920 = vrot.lane.b32.xlu0 %v7917, 71
  %v7921 = vpop.permute.xlu0 %7920
  %v7922 = vsel %vm849, %v7919, %v7921
  %v7926 = vmul.f32 %v7903, %v7919
  %v7927 = vmul.f32 %v7904, %v7922
  %v7928 = vmul.f32 %v7905, %v7921
  %v7929 = vmul.f32 %v7906, %v7919
  %v7930 = vmul.f32 %v7907, %v7922
  %v7931 = vmul.f32 %v7908, %v7921
  %v7932 = vpack.c.bf16 %v7929, %v7926
  %v7933 = vpack.c.bf16 %v7930, %v7927
  %v7934 = vpack.c.bf16 %v7931, %v7928
  %v7938 = vunpack.c.l.b16 %v7932
  %v7939 = vunpack.c.l.b16 %v7933
  %v7940 = vunpack.c.l.b16 %v7934
  %v7941 = vunpack.c.h.b16 %v7932
  %v7942 = vunpack.c.h.b16 %v7933
  %v7943 = vunpack.c.h.b16 %v7934
  %v7944 = vpack.c.b16 %v7939, %v7938
  %v7945 = vpack.c.b16 %v7940, %v7940
  %v7946 = vpack.c.b16 %v7942, %v7941
  %v7947 = vpack.c.b16 %v7943, %v7943
  %7948 = vrot.lane.b32.xlu0 %v7944, 57
  %v7949 = vpop.permute.xlu0 %7948
  %7950 = vrot.lane.b32.xlu0 %v7945, 57
  %v7951 = vpop.permute.xlu0 %7950
  %7952 = vrot.lane.b32.xlu0 %v7946, 57
  %v7953 = vpop.permute.xlu0 %7952
  %7954 = vrot.lane.b32.xlu0 %v7947, 57
  %v7955 = vpop.permute.xlu0 %7954
  %v7956 = vrot.slane %v7949, 4
  %v7957 = vrot.slane %v7951, 4
  %v7958 = vrot.slane %v7953, 4
  %v7959 = vrot.slane %v7955, 4
  %v7960 = vsel %vm137, %v7956, %v7957
  %v7961 = vsel %vm889, %v7949, %v7960
  %v7962 = vsel %vm137, %v7958, %v7959
  %v7963 = vsel %vm889, %v7953, %v7962
  %7966 = vst [vmem:[#allocation4 + $0xc0] sm:$0xff] %v7961
  %7967 = vst [vmem:[#allocation4 + $0xd0] sm:$0xff] %v7963
  %v7968 = vld [vmem:[#allocation3 + $0x4] sm:$0xff]
  %v7969 = vld [vmem:[#allocation3 + $0xc] sm:$0xf]
  %v7970 = vld [vmem:[#allocation3 + $0x14] sm:$0xff]
  %v7971 = vld [vmem:[#allocation3 + $0x1c] sm:$0xf]
  %v7972 = vunpack.c.l.bf16 %v7968
  %v7973 = vunpack.c.h.bf16 %v7968
  %v7974 = vunpack.c.l.bf16 %v7969
  %v7975 = vunpack.c.l.bf16 %v7970
  %v7976 = vunpack.c.h.bf16 %v7970
  %v7977 = vunpack.c.l.bf16 %v7971
  %v7978 = vmul.f32 %v7972, %v7919
  %v7979 = vmul.f32 %v7973, %v7922
  %v7980 = vmul.f32 %v7974, %v7921
  %v7981 = vmul.f32 %v7975, %v7919
  %v7982 = vmul.f32 %v7976, %v7922
  %v7983 = vmul.f32 %v7977, %v7921
  %v7984 = vpack.c.bf16 %v7981, %v7978
  %v7985 = vpack.c.bf16 %v7982, %v7979
  %v7986 = vpack.c.bf16 %v7983, %v7980
  %v7990 = vunpack.c.l.b16 %v7984
  %v7991 = vunpack.c.l.b16 %v7985
  %v7992 = vunpack.c.l.b16 %v7986
  %v7993 = vunpack.c.h.b16 %v7984
  %v7994 = vunpack.c.h.b16 %v7985
  %v7995 = vunpack.c.h.b16 %v7986
  %v7996 = vpack.c.b16 %v7991, %v7990
  %v7997 = vpack.c.b16 %v7992, %v7992
  %v7998 = vpack.c.b16 %v7994, %v7993
  %v7999 = vpack.c.b16 %v7995, %v7995
  %8000 = vrot.lane.b32.xlu0 %v7996, 57
  %v8001 = vpop.permute.xlu0 %8000
  %8002 = vrot.lane.b32.xlu0 %v7997, 57
  %v8003 = vpop.permute.xlu0 %8002
  %8004 = vrot.lane.b32.xlu0 %v7998, 57
  %v8005 = vpop.permute.xlu0 %8004
  %8006 = vrot.lane.b32.xlu0 %v7999, 57
  %v8007 = vpop.permute.xlu0 %8006
  %v8008 = vrot.slane %v8001, 4
  %v8009 = vrot.slane %v8003, 4
  %v8010 = vrot.slane %v8005, 4
  %v8011 = vrot.slane %v8007, 4
  %v8012 = vsel %vm137, %v8008, %v8009
  %v8013 = vsel %vm889, %v8001, %v8012
  %v8014 = vsel %vm137, %v8010, %v8011
  %v8015 = vsel %vm889, %v8005, %v8014
  %8018 = vst [vmem:[#allocation4 + $0xc8] sm:$0xff] %v8013
  %8019 = vst [vmem:[#allocation4 + $0xd8] sm:$0xff] %v8015
  %v8020 = vld [vmem:[%s3755] ss:$8 sm:$0x3]
  %v8021 = vld [vmem:[#allocation2 + $0x4] sm:$0xff]
  %v8022 = vld [vmem:[#allocation2 + $0xc] sm:$0xf]
  %v8023 = vld [vmem:[#allocation2 + $0x14] sm:$0xff]
  %v8024 = vld [vmem:[#allocation2 + $0x1c] sm:$0xf]
  %v8025 = vunpack.c.l.bf16 %v8021
  %v8026 = vunpack.c.h.bf16 %v8021
  %v8027 = vunpack.c.l.bf16 %v8022
  %v8028 = vunpack.c.l.bf16 %v8023
  %v8029 = vunpack.c.h.bf16 %v8023
  %v8030 = vunpack.c.l.bf16 %v8024
  %v8032 = vlaneseq
  %v8033 = vshrl.u32 %v8032, 7
  %v8034 = vsub.s32 0, %v8033
  %v8035 = vrot.slane %v8020, %v8034
  %v8036 = vlaneseq
  %v8037 = vshrl.u32 %v8036, 7
  %v8038 = vsub.s32 1, %v8037
  %v8039 = vrot.slane %v8020, %v8038
  %8040 = vrot.lane.b32.xlu0 %v8035, 72
  %v8041 = vpop.permute.xlu0 %8040
  %8042 = vrot.lane.b32.xlu0 %v8039, 72
  %v8043 = vpop.permute.xlu0 %8042
  %v8044 = vsel %vm974, %v8041, %v8043
  %v8048 = vmul.f32 %v8025, %v8041
  %v8049 = vmul.f32 %v8026, %v8044
  %v8050 = vmul.f32 %v8027, %v8043
  %v8051 = vmul.f32 %v8028, %v8041
  %v8052 = vmul.f32 %v8029, %v8044
  %v8053 = vmul.f32 %v8030, %v8043
  %v8054 = vpack.c.bf16 %v8051, %v8048
  %v8055 = vpack.c.bf16 %v8052, %v8049
  %v8056 = vpack.c.bf16 %v8053, %v8050
  %v8060 = vunpack.c.l.b16 %v8054
  %v8061 = vunpack.c.l.b16 %v8055
  %v8062 = vunpack.c.l.b16 %v8056
  %v8063 = vunpack.c.h.b16 %v8054
  %v8064 = vunpack.c.h.b16 %v8055
  %v8065 = vunpack.c.h.b16 %v8056
  %v8066 = vpack.c.b16 %v8061, %v8060
  %v8067 = vpack.c.b16 %v8062, %v8062
  %v8068 = vpack.c.b16 %v8064, %v8063
  %v8069 = vpack.c.b16 %v8065, %v8065
  %8070 = vrot.lane.b32.xlu0 %v8066, 56
  %v8071 = vpop.permute.xlu0 %8070
  %8072 = vrot.lane.b32.xlu0 %v8067, 56
  %v8073 = vpop.permute.xlu0 %8072
  %8074 = vrot.lane.b32.xlu0 %v8068, 56
  %v8075 = vpop.permute.xlu0 %8074
  %8076 = vrot.lane.b32.xlu0 %v8069, 56
  %v8077 = vpop.permute.xlu0 %8076
  %v8078 = vrot.slane %v8071, 4
  %v8079 = vrot.slane %v8073, 4
  %v8080 = vrot.slane %v8075, 4
  %v8081 = vrot.slane %v8077, 4
  %v8082 = vsel %vm137, %v8078, %v8079
  %v8083 = vsel %vm1014, %v8071, %v8082
  %v8084 = vsel %vm137, %v8080, %v8081
  %v8085 = vsel %vm1014, %v8075, %v8084
  %8088 = vst [vmem:[#allocation4 + $0xe0] sm:$0xff] %v8083
  %8089 = vst [vmem:[#allocation4 + $0xf0] sm:$0xff] %v8085
  %v8090 = vld [vmem:[#allocation3 + $0x4] sm:$0xff]
  %v8091 = vld [vmem:[#allocation3 + $0xc] sm:$0xf]
  %v8092 = vld [vmem:[#allocation3 + $0x14] sm:$0xff]
  %v8093 = vld [vmem:[#allocation3 + $0x1c] sm:$0xf]
  %v8094 = vunpack.c.l.bf16 %v8090
  %v8095 = vunpack.c.h.bf16 %v8090
  %v8096 = vunpack.c.l.bf16 %v8091
  %v8097 = vunpack.c.l.bf16 %v8092
  %v8098 = vunpack.c.h.bf16 %v8092
  %v8099 = vunpack.c.l.bf16 %v8093
  %v8100 = vmul.f32 %v8094, %v8041
  %v8101 = vmul.f32 %v8095, %v8044
  %v8102 = vmul.f32 %v8096, %v8043
  %v8103 = vmul.f32 %v8097, %v8041
  %v8104 = vmul.f32 %v8098, %v8044
  %v8105 = vmul.f32 %v8099, %v8043
  %v8106 = vpack.c.bf16 %v8103, %v8100
  %v8107 = vpack.c.bf16 %v8104, %v8101
  %v8108 = vpack.c.bf16 %v8105, %v8102
  %v8112 = vunpack.c.l.b16 %v8106
  %v8113 = vunpack.c.l.b16 %v8107
  %v8114 = vunpack.c.l.b16 %v8108
  %v8115 = vunpack.c.h.b16 %v8106
  %v8116 = vunpack.c.h.b16 %v8107
  %v8117 = vunpack.c.h.b16 %v8108
  %v8118 = vpack.c.b16 %v8113, %v8112
  %v8119 = vpack.c.b16 %v8114, %v8114
  %v8120 = vpack.c.b16 %v8116, %v8115
  %v8121 = vpack.c.b16 %v8117, %v8117
  %8122 = vrot.lane.b32.xlu0 %v8118, 56
  %v8123 = vpop.permute.xlu0 %8122
  %8124 = vrot.lane.b32.xlu0 %v8119, 56
  %v8125 = vpop.permute.xlu0 %8124
  %8126 = vrot.lane.b32.xlu0 %v8120, 56
  %v8127 = vpop.permute.xlu0 %8126
  %8128 = vrot.lane.b32.xlu0 %v8121, 56
  %v8129 = vpop.permute.xlu0 %8128
  %v8130 = vrot.slane %v8123, 4
  %v8131 = vrot.slane %v8125, 4
  %v8132 = vrot.slane %v8127, 4
  %v8133 = vrot.slane %v8129, 4
  %v8134 = vsel %vm137, %v8130, %v8131
  %v8135 = vsel %vm1014, %v8123, %v8134
  %v8136 = vsel %vm137, %v8132, %v8133
  %v8137 = vsel %vm1014, %v8127, %v8136
  %8140 = vst [vmem:[#allocation4 + $0xe8] sm:$0xff] %v8135
  %8141 = vst [vmem:[#allocation4 + $0xf8] sm:$0xff] %v8137
  %v8142 = vld [vmem:[%s3878] ss:$8 sm:$0x3]
  %v8143 = vld [vmem:[#allocation2 + $0x4] sm:$0xff]
  %v8144 = vld [vmem:[#allocation2 + $0xc] sm:$0xf]
  %v8145 = vld [vmem:[#allocation2 + $0x14] sm:$0xff]
  %v8146 = vld [vmem:[#allocation2 + $0x1c] sm:$0xf]
  %v8147 = vunpack.c.l.bf16 %v8143
  %v8148 = vunpack.c.h.bf16 %v8143
  %v8149 = vunpack.c.l.bf16 %v8144
  %v8150 = vunpack.c.l.bf16 %v8145
  %v8151 = vunpack.c.h.bf16 %v8145
  %v8152 = vunpack.c.l.bf16 %v8146
  %v8154 = vlaneseq
  %v8155 = vshrl.u32 %v8154, 7
  %v8156 = vsub.s32 0, %v8155
  %v8157 = vrot.slane %v8142, %v8156
  %v8158 = vlaneseq
  %v8159 = vshrl.u32 %v8158, 7
  %v8160 = vsub.s32 1, %v8159
  %v8161 = vrot.slane %v8142, %v8160
  %8162 = vrot.lane.b32.xlu0 %v8157, 73
  %v8163 = vpop.permute.xlu0 %8162
  %8164 = vrot.lane.b32.xlu0 %v8161, 73
  %v8165 = vpop.permute.xlu0 %8164
  %v8166 = vsel %vm1099, %v8163, %v8165
  %v8170 = vmul.f32 %v8147, %v8163
  %v8171 = vmul.f32 %v8148, %v8166
  %v8172 = vmul.f32 %v8149, %v8165
  %v8173 = vmul.f32 %v8150, %v8163
  %v8174 = vmul.f32 %v8151, %v8166
  %v8175 = vmul.f32 %v8152, %v8165
  %v8176 = vpack.c.bf16 %v8173, %v8170
  %v8177 = vpack.c.bf16 %v8174, %v8171
  %v8178 = vpack.c.bf16 %v8175, %v8172
  %v8182 = vunpack.c.l.b16 %v8176
  %v8183 = vunpack.c.l.b16 %v8177
  %v8184 = vunpack.c.l.b16 %v8178
  %v8185 = vunpack.c.h.b16 %v8176
  %v8186 = vunpack.c.h.b16 %v8177
  %v8187 = vunpack.c.h.b16 %v8178
  %v8188 = vpack.c.b16 %v8183, %v8182
  %v8189 = vpack.c.b16 %v8184, %v8184
  %v8190 = vpack.c.b16 %v8186, %v8185
  %v8191 = vpack.c.b16 %v8187, %v8187
  %8192 = vrot.lane.b32.xlu0 %v8188, 55
  %v8193 = vpop.permute.xlu0 %8192
  %8194 = vrot.lane.b32.xlu0 %v8189, 55
  %v8195 = vpop.permute.xlu0 %8194
  %8196 = vrot.lane.b32.xlu0 %v8190, 55
  %v8197 = vpop.permute.xlu0 %8196
  %8198 = vrot.lane.b32.xlu0 %v8191, 55
  %v8199 = vpop.permute.xlu0 %8198
  %v8200 = vrot.slane %v8193, 4
  %v8201 = vrot.slane %v8195, 4
  %v8202 = vrot.slane %v8197, 4
  %v8203 = vrot.slane %v8199, 4
  %v8204 = vsel %vm137, %v8200, %v8201
  %v8205 = vsel %vm1139, %v8193, %v8204
  %v8206 = vsel %vm137, %v8202, %v8203
  %v8207 = vsel %vm1139, %v8197, %v8206
  %8210 = vst [vmem:[#allocation4 + $0x100] sm:$0xff] %v8205
  %8211 = vst [vmem:[#allocation4 + $0x110] sm:$0xff] %v8207
  %v8212 = vld [vmem:[#allocation3 + $0x4] sm:$0xff]
  %v8213 = vld [vmem:[#allocation3 + $0xc] sm:$0xf]
  %v8214 = vld [vmem:[#allocation3 + $0x14] sm:$0xff]
  %v8215 = vld [vmem:[#allocation3 + $0x1c] sm:$0xf]
  %v8216 = vunpack.c.l.bf16 %v8212
  %v8217 = vunpack.c.h.bf16 %v8212
  %v8218 = vunpack.c.l.bf16 %v8213
  %v8219 = vunpack.c.l.bf16 %v8214
  %v8220 = vunpack.c.h.bf16 %v8214
  %v8221 = vunpack.c.l.bf16 %v8215
  %v8222 = vmul.f32 %v8216, %v8163
  %v8223 = vmul.f32 %v8217, %v8166
  %v8224 = vmul.f32 %v8218, %v8165
  %v8225 = vmul.f32 %v8219, %v8163
  %v8226 = vmul.f32 %v8220, %v8166
  %v8227 = vmul.f32 %v8221, %v8165
  %v8228 = vpack.c.bf16 %v8225, %v8222
  %v8229 = vpack.c.bf16 %v8226, %v8223
  %v8230 = vpack.c.bf16 %v8227, %v8224
  %v8234 = vunpack.c.l.b16 %v8228
  %v8235 = vunpack.c.l.b16 %v8229
  %v8236 = vunpack.c.l.b16 %v8230
  %v8237 = vunpack.c.h.b16 %v8228
  %v8238 = vunpack.c.h.b16 %v8229
  %v8239 = vunpack.c.h.b16 %v8230
  %v8240 = vpack.c.b16 %v8235, %v8234
  %v8241 = vpack.c.b16 %v8236, %v8236
  %v8242 = vpack.c.b16 %v8238, %v8237
  %v8243 = vpack.c.b16 %v8239, %v8239
  %8244 = vrot.lane.b32.xlu0 %v8240, 55
  %v8245 = vpop.permute.xlu0 %8244
  %8246 = vrot.lane.b32.xlu0 %v8241, 55
  %v8247 = vpop.permute.xlu0 %8246
  %8248 = vrot.lane.b32.xlu0 %v8242, 55
  %v8249 = vpop.permute.xlu0 %8248
  %8250 = vrot.lane.b32.xlu0 %v8243, 55
  %v8251 = vpop.permute.xlu0 %8250
  %v8252 = vrot.slane %v8245, 4
  %v8253 = vrot.slane %v8247, 4
  %v8254 = vrot.slane %v8249, 4
  %v8255 = vrot.slane %v8251, 4
  %v8256 = vsel %vm137, %v8252, %v8253
  %v8257 = vsel %vm1139, %v8245, %v8256
  %v8258 = vsel %vm137, %v8254, %v8255
  %v8259 = vsel %vm1139, %v8249, %v8258
  %8262 = vst [vmem:[#allocation4 + $0x108] sm:$0xff] %v8257
  %8263 = vst [vmem:[#allocation4 + $0x118] sm:$0xff] %v8259
  %s8264 = scalar_lea.vmem %s3, 32
  %v8265 = vld [vmem:[%s8264] sm:$0xff]
  %v8266 = vld [vmem:[%s8264 + $0x8] sm:$0xff]
  %v8267 = vld [vmem:[#allocation4] sm:$0xff]
  %v8268 = vld [vmem:[#allocation4 + $0x8] sm:$0xff]
  %v8269 = vld [vmem:[#allocation4 + $0x10] sm:$0xff]
  %v8270 = vld [vmem:[#allocation4 + $0x18] sm:$0xff]
  %v8271 = vld [vmem:[#allocation4 + $0x20] sm:$0xff]
  %v8272 = vld [vmem:[#allocation4 + $0x28] sm:$0xff]
  %v8273 = vld [vmem:[#allocation4 + $0x30] sm:$0xff]
  %v8274 = vld [vmem:[#allocation4 + $0x38] sm:$0xff]
  %v8275 = vld [vmem:[#allocation4 + $0x40] sm:$0xff]
  %v8276 = vld [vmem:[#allocation4 + $0x48] sm:$0xff]
  %v8277 = vld [vmem:[#allocation4 + $0x50] sm:$0xff]
  %v8278 = vld [vmem:[#allocation4 + $0x58] sm:$0xff]
  %v8279 = vld [vmem:[#allocation4 + $0x60] sm:$0xff]
  %v8280 = vld [vmem:[#allocation4 + $0x68] sm:$0xff]
  %v8281 = vld [vmem:[#allocation4 + $0x70] sm:$0xff]
  %v8282 = vld [vmem:[#allocation4 + $0x78] sm:$0xff]
  %v8283 = vld [vmem:[#allocation4 + $0x80] sm:$0xff]
  %v8284 = vld [vmem:[#allocation4 + $0x88] sm:$0xff]
  %v8285 = vld [vmem:[#allocation4 + $0x90] sm:$0xff]
  %v8286 = vld [vmem:[#allocation4 + $0x98] sm:$0xff]
  %v8287 = vld [vmem:[#allocation4 + $0xa0] sm:$0xff]
  %v8288 = vld [vmem:[#allocation4 + $0xa8] sm:$0xff]
  %v8289 = vld [vmem:[#allocation4 + $0xb0] sm:$0xff]
  %v8290 = vld [vmem:[#allocation4 + $0xb8] sm:$0xff]
  %v8291 = vld [vmem:[#allocation4 + $0xc0] sm:$0xff]
  %v8292 = vld [vmem:[#allocation4 + $0xc8] sm:$0xff]
  %v8293 = vld [vmem:[#allocation4 + $0xd0] sm:$0xff]
  %v8294 = vld [vmem:[#allocation4 + $0xd8] sm:$0xff]
  %v8295 = vld [vmem:[#allocation4 + $0xe0] sm:$0xff]
  %v8296 = vld [vmem:[#allocation4 + $0xe8] sm:$0xff]
  %v8297 = vld [vmem:[#allocation4 + $0xf0] sm:$0xff]
  %v8298 = vld [vmem:[#allocation4 + $0xf8] sm:$0xff]
  %v8299 = vld [vmem:[#allocation4 + $0x100] sm:$0xff]
  %v8300 = vld [vmem:[#allocation4 + $0x108] sm:$0xff]
  %v8301 = vld [vmem:[#allocation4 + $0x110] sm:$0xff]
  %v8302 = vld [vmem:[#allocation4 + $0x118] sm:$0xff]
  %v8305 = vunpack.c.l.b16 %v8265
  %v8306 = vunpack.c.h.b16 %v8265
  %v8307 = vunpack.c.l.b16 %v8266
  %v8308 = vunpack.c.h.b16 %v8266
  %v8309 = vpack.c.b16 %v8307, %v8305
  %v8310 = vpack.c.b16 %v8308, %v8306
  %v8348 = vunpack.c.l.b16 %v8267
  %v8349 = vunpack.c.h.b16 %v8267
  %v8350 = vunpack.c.l.b16 %v8268
  %v8351 = vunpack.c.h.b16 %v8268
  %v8352 = vunpack.c.l.b16 %v8269
  %v8353 = vunpack.c.h.b16 %v8269
  %v8354 = vunpack.c.l.b16 %v8270
  %v8355 = vunpack.c.h.b16 %v8270
  %v8356 = vunpack.c.l.b16 %v8271
  %v8357 = vunpack.c.h.b16 %v8271
  %v8358 = vunpack.c.l.b16 %v8272
  %v8359 = vunpack.c.h.b16 %v8272
  %v8360 = vunpack.c.l.b16 %v8273
  %v8361 = vunpack.c.h.b16 %v8273
  %v8362 = vunpack.c.l.b16 %v8274
  %v8363 = vunpack.c.h.b16 %v8274
  %v8364 = vunpack.c.l.b16 %v8275
  %v8365 = vunpack.c.h.b16 %v8275
  %v8366 = vunpack.c.l.b16 %v8276
  %v8367 = vunpack.c.h.b16 %v8276
  %v8368 = vunpack.c.l.b16 %v8277
  %v8369 = vunpack.c.h.b16 %v8277
  %v8370 = vunpack.c.l.b16 %v8278
  %v8371 = vunpack.c.h.b16 %v8278
  %v8372 = vunpack.c.l.b16 %v8279
  %v8373 = vunpack.c.h.b16 %v8279
  %v8374 = vunpack.c.l.b16 %v8280
  %v8375 = vunpack.c.h.b16 %v8280
  %v8376 = vunpack.c.l.b16 %v8281
  %v8377 = vunpack.c.h.b16 %v8281
  %v8378 = vunpack.c.l.b16 %v8282
  %v8379 = vunpack.c.h.b16 %v8282
  %v8380 = vunpack.c.l.b16 %v8283
  %v8381 = vunpack.c.h.b16 %v8283
  %v8382 = vunpack.c.l.b16 %v8284
  %v8383 = vunpack.c.h.b16 %v8284
  %v8384 = vunpack.c.l.b16 %v8285
  %v8385 = vunpack.c.h.b16 %v8285
  %v8386 = vunpack.c.l.b16 %v8286
  %v8387 = vunpack.c.h.b16 %v8286
  %v8388 = vunpack.c.l.b16 %v8287
  %v8389 = vunpack.c.h.b16 %v8287
  %v8390 = vunpack.c.l.b16 %v8288
  %v8391 = vunpack.c.h.b16 %v8288
  %v8392 = vunpack.c.l.b16 %v8289
  %v8393 = vunpack.c.h.b16 %v8289
  %v8394 = vunpack.c.l.b16 %v8290
  %v8395 = vunpack.c.h.b16 %v8290
  %v8396 = vunpack.c.l.b16 %v8291
  %v8397 = vunpack.c.h.b16 %v8291
  %v8398 = vunpack.c.l.b16 %v8292
  %v8399 = vunpack.c.h.b16 %v8292
  %v8400 = vunpack.c.l.b16 %v8293
  %v8401 = vunpack.c.h.b16 %v8293
  %v8402 = vunpack.c.l.b16 %v8294
  %v8403 = vunpack.c.h.b16 %v8294
  %v8404 = vunpack.c.l.b16 %v8295
  %v8405 = vunpack.c.h.b16 %v8295
  %v8406 = vunpack.c.l.b16 %v8296
  %v8407 = vunpack.c.h.b16 %v8296
  %v8408 = vunpack.c.l.b16 %v8297
  %v8409 = vunpack.c.h.b16 %v8297
  %v8410 = vunpack.c.l.b16 %v8298
  %v8411 = vunpack.c.h.b16 %v8298
  %v8412 = vunpack.c.l.b16 %v8299
  %v8413 = vunpack.c.h.b16 %v8299
  %v8414 = vunpack.c.l.b16 %v8300
  %v8415 = vunpack.c.h.b16 %v8300
  %v8416 = vunpack.c.l.b16 %v8301
  %v8417 = vunpack.c.h.b16 %v8301
  %v8418 = vunpack.c.l.b16 %v8302
  %v8419 = vunpack.c.h.b16 %v8302
  %v8420 = vpack.c.b16 %v8352, %v8348
  %v8421 = vpack.c.b16 %v8353, %v8349
  %v8422 = vpack.c.b16 %v8354, %v8350
  %v8423 = vpack.c.b16 %v8355, %v8351
  %v8424 = vpack.c.b16 %v8360, %v8356
  %v8425 = vpack.c.b16 %v8361, %v8357
  %v8426 = vpack.c.b16 %v8362, %v8358
  %v8427 = vpack.c.b16 %v8363, %v8359
  %v8428 = vpack.c.b16 %v8368, %v8364
  %v8429 = vpack.c.b16 %v8369, %v8365
  %v8430 = vpack.c.b16 %v8370, %v8366
  %v8431 = vpack.c.b16 %v8371, %v8367
  %v8432 = vpack.c.b16 %v8376, %v8372
  %v8433 = vpack.c.b16 %v8377, %v8373
  %v8434 = vpack.c.b16 %v8378, %v8374
  %v8435 = vpack.c.b16 %v8379, %v8375
  %v8436 = vpack.c.b16 %v8384, %v8380
  %v8437 = vpack.c.b16 %v8385, %v8381
  %v8438 = vpack.c.b16 %v8386, %v8382
  %v8439 = vpack.c.b16 %v8387, %v8383
  %v8440 = vpack.c.b16 %v8392, %v8388
  %v8441 = vpack.c.b16 %v8393, %v8389
  %v8442 = vpack.c.b16 %v8394, %v8390
  %v8443 = vpack.c.b16 %v8395, %v8391
  %v8444 = vpack.c.b16 %v8400, %v8396
  %v8445 = vpack.c.b16 %v8401, %v8397
  %v8446 = vpack.c.b16 %v8402, %v8398
  %v8447 = vpack.c.b16 %v8403, %v8399
  %v8448 = vpack.c.b16 %v8408, %v8404
  %v8449 = vpack.c.b16 %v8409, %v8405
  %v8450 = vpack.c.b16 %v8410, %v8406
  %v8451 = vpack.c.b16 %v8411, %v8407
  %v8452 = vpack.c.b16 %v8416, %v8412
  %v8453 = vpack.c.b16 %v8417, %v8413
  %v8454 = vpack.c.b16 %v8418, %v8414
  %v8455 = vpack.c.b16 %v8419, %v8415
  %v8493 = vsel %vm2526, %v8310, 0
  %8495 = vmatprep.subr.bf16.mxu0 %v8449
  %8496 = vmatpush1.bf16.msra.mxu0 %v8448
  %8497 = vmatprep.subr.bf16.mxu0 %v8445
  %8498 = vmatpush1.bf16.msra.mxu0 %v8444
  %8499 = vmatprep.subr.bf16.mxu0 %v8441
  %8500 = vmatpush1.bf16.msra.mxu0 %v8440
  %8501 = vmatprep.subr.bf16.mxu0 %v8437
  %8502 = vmatpush1.bf16.msra.mxu0 %v8436
  %8503 = vmatprep.subr.bf16.mxu0 %v8433
  %8504 = vmatpush1.bf16.msra.mxu0 %v8432
  %8505 = vmatprep.subr.bf16.mxu0 %v8429
  %8506 = vmatpush1.bf16.msra.mxu0 %v8428
  %8507 = vmatprep.subr.bf16.mxu0 %v8425
  %8508 = vmatpush1.bf16.msra.mxu0 %v8424
  %8509 = vmatprep.subr.bf16.mxu0 %v8421
  %8510 = vmatpush1.bf16.msra.mxu0 %v8420
  %8511 = vmatprep.subr.bf16.mxu0 0
  %8512 = vmatpush2.bf16.msra.mxu0 0
  %8513 = vmatprep.subr.bf16.mxu0 0
  %8514 = vmatpush2.bf16.msra.mxu0 0
  %8515 = vmatprep.subr.bf16.mxu0 0
  %8516 = vmatpush2.bf16.msra.mxu0 0
  %8517 = vmatprep.subr.bf16.mxu0 0
  %8518 = vmatpush2.bf16.msra.mxu0 0
  %8519 = vmatprep.subr.bf16.mxu0 0
  %8520 = vmatpush2.bf16.msra.mxu0 0
  %8521 = vmatprep.subr.bf16.mxu0 0
  %8522 = vmatpush2.bf16.msra.mxu0 0
  %8523 = vmatprep.subr.bf16.mxu0 0
  %8524 = vmatpush2.bf16.msra.mxu0 0
  %8525 = vmatprep.subr.bf16.mxu0 %v8453
  %8526 = vmatpush2.bf16.msra.mxu0 %v8452
  %8527 = vmatprep.mubr.bf16.mxu0 %v8493
  %8528 = vmatmul.mubr.bf16.gmra.mxu0 %v8309
  %v8529 = vpop.f32.mrf.mxu0
  %v8530 = vadd.f32 0.0, %v8529
  %v8531 = vpop.f32.mrf.mxu0
  %v8532 = vadd.f32 0.0, %v8531
  %v8533 = vpop.f32.mrf.mxu0
  %v8534 = vadd.f32 0.0, %v8533
  %v8535 = vpop.f32.mrf.mxu0
  %v8536 = vadd.f32 0.0, %v8535
  %8537 = vdwg.mxu0
  %8538 = vmatprep.subr.bf16.mxu0 %v8451
  %8539 = vmatpush1.bf16.msra.mxu0 %v8450
  %8540 = vmatprep.subr.bf16.mxu0 %v8447
  %8541 = vmatpush1.bf16.msra.mxu0 %v8446
  %8542 = vmatprep.subr.bf16.mxu0 %v8443
  %8543 = vmatpush1.bf16.msra.mxu0 %v8442
  %8544 = vmatprep.subr.bf16.mxu0 %v8439
  %8545 = vmatpush1.bf16.msra.mxu0 %v8438
  %8546 = vmatprep.subr.bf16.mxu0 %v8435
  %8547 = vmatpush1.bf16.msra.mxu0 %v8434
  %8548 = vmatprep.subr.bf16.mxu0 %v8431
  %8549 = vmatpush1.bf16.msra.mxu0 %v8430
  %8550 = vmatprep.subr.bf16.mxu0 %v8427
  %8551 = vmatpush1.bf16.msra.mxu0 %v8426
  %8552 = vmatprep.subr.bf16.mxu0 %v8423
  %8553 = vmatpush1.bf16.msra.mxu0 %v8422
  %8554 = vmatprep.subr.bf16.mxu0 0
  %8555 = vmatpush2.bf16.msra.mxu0 0
  %8556 = vmatprep.subr.bf16.mxu0 0
  %8557 = vmatpush2.bf16.msra.mxu0 0
  %8558 = vmatprep.subr.bf16.mxu0 0
  %8559 = vmatpush2.bf16.msra.mxu0 0
  %8560 = vmatprep.subr.bf16.mxu0 0
  %8561 = vmatpush2.bf16.msra.mxu0 0
  %8562 = vmatprep.subr.bf16.mxu0 0
  %8563 = vmatpush2.bf16.msra.mxu0 0
  %8564 = vmatprep.subr.bf16.mxu0 0
  %8565 = vmatpush2.bf16.msra.mxu0 0
  %8566 = vmatprep.subr.bf16.mxu0 0
  %8567 = vmatpush2.bf16.msra.mxu0 0
  %8568 = vmatprep.subr.bf16.mxu0 %v8455
  %8569 = vmatpush2.bf16.msra.mxu0 %v8454
  %8570 = vmatprep.mubr.bf16.mxu0 %v8493
  %8571 = vmatmul.mubr.bf16.gmra.mxu0 %v8309
  %v8572 = vpop.f32.mrf.mxu0
  %v8573 = vadd.f32 0.0, %v8572
  %v8574 = vpop.f32.mrf.mxu0
  %v8575 = vadd.f32 0.0, %v8574
  %v8576 = vpop.f32.mrf.mxu0
  %v8577 = vadd.f32 0.0, %v8576
  %v8578 = vpop.f32.mrf.mxu0
  %v8579 = vadd.f32 0.0, %v8578
  %8580 = vdwg.mxu0
  %v8581 = vadd.f32 %v7115, %v8530
  %v8582 = vadd.f32 %v7117, %v8532
  %v8583 = vadd.f32 %v7158, %v8573
  %v8584 = vadd.f32 %v7160, %v8575
  %v8585 = vadd.f32 %v7119, %v8534
  %v8586 = vadd.f32 %v7121, %v8536
  %v8587 = vadd.f32 %v7162, %v8577
  %v8588 = vadd.f32 %v7164, %v8579
  %v8589 = vld [vmem:[%s4] sm:$0xff]
  %v8590 = vld [vmem:[%s4 + $0x8] sm:$0xff]
  %8592 = vset.pattern.permute.xlu0 0
  %8593 = vperm.xlu0 %8592, %v8589
  %v8594 = vpop.permute.xlu0 %8593
  %8597 = vset.pattern.permute.xlu0 0
  %8598 = vperm.xlu0 %8597, %v8590
  %v8599 = vpop.permute.xlu0 %8598
  %v8601 = vadd.f32 %v8581, %v8594
  %v8602 = vadd.f32 %v8582, %v8594
  %v8603 = vadd.f32 %v8583, %v8594
  %v8604 = vadd.f32 %v8584, %v8594
  %v8605 = vadd.f32 %v8585, %v8599
  %v8606 = vadd.f32 %v8586, %v8599
  %v8607 = vadd.f32 %v8587, %v8599
  %v8608 = vadd.f32 %v8588, %v8599
  %v8609 = vmul.f32 %v8601, 0.1
  %v8610 = vmul.f32 %v8602, 0.1
  %v8611 = vmul.f32 %v8605, 0.1
  %v8612 = vmul.f32 %v8606, 0.1
  %v8613 = vld [vmem:[%s0] sm:$0xff]
  %v8614 = vld [vmem:[%s0 + $0x8] sm:$0xff]
  %v8615 = vld [vmem:[%s0 + $0x10] sm:$0xff]
  %v8616 = vld [vmem:[%s0 + $0x18] sm:$0xff]
  %v8617 = vadd.f32 %v8609, %v8613
  %v8618 = vadd.f32 %v8610, %v8614
  %v8619 = vadd.f32 %v8611, %v8615
  %v8620 = vadd.f32 %v8612, %v8616
  %8621 = vst [vmem:[%s7] sm:$0xff] %v8617
  %8622 = vst [vmem:[%s7 + $0x8] sm:$0xff] %v8618
  %8623 = vst [vmem:[%s7 + $0x10] sm:$0xff] %v8619
  %8624 = vst [vmem:[%s7 + $0x18] sm:$0xff] %v8620
  %v8625 = vmul.f32 %v8603, 0.1
  %v8626 = vmul.f32 %v8604, 0.1
  %v8627 = vmul.f32 %v8607, 0.1
  %v8628 = vmul.f32 %v8608, 0.1
  %v8629 = vld [vmem:[%s55] sm:$0xff]
  %v8630 = vld [vmem:[%s55 + $0x8] sm:$0xff]
  %v8631 = vld [vmem:[%s55 + $0x10] sm:$0xff]
  %v8632 = vld [vmem:[%s55 + $0x18] sm:$0xff]
  %v8633 = vadd.f32 %v8625, %v8629
  %v8634 = vadd.f32 %v8626, %v8630
  %v8635 = vadd.f32 %v8627, %v8631
  %v8636 = vadd.f32 %v8628, %v8632
  %s8637 = scalar_lea.vmem %s7, 32
  %8638 = vst [vmem:[%s8637] sm:$0xff] %v8633
  %8639 = vst [vmem:[%s8637 + $0x8] sm:$0xff] %v8634
  %8640 = vst [vmem:[%s8637 + $0x10] sm:$0xff] %v8635
  %8641 = vst [vmem:[%s8637 + $0x18] sm:$0xff] %v8636
  // Predicated region
  $region30: #{residual_block_3d.1} parent=0 // pred_check
    _
  $region31: #{residual_block_3d.1} parent=0 // pred_check_branch
    %8643 = sbr.rel (0) target = $region33
  $region32: #{residual_block_3d.1} parent=0 // pred_region
    _
  $region33: #{residual_block_3d.1} parent=0 // pred_fallthru
    _
  // Predicated region
  $region34: #{residual_block_3d.1} parent=0 // pred_check
    _
  $region35: #{residual_block_3d.1} parent=0 // pred_check_branch
    %8645 = sbr.rel (0) target = $region37
  $region36: #{residual_block_3d.1} parent=0 // pred_region
    _
  $region37: #{residual_block_3d.1} parent=0 // pred_fallthru
    _

</llo_original>
